<compile_context>
chip_gen: v7x
topology: tpu7x:2x2x1
jax: 0.10.0
libtpu: 0.0.40
codegen_flags: <defaults>
</compile_context>

<pallas_src>
import functools
import math

import numpy as np
import jax
import jax.numpy as jnp
from jax.experimental import pallas as pl
from jax.experimental.pallas import tpu as pltpu


# -----------------------------------------------------------------------------
# The single fused forward kernel
# -----------------------------------------------------------------------------
def _fused_forward_kernel(
    x_ref, ea_ref, src_ref, tgt_ref, batch_ref,
    # conv1 + transf1 + bn1 (input feature dim differs from later layers)
    w1qkvs_ref, b1qkvs_ref, w1e_ref, w1ba_ref, w1bs_ref, w1t_ref, b1t_ref, sc1_ref, sh1_ref,
    # stacked per-layer weights [L, ...]
    wqkvs_ref, bqkvs_ref, we_ref, wba_ref, wbs_ref, wt_ref, bt_ref, sc_ref, sh_ref,
    # TopK pooling weights [emb, P] (each column pre-scaled by 1/||w||)
    wpool_ref,
    # dense head (lin1 split into max / mean halves)
    hw1a_ref, hw1b_ref, hb1_ref, hw2_ref, hb2_ref, hw3_ref, hb3_ref,
    out_ref,
    *, heads, head_dim, n_layers, top_k_every_n, ratio, num_graphs):
    f32 = jnp.float32
    bf16 = jnp.bfloat16
    hc = heads * head_dim
    n = x_ref.shape[0]
    e_cnt = ea_ref.shape[0]
    emb = w1t_ref.shape[1]
    inv_sqrt_d = f32(1.0 / math.sqrt(head_dim))
    gdims = (((0,), (0,)), ((), ()))     # contract sublane (node) axis of both operands
    hdims = (((1,), (1,)), ((), ()))     # contract lane (feature) axis of both operands

    # ---- graph structure built in-kernel via iota compares (no per-layer re-upload) ----
    node_e = jax.lax.broadcasted_iota(jnp.int32, (n, e_cnt), 0)
    s_oh = jnp.where(node_e == jnp.broadcast_to(src_ref[...], (n, e_cnt)), f32(1.0), f32(0.0))
    t_oh = jnp.where(node_e == jnp.broadcast_to(tgt_ref[...], (n, e_cnt)), f32(1.0), f32(0.0))
    graph_i = jax.lax.broadcasted_iota(jnp.int32, (n, num_graphs), 1)
    boh = jnp.where(jnp.broadcast_to(batch_ref[...], (n, num_graphs)) == graph_i,
                    f32(1.0), f32(0.0))                                            # [N, G]

    ea = ea_ref[...]                                                               # [E, edim] bf16
    col_hc = jax.lax.broadcasted_iota(jnp.int32, (1, hc), 1)                       # head-col ids

    # ---- fused TransformerConv(beta=True, edge_dim) + Linear + ReLU + eval-BN ----------
    def conv_block(xin, live, wqkvs, bqkvs, we, wba, wbs, wt, bt, scale, shift):
        # edge is live iff both endpoints are live (computed in-kernel from the live mask)
        el = (jax.lax.dot_general(live, s_oh, gdims, preferred_element_type=f32) *
              jax.lax.dot_general(live, t_oh, gdims, preferred_element_type=f32))  # [1, E]
        el_b = jnp.broadcast_to(el, (n, e_cnt))
        S = (s_oh * el_b).astype(bf16)                                             # live src one-hot
        incoming = (t_oh * el_b) > f32(0.0)                                        # edge e -> node n

        # fused Q/K/V/skip projection: one lane-dense [N, 4*HC] matmul
        qkvs = jnp.dot(xin, wqkvs, preferred_element_type=f32) + bqkvs             # [N, 4HC] f32
        q = qkvs[:, 0:hc]
        k = qkvs[:, hc:2 * hc].astype(bf16)
        v = qkvs[:, 2 * hc:3 * hc].astype(bf16)
        skip = qkvs[:, 3 * hc:4 * hc]

        e_proj = jnp.dot(ea, we, preferred_element_type=f32)                       # [E, HC]
        k_e = jax.lax.dot_general(S, k, gdims, preferred_element_type=f32) + e_proj
        v_e = jax.lax.dot_general(S, v, gdims, preferred_element_type=f32) + e_proj
        ke_bf = k_e.astype(bf16)                                                   # cast once

        # per-head attention with head-column masks (no sub-vreg lane slices in the loop)
        agg = jnp.zeros((n, hc), f32)
        for h in range(heads):
            hm = (col_hc >= h * head_dim) & (col_hc < (h + 1) * head_dim)          # [1, HC]
            q_h = jnp.where(jnp.broadcast_to(hm, q.shape), q, f32(0.0)).astype(bf16)
            v_h = jnp.where(jnp.broadcast_to(hm, v_e.shape), v_e, f32(0.0)).astype(bf16)
            logits = jax.lax.dot_general(q_h, ke_bf, hdims,
                                         preferred_element_type=f32) * inv_sqrt_d  # [N, E]
            masked = jnp.where(incoming, logits, f32(-1e30))
            m = jnp.max(masked, axis=-1, keepdims=True)
            p = jnp.where(incoming, jnp.exp(masked - m), f32(0.0))
            denom = jnp.sum(p, axis=-1, keepdims=True)
            attn = p / jnp.where(denom > f32(0.0), denom, f32(1.0))
            agg = agg + jnp.dot(attn.astype(bf16), v_h, preferred_element_type=f32)  # [N, HC]

        # beta gate (lin_beta pre-combined at prep time) and full-width combine
        beta_logit = (jnp.dot(skip, wbs, preferred_element_type=f32) +
                      jnp.dot(agg, wba, preferred_element_type=f32))               # [N, 1]
        beta = 1.0 / (1.0 + jnp.exp(-beta_logit))
        comb = beta * skip + (1.0 - beta) * agg                                    # [N, HC]
        y = jnp.dot(comb.astype(bf16), wt, preferred_element_type=f32) + bt        # transf Linear
        return jnp.maximum(y, f32(0.0)) * scale + shift                            # ReLU + eval-BN

    # ---- TopKPooling as fixed-shape live-masking --------------------------------------
    def topk_select(xin, live, wcol):
        gate = jnp.tanh(jnp.dot(xin, wcol, preferred_element_type=f32))            # [N, 1]
        ii = jax.lax.broadcasted_iota(jnp.int32, (n, n), 0)
        jj = jax.lax.broadcasted_iota(jnp.int32, (n, n), 1)
        eyef = jnp.where(ii == jj, f32(1.0), f32(0.0))
        # row orientation extracted from the SAME gate values -> consistent tie-break
        gate_row = jax.lax.dot_general(gate, eyef, gdims, preferred_element_type=f32)  # [1, N]
        live_row = jax.lax.dot_general(live, eyef, gdims, preferred_element_type=f32)  # [1, N]

        counts = jax.lax.dot_general(boh, live, gdims, preferred_element_type=f32)     # [G, 1]
        k_node = jnp.dot(boh, f32(ratio) * counts, preferred_element_type=f32)         # [N, 1]
        same = jax.lax.dot_general(boh, boh, hdims, preferred_element_type=f32)        # [N, N]

        gi = jnp.broadcast_to(gate, (n, n))
        gj = jnp.broadcast_to(gate_row, (n, n))
        lj = jnp.broadcast_to(live_row, (n, n))
        better = (ii != jj) & ((gj > gi) | ((gj == gi) & (jj < ii)))   # stable tie-break by index
        beats = jnp.where(better, f32(1.0), f32(0.0)) * same * lj
        rank = jnp.sum(beats, axis=1, keepdims=True)                                   # [N, 1]
        selected = jnp.where((live > f32(0.0)) & (rank < k_node), f32(1.0), f32(0.0))
        return xin * (gate * selected), selected

    # ---- concat([global_max_pool, global_mean_pool]) kept as separate max/mean halves --
    def global_pool(xin, live):
        d = xin.shape[1]
        mask = boh * live                                                               # [N, G]
        counts = jax.lax.dot_general(boh, live, gdims, preferred_element_type=f32)      # [G, 1]
        s = jax.lax.dot_general(mask, xin, gdims, preferred_element_type=f32)           # [G, D]
        mean = s * (f32(1.0) / jnp.maximum(counts, f32(1.0)))
        row_g = jax.lax.broadcasted_iota(jnp.int32, (num_graphs, d), 0)
        mx = jnp.zeros((num_graphs, d), f32)
        for g in range(num_graphs):                                                     # G tiny & static
            mg = mask[:, g:g + 1] > f32(0.0)
            mxg = jnp.max(jnp.where(jnp.broadcast_to(mg, xin.shape), xin, f32(-1e30)),
                          axis=0, keepdims=True)                                        # [1, D]
            mx = jnp.where(row_g == g, jnp.broadcast_to(mxg, mx.shape), mx)
        mx = jnp.where(jnp.broadcast_to(counts > f32(0.0), mx.shape), mx, f32(0.0))     # empty-graph guard
        return mx, mean

    # ---- driver: all layers in one kernel body -----------------------------------------
    live = jnp.ones((n, 1), f32)
    h_x = conv_block(x_ref[...], live,
                     w1qkvs_ref[...], b1qkvs_ref[...], w1e_ref[...], w1ba_ref[...],
                     w1bs_ref[...], w1t_ref[...], b1t_ref[...], sc1_ref[...], sh1_ref[...])

    rep_max = jnp.zeros((num_graphs, emb), f32)
    rep_mean = jnp.zeros((num_graphs, emb), f32)
    for i in range(n_layers):
        h_x = conv_block(h_x.astype(bf16), live,
                         wqkvs_ref[i], bqkvs_ref[i], we_ref[i], wba_ref[i], wbs_ref[i],
                         wt_ref[i], bt_ref[i], sc_ref[i], sh_ref[i])
        # NOTE: `i == n_layers` is never true inside range(n_layers); kept to mirror the
        # PyTorch reference exactly.
        if i % top_k_every_n == 0 or i == n_layers:
            p_idx = int(i / top_k_every_n)
            h_x, live = topk_select(h_x, live, wpool_ref[:, p_idx:p_idx + 1])
            mx, mean = global_pool(h_x, live)
            rep_max = rep_max + mx
            rep_mean = rep_mean + mean

    # ---- dense head: lin1(split) -> relu -> (dropout=id) -> lin2 -> relu -> lin3 -------
    hidden = jnp.maximum(
        jnp.dot(rep_max.astype(bf16), hw1a_ref[...], preferred_element_type=f32) +
        jnp.dot(rep_mean.astype(bf16), hw1b_ref[...], preferred_element_type=f32) +
        hb1_ref[...], f32(0.0))
    hidden = jnp.maximum(
        jnp.dot(hidden.astype(bf16), hw2_ref[...], preferred_element_type=f32) + hb2_ref[...],
        f32(0.0))
    out = jnp.dot(hidden.astype(bf16), hw3_ref[...], preferred_element_type=f32) + hb3_ref[...]
    out_ref[...] = out.astype(out_ref.dtype)


# -----------------------------------------------------------------------------
# Wrapper: ONE pallas_call for the whole forward
# -----------------------------------------------------------------------------
def _full_spec(shape):
    nd = len(shape)
    return pl.BlockSpec(shape, lambda i, _nd=nd: (0,) * _nd)


def gnn_trans_forward(prep, x, edge_attr, edge_index, batch_index, *, num_graphs, cfg):
    heads = cfg["model_attention_heads"]
    emb = cfg["model_embedding_size"]
    n_layers = cfg["model_layers"]
    top_k_every_n = cfg["model_top_k_every_n"]
    ratio = float(cfg["model_top_k_ratio"])

    n = x.shape[0]
    e_cnt = edge_index.shape[1]
    e_pad = max(128, ((e_cnt + 127) // 128) * 128)        # lane-dense edge axis
    pad = e_pad - e_cnt
    src = jnp.concatenate([edge_index[0].astype(jnp.int32),
                           jnp.full((pad,), -1, jnp.int32)]).reshape(1, e_pad)
    tgt = jnp.concatenate([edge_index[1].astype(jnp.int32),
                           jnp.full((pad,), -1, jnp.int32)]).reshape(1, e_pad)
    ea = jnp.pad(edge_attr, ((0, pad), (0, 0))).astype(jnp.bfloat16)
    batch_col = batch_index.astype(jnp.int32).reshape(n, 1)

    b1 = prep["block1"]
    ly = prep["layers"]
    hd = prep["head"]
    args = (x.astype(jnp.bfloat16), ea, src, tgt, batch_col,
            b1["wqkvs_t"], b1["b_qkvs"], b1["we_t"], b1["wba"], b1["wbs"],
            b1["wt"], b1["bt"], b1["scale"], b1["shift"],
            ly["wqkvs_t"], ly["b_qkvs"], ly["we_t"], ly["wba"], ly["wbs"],
            ly["wt"], ly["bt"], ly["scale"], ly["shift"],
            prep["wpool"],
            hd["w1a"], hd["w1b"], hd["b1"], hd["w2"], hd["b2"], hd["w3"], hd["b3"])

    kernel = functools.partial(_fused_forward_kernel, heads=heads, head_dim=emb,
                               n_layers=n_layers, top_k_every_n=top_k_every_n,
                               ratio=ratio, num_graphs=num_graphs)
    # TODO(synk): for larger graphs, add a leading "parallel" grid axis over node tiles
    # so v7x's second TensorCore is used, with generation-aware tile sizing.
    out = pl.pallas_call(
        kernel,
        grid=(1,),
        in_specs=[_full_spec(a.shape) for a in args],
        out_specs=_full_spec((num_graphs, 1)),
        out_shape=jax.ShapeDtypeStruct((num_graphs, 1), jnp.float32),
        compiler_params=pltpu.CompilerParams(dimension_semantics=("arbitrary",)),
    )(*args)
    return jnp.squeeze(out)


# -----------------------------------------------------------------------------
# Parameters: PyTorch-convention init, then one-time prep (transpose/concat/BN-fold/bf16)
# -----------------------------------------------------------------------------
def init_params(key, feature_size, cfg):
    emb = cfg["model_embedding_size"]
    heads = cfg["model_attention_heads"]
    n_layers = cfg["model_layers"]
    dense = cfg["model_dense_neurons"]
    edim = cfg["model_edge_dim"]
    keys = iter(jax.random.split(key, 64))

    def lin(dout, din, bias=True):
        k1, k2 = jax.random.split(next(keys))
        s = 1.0 / math.sqrt(din)
        w = jax.random.uniform(k1, (dout, din), jnp.float32, -s, s)
        b = jax.random.uniform(k2, (dout,), jnp.float32, -s, s) if bias else None
        return w, b

    def conv(din):
        Wq, bq = lin(heads * emb, din)
        Wk, bk = lin(heads * emb, din)
        Wv, bv = lin(heads * emb, din)
        We, _ = lin(heads * emb, edim, bias=False)
        Wskip, bskip = lin(heads * emb, din)
        Wbeta, _ = lin(1, 3 * heads * emb, bias=False)
        return dict(Wq=Wq, bq=bq, Wk=Wk, bk=bk, Wv=Wv, bv=bv, We=We,
                    Wskip=Wskip, bskip=bskip, Wbeta=Wbeta)

    def bn():
        return dict(gamma=jnp.ones((emb,), jnp.float32), beta=jnp.zeros((emb,), jnp.float32),
                    mean=jnp.zeros((emb,), jnp.float32), var=jnp.ones((emb,), jnp.float32))

    params = {"conv1": conv(feature_size), "bn1": bn()}
    W, b = lin(emb, heads * emb)
    params["transf1"] = dict(W=W, b=b)
    params["conv_layers"], params["transf_layers"] = [], []
    params["bn_layers"], params["pool_layers"] = [], []
    for i in range(n_layers):
        params["conv_layers"].append(conv(emb))
        W, b = lin(emb, heads * emb)
        params["transf_layers"].append(dict(W=W, b=b))
        params["bn_layers"].append(bn())
        if i % cfg["model_top_k_every_n"] == 0:
            Wp, _ = lin(1, emb, bias=False)            # TopKPooling weight (1, in_channels)
            params["pool_layers"].append(Wp)
    W1, b1 = lin(dense, emb * 2)
    W2, b2 = lin(dense // 2, dense)
    W3, b3 = lin(1, dense // 2)
    params["lin1"] = dict(W=W1, b=b1)
    params["lin2"] = dict(W=W2, b=b2)
    params["lin3"] = dict(W=W3, b=b3)
    return params


def _prep_block(conv, transf, bn, eps=1e-5):
    hc = conv["Wq"].shape[0]
    wqkvs = jnp.concatenate([conv["Wq"], conv["Wk"], conv["Wv"], conv["Wskip"]], axis=0)
    b_qkvs = jnp.concatenate([conv["bq"], conv["bk"], conv["bv"], conv["bskip"]], axis=0)
    wbeta = conv["Wbeta"][0]                                       # [3*HC]
    scale = bn["gamma"] / jnp.sqrt(bn["var"] + eps)
    shift = bn["beta"] - bn["mean"] * scale
    return dict(
        wqkvs_t=jnp.transpose(wqkvs).astype(jnp.bfloat16),         # [din, 4*HC]
        b_qkvs=b_qkvs.reshape(1, -1).astype(jnp.float32),
        we_t=jnp.transpose(conv["We"]).astype(jnp.bfloat16),       # [edim, HC]
        # beta logit = agg@(w1+w3)^T + skip@(w2-w3)^T  (pre-combined at prep time)
        wba=(wbeta[0:hc] + wbeta[2 * hc:3 * hc]).reshape(hc, 1).astype(jnp.float32),
        wbs=(wbeta[hc:2 * hc] - wbeta[2 * hc:3 * hc]).reshape(hc, 1).astype(jnp.float32),
        wt=jnp.transpose(transf["W"]).astype(jnp.bfloat16),        # [HC, emb]
        bt=transf["b"].reshape(1, -1).astype(jnp.float32),
        scale=scale.reshape(1, -1).astype(jnp.float32),
        shift=shift.reshape(1, -1).astype(jnp.float32),
    )


def prepare_params(params, cfg):
    n_layers = cfg["model_layers"]
    emb = cfg["model_embedding_size"]
    block1 = _prep_block(params["conv1"], params["transf1"], params["bn1"])
    blocks = [_prep_block(params["conv_layers"][i], params["transf_layers"][i],
                          params["bn_layers"][i]) for i in range(n_layers)]
    layers = {k: jnp.stack([b[k] for b in blocks], axis=0) for k in blocks[0]}   # [L, ...]
    pool_cols = []
    for w in params["pool_layers"]:
        wv = w[0].astype(jnp.float32)
        pool_cols.append(wv / jnp.sqrt(jnp.sum(wv * wv)))          # fold 1/||w|| into weight
    wpool = jnp.stack(pool_cols, axis=1)                           # [emb, P]
    w1_t = jnp.transpose(params["lin1"]["W"])                      # [2*emb, dense]
    head = dict(
        w1a=w1_t[:emb, :].astype(jnp.bfloat16),                    # rows for the gmp half
        w1b=w1_t[emb:, :].astype(jnp.bfloat16),                    # rows for the gap half
        b1=params["lin1"]["b"].reshape(1, -1).astype(jnp.float32),
        w2=jnp.transpose(params["lin2"]["W"]).astype(jnp.bfloat16),
        b2=params["lin2"]["b"].reshape(1, -1).astype(jnp.float32),
        w3=jnp.transpose(params["lin3"]["W"]).astype(jnp.bfloat16),
        b3=params["lin3"]["b"].reshape(1, -1).astype(jnp.float32),
    )
    return dict(block1=block1, layers=layers, wpool=wpool, head=head)


# -----------------------------------------------------------------------------
# Main
# -----------------------------------------------------------------------------
if __name__ == "__main__":
    cfg = {
        "model_embedding_size": 16,
        "model_attention_heads": 2,
        "model_layers": 2,
        "model_dropout_rate": 0.0,
        "model_top_k_ratio": 0.5,
        "model_top_k_every_n": 1,
        "model_dense_neurons": 32,
        "model_edge_dim": 4,
    }
    feature_size = 8
    num_graphs = 2
    nodes_per_graph = 8
    num_nodes = num_graphs * nodes_per_graph

    # batch assignment and a ring-ish edge structure within each graph
    batch_index = jnp.asarray(np.repeat(np.arange(num_graphs), nodes_per_graph), jnp.int32)
    src_l, tgt_l = [], []
    for g in range(num_graphs):
        base = g * nodes_per_graph
        for i in range(nodes_per_graph):
            for d in (1, 2, 3):
                src_l.append(base + i)
                tgt_l.append(base + (i + d) % nodes_per_graph)
    edge_index = jnp.asarray(np.stack([src_l, tgt_l]), jnp.int32)     # [2, 48]
    num_edges = edge_index.shape[1]

    key = jax.random.PRNGKey(0)
    kx, ke, kp = jax.random.split(key, 3)
    x = jax.random.normal(kx, (num_nodes, feature_size), jnp.float32)
    edge_attr = jax.random.normal(ke, (num_edges, cfg["model_edge_dim"]), jnp.float32)
    prep = prepare_params(init_params(kp, feature_size, cfg), cfg)

    fwd = jax.jit(functools.partial(gnn_trans_forward, num_graphs=num_graphs, cfg=cfg))
    out = fwd(prep, x, edge_attr, edge_index, batch_index)
    jax.block_until_ready(out)
    assert out.shape == (num_graphs,)
    assert np.all(np.isfinite(np.asarray(out)))
    print("KERNEL_OK")
</pallas_src>

<mosaic_0001>
module attributes {stable_mosaic.version = 11 : i64} {
  func.func @_fused_forward_kernel(%arg0: i32, %arg1: memref<16x8xbf16, #tpu.memory_space<vmem>>, %arg2: memref<128x4xbf16, #tpu.memory_space<vmem>>, %arg3: memref<1x128xi32, #tpu.memory_space<vmem>>, %arg4: memref<1x128xi32, #tpu.memory_space<vmem>>, %arg5: memref<16x1xi32, #tpu.memory_space<vmem>>, %arg6: memref<8x128xbf16, #tpu.memory_space<vmem>>, %arg7: memref<1x128xf32, #tpu.memory_space<vmem>>, %arg8: memref<4x32xbf16, #tpu.memory_space<vmem>>, %arg9: memref<32x1xf32, #tpu.memory_space<vmem>>, %arg10: memref<32x1xf32, #tpu.memory_space<vmem>>, %arg11: memref<32x16xbf16, #tpu.memory_space<vmem>>, %arg12: memref<1x16xf32, #tpu.memory_space<vmem>>, %arg13: memref<1x16xf32, #tpu.memory_space<vmem>>, %arg14: memref<1x16xf32, #tpu.memory_space<vmem>>, %arg15: memref<2x16x128xbf16, #tpu.memory_space<vmem>>, %arg16: memref<2x1x128xf32, #tpu.memory_space<vmem>>, %arg17: memref<2x4x32xbf16, #tpu.memory_space<vmem>>, %arg18: memref<2x32x1xf32, #tpu.memory_space<vmem>>, %arg19: memref<2x32x1xf32, #tpu.memory_space<vmem>>, %arg20: memref<2x32x16xbf16, #tpu.memory_space<vmem>>, %arg21: memref<2x1x16xf32, #tpu.memory_space<vmem>>, %arg22: memref<2x1x16xf32, #tpu.memory_space<vmem>>, %arg23: memref<2x1x16xf32, #tpu.memory_space<vmem>>, %arg24: memref<16x2xf32, #tpu.memory_space<vmem>>, %arg25: memref<16x32xbf16, #tpu.memory_space<vmem>>, %arg26: memref<16x32xbf16, #tpu.memory_space<vmem>>, %arg27: memref<1x32xf32, #tpu.memory_space<vmem>>, %arg28: memref<32x16xbf16, #tpu.memory_space<vmem>>, %arg29: memref<1x16xf32, #tpu.memory_space<vmem>>, %arg30: memref<16x1xbf16, #tpu.memory_space<vmem>>, %arg31: memref<1x1xf32, #tpu.memory_space<vmem>>, %arg32: memref<2x1xf32, #tpu.memory_space<vmem>>) attributes {dimension_semantics = [#tpu.dimension_semantics<arbitrary>], iteration_bounds = array<i64: 1>, scalar_prefetch = 0 : i64, scratch_operands = 0 : i64, tpu.core_type = #tpu.core_type<tc>, window_params = [{pipeline_mode = #tpu.pipeline_mode<synchronous>, transform_indices = @transform_0, window_bounds = array<i64: 16, 8>}, {pipeline_mode = #tpu.pipeline_mode<synchronous>, transform_indices = @transform_1, window_bounds = array<i64: 128, 4>}, {pipeline_mode = #tpu.pipeline_mode<synchronous>, transform_indices = @transform_2, window_bounds = array<i64: 1, 128>}, {pipeline_mode = #tpu.pipeline_mode<synchronous>, transform_indices = @transform_3, window_bounds = array<i64: 1, 128>}, {pipeline_mode = #tpu.pipeline_mode<synchronous>, transform_indices = @transform_4, window_bounds = array<i64: 16, 1>}, {pipeline_mode = #tpu.pipeline_mode<synchronous>, transform_indices = @transform_5, window_bounds = array<i64: 8, 128>}, {pipeline_mode = #tpu.pipeline_mode<synchronous>, transform_indices = @transform_6, window_bounds = array<i64: 1, 128>}, {pipeline_mode = #tpu.pipeline_mode<synchronous>, transform_indices = @transform_7, window_bounds = array<i64: 4, 32>}, {pipeline_mode = #tpu.pipeline_mode<synchronous>, transform_indices = @transform_8, window_bounds = array<i64: 32, 1>}, {pipeline_mode = #tpu.pipeline_mode<synchronous>, transform_indices = @transform_9, window_bounds = array<i64: 32, 1>}, {pipeline_mode = #tpu.pipeline_mode<synchronous>, transform_indices = @transform_10, window_bounds = array<i64: 32, 16>}, {pipeline_mode = #tpu.pipeline_mode<synchronous>, transform_indices = @transform_11, window_bounds = array<i64: 1, 16>}, {pipeline_mode = #tpu.pipeline_mode<synchronous>, transform_indices = @transform_12, window_bounds = array<i64: 1, 16>}, {pipeline_mode = #tpu.pipeline_mode<synchronous>, transform_indices = @transform_13, window_bounds = array<i64: 1, 16>}, {pipeline_mode = #tpu.pipeline_mode<synchronous>, transform_indices = @transform_14, window_bounds = array<i64: 2, 16, 128>}, {pipeline_mode = #tpu.pipeline_mode<synchronous>, transform_indices = @transform_15, window_bounds = array<i64: 2, 1, 128>}, {pipeline_mode = #tpu.pipeline_mode<synchronous>, transform_indices = @transform_16, window_bounds = array<i64: 2, 4, 32>}, {pipeline_mode = #tpu.pipeline_mode<synchronous>, transform_indices = @transform_17, window_bounds = array<i64: 2, 32, 1>}, {pipeline_mode = #tpu.pipeline_mode<synchronous>, transform_indices = @transform_18, window_bounds = array<i64: 2, 32, 1>}, {pipeline_mode = #tpu.pipeline_mode<synchronous>, transform_indices = @transform_19, window_bounds = array<i64: 2, 32, 16>}, {pipeline_mode = #tpu.pipeline_mode<synchronous>, transform_indices = @transform_20, window_bounds = array<i64: 2, 1, 16>}, {pipeline_mode = #tpu.pipeline_mode<synchronous>, transform_indices = @transform_21, window_bounds = array<i64: 2, 1, 16>}, {pipeline_mode = #tpu.pipeline_mode<synchronous>, transform_indices = @transform_22, window_bounds = array<i64: 2, 1, 16>}, {pipeline_mode = #tpu.pipeline_mode<synchronous>, transform_indices = @transform_23, window_bounds = array<i64: 16, 2>}, {pipeline_mode = #tpu.pipeline_mode<synchronous>, transform_indices = @transform_24, window_bounds = array<i64: 16, 32>}, {pipeline_mode = #tpu.pipeline_mode<synchronous>, transform_indices = @transform_25, window_bounds = array<i64: 16, 32>}, {pipeline_mode = #tpu.pipeline_mode<synchronous>, transform_indices = @transform_26, window_bounds = array<i64: 1, 32>}, {pipeline_mode = #tpu.pipeline_mode<synchronous>, transform_indices = @transform_27, window_bounds = array<i64: 32, 16>}, {pipeline_mode = #tpu.pipeline_mode<synchronous>, transform_indices = @transform_28, window_bounds = array<i64: 1, 16>}, {pipeline_mode = #tpu.pipeline_mode<synchronous>, transform_indices = @transform_29, window_bounds = array<i64: 16, 1>}, {pipeline_mode = #tpu.pipeline_mode<synchronous>, transform_indices = @transform_30, window_bounds = array<i64: 1, 1>}, {pipeline_mode = #tpu.pipeline_mode<synchronous>, transform_indices = @transform_31, window_bounds = array<i64: 2, 1>}]} {
    %0 = tpu.iota {dimensions = array<i32: 0>} : vector<16x128xi32>
    %c0 = arith.constant 0 : index
    %c0_0 = arith.constant 0 : index
    %1 = vector.load %arg3[%c0, %c0_0] : memref<1x128xi32, #tpu.memory_space<vmem>>, vector<1x128xi32>
    %2 = vector.shape_cast %1 : vector<1x128xi32> to vector<1x128xi32>
    %3 = vector.broadcast %2 : vector<1x128xi32> to vector<16x128xi32>
    %4 = arith.cmpi eq, %0, %3 : vector<16x128xi32>
    %cst = arith.constant 1.000000e+00 : f32
    %cst_1 = arith.constant 0.000000e+00 : f32
    %5 = vector.broadcast %cst : f32 to vector<16x128xf32>
    %6 = vector.broadcast %cst_1 : f32 to vector<16x128xf32>
    %7 = arith.select %4, %5, %6 : vector<16x128xi1>, vector<16x128xf32>
    %c0_2 = arith.constant 0 : index
    %c0_3 = arith.constant 0 : index
    %8 = vector.load %arg4[%c0_2, %c0_3] : memref<1x128xi32, #tpu.memory_space<vmem>>, vector<1x128xi32>
    %9 = vector.shape_cast %8 : vector<1x128xi32> to vector<1x128xi32>
    %10 = vector.broadcast %9 : vector<1x128xi32> to vector<16x128xi32>
    %11 = arith.cmpi eq, %0, %10 : vector<16x128xi32>
    %cst_4 = arith.constant 1.000000e+00 : f32
    %cst_5 = arith.constant 0.000000e+00 : f32
    %12 = vector.broadcast %cst_4 : f32 to vector<16x128xf32>
    %13 = vector.broadcast %cst_5 : f32 to vector<16x128xf32>
    %14 = arith.select %11, %12, %13 : vector<16x128xi1>, vector<16x128xf32>
    %15 = tpu.iota {dimensions = array<i32: 1>} : vector<16x2xi32>
    %c0_6 = arith.constant 0 : index
    %c0_7 = arith.constant 0 : index
    %16 = vector.load %arg5[%c0_6, %c0_7] : memref<16x1xi32, #tpu.memory_space<vmem>>, vector<16x1xi32>
    %17 = vector.shape_cast %16 : vector<16x1xi32> to vector<16x1xi32>
    %18 = vector.broadcast %17 : vector<16x1xi32> to vector<16x2xi32>
    %19 = arith.cmpi eq, %18, %15 : vector<16x2xi32>
    %cst_8 = arith.constant 1.000000e+00 : f32
    %cst_9 = arith.constant 0.000000e+00 : f32
    %20 = vector.broadcast %cst_8 : f32 to vector<16x2xf32>
    %21 = vector.broadcast %cst_9 : f32 to vector<16x2xf32>
    %22 = arith.select %19, %20, %21 : vector<16x2xi1>, vector<16x2xf32>
    %c0_10 = arith.constant 0 : index
    %c0_11 = arith.constant 0 : index
    %23 = vector.load %arg2[%c0_10, %c0_11] : memref<128x4xbf16, #tpu.memory_space<vmem>>, vector<128x4xbf16>
    %24 = tpu.iota {dimensions = array<i32: 1>} : vector<1x32xi32>
    %cst_12 = arith.constant 1.000000e+00 : f32
    %25 = vector.broadcast %cst_12 : f32 to vector<16x1xf32>
    %c0_13 = arith.constant 0 : index
    %c0_14 = arith.constant 0 : index
    %26 = vector.load %arg1[%c0_13, %c0_14] : memref<16x8xbf16, #tpu.memory_space<vmem>>, vector<16x8xbf16>
    %c0_15 = arith.constant 0 : index
    %c0_16 = arith.constant 0 : index
    %27 = vector.load %arg6[%c0_15, %c0_16] : memref<8x128xbf16, #tpu.memory_space<vmem>>, vector<8x128xbf16>
    %c0_17 = arith.constant 0 : index
    %c0_18 = arith.constant 0 : index
    %28 = vector.load %arg7[%c0_17, %c0_18] : memref<1x128xf32, #tpu.memory_space<vmem>>, vector<1x128xf32>
    %c0_19 = arith.constant 0 : index
    %c0_20 = arith.constant 0 : index
    %29 = vector.load %arg8[%c0_19, %c0_20] : memref<4x32xbf16, #tpu.memory_space<vmem>>, vector<4x32xbf16>
    %c0_21 = arith.constant 0 : index
    %c0_22 = arith.constant 0 : index
    %30 = vector.load %arg9[%c0_21, %c0_22] : memref<32x1xf32, #tpu.memory_space<vmem>>, vector<32x1xf32>
    %c0_23 = arith.constant 0 : index
    %c0_24 = arith.constant 0 : index
    %31 = vector.load %arg10[%c0_23, %c0_24] : memref<32x1xf32, #tpu.memory_space<vmem>>, vector<32x1xf32>
    %c0_25 = arith.constant 0 : index
    %c0_26 = arith.constant 0 : index
    %32 = vector.load %arg11[%c0_25, %c0_26] : memref<32x16xbf16, #tpu.memory_space<vmem>>, vector<32x16xbf16>
    %c0_27 = arith.constant 0 : index
    %c0_28 = arith.constant 0 : index
    %33 = vector.load %arg12[%c0_27, %c0_28] : memref<1x16xf32, #tpu.memory_space<vmem>>, vector<1x16xf32>
    %c0_29 = arith.constant 0 : index
    %c0_30 = arith.constant 0 : index
    %34 = vector.load %arg13[%c0_29, %c0_30] : memref<1x16xf32, #tpu.memory_space<vmem>>, vector<1x16xf32>
    %c0_31 = arith.constant 0 : index
    %c0_32 = arith.constant 0 : index
    %35 = vector.load %arg14[%c0_31, %c0_32] : memref<1x16xf32, #tpu.memory_space<vmem>>, vector<1x16xf32>
    %cst_33 = arith.constant dense<0.000000e+00> : vector<1x128xf32>
    %36 = tpu.matmul %25, %7, %cst_33 {dimension_numbers = #tpu.dot_dimension_numbers<[0], [0], [1], [1], [0, 1, 1, 1], [], []>} : vector<16x1xf32>, vector<16x128xf32>, vector<1x128xf32> -> vector<1x128xf32>
    %cst_34 = arith.constant dense<0.000000e+00> : vector<1x128xf32>
    %37 = tpu.matmul %25, %14, %cst_34 {dimension_numbers = #tpu.dot_dimension_numbers<[0], [0], [1], [1], [0, 1, 1, 1], [], []>} : vector<16x1xf32>, vector<16x128xf32>, vector<1x128xf32> -> vector<1x128xf32>
    %38 = arith.mulf %36, %37 : vector<1x128xf32>
    %39 = vector.shape_cast %38 : vector<1x128xf32> to vector<1x128xf32>
    %40 = vector.broadcast %39 : vector<1x128xf32> to vector<16x128xf32>
    %41 = arith.mulf %7, %40 : vector<16x128xf32>
    %42 = arith.truncf %41 : vector<16x128xf32> to vector<16x128xbf16>
    %43 = arith.mulf %14, %40 : vector<16x128xf32>
    %cst_35 = arith.constant 0.000000e+00 : f32
    %44 = vector.broadcast %cst_35 : f32 to vector<16x128xf32>
    %45 = arith.cmpf ogt, %43, %44 : vector<16x128xf32>
    %cst_36 = arith.constant dense<0.000000e+00> : vector<16x128xf32>
    %46 = tpu.matmul %26, %27, %cst_36 {dimension_numbers = #tpu.dot_dimension_numbers<[1], [0], [0], [1], [0, 0, 1, 1], [], []>} : vector<16x8xbf16>, vector<8x128xbf16>, vector<16x128xf32> -> vector<16x128xf32>
    %47 = vector.broadcast %28 : vector<1x128xf32> to vector<16x128xf32>
    %48 = arith.addf %46, %47 : vector<16x128xf32>
    %49 = vector.extract_strided_slice %48 {offsets = [0, 0], sizes = [16, 32], strides = [1, 1]} : vector<16x128xf32> to vector<16x32xf32>
    %50 = vector.extract_strided_slice %48 {offsets = [0, 32], sizes = [16, 32], strides = [1, 1]} : vector<16x128xf32> to vector<16x32xf32>
    %51 = arith.truncf %50 : vector<16x32xf32> to vector<16x32xbf16>
    %52 = vector.extract_strided_slice %48 {offsets = [0, 64], sizes = [16, 32], strides = [1, 1]} : vector<16x128xf32> to vector<16x32xf32>
    %53 = arith.truncf %52 : vector<16x32xf32> to vector<16x32xbf16>
    %54 = vector.extract_strided_slice %48 {offsets = [0, 96], sizes = [16, 32], strides = [1, 1]} : vector<16x128xf32> to vector<16x32xf32>
    %cst_37 = arith.constant dense<0.000000e+00> : vector<128x32xf32>
    %55 = tpu.matmul %23, %29, %cst_37 {dimension_numbers = #tpu.dot_dimension_numbers<[1], [0], [0], [1], [0, 0, 1, 1], [], []>} : vector<128x4xbf16>, vector<4x32xbf16>, vector<128x32xf32> -> vector<128x32xf32>
    %cst_38 = arith.constant dense<0.000000e+00> : vector<128x32xf32>
    %56 = tpu.matmul %42, %51, %cst_38 {dimension_numbers = #tpu.dot_dimension_numbers<[0], [0], [1], [1], [0, 1, 1, 1], [], []>} : vector<16x128xbf16>, vector<16x32xbf16>, vector<128x32xf32> -> vector<128x32xf32>
    %57 = arith.addf %56, %55 : vector<128x32xf32>
    %cst_39 = arith.constant dense<0.000000e+00> : vector<128x32xf32>
    %58 = tpu.matmul %42, %53, %cst_39 {dimension_numbers = #tpu.dot_dimension_numbers<[0], [0], [1], [1], [0, 1, 1, 1], [], []>} : vector<16x128xbf16>, vector<16x32xbf16>, vector<128x32xf32> -> vector<128x32xf32>
    %59 = arith.addf %58, %55 : vector<128x32xf32>
    %60 = arith.truncf %57 : vector<128x32xf32> to vector<128x32xbf16>
    %cst_40 = arith.constant 0.000000e+00 : f32
    %61 = vector.broadcast %cst_40 : f32 to vector<16x32xf32>
    %c0_i32 = arith.constant 0 : i32
    %62 = vector.broadcast %c0_i32 : i32 to vector<1x32xi32>
    %63 = arith.cmpi sge, %24, %62 : vector<1x32xi32>
    %c16_i32 = arith.constant 16 : i32
    %64 = vector.broadcast %c16_i32 : i32 to vector<1x32xi32>
    %65 = arith.cmpi slt, %24, %64 : vector<1x32xi32>
    %66 = arith.andi %63, %65 : vector<1x32xi1>
    %67 = vector.shape_cast %66 : vector<1x32xi1> to vector<1x32xi1>
    %68 = vector.broadcast %67 : vector<1x32xi1> to vector<16x32xi1>
    %cst_41 = arith.constant 0.000000e+00 : f32
    %69 = vector.broadcast %cst_41 : f32 to vector<16x32xf32>
    %70 = arith.select %68, %49, %69 : vector<16x32xi1>, vector<16x32xf32>
    %71 = arith.truncf %70 : vector<16x32xf32> to vector<16x32xbf16>
    %72 = vector.shape_cast %66 : vector<1x32xi1> to vector<1x32xi1>
    %73 = vector.broadcast %72 : vector<1x32xi1> to vector<128x32xi1>
    %cst_42 = arith.constant 0.000000e+00 : f32
    %74 = vector.broadcast %cst_42 : f32 to vector<128x32xf32>
    %75 = arith.select %73, %59, %74 : vector<128x32xi1>, vector<128x32xf32>
    %76 = arith.truncf %75 : vector<128x32xf32> to vector<128x32xbf16>
    %cst_43 = arith.constant dense<0.000000e+00> : vector<16x128xf32>
    %77 = tpu.matmul %71, %60, %cst_43 {dimension_numbers = #tpu.dot_dimension_numbers<[1], [1], [0], [0], [0, 0, 1, 0], [], []>} : vector<16x32xbf16>, vector<128x32xbf16>, vector<16x128xf32> -> vector<16x128xf32>
    %cst_44 = arith.constant 2.500000e-01 : f32
    %78 = vector.broadcast %cst_44 : f32 to vector<16x128xf32>
    %79 = arith.mulf %77, %78 : vector<16x128xf32>
    %cst_45 = arith.constant -1.000000e+30 : f32
    %80 = vector.broadcast %cst_45 : f32 to vector<16x128xf32>
    %81 = arith.select %45, %79, %80 : vector<16x128xi1>, vector<16x128xf32>
    %cst_46 = arith.constant dense<0xFF800000> : vector<16xf32>
    %82 = vector.multi_reduction <maximumf>, %81, %cst_46 [1] : vector<16x128xf32> to vector<16xf32>
    %83 = vector.shape_cast %82 : vector<16xf32> to vector<16x1xf32>
    %84 = vector.broadcast %83 : vector<16x1xf32> to vector<16x128xf32>
    %85 = arith.subf %81, %84 : vector<16x128xf32>
    %86 = math.exp %85 : vector<16x128xf32>
    %cst_47 = arith.constant 0.000000e+00 : f32
    %87 = vector.broadcast %cst_47 : f32 to vector<16x128xf32>
    %88 = arith.select %45, %86, %87 : vector<16x128xi1>, vector<16x128xf32>
    %cst_48 = arith.constant dense<0.000000e+00> : vector<16xf32>
    %89 = vector.multi_reduction <add>, %88, %cst_48 [1] : vector<16x128xf32> to vector<16xf32>
    %90 = vector.shape_cast %89 : vector<16xf32> to vector<16x1xf32>
    %cst_49 = arith.constant 0.000000e+00 : f32
    %91 = vector.broadcast %cst_49 : f32 to vector<16x1xf32>
    %92 = arith.cmpf ogt, %90, %91 : vector<16x1xf32>
    %cst_50 = arith.constant 1.000000e+00 : f32
    %93 = vector.broadcast %cst_50 : f32 to vector<16x1xf32>
    %94 = arith.select %92, %90, %93 : vector<16x1xi1>, vector<16x1xf32>
    %95 = vector.broadcast %94 : vector<16x1xf32> to vector<16x128xf32>
    %96 = arith.divf %88, %95 : vector<16x128xf32>
    %97 = arith.truncf %96 : vector<16x128xf32> to vector<16x128xbf16>
    %cst_51 = arith.constant dense<0.000000e+00> : vector<16x32xf32>
    %98 = tpu.matmul %97, %76, %cst_51 {dimension_numbers = #tpu.dot_dimension_numbers<[1], [0], [0], [1], [0, 0, 1, 1], [], []>} : vector<16x128xbf16>, vector<128x32xbf16>, vector<16x32xf32> -> vector<16x32xf32>
    %99 = arith.addf %61, %98 : vector<16x32xf32>
    %c16_i32_52 = arith.constant 16 : i32
    %100 = vector.broadcast %c16_i32_52 : i32 to vector<1x32xi32>
    %101 = arith.cmpi sge, %24, %100 : vector<1x32xi32>
    %c32_i32 = arith.constant 32 : i32
    %102 = vector.broadcast %c32_i32 : i32 to vector<1x32xi32>
    %103 = arith.cmpi slt, %24, %102 : vector<1x32xi32>
    %104 = arith.andi %101, %103 : vector<1x32xi1>
    %105 = vector.shape_cast %104 : vector<1x32xi1> to vector<1x32xi1>
    %106 = vector.broadcast %105 : vector<1x32xi1> to vector<16x32xi1>
    %cst_53 = arith.constant 0.000000e+00 : f32
    %107 = vector.broadcast %cst_53 : f32 to vector<16x32xf32>
    %108 = arith.select %106, %49, %107 : vector<16x32xi1>, vector<16x32xf32>
    %109 = arith.truncf %108 : vector<16x32xf32> to vector<16x32xbf16>
    %110 = vector.shape_cast %104 : vector<1x32xi1> to vector<1x32xi1>
    %111 = vector.broadcast %110 : vector<1x32xi1> to vector<128x32xi1>
    %cst_54 = arith.constant 0.000000e+00 : f32
    %112 = vector.broadcast %cst_54 : f32 to vector<128x32xf32>
    %113 = arith.select %111, %59, %112 : vector<128x32xi1>, vector<128x32xf32>
    %114 = arith.truncf %113 : vector<128x32xf32> to vector<128x32xbf16>
    %cst_55 = arith.constant dense<0.000000e+00> : vector<16x128xf32>
    %115 = tpu.matmul %109, %60, %cst_55 {dimension_numbers = #tpu.dot_dimension_numbers<[1], [1], [0], [0], [0, 0, 1, 0], [], []>} : vector<16x32xbf16>, vector<128x32xbf16>, vector<16x128xf32> -> vector<16x128xf32>
    %cst_56 = arith.constant 2.500000e-01 : f32
    %116 = vector.broadcast %cst_56 : f32 to vector<16x128xf32>
    %117 = arith.mulf %115, %116 : vector<16x128xf32>
    %cst_57 = arith.constant -1.000000e+30 : f32
    %118 = vector.broadcast %cst_57 : f32 to vector<16x128xf32>
    %119 = arith.select %45, %117, %118 : vector<16x128xi1>, vector<16x128xf32>
    %cst_58 = arith.constant dense<0xFF800000> : vector<16xf32>
    %120 = vector.multi_reduction <maximumf>, %119, %cst_58 [1] : vector<16x128xf32> to vector<16xf32>
    %121 = vector.shape_cast %120 : vector<16xf32> to vector<16x1xf32>
    %122 = vector.broadcast %121 : vector<16x1xf32> to vector<16x128xf32>
    %123 = arith.subf %119, %122 : vector<16x128xf32>
    %124 = math.exp %123 : vector<16x128xf32>
    %cst_59 = arith.constant 0.000000e+00 : f32
    %125 = vector.broadcast %cst_59 : f32 to vector<16x128xf32>
    %126 = arith.select %45, %124, %125 : vector<16x128xi1>, vector<16x128xf32>
    %cst_60 = arith.constant dense<0.000000e+00> : vector<16xf32>
    %127 = vector.multi_reduction <add>, %126, %cst_60 [1] : vector<16x128xf32> to vector<16xf32>
    %128 = vector.shape_cast %127 : vector<16xf32> to vector<16x1xf32>
    %cst_61 = arith.constant 0.000000e+00 : f32
    %129 = vector.broadcast %cst_61 : f32 to vector<16x1xf32>
    %130 = arith.cmpf ogt, %128, %129 : vector<16x1xf32>
    %cst_62 = arith.constant 1.000000e+00 : f32
    %131 = vector.broadcast %cst_62 : f32 to vector<16x1xf32>
    %132 = arith.select %130, %128, %131 : vector<16x1xi1>, vector<16x1xf32>
    %133 = vector.broadcast %132 : vector<16x1xf32> to vector<16x128xf32>
    %134 = arith.divf %126, %133 : vector<16x128xf32>
    %135 = arith.truncf %134 : vector<16x128xf32> to vector<16x128xbf16>
    %cst_63 = arith.constant dense<0.000000e+00> : vector<16x32xf32>
    %136 = tpu.matmul %135, %114, %cst_63 {dimension_numbers = #tpu.dot_dimension_numbers<[1], [0], [0], [1], [0, 0, 1, 1], [], []>} : vector<16x128xbf16>, vector<128x32xbf16>, vector<16x32xf32> -> vector<16x32xf32>
    %137 = arith.addf %99, %136 : vector<16x32xf32>
    %cst_64 = arith.constant dense<0.000000e+00> : vector<16x1xf32>
    %138 = tpu.matmul %54, %31, %cst_64 {dimension_numbers = #tpu.dot_dimension_numbers<[1], [0], [0], [1], [0, 0, 1, 1], [], []>} : vector<16x32xf32>, vector<32x1xf32>, vector<16x1xf32> -> vector<16x1xf32>
    %cst_65 = arith.constant dense<0.000000e+00> : vector<16x1xf32>
    %139 = tpu.matmul %137, %30, %cst_65 {dimension_numbers = #tpu.dot_dimension_numbers<[1], [0], [0], [1], [0, 0, 1, 1], [], []>} : vector<16x32xf32>, vector<32x1xf32>, vector<16x1xf32> -> vector<16x1xf32>
    %140 = arith.addf %138, %139 : vector<16x1xf32>
    %cst_66 = arith.constant 0.000000e+00 : f32
    %141 = vector.broadcast %cst_66 : f32 to vector<16x1xf32>
    %142 = arith.subf %141, %140 : vector<16x1xf32>
    %143 = math.exp %142 : vector<16x1xf32>
    %cst_67 = arith.constant 1.000000e+00 : f32
    %144 = vector.broadcast %cst_67 : f32 to vector<16x1xf32>
    %145 = arith.addf %144, %143 : vector<16x1xf32>
    %cst_68 = arith.constant 1.000000e+00 : f32
    %146 = vector.broadcast %cst_68 : f32 to vector<16x1xf32>
    %147 = arith.divf %146, %145 : vector<16x1xf32>
    %148 = vector.broadcast %147 : vector<16x1xf32> to vector<16x32xf32>
    %149 = arith.mulf %148, %54 : vector<16x32xf32>
    %cst_69 = arith.constant 1.000000e+00 : f32
    %150 = vector.broadcast %cst_69 : f32 to vector<16x1xf32>
    %151 = arith.subf %150, %147 : vector<16x1xf32>
    %152 = vector.broadcast %151 : vector<16x1xf32> to vector<16x32xf32>
    %153 = arith.mulf %152, %137 : vector<16x32xf32>
    %154 = arith.addf %149, %153 : vector<16x32xf32>
    %155 = arith.truncf %154 : vector<16x32xf32> to vector<16x32xbf16>
    %cst_70 = arith.constant dense<0.000000e+00> : vector<16x16xf32>
    %156 = tpu.matmul %155, %32, %cst_70 {dimension_numbers = #tpu.dot_dimension_numbers<[1], [0], [0], [1], [0, 0, 1, 1], [], []>} : vector<16x32xbf16>, vector<32x16xbf16>, vector<16x16xf32> -> vector<16x16xf32>
    %157 = vector.broadcast %33 : vector<1x16xf32> to vector<16x16xf32>
    %158 = arith.addf %156, %157 : vector<16x16xf32>
    %cst_71 = arith.constant 0.000000e+00 : f32
    %159 = vector.broadcast %cst_71 : f32 to vector<16x16xf32>
    %160 = arith.maximumf %158, %159 : vector<16x16xf32>
    %161 = vector.broadcast %34 : vector<1x16xf32> to vector<16x16xf32>
    %162 = arith.mulf %160, %161 : vector<16x16xf32>
    %163 = vector.broadcast %35 : vector<1x16xf32> to vector<16x16xf32>
    %164 = arith.addf %162, %163 : vector<16x16xf32>
    %cst_72 = arith.constant 0.000000e+00 : f32
    %165 = vector.broadcast %cst_72 : f32 to vector<2x16xf32>
    %cst_73 = arith.constant 0.000000e+00 : f32
    %166 = vector.broadcast %cst_73 : f32 to vector<2x16xf32>
    %167 = arith.truncf %164 : vector<16x16xf32> to vector<16x16xbf16>
    %c0_74 = arith.constant 0 : index
    %c0_75 = arith.constant 0 : index
    %c0_76 = arith.constant 0 : index
    %168 = vector.load %arg15[%c0_74, %c0_75, %c0_76] : memref<2x16x128xbf16, #tpu.memory_space<vmem>>, vector<1x16x128xbf16>
    %169 = vector.shape_cast %168 : vector<1x16x128xbf16> to vector<16x128xbf16>
    %c0_77 = arith.constant 0 : index
    %c0_78 = arith.constant 0 : index
    %c0_79 = arith.constant 0 : index
    %170 = vector.load %arg16[%c0_77, %c0_78, %c0_79] : memref<2x1x128xf32, #tpu.memory_space<vmem>>, vector<1x1x128xf32>
    %171 = vector.shape_cast %170 : vector<1x1x128xf32> to vector<1x128xf32>
    %c0_80 = arith.constant 0 : index
    %c0_81 = arith.constant 0 : index
    %c0_82 = arith.constant 0 : index
    %172 = vector.load %arg17[%c0_80, %c0_81, %c0_82] : memref<2x4x32xbf16, #tpu.memory_space<vmem>>, vector<1x4x32xbf16>
    %173 = vector.shape_cast %172 : vector<1x4x32xbf16> to vector<4x32xbf16>
    %c0_83 = arith.constant 0 : index
    %c0_84 = arith.constant 0 : index
    %c0_85 = arith.constant 0 : index
    %174 = vector.load %arg18[%c0_83, %c0_84, %c0_85] : memref<2x32x1xf32, #tpu.memory_space<vmem>>, vector<1x32x1xf32>
    %175 = vector.shape_cast %174 : vector<1x32x1xf32> to vector<32x1xf32>
    %c0_86 = arith.constant 0 : index
    %c0_87 = arith.constant 0 : index
    %c0_88 = arith.constant 0 : index
    %176 = vector.load %arg19[%c0_86, %c0_87, %c0_88] : memref<2x32x1xf32, #tpu.memory_space<vmem>>, vector<1x32x1xf32>
    %177 = vector.shape_cast %176 : vector<1x32x1xf32> to vector<32x1xf32>
    %c0_89 = arith.constant 0 : index
    %c0_90 = arith.constant 0 : index
    %c0_91 = arith.constant 0 : index
    %178 = vector.load %arg20[%c0_89, %c0_90, %c0_91] : memref<2x32x16xbf16, #tpu.memory_space<vmem>>, vector<1x32x16xbf16>
    %179 = vector.shape_cast %178 : vector<1x32x16xbf16> to vector<32x16xbf16>
    %c0_92 = arith.constant 0 : index
    %c0_93 = arith.constant 0 : index
    %c0_94 = arith.constant 0 : index
    %180 = vector.load %arg21[%c0_92, %c0_93, %c0_94] : memref<2x1x16xf32, #tpu.memory_space<vmem>>, vector<1x1x16xf32>
    %181 = vector.shape_cast %180 : vector<1x1x16xf32> to vector<1x16xf32>
    %c0_95 = arith.constant 0 : index
    %c0_96 = arith.constant 0 : index
    %c0_97 = arith.constant 0 : index
    %182 = vector.load %arg22[%c0_95, %c0_96, %c0_97] : memref<2x1x16xf32, #tpu.memory_space<vmem>>, vector<1x1x16xf32>
    %183 = vector.shape_cast %182 : vector<1x1x16xf32> to vector<1x16xf32>
    %c0_98 = arith.constant 0 : index
    %c0_99 = arith.constant 0 : index
    %c0_100 = arith.constant 0 : index
    %184 = vector.load %arg23[%c0_98, %c0_99, %c0_100] : memref<2x1x16xf32, #tpu.memory_space<vmem>>, vector<1x1x16xf32>
    %185 = vector.shape_cast %184 : vector<1x1x16xf32> to vector<1x16xf32>
    %cst_101 = arith.constant dense<0.000000e+00> : vector<1x128xf32>
    %186 = tpu.matmul %25, %7, %cst_101 {dimension_numbers = #tpu.dot_dimension_numbers<[0], [0], [1], [1], [0, 1, 1, 1], [], []>} : vector<16x1xf32>, vector<16x128xf32>, vector<1x128xf32> -> vector<1x128xf32>
    %cst_102 = arith.constant dense<0.000000e+00> : vector<1x128xf32>
    %187 = tpu.matmul %25, %14, %cst_102 {dimension_numbers = #tpu.dot_dimension_numbers<[0], [0], [1], [1], [0, 1, 1, 1], [], []>} : vector<16x1xf32>, vector<16x128xf32>, vector<1x128xf32> -> vector<1x128xf32>
    %188 = arith.mulf %186, %187 : vector<1x128xf32>
    %189 = vector.shape_cast %188 : vector<1x128xf32> to vector<1x128xf32>
    %190 = vector.broadcast %189 : vector<1x128xf32> to vector<16x128xf32>
    %191 = arith.mulf %7, %190 : vector<16x128xf32>
    %192 = arith.truncf %191 : vector<16x128xf32> to vector<16x128xbf16>
    %193 = arith.mulf %14, %190 : vector<16x128xf32>
    %cst_103 = arith.constant 0.000000e+00 : f32
    %194 = vector.broadcast %cst_103 : f32 to vector<16x128xf32>
    %195 = arith.cmpf ogt, %193, %194 : vector<16x128xf32>
    %cst_104 = arith.constant dense<0.000000e+00> : vector<16x128xf32>
    %196 = tpu.matmul %167, %169, %cst_104 {dimension_numbers = #tpu.dot_dimension_numbers<[1], [0], [0], [1], [0, 0, 1, 1], [], []>} : vector<16x16xbf16>, vector<16x128xbf16>, vector<16x128xf32> -> vector<16x128xf32>
    %197 = vector.broadcast %171 : vector<1x128xf32> to vector<16x128xf32>
    %198 = arith.addf %196, %197 : vector<16x128xf32>
    %199 = vector.extract_strided_slice %198 {offsets = [0, 0], sizes = [16, 32], strides = [1, 1]} : vector<16x128xf32> to vector<16x32xf32>
    %200 = vector.extract_strided_slice %198 {offsets = [0, 32], sizes = [16, 32], strides = [1, 1]} : vector<16x128xf32> to vector<16x32xf32>
    %201 = arith.truncf %200 : vector<16x32xf32> to vector<16x32xbf16>
    %202 = vector.extract_strided_slice %198 {offsets = [0, 64], sizes = [16, 32], strides = [1, 1]} : vector<16x128xf32> to vector<16x32xf32>
    %203 = arith.truncf %202 : vector<16x32xf32> to vector<16x32xbf16>
    %204 = vector.extract_strided_slice %198 {offsets = [0, 96], sizes = [16, 32], strides = [1, 1]} : vector<16x128xf32> to vector<16x32xf32>
    %cst_105 = arith.constant dense<0.000000e+00> : vector<128x32xf32>
    %205 = tpu.matmul %23, %173, %cst_105 {dimension_numbers = #tpu.dot_dimension_numbers<[1], [0], [0], [1], [0, 0, 1, 1], [], []>} : vector<128x4xbf16>, vector<4x32xbf16>, vector<128x32xf32> -> vector<128x32xf32>
    %cst_106 = arith.constant dense<0.000000e+00> : vector<128x32xf32>
    %206 = tpu.matmul %192, %201, %cst_106 {dimension_numbers = #tpu.dot_dimension_numbers<[0], [0], [1], [1], [0, 1, 1, 1], [], []>} : vector<16x128xbf16>, vector<16x32xbf16>, vector<128x32xf32> -> vector<128x32xf32>
    %207 = arith.addf %206, %205 : vector<128x32xf32>
    %cst_107 = arith.constant dense<0.000000e+00> : vector<128x32xf32>
    %208 = tpu.matmul %192, %203, %cst_107 {dimension_numbers = #tpu.dot_dimension_numbers<[0], [0], [1], [1], [0, 1, 1, 1], [], []>} : vector<16x128xbf16>, vector<16x32xbf16>, vector<128x32xf32> -> vector<128x32xf32>
    %209 = arith.addf %208, %205 : vector<128x32xf32>
    %210 = arith.truncf %207 : vector<128x32xf32> to vector<128x32xbf16>
    %cst_108 = arith.constant 0.000000e+00 : f32
    %211 = vector.broadcast %cst_108 : f32 to vector<16x32xf32>
    %c0_i32_109 = arith.constant 0 : i32
    %212 = vector.broadcast %c0_i32_109 : i32 to vector<1x32xi32>
    %213 = arith.cmpi sge, %24, %212 : vector<1x32xi32>
    %c16_i32_110 = arith.constant 16 : i32
    %214 = vector.broadcast %c16_i32_110 : i32 to vector<1x32xi32>
    %215 = arith.cmpi slt, %24, %214 : vector<1x32xi32>
    %216 = arith.andi %213, %215 : vector<1x32xi1>
    %217 = vector.shape_cast %216 : vector<1x32xi1> to vector<1x32xi1>
    %218 = vector.broadcast %217 : vector<1x32xi1> to vector<16x32xi1>
    %cst_111 = arith.constant 0.000000e+00 : f32
    %219 = vector.broadcast %cst_111 : f32 to vector<16x32xf32>
    %220 = arith.select %218, %199, %219 : vector<16x32xi1>, vector<16x32xf32>
    %221 = arith.truncf %220 : vector<16x32xf32> to vector<16x32xbf16>
    %222 = vector.shape_cast %216 : vector<1x32xi1> to vector<1x32xi1>
    %223 = vector.broadcast %222 : vector<1x32xi1> to vector<128x32xi1>
    %cst_112 = arith.constant 0.000000e+00 : f32
    %224 = vector.broadcast %cst_112 : f32 to vector<128x32xf32>
    %225 = arith.select %223, %209, %224 : vector<128x32xi1>, vector<128x32xf32>
    %226 = arith.truncf %225 : vector<128x32xf32> to vector<128x32xbf16>
    %cst_113 = arith.constant dense<0.000000e+00> : vector<16x128xf32>
    %227 = tpu.matmul %221, %210, %cst_113 {dimension_numbers = #tpu.dot_dimension_numbers<[1], [1], [0], [0], [0, 0, 1, 0], [], []>} : vector<16x32xbf16>, vector<128x32xbf16>, vector<16x128xf32> -> vector<16x128xf32>
    %cst_114 = arith.constant 2.500000e-01 : f32
    %228 = vector.broadcast %cst_114 : f32 to vector<16x128xf32>
    %229 = arith.mulf %227, %228 : vector<16x128xf32>
    %cst_115 = arith.constant -1.000000e+30 : f32
    %230 = vector.broadcast %cst_115 : f32 to vector<16x128xf32>
    %231 = arith.select %195, %229, %230 : vector<16x128xi1>, vector<16x128xf32>
    %cst_116 = arith.constant dense<0xFF800000> : vector<16xf32>
    %232 = vector.multi_reduction <maximumf>, %231, %cst_116 [1] : vector<16x128xf32> to vector<16xf32>
    %233 = vector.shape_cast %232 : vector<16xf32> to vector<16x1xf32>
    %234 = vector.broadcast %233 : vector<16x1xf32> to vector<16x128xf32>
    %235 = arith.subf %231, %234 : vector<16x128xf32>
    %236 = math.exp %235 : vector<16x128xf32>
    %cst_117 = arith.constant 0.000000e+00 : f32
    %237 = vector.broadcast %cst_117 : f32 to vector<16x128xf32>
    %238 = arith.select %195, %236, %237 : vector<16x128xi1>, vector<16x128xf32>
    %cst_118 = arith.constant dense<0.000000e+00> : vector<16xf32>
    %239 = vector.multi_reduction <add>, %238, %cst_118 [1] : vector<16x128xf32> to vector<16xf32>
    %240 = vector.shape_cast %239 : vector<16xf32> to vector<16x1xf32>
    %cst_119 = arith.constant 0.000000e+00 : f32
    %241 = vector.broadcast %cst_119 : f32 to vector<16x1xf32>
    %242 = arith.cmpf ogt, %240, %241 : vector<16x1xf32>
    %cst_120 = arith.constant 1.000000e+00 : f32
    %243 = vector.broadcast %cst_120 : f32 to vector<16x1xf32>
    %244 = arith.select %242, %240, %243 : vector<16x1xi1>, vector<16x1xf32>
    %245 = vector.broadcast %244 : vector<16x1xf32> to vector<16x128xf32>
    %246 = arith.divf %238, %245 : vector<16x128xf32>
    %247 = arith.truncf %246 : vector<16x128xf32> to vector<16x128xbf16>
    %cst_121 = arith.constant dense<0.000000e+00> : vector<16x32xf32>
    %248 = tpu.matmul %247, %226, %cst_121 {dimension_numbers = #tpu.dot_dimension_numbers<[1], [0], [0], [1], [0, 0, 1, 1], [], []>} : vector<16x128xbf16>, vector<128x32xbf16>, vector<16x32xf32> -> vector<16x32xf32>
    %249 = arith.addf %211, %248 : vector<16x32xf32>
    %c16_i32_122 = arith.constant 16 : i32
    %250 = vector.broadcast %c16_i32_122 : i32 to vector<1x32xi32>
    %251 = arith.cmpi sge, %24, %250 : vector<1x32xi32>
    %c32_i32_123 = arith.constant 32 : i32
    %252 = vector.broadcast %c32_i32_123 : i32 to vector<1x32xi32>
    %253 = arith.cmpi slt, %24, %252 : vector<1x32xi32>
    %254 = arith.andi %251, %253 : vector<1x32xi1>
    %255 = vector.shape_cast %254 : vector<1x32xi1> to vector<1x32xi1>
    %256 = vector.broadcast %255 : vector<1x32xi1> to vector<16x32xi1>
    %cst_124 = arith.constant 0.000000e+00 : f32
    %257 = vector.broadcast %cst_124 : f32 to vector<16x32xf32>
    %258 = arith.select %256, %199, %257 : vector<16x32xi1>, vector<16x32xf32>
    %259 = arith.truncf %258 : vector<16x32xf32> to vector<16x32xbf16>
    %260 = vector.shape_cast %254 : vector<1x32xi1> to vector<1x32xi1>
    %261 = vector.broadcast %260 : vector<1x32xi1> to vector<128x32xi1>
    %cst_125 = arith.constant 0.000000e+00 : f32
    %262 = vector.broadcast %cst_125 : f32 to vector<128x32xf32>
    %263 = arith.select %261, %209, %262 : vector<128x32xi1>, vector<128x32xf32>
    %264 = arith.truncf %263 : vector<128x32xf32> to vector<128x32xbf16>
    %cst_126 = arith.constant dense<0.000000e+00> : vector<16x128xf32>
    %265 = tpu.matmul %259, %210, %cst_126 {dimension_numbers = #tpu.dot_dimension_numbers<[1], [1], [0], [0], [0, 0, 1, 0], [], []>} : vector<16x32xbf16>, vector<128x32xbf16>, vector<16x128xf32> -> vector<16x128xf32>
    %cst_127 = arith.constant 2.500000e-01 : f32
    %266 = vector.broadcast %cst_127 : f32 to vector<16x128xf32>
    %267 = arith.mulf %265, %266 : vector<16x128xf32>
    %cst_128 = arith.constant -1.000000e+30 : f32
    %268 = vector.broadcast %cst_128 : f32 to vector<16x128xf32>
    %269 = arith.select %195, %267, %268 : vector<16x128xi1>, vector<16x128xf32>
    %cst_129 = arith.constant dense<0xFF800000> : vector<16xf32>
    %270 = vector.multi_reduction <maximumf>, %269, %cst_129 [1] : vector<16x128xf32> to vector<16xf32>
    %271 = vector.shape_cast %270 : vector<16xf32> to vector<16x1xf32>
    %272 = vector.broadcast %271 : vector<16x1xf32> to vector<16x128xf32>
    %273 = arith.subf %269, %272 : vector<16x128xf32>
    %274 = math.exp %273 : vector<16x128xf32>
    %cst_130 = arith.constant 0.000000e+00 : f32
    %275 = vector.broadcast %cst_130 : f32 to vector<16x128xf32>
    %276 = arith.select %195, %274, %275 : vector<16x128xi1>, vector<16x128xf32>
    %cst_131 = arith.constant dense<0.000000e+00> : vector<16xf32>
    %277 = vector.multi_reduction <add>, %276, %cst_131 [1] : vector<16x128xf32> to vector<16xf32>
    %278 = vector.shape_cast %277 : vector<16xf32> to vector<16x1xf32>
    %cst_132 = arith.constant 0.000000e+00 : f32
    %279 = vector.broadcast %cst_132 : f32 to vector<16x1xf32>
    %280 = arith.cmpf ogt, %278, %279 : vector<16x1xf32>
    %cst_133 = arith.constant 1.000000e+00 : f32
    %281 = vector.broadcast %cst_133 : f32 to vector<16x1xf32>
    %282 = arith.select %280, %278, %281 : vector<16x1xi1>, vector<16x1xf32>
    %283 = vector.broadcast %282 : vector<16x1xf32> to vector<16x128xf32>
    %284 = arith.divf %276, %283 : vector<16x128xf32>
    %285 = arith.truncf %284 : vector<16x128xf32> to vector<16x128xbf16>
    %cst_134 = arith.constant dense<0.000000e+00> : vector<16x32xf32>
    %286 = tpu.matmul %285, %264, %cst_134 {dimension_numbers = #tpu.dot_dimension_numbers<[1], [0], [0], [1], [0, 0, 1, 1], [], []>} : vector<16x128xbf16>, vector<128x32xbf16>, vector<16x32xf32> -> vector<16x32xf32>
    %287 = arith.addf %249, %286 : vector<16x32xf32>
    %cst_135 = arith.constant dense<0.000000e+00> : vector<16x1xf32>
    %288 = tpu.matmul %204, %177, %cst_135 {dimension_numbers = #tpu.dot_dimension_numbers<[1], [0], [0], [1], [0, 0, 1, 1], [], []>} : vector<16x32xf32>, vector<32x1xf32>, vector<16x1xf32> -> vector<16x1xf32>
    %cst_136 = arith.constant dense<0.000000e+00> : vector<16x1xf32>
    %289 = tpu.matmul %287, %175, %cst_136 {dimension_numbers = #tpu.dot_dimension_numbers<[1], [0], [0], [1], [0, 0, 1, 1], [], []>} : vector<16x32xf32>, vector<32x1xf32>, vector<16x1xf32> -> vector<16x1xf32>
    %290 = arith.addf %288, %289 : vector<16x1xf32>
    %cst_137 = arith.constant 0.000000e+00 : f32
    %291 = vector.broadcast %cst_137 : f32 to vector<16x1xf32>
    %292 = arith.subf %291, %290 : vector<16x1xf32>
    %293 = math.exp %292 : vector<16x1xf32>
    %cst_138 = arith.constant 1.000000e+00 : f32
    %294 = vector.broadcast %cst_138 : f32 to vector<16x1xf32>
    %295 = arith.addf %294, %293 : vector<16x1xf32>
    %cst_139 = arith.constant 1.000000e+00 : f32
    %296 = vector.broadcast %cst_139 : f32 to vector<16x1xf32>
    %297 = arith.divf %296, %295 : vector<16x1xf32>
    %298 = vector.broadcast %297 : vector<16x1xf32> to vector<16x32xf32>
    %299 = arith.mulf %298, %204 : vector<16x32xf32>
    %cst_140 = arith.constant 1.000000e+00 : f32
    %300 = vector.broadcast %cst_140 : f32 to vector<16x1xf32>
    %301 = arith.subf %300, %297 : vector<16x1xf32>
    %302 = vector.broadcast %301 : vector<16x1xf32> to vector<16x32xf32>
    %303 = arith.mulf %302, %287 : vector<16x32xf32>
    %304 = arith.addf %299, %303 : vector<16x32xf32>
    %305 = arith.truncf %304 : vector<16x32xf32> to vector<16x32xbf16>
    %cst_141 = arith.constant dense<0.000000e+00> : vector<16x16xf32>
    %306 = tpu.matmul %305, %179, %cst_141 {dimension_numbers = #tpu.dot_dimension_numbers<[1], [0], [0], [1], [0, 0, 1, 1], [], []>} : vector<16x32xbf16>, vector<32x16xbf16>, vector<16x16xf32> -> vector<16x16xf32>
    %307 = vector.broadcast %181 : vector<1x16xf32> to vector<16x16xf32>
    %308 = arith.addf %306, %307 : vector<16x16xf32>
    %cst_142 = arith.constant 0.000000e+00 : f32
    %309 = vector.broadcast %cst_142 : f32 to vector<16x16xf32>
    %310 = arith.maximumf %308, %309 : vector<16x16xf32>
    %311 = vector.broadcast %183 : vector<1x16xf32> to vector<16x16xf32>
    %312 = arith.mulf %310, %311 : vector<16x16xf32>
    %313 = vector.broadcast %185 : vector<1x16xf32> to vector<16x16xf32>
    %314 = arith.addf %312, %313 : vector<16x16xf32>
    %c0_143 = arith.constant 0 : index
    %c0_144 = arith.constant 0 : index
    %315 = vector.load %arg24[%c0_143, %c0_144] : memref<16x2xf32, #tpu.memory_space<vmem>>, vector<16x1xf32>
    %cst_145 = arith.constant dense<0.000000e+00> : vector<16x1xf32>
    %316 = tpu.matmul %314, %315, %cst_145 {dimension_numbers = #tpu.dot_dimension_numbers<[1], [0], [0], [1], [0, 0, 1, 1], [], []>} : vector<16x16xf32>, vector<16x1xf32>, vector<16x1xf32> -> vector<16x1xf32>
    %317 = math.tanh %316 : vector<16x1xf32>
    %318 = tpu.iota {dimensions = array<i32: 0>} : vector<16x16xi32>
    %319 = tpu.iota {dimensions = array<i32: 1>} : vector<16x16xi32>
    %320 = arith.cmpi eq, %318, %319 : vector<16x16xi32>
    %cst_146 = arith.constant 1.000000e+00 : f32
    %cst_147 = arith.constant 0.000000e+00 : f32
    %321 = vector.broadcast %cst_146 : f32 to vector<16x16xf32>
    %322 = vector.broadcast %cst_147 : f32 to vector<16x16xf32>
    %323 = arith.select %320, %321, %322 : vector<16x16xi1>, vector<16x16xf32>
    %cst_148 = arith.constant dense<0.000000e+00> : vector<1x16xf32>
    %324 = tpu.matmul %317, %323, %cst_148 {dimension_numbers = #tpu.dot_dimension_numbers<[0], [0], [1], [1], [0, 1, 1, 1], [], []>} : vector<16x1xf32>, vector<16x16xf32>, vector<1x16xf32> -> vector<1x16xf32>
    %cst_149 = arith.constant dense<0.000000e+00> : vector<1x16xf32>
    %325 = tpu.matmul %25, %323, %cst_149 {dimension_numbers = #tpu.dot_dimension_numbers<[0], [0], [1], [1], [0, 1, 1, 1], [], []>} : vector<16x1xf32>, vector<16x16xf32>, vector<1x16xf32> -> vector<1x16xf32>
    %cst_150 = arith.constant dense<0.000000e+00> : vector<2x1xf32>
    %326 = tpu.matmul %22, %25, %cst_150 {dimension_numbers = #tpu.dot_dimension_numbers<[0], [0], [1], [1], [0, 1, 1, 1], [], []>} : vector<16x2xf32>, vector<16x1xf32>, vector<2x1xf32> -> vector<2x1xf32>
    %cst_151 = arith.constant 5.000000e-01 : f32
    %327 = vector.broadcast %cst_151 : f32 to vector<2x1xf32>
    %328 = arith.mulf %327, %326 : vector<2x1xf32>
    %cst_152 = arith.constant dense<0.000000e+00> : vector<16x1xf32>
    %329 = tpu.matmul %22, %328, %cst_152 {dimension_numbers = #tpu.dot_dimension_numbers<[1], [0], [0], [1], [0, 0, 1, 1], [], []>} : vector<16x2xf32>, vector<2x1xf32>, vector<16x1xf32> -> vector<16x1xf32>
    %cst_153 = arith.constant dense<0.000000e+00> : vector<16x16xf32>
    %330 = tpu.matmul %22, %22, %cst_153 {dimension_numbers = #tpu.dot_dimension_numbers<[1], [1], [0], [0], [0, 0, 1, 0], [], []>} : vector<16x2xf32>, vector<16x2xf32>, vector<16x16xf32> -> vector<16x16xf32>
    %331 = vector.shape_cast %317 : vector<16x1xf32> to vector<16x1xf32>
    %332 = vector.broadcast %331 : vector<16x1xf32> to vector<16x16xf32>
    %333 = vector.shape_cast %324 : vector<1x16xf32> to vector<1x16xf32>
    %334 = vector.broadcast %333 : vector<1x16xf32> to vector<16x16xf32>
    %335 = vector.shape_cast %325 : vector<1x16xf32> to vector<1x16xf32>
    %336 = vector.broadcast %335 : vector<1x16xf32> to vector<16x16xf32>
    %337 = arith.cmpi ne, %318, %319 : vector<16x16xi32>
    %338 = arith.cmpf ogt, %334, %332 : vector<16x16xf32>
    %339 = arith.cmpf oeq, %334, %332 : vector<16x16xf32>
    %340 = arith.cmpi slt, %319, %318 : vector<16x16xi32>
    %341 = arith.andi %339, %340 : vector<16x16xi1>
    %342 = arith.ori %338, %341 : vector<16x16xi1>
    %343 = arith.andi %337, %342 : vector<16x16xi1>
    %cst_154 = arith.constant 1.000000e+00 : f32
    %cst_155 = arith.constant 0.000000e+00 : f32
    %344 = vector.broadcast %cst_154 : f32 to vector<16x16xf32>
    %345 = vector.broadcast %cst_155 : f32 to vector<16x16xf32>
    %346 = arith.select %343, %344, %345 : vector<16x16xi1>, vector<16x16xf32>
    %347 = arith.mulf %346, %330 : vector<16x16xf32>
    %348 = arith.mulf %347, %336 : vector<16x16xf32>
    %cst_156 = arith.constant dense<0.000000e+00> : vector<16xf32>
    %349 = vector.multi_reduction <add>, %348, %cst_156 [1] : vector<16x16xf32> to vector<16xf32>
    %350 = vector.shape_cast %349 : vector<16xf32> to vector<16x1xf32>
    %cst_157 = arith.constant 0.000000e+00 : f32
    %351 = vector.broadcast %cst_157 : f32 to vector<16x1xf32>
    %352 = arith.cmpf ogt, %25, %351 : vector<16x1xf32>
    %353 = arith.cmpf olt, %350, %329 : vector<16x1xf32>
    %354 = arith.andi %352, %353 : vector<16x1xi1>
    %cst_158 = arith.constant 1.000000e+00 : f32
    %cst_159 = arith.constant 0.000000e+00 : f32
    %355 = vector.broadcast %cst_158 : f32 to vector<16x1xf32>
    %356 = vector.broadcast %cst_159 : f32 to vector<16x1xf32>
    %357 = arith.select %354, %355, %356 : vector<16x1xi1>, vector<16x1xf32>
    %358 = arith.mulf %317, %357 : vector<16x1xf32>
    %359 = vector.broadcast %358 : vector<16x1xf32> to vector<16x16xf32>
    %360 = arith.mulf %314, %359 : vector<16x16xf32>
    %361 = vector.broadcast %357 : vector<16x1xf32> to vector<16x2xf32>
    %362 = arith.mulf %22, %361 : vector<16x2xf32>
    %cst_160 = arith.constant dense<0.000000e+00> : vector<2x1xf32>
    %363 = tpu.matmul %22, %357, %cst_160 {dimension_numbers = #tpu.dot_dimension_numbers<[0], [0], [1], [1], [0, 1, 1, 1], [], []>} : vector<16x2xf32>, vector<16x1xf32>, vector<2x1xf32> -> vector<2x1xf32>
    %cst_161 = arith.constant dense<0.000000e+00> : vector<2x16xf32>
    %364 = tpu.matmul %362, %360, %cst_161 {dimension_numbers = #tpu.dot_dimension_numbers<[0], [0], [1], [1], [0, 1, 1, 1], [], []>} : vector<16x2xf32>, vector<16x16xf32>, vector<2x16xf32> -> vector<2x16xf32>
    %cst_162 = arith.constant 1.000000e+00 : f32
    %365 = vector.broadcast %cst_162 : f32 to vector<2x1xf32>
    %366 = arith.maximumf %363, %365 : vector<2x1xf32>
    %cst_163 = arith.constant 1.000000e+00 : f32
    %367 = vector.broadcast %cst_163 : f32 to vector<2x1xf32>
    %368 = arith.divf %367, %366 : vector<2x1xf32>
    %369 = vector.broadcast %368 : vector<2x1xf32> to vector<2x16xf32>
    %370 = arith.mulf %364, %369 : vector<2x16xf32>
    %371 = tpu.iota {dimensions = array<i32: 0>} : vector<2x16xi32>
    %cst_164 = arith.constant 0.000000e+00 : f32
    %372 = vector.broadcast %cst_164 : f32 to vector<2x16xf32>
    %373 = vector.extract_strided_slice %362 {offsets = [0, 0], sizes = [16, 1], strides = [1, 1]} : vector<16x2xf32> to vector<16x1xf32>
    %cst_165 = arith.constant 0.000000e+00 : f32
    %374 = vector.broadcast %cst_165 : f32 to vector<16x1xf32>
    %375 = arith.cmpf ogt, %373, %374 : vector<16x1xf32>
    %376 = vector.shape_cast %375 : vector<16x1xi1> to vector<16x1xi1>
    %377 = vector.broadcast %376 : vector<16x1xi1> to vector<16x16xi1>
    %cst_166 = arith.constant -1.000000e+30 : f32
    %378 = vector.broadcast %cst_166 : f32 to vector<16x16xf32>
    %379 = arith.select %377, %360, %378 : vector<16x16xi1>, vector<16x16xf32>
    %cst_167 = arith.constant dense<0xFF800000> : vector<16xf32>
    %380 = vector.multi_reduction <maximumf>, %379, %cst_167 [0] : vector<16x16xf32> to vector<16xf32>
    %381 = vector.shape_cast %380 : vector<16xf32> to vector<1x16xf32>
    %c0_i32_168 = arith.constant 0 : i32
    %382 = vector.broadcast %c0_i32_168 : i32 to vector<2x16xi32>
    %383 = arith.cmpi eq, %371, %382 : vector<2x16xi32>
    %384 = vector.shape_cast %381 : vector<1x16xf32> to vector<1x16xf32>
    %385 = vector.broadcast %384 : vector<1x16xf32> to vector<2x16xf32>
    %386 = arith.select %383, %385, %372 : vector<2x16xi1>, vector<2x16xf32>
    %387 = vector.extract_strided_slice %362 {offsets = [0, 1], sizes = [16, 1], strides = [1, 1]} : vector<16x2xf32> to vector<16x1xf32>
    %cst_169 = arith.constant 0.000000e+00 : f32
    %388 = vector.broadcast %cst_169 : f32 to vector<16x1xf32>
    %389 = arith.cmpf ogt, %387, %388 : vector<16x1xf32>
    %390 = vector.shape_cast %389 : vector<16x1xi1> to vector<16x1xi1>
    %391 = vector.broadcast %390 : vector<16x1xi1> to vector<16x16xi1>
    %cst_170 = arith.constant -1.000000e+30 : f32
    %392 = vector.broadcast %cst_170 : f32 to vector<16x16xf32>
    %393 = arith.select %391, %360, %392 : vector<16x16xi1>, vector<16x16xf32>
    %cst_171 = arith.constant dense<0xFF800000> : vector<16xf32>
    %394 = vector.multi_reduction <maximumf>, %393, %cst_171 [0] : vector<16x16xf32> to vector<16xf32>
    %395 = vector.shape_cast %394 : vector<16xf32> to vector<1x16xf32>
    %c1_i32 = arith.constant 1 : i32
    %396 = vector.broadcast %c1_i32 : i32 to vector<2x16xi32>
    %397 = arith.cmpi eq, %371, %396 : vector<2x16xi32>
    %398 = vector.shape_cast %395 : vector<1x16xf32> to vector<1x16xf32>
    %399 = vector.broadcast %398 : vector<1x16xf32> to vector<2x16xf32>
    %400 = arith.select %397, %399, %386 : vector<2x16xi1>, vector<2x16xf32>
    %cst_172 = arith.constant 0.000000e+00 : f32
    %401 = vector.broadcast %cst_172 : f32 to vector<2x1xf32>
    %402 = arith.cmpf ogt, %363, %401 : vector<2x1xf32>
    %403 = vector.shape_cast %402 : vector<2x1xi1> to vector<2x1xi1>
    %404 = vector.broadcast %403 : vector<2x1xi1> to vector<2x16xi1>
    %cst_173 = arith.constant 0.000000e+00 : f32
    %405 = vector.broadcast %cst_173 : f32 to vector<2x16xf32>
    %406 = arith.select %404, %400, %405 : vector<2x16xi1>, vector<2x16xf32>
    %407 = arith.addf %165, %406 : vector<2x16xf32>
    %408 = arith.addf %166, %370 : vector<2x16xf32>
    %409 = arith.truncf %360 : vector<16x16xf32> to vector<16x16xbf16>
    %c1 = arith.constant 1 : index
    %c0_174 = arith.constant 0 : index
    %c0_175 = arith.constant 0 : index
    %410 = vector.load %arg15[%c1, %c0_174, %c0_175] : memref<2x16x128xbf16, #tpu.memory_space<vmem>>, vector<1x16x128xbf16>
    %411 = vector.shape_cast %410 : vector<1x16x128xbf16> to vector<16x128xbf16>
    %c1_176 = arith.constant 1 : index
    %c0_177 = arith.constant 0 : index
    %c0_178 = arith.constant 0 : index
    %412 = vector.load %arg16[%c1_176, %c0_177, %c0_178] : memref<2x1x128xf32, #tpu.memory_space<vmem>>, vector<1x1x128xf32>
    %413 = vector.shape_cast %412 : vector<1x1x128xf32> to vector<1x128xf32>
    %c1_179 = arith.constant 1 : index
    %c0_180 = arith.constant 0 : index
    %c0_181 = arith.constant 0 : index
    %414 = vector.load %arg17[%c1_179, %c0_180, %c0_181] : memref<2x4x32xbf16, #tpu.memory_space<vmem>>, vector<1x4x32xbf16>
    %415 = vector.shape_cast %414 : vector<1x4x32xbf16> to vector<4x32xbf16>
    %c1_182 = arith.constant 1 : index
    %c0_183 = arith.constant 0 : index
    %c0_184 = arith.constant 0 : index
    %416 = vector.load %arg18[%c1_182, %c0_183, %c0_184] : memref<2x32x1xf32, #tpu.memory_space<vmem>>, vector<1x32x1xf32>
    %417 = vector.shape_cast %416 : vector<1x32x1xf32> to vector<32x1xf32>
    %c1_185 = arith.constant 1 : index
    %c0_186 = arith.constant 0 : index
    %c0_187 = arith.constant 0 : index
    %418 = vector.load %arg19[%c1_185, %c0_186, %c0_187] : memref<2x32x1xf32, #tpu.memory_space<vmem>>, vector<1x32x1xf32>
    %419 = vector.shape_cast %418 : vector<1x32x1xf32> to vector<32x1xf32>
    %c1_188 = arith.constant 1 : index
    %c0_189 = arith.constant 0 : index
    %c0_190 = arith.constant 0 : index
    %420 = vector.load %arg20[%c1_188, %c0_189, %c0_190] : memref<2x32x16xbf16, #tpu.memory_space<vmem>>, vector<1x32x16xbf16>
    %421 = vector.shape_cast %420 : vector<1x32x16xbf16> to vector<32x16xbf16>
    %c1_191 = arith.constant 1 : index
    %c0_192 = arith.constant 0 : index
    %c0_193 = arith.constant 0 : index
    %422 = vector.load %arg21[%c1_191, %c0_192, %c0_193] : memref<2x1x16xf32, #tpu.memory_space<vmem>>, vector<1x1x16xf32>
    %423 = vector.shape_cast %422 : vector<1x1x16xf32> to vector<1x16xf32>
    %c1_194 = arith.constant 1 : index
    %c0_195 = arith.constant 0 : index
    %c0_196 = arith.constant 0 : index
    %424 = vector.load %arg22[%c1_194, %c0_195, %c0_196] : memref<2x1x16xf32, #tpu.memory_space<vmem>>, vector<1x1x16xf32>
    %425 = vector.shape_cast %424 : vector<1x1x16xf32> to vector<1x16xf32>
    %c1_197 = arith.constant 1 : index
    %c0_198 = arith.constant 0 : index
    %c0_199 = arith.constant 0 : index
    %426 = vector.load %arg23[%c1_197, %c0_198, %c0_199] : memref<2x1x16xf32, #tpu.memory_space<vmem>>, vector<1x1x16xf32>
    %427 = vector.shape_cast %426 : vector<1x1x16xf32> to vector<1x16xf32>
    %cst_200 = arith.constant dense<0.000000e+00> : vector<1x128xf32>
    %428 = tpu.matmul %357, %7, %cst_200 {dimension_numbers = #tpu.dot_dimension_numbers<[0], [0], [1], [1], [0, 1, 1, 1], [], []>} : vector<16x1xf32>, vector<16x128xf32>, vector<1x128xf32> -> vector<1x128xf32>
    %cst_201 = arith.constant dense<0.000000e+00> : vector<1x128xf32>
    %429 = tpu.matmul %357, %14, %cst_201 {dimension_numbers = #tpu.dot_dimension_numbers<[0], [0], [1], [1], [0, 1, 1, 1], [], []>} : vector<16x1xf32>, vector<16x128xf32>, vector<1x128xf32> -> vector<1x128xf32>
    %430 = arith.mulf %428, %429 : vector<1x128xf32>
    %431 = vector.shape_cast %430 : vector<1x128xf32> to vector<1x128xf32>
    %432 = vector.broadcast %431 : vector<1x128xf32> to vector<16x128xf32>
    %433 = arith.mulf %7, %432 : vector<16x128xf32>
    %434 = arith.truncf %433 : vector<16x128xf32> to vector<16x128xbf16>
    %435 = arith.mulf %14, %432 : vector<16x128xf32>
    %cst_202 = arith.constant 0.000000e+00 : f32
    %436 = vector.broadcast %cst_202 : f32 to vector<16x128xf32>
    %437 = arith.cmpf ogt, %435, %436 : vector<16x128xf32>
    %cst_203 = arith.constant dense<0.000000e+00> : vector<16x128xf32>
    %438 = tpu.matmul %409, %411, %cst_203 {dimension_numbers = #tpu.dot_dimension_numbers<[1], [0], [0], [1], [0, 0, 1, 1], [], []>} : vector<16x16xbf16>, vector<16x128xbf16>, vector<16x128xf32> -> vector<16x128xf32>
    %439 = vector.broadcast %413 : vector<1x128xf32> to vector<16x128xf32>
    %440 = arith.addf %438, %439 : vector<16x128xf32>
    %441 = vector.extract_strided_slice %440 {offsets = [0, 0], sizes = [16, 32], strides = [1, 1]} : vector<16x128xf32> to vector<16x32xf32>
    %442 = vector.extract_strided_slice %440 {offsets = [0, 32], sizes = [16, 32], strides = [1, 1]} : vector<16x128xf32> to vector<16x32xf32>
    %443 = arith.truncf %442 : vector<16x32xf32> to vector<16x32xbf16>
    %444 = vector.extract_strided_slice %440 {offsets = [0, 64], sizes = [16, 32], strides = [1, 1]} : vector<16x128xf32> to vector<16x32xf32>
    %445 = arith.truncf %444 : vector<16x32xf32> to vector<16x32xbf16>
    %446 = vector.extract_strided_slice %440 {offsets = [0, 96], sizes = [16, 32], strides = [1, 1]} : vector<16x128xf32> to vector<16x32xf32>
    %cst_204 = arith.constant dense<0.000000e+00> : vector<128x32xf32>
    %447 = tpu.matmul %23, %415, %cst_204 {dimension_numbers = #tpu.dot_dimension_numbers<[1], [0], [0], [1], [0, 0, 1, 1], [], []>} : vector<128x4xbf16>, vector<4x32xbf16>, vector<128x32xf32> -> vector<128x32xf32>
    %cst_205 = arith.constant dense<0.000000e+00> : vector<128x32xf32>
    %448 = tpu.matmul %434, %443, %cst_205 {dimension_numbers = #tpu.dot_dimension_numbers<[0], [0], [1], [1], [0, 1, 1, 1], [], []>} : vector<16x128xbf16>, vector<16x32xbf16>, vector<128x32xf32> -> vector<128x32xf32>
    %449 = arith.addf %448, %447 : vector<128x32xf32>
    %cst_206 = arith.constant dense<0.000000e+00> : vector<128x32xf32>
    %450 = tpu.matmul %434, %445, %cst_206 {dimension_numbers = #tpu.dot_dimension_numbers<[0], [0], [1], [1], [0, 1, 1, 1], [], []>} : vector<16x128xbf16>, vector<16x32xbf16>, vector<128x32xf32> -> vector<128x32xf32>
    %451 = arith.addf %450, %447 : vector<128x32xf32>
    %452 = arith.truncf %449 : vector<128x32xf32> to vector<128x32xbf16>
    %cst_207 = arith.constant 0.000000e+00 : f32
    %453 = vector.broadcast %cst_207 : f32 to vector<16x32xf32>
    %c0_i32_208 = arith.constant 0 : i32
    %454 = vector.broadcast %c0_i32_208 : i32 to vector<1x32xi32>
    %455 = arith.cmpi sge, %24, %454 : vector<1x32xi32>
    %c16_i32_209 = arith.constant 16 : i32
    %456 = vector.broadcast %c16_i32_209 : i32 to vector<1x32xi32>
    %457 = arith.cmpi slt, %24, %456 : vector<1x32xi32>
    %458 = arith.andi %455, %457 : vector<1x32xi1>
    %459 = vector.shape_cast %458 : vector<1x32xi1> to vector<1x32xi1>
    %460 = vector.broadcast %459 : vector<1x32xi1> to vector<16x32xi1>
    %cst_210 = arith.constant 0.000000e+00 : f32
    %461 = vector.broadcast %cst_210 : f32 to vector<16x32xf32>
    %462 = arith.select %460, %441, %461 : vector<16x32xi1>, vector<16x32xf32>
    %463 = arith.truncf %462 : vector<16x32xf32> to vector<16x32xbf16>
    %464 = vector.shape_cast %458 : vector<1x32xi1> to vector<1x32xi1>
    %465 = vector.broadcast %464 : vector<1x32xi1> to vector<128x32xi1>
    %cst_211 = arith.constant 0.000000e+00 : f32
    %466 = vector.broadcast %cst_211 : f32 to vector<128x32xf32>
    %467 = arith.select %465, %451, %466 : vector<128x32xi1>, vector<128x32xf32>
    %468 = arith.truncf %467 : vector<128x32xf32> to vector<128x32xbf16>
    %cst_212 = arith.constant dense<0.000000e+00> : vector<16x128xf32>
    %469 = tpu.matmul %463, %452, %cst_212 {dimension_numbers = #tpu.dot_dimension_numbers<[1], [1], [0], [0], [0, 0, 1, 0], [], []>} : vector<16x32xbf16>, vector<128x32xbf16>, vector<16x128xf32> -> vector<16x128xf32>
    %cst_213 = arith.constant 2.500000e-01 : f32
    %470 = vector.broadcast %cst_213 : f32 to vector<16x128xf32>
    %471 = arith.mulf %469, %470 : vector<16x128xf32>
    %cst_214 = arith.constant -1.000000e+30 : f32
    %472 = vector.broadcast %cst_214 : f32 to vector<16x128xf32>
    %473 = arith.select %437, %471, %472 : vector<16x128xi1>, vector<16x128xf32>
    %cst_215 = arith.constant dense<0xFF800000> : vector<16xf32>
    %474 = vector.multi_reduction <maximumf>, %473, %cst_215 [1] : vector<16x128xf32> to vector<16xf32>
    %475 = vector.shape_cast %474 : vector<16xf32> to vector<16x1xf32>
    %476 = vector.broadcast %475 : vector<16x1xf32> to vector<16x128xf32>
    %477 = arith.subf %473, %476 : vector<16x128xf32>
    %478 = math.exp %477 : vector<16x128xf32>
    %cst_216 = arith.constant 0.000000e+00 : f32
    %479 = vector.broadcast %cst_216 : f32 to vector<16x128xf32>
    %480 = arith.select %437, %478, %479 : vector<16x128xi1>, vector<16x128xf32>
    %cst_217 = arith.constant dense<0.000000e+00> : vector<16xf32>
    %481 = vector.multi_reduction <add>, %480, %cst_217 [1] : vector<16x128xf32> to vector<16xf32>
    %482 = vector.shape_cast %481 : vector<16xf32> to vector<16x1xf32>
    %cst_218 = arith.constant 0.000000e+00 : f32
    %483 = vector.broadcast %cst_218 : f32 to vector<16x1xf32>
    %484 = arith.cmpf ogt, %482, %483 : vector<16x1xf32>
    %cst_219 = arith.constant 1.000000e+00 : f32
    %485 = vector.broadcast %cst_219 : f32 to vector<16x1xf32>
    %486 = arith.select %484, %482, %485 : vector<16x1xi1>, vector<16x1xf32>
    %487 = vector.broadcast %486 : vector<16x1xf32> to vector<16x128xf32>
    %488 = arith.divf %480, %487 : vector<16x128xf32>
    %489 = arith.truncf %488 : vector<16x128xf32> to vector<16x128xbf16>
    %cst_220 = arith.constant dense<0.000000e+00> : vector<16x32xf32>
    %490 = tpu.matmul %489, %468, %cst_220 {dimension_numbers = #tpu.dot_dimension_numbers<[1], [0], [0], [1], [0, 0, 1, 1], [], []>} : vector<16x128xbf16>, vector<128x32xbf16>, vector<16x32xf32> -> vector<16x32xf32>
    %491 = arith.addf %453, %490 : vector<16x32xf32>
    %c16_i32_221 = arith.constant 16 : i32
    %492 = vector.broadcast %c16_i32_221 : i32 to vector<1x32xi32>
    %493 = arith.cmpi sge, %24, %492 : vector<1x32xi32>
    %c32_i32_222 = arith.constant 32 : i32
    %494 = vector.broadcast %c32_i32_222 : i32 to vector<1x32xi32>
    %495 = arith.cmpi slt, %24, %494 : vector<1x32xi32>
    %496 = arith.andi %493, %495 : vector<1x32xi1>
    %497 = vector.shape_cast %496 : vector<1x32xi1> to vector<1x32xi1>
    %498 = vector.broadcast %497 : vector<1x32xi1> to vector<16x32xi1>
    %cst_223 = arith.constant 0.000000e+00 : f32
    %499 = vector.broadcast %cst_223 : f32 to vector<16x32xf32>
    %500 = arith.select %498, %441, %499 : vector<16x32xi1>, vector<16x32xf32>
    %501 = arith.truncf %500 : vector<16x32xf32> to vector<16x32xbf16>
    %502 = vector.shape_cast %496 : vector<1x32xi1> to vector<1x32xi1>
    %503 = vector.broadcast %502 : vector<1x32xi1> to vector<128x32xi1>
    %cst_224 = arith.constant 0.000000e+00 : f32
    %504 = vector.broadcast %cst_224 : f32 to vector<128x32xf32>
    %505 = arith.select %503, %451, %504 : vector<128x32xi1>, vector<128x32xf32>
    %506 = arith.truncf %505 : vector<128x32xf32> to vector<128x32xbf16>
    %cst_225 = arith.constant dense<0.000000e+00> : vector<16x128xf32>
    %507 = tpu.matmul %501, %452, %cst_225 {dimension_numbers = #tpu.dot_dimension_numbers<[1], [1], [0], [0], [0, 0, 1, 0], [], []>} : vector<16x32xbf16>, vector<128x32xbf16>, vector<16x128xf32> -> vector<16x128xf32>
    %cst_226 = arith.constant 2.500000e-01 : f32
    %508 = vector.broadcast %cst_226 : f32 to vector<16x128xf32>
    %509 = arith.mulf %507, %508 : vector<16x128xf32>
    %cst_227 = arith.constant -1.000000e+30 : f32
    %510 = vector.broadcast %cst_227 : f32 to vector<16x128xf32>
    %511 = arith.select %437, %509, %510 : vector<16x128xi1>, vector<16x128xf32>
    %cst_228 = arith.constant dense<0xFF800000> : vector<16xf32>
    %512 = vector.multi_reduction <maximumf>, %511, %cst_228 [1] : vector<16x128xf32> to vector<16xf32>
    %513 = vector.shape_cast %512 : vector<16xf32> to vector<16x1xf32>
    %514 = vector.broadcast %513 : vector<16x1xf32> to vector<16x128xf32>
    %515 = arith.subf %511, %514 : vector<16x128xf32>
    %516 = math.exp %515 : vector<16x128xf32>
    %cst_229 = arith.constant 0.000000e+00 : f32
    %517 = vector.broadcast %cst_229 : f32 to vector<16x128xf32>
    %518 = arith.select %437, %516, %517 : vector<16x128xi1>, vector<16x128xf32>
    %cst_230 = arith.constant dense<0.000000e+00> : vector<16xf32>
    %519 = vector.multi_reduction <add>, %518, %cst_230 [1] : vector<16x128xf32> to vector<16xf32>
    %520 = vector.shape_cast %519 : vector<16xf32> to vector<16x1xf32>
    %cst_231 = arith.constant 0.000000e+00 : f32
    %521 = vector.broadcast %cst_231 : f32 to vector<16x1xf32>
    %522 = arith.cmpf ogt, %520, %521 : vector<16x1xf32>
    %cst_232 = arith.constant 1.000000e+00 : f32
    %523 = vector.broadcast %cst_232 : f32 to vector<16x1xf32>
    %524 = arith.select %522, %520, %523 : vector<16x1xi1>, vector<16x1xf32>
    %525 = vector.broadcast %524 : vector<16x1xf32> to vector<16x128xf32>
    %526 = arith.divf %518, %525 : vector<16x128xf32>
    %527 = arith.truncf %526 : vector<16x128xf32> to vector<16x128xbf16>
    %cst_233 = arith.constant dense<0.000000e+00> : vector<16x32xf32>
    %528 = tpu.matmul %527, %506, %cst_233 {dimension_numbers = #tpu.dot_dimension_numbers<[1], [0], [0], [1], [0, 0, 1, 1], [], []>} : vector<16x128xbf16>, vector<128x32xbf16>, vector<16x32xf32> -> vector<16x32xf32>
    %529 = arith.addf %491, %528 : vector<16x32xf32>
    %cst_234 = arith.constant dense<0.000000e+00> : vector<16x1xf32>
    %530 = tpu.matmul %446, %419, %cst_234 {dimension_numbers = #tpu.dot_dimension_numbers<[1], [0], [0], [1], [0, 0, 1, 1], [], []>} : vector<16x32xf32>, vector<32x1xf32>, vector<16x1xf32> -> vector<16x1xf32>
    %cst_235 = arith.constant dense<0.000000e+00> : vector<16x1xf32>
    %531 = tpu.matmul %529, %417, %cst_235 {dimension_numbers = #tpu.dot_dimension_numbers<[1], [0], [0], [1], [0, 0, 1, 1], [], []>} : vector<16x32xf32>, vector<32x1xf32>, vector<16x1xf32> -> vector<16x1xf32>
    %532 = arith.addf %530, %531 : vector<16x1xf32>
    %cst_236 = arith.constant 0.000000e+00 : f32
    %533 = vector.broadcast %cst_236 : f32 to vector<16x1xf32>
    %534 = arith.subf %533, %532 : vector<16x1xf32>
    %535 = math.exp %534 : vector<16x1xf32>
    %cst_237 = arith.constant 1.000000e+00 : f32
    %536 = vector.broadcast %cst_237 : f32 to vector<16x1xf32>
    %537 = arith.addf %536, %535 : vector<16x1xf32>
    %cst_238 = arith.constant 1.000000e+00 : f32
    %538 = vector.broadcast %cst_238 : f32 to vector<16x1xf32>
    %539 = arith.divf %538, %537 : vector<16x1xf32>
    %540 = vector.broadcast %539 : vector<16x1xf32> to vector<16x32xf32>
    %541 = arith.mulf %540, %446 : vector<16x32xf32>
    %cst_239 = arith.constant 1.000000e+00 : f32
    %542 = vector.broadcast %cst_239 : f32 to vector<16x1xf32>
    %543 = arith.subf %542, %539 : vector<16x1xf32>
    %544 = vector.broadcast %543 : vector<16x1xf32> to vector<16x32xf32>
    %545 = arith.mulf %544, %529 : vector<16x32xf32>
    %546 = arith.addf %541, %545 : vector<16x32xf32>
    %547 = arith.truncf %546 : vector<16x32xf32> to vector<16x32xbf16>
    %cst_240 = arith.constant dense<0.000000e+00> : vector<16x16xf32>
    %548 = tpu.matmul %547, %421, %cst_240 {dimension_numbers = #tpu.dot_dimension_numbers<[1], [0], [0], [1], [0, 0, 1, 1], [], []>} : vector<16x32xbf16>, vector<32x16xbf16>, vector<16x16xf32> -> vector<16x16xf32>
    %549 = vector.broadcast %423 : vector<1x16xf32> to vector<16x16xf32>
    %550 = arith.addf %548, %549 : vector<16x16xf32>
    %cst_241 = arith.constant 0.000000e+00 : f32
    %551 = vector.broadcast %cst_241 : f32 to vector<16x16xf32>
    %552 = arith.maximumf %550, %551 : vector<16x16xf32>
    %553 = vector.broadcast %425 : vector<1x16xf32> to vector<16x16xf32>
    %554 = arith.mulf %552, %553 : vector<16x16xf32>
    %555 = vector.broadcast %427 : vector<1x16xf32> to vector<16x16xf32>
    %556 = arith.addf %554, %555 : vector<16x16xf32>
    %c0_242 = arith.constant 0 : index
    %c1_243 = arith.constant 1 : index
    %557 = vector.load %arg24[%c0_242, %c1_243] : memref<16x2xf32, #tpu.memory_space<vmem>>, vector<16x1xf32>
    %cst_244 = arith.constant dense<0.000000e+00> : vector<16x1xf32>
    %558 = tpu.matmul %556, %557, %cst_244 {dimension_numbers = #tpu.dot_dimension_numbers<[1], [0], [0], [1], [0, 0, 1, 1], [], []>} : vector<16x16xf32>, vector<16x1xf32>, vector<16x1xf32> -> vector<16x1xf32>
    %559 = math.tanh %558 : vector<16x1xf32>
    %560 = tpu.iota {dimensions = array<i32: 0>} : vector<16x16xi32>
    %561 = tpu.iota {dimensions = array<i32: 1>} : vector<16x16xi32>
    %562 = arith.cmpi eq, %560, %561 : vector<16x16xi32>
    %cst_245 = arith.constant 1.000000e+00 : f32
    %cst_246 = arith.constant 0.000000e+00 : f32
    %563 = vector.broadcast %cst_245 : f32 to vector<16x16xf32>
    %564 = vector.broadcast %cst_246 : f32 to vector<16x16xf32>
    %565 = arith.select %562, %563, %564 : vector<16x16xi1>, vector<16x16xf32>
    %cst_247 = arith.constant dense<0.000000e+00> : vector<1x16xf32>
    %566 = tpu.matmul %559, %565, %cst_247 {dimension_numbers = #tpu.dot_dimension_numbers<[0], [0], [1], [1], [0, 1, 1, 1], [], []>} : vector<16x1xf32>, vector<16x16xf32>, vector<1x16xf32> -> vector<1x16xf32>
    %cst_248 = arith.constant dense<0.000000e+00> : vector<1x16xf32>
    %567 = tpu.matmul %357, %565, %cst_248 {dimension_numbers = #tpu.dot_dimension_numbers<[0], [0], [1], [1], [0, 1, 1, 1], [], []>} : vector<16x1xf32>, vector<16x16xf32>, vector<1x16xf32> -> vector<1x16xf32>
    %cst_249 = arith.constant dense<0.000000e+00> : vector<2x1xf32>
    %568 = tpu.matmul %22, %357, %cst_249 {dimension_numbers = #tpu.dot_dimension_numbers<[0], [0], [1], [1], [0, 1, 1, 1], [], []>} : vector<16x2xf32>, vector<16x1xf32>, vector<2x1xf32> -> vector<2x1xf32>
    %cst_250 = arith.constant 5.000000e-01 : f32
    %569 = vector.broadcast %cst_250 : f32 to vector<2x1xf32>
    %570 = arith.mulf %569, %568 : vector<2x1xf32>
    %cst_251 = arith.constant dense<0.000000e+00> : vector<16x1xf32>
    %571 = tpu.matmul %22, %570, %cst_251 {dimension_numbers = #tpu.dot_dimension_numbers<[1], [0], [0], [1], [0, 0, 1, 1], [], []>} : vector<16x2xf32>, vector<2x1xf32>, vector<16x1xf32> -> vector<16x1xf32>
    %cst_252 = arith.constant dense<0.000000e+00> : vector<16x16xf32>
    %572 = tpu.matmul %22, %22, %cst_252 {dimension_numbers = #tpu.dot_dimension_numbers<[1], [1], [0], [0], [0, 0, 1, 0], [], []>} : vector<16x2xf32>, vector<16x2xf32>, vector<16x16xf32> -> vector<16x16xf32>
    %573 = vector.shape_cast %559 : vector<16x1xf32> to vector<16x1xf32>
    %574 = vector.broadcast %573 : vector<16x1xf32> to vector<16x16xf32>
    %575 = vector.shape_cast %566 : vector<1x16xf32> to vector<1x16xf32>
    %576 = vector.broadcast %575 : vector<1x16xf32> to vector<16x16xf32>
    %577 = vector.shape_cast %567 : vector<1x16xf32> to vector<1x16xf32>
    %578 = vector.broadcast %577 : vector<1x16xf32> to vector<16x16xf32>
    %579 = arith.cmpi ne, %560, %561 : vector<16x16xi32>
    %580 = arith.cmpf ogt, %576, %574 : vector<16x16xf32>
    %581 = arith.cmpf oeq, %576, %574 : vector<16x16xf32>
    %582 = arith.cmpi slt, %561, %560 : vector<16x16xi32>
    %583 = arith.andi %581, %582 : vector<16x16xi1>
    %584 = arith.ori %580, %583 : vector<16x16xi1>
    %585 = arith.andi %579, %584 : vector<16x16xi1>
    %cst_253 = arith.constant 1.000000e+00 : f32
    %cst_254 = arith.constant 0.000000e+00 : f32
    %586 = vector.broadcast %cst_253 : f32 to vector<16x16xf32>
    %587 = vector.broadcast %cst_254 : f32 to vector<16x16xf32>
    %588 = arith.select %585, %586, %587 : vector<16x16xi1>, vector<16x16xf32>
    %589 = arith.mulf %588, %572 : vector<16x16xf32>
    %590 = arith.mulf %589, %578 : vector<16x16xf32>
    %cst_255 = arith.constant dense<0.000000e+00> : vector<16xf32>
    %591 = vector.multi_reduction <add>, %590, %cst_255 [1] : vector<16x16xf32> to vector<16xf32>
    %592 = vector.shape_cast %591 : vector<16xf32> to vector<16x1xf32>
    %cst_256 = arith.constant 0.000000e+00 : f32
    %593 = vector.broadcast %cst_256 : f32 to vector<16x1xf32>
    %594 = arith.cmpf ogt, %357, %593 : vector<16x1xf32>
    %595 = arith.cmpf olt, %592, %571 : vector<16x1xf32>
    %596 = arith.andi %594, %595 : vector<16x1xi1>
    %cst_257 = arith.constant 1.000000e+00 : f32
    %cst_258 = arith.constant 0.000000e+00 : f32
    %597 = vector.broadcast %cst_257 : f32 to vector<16x1xf32>
    %598 = vector.broadcast %cst_258 : f32 to vector<16x1xf32>
    %599 = arith.select %596, %597, %598 : vector<16x1xi1>, vector<16x1xf32>
    %600 = arith.mulf %559, %599 : vector<16x1xf32>
    %601 = vector.broadcast %600 : vector<16x1xf32> to vector<16x16xf32>
    %602 = arith.mulf %556, %601 : vector<16x16xf32>
    %603 = vector.broadcast %599 : vector<16x1xf32> to vector<16x2xf32>
    %604 = arith.mulf %22, %603 : vector<16x2xf32>
    %cst_259 = arith.constant dense<0.000000e+00> : vector<2x1xf32>
    %605 = tpu.matmul %22, %599, %cst_259 {dimension_numbers = #tpu.dot_dimension_numbers<[0], [0], [1], [1], [0, 1, 1, 1], [], []>} : vector<16x2xf32>, vector<16x1xf32>, vector<2x1xf32> -> vector<2x1xf32>
    %cst_260 = arith.constant dense<0.000000e+00> : vector<2x16xf32>
    %606 = tpu.matmul %604, %602, %cst_260 {dimension_numbers = #tpu.dot_dimension_numbers<[0], [0], [1], [1], [0, 1, 1, 1], [], []>} : vector<16x2xf32>, vector<16x16xf32>, vector<2x16xf32> -> vector<2x16xf32>
    %cst_261 = arith.constant 1.000000e+00 : f32
    %607 = vector.broadcast %cst_261 : f32 to vector<2x1xf32>
    %608 = arith.maximumf %605, %607 : vector<2x1xf32>
    %cst_262 = arith.constant 1.000000e+00 : f32
    %609 = vector.broadcast %cst_262 : f32 to vector<2x1xf32>
    %610 = arith.divf %609, %608 : vector<2x1xf32>
    %611 = vector.broadcast %610 : vector<2x1xf32> to vector<2x16xf32>
    %612 = arith.mulf %606, %611 : vector<2x16xf32>
    %613 = tpu.iota {dimensions = array<i32: 0>} : vector<2x16xi32>
    %cst_263 = arith.constant 0.000000e+00 : f32
    %614 = vector.broadcast %cst_263 : f32 to vector<2x16xf32>
    %615 = vector.extract_strided_slice %604 {offsets = [0, 0], sizes = [16, 1], strides = [1, 1]} : vector<16x2xf32> to vector<16x1xf32>
    %cst_264 = arith.constant 0.000000e+00 : f32
    %616 = vector.broadcast %cst_264 : f32 to vector<16x1xf32>
    %617 = arith.cmpf ogt, %615, %616 : vector<16x1xf32>
    %618 = vector.shape_cast %617 : vector<16x1xi1> to vector<16x1xi1>
    %619 = vector.broadcast %618 : vector<16x1xi1> to vector<16x16xi1>
    %cst_265 = arith.constant -1.000000e+30 : f32
    %620 = vector.broadcast %cst_265 : f32 to vector<16x16xf32>
    %621 = arith.select %619, %602, %620 : vector<16x16xi1>, vector<16x16xf32>
    %cst_266 = arith.constant dense<0xFF800000> : vector<16xf32>
    %622 = vector.multi_reduction <maximumf>, %621, %cst_266 [0] : vector<16x16xf32> to vector<16xf32>
    %623 = vector.shape_cast %622 : vector<16xf32> to vector<1x16xf32>
    %c0_i32_267 = arith.constant 0 : i32
    %624 = vector.broadcast %c0_i32_267 : i32 to vector<2x16xi32>
    %625 = arith.cmpi eq, %613, %624 : vector<2x16xi32>
    %626 = vector.shape_cast %623 : vector<1x16xf32> to vector<1x16xf32>
    %627 = vector.broadcast %626 : vector<1x16xf32> to vector<2x16xf32>
    %628 = arith.select %625, %627, %614 : vector<2x16xi1>, vector<2x16xf32>
    %629 = vector.extract_strided_slice %604 {offsets = [0, 1], sizes = [16, 1], strides = [1, 1]} : vector<16x2xf32> to vector<16x1xf32>
    %cst_268 = arith.constant 0.000000e+00 : f32
    %630 = vector.broadcast %cst_268 : f32 to vector<16x1xf32>
    %631 = arith.cmpf ogt, %629, %630 : vector<16x1xf32>
    %632 = vector.shape_cast %631 : vector<16x1xi1> to vector<16x1xi1>
    %633 = vector.broadcast %632 : vector<16x1xi1> to vector<16x16xi1>
    %cst_269 = arith.constant -1.000000e+30 : f32
    %634 = vector.broadcast %cst_269 : f32 to vector<16x16xf32>
    %635 = arith.select %633, %602, %634 : vector<16x16xi1>, vector<16x16xf32>
    %cst_270 = arith.constant dense<0xFF800000> : vector<16xf32>
    %636 = vector.multi_reduction <maximumf>, %635, %cst_270 [0] : vector<16x16xf32> to vector<16xf32>
    %637 = vector.shape_cast %636 : vector<16xf32> to vector<1x16xf32>
    %c1_i32_271 = arith.constant 1 : i32
    %638 = vector.broadcast %c1_i32_271 : i32 to vector<2x16xi32>
    %639 = arith.cmpi eq, %613, %638 : vector<2x16xi32>
    %640 = vector.shape_cast %637 : vector<1x16xf32> to vector<1x16xf32>
    %641 = vector.broadcast %640 : vector<1x16xf32> to vector<2x16xf32>
    %642 = arith.select %639, %641, %628 : vector<2x16xi1>, vector<2x16xf32>
    %cst_272 = arith.constant 0.000000e+00 : f32
    %643 = vector.broadcast %cst_272 : f32 to vector<2x1xf32>
    %644 = arith.cmpf ogt, %605, %643 : vector<2x1xf32>
    %645 = vector.shape_cast %644 : vector<2x1xi1> to vector<2x1xi1>
    %646 = vector.broadcast %645 : vector<2x1xi1> to vector<2x16xi1>
    %cst_273 = arith.constant 0.000000e+00 : f32
    %647 = vector.broadcast %cst_273 : f32 to vector<2x16xf32>
    %648 = arith.select %646, %642, %647 : vector<2x16xi1>, vector<2x16xf32>
    %649 = arith.addf %407, %648 : vector<2x16xf32>
    %650 = arith.addf %408, %612 : vector<2x16xf32>
    %651 = arith.truncf %649 : vector<2x16xf32> to vector<2x16xbf16>
    %c0_274 = arith.constant 0 : index
    %c0_275 = arith.constant 0 : index
    %652 = vector.load %arg25[%c0_274, %c0_275] : memref<16x32xbf16, #tpu.memory_space<vmem>>, vector<16x32xbf16>
    %cst_276 = arith.constant dense<0.000000e+00> : vector<2x32xf32>
    %653 = tpu.matmul %651, %652, %cst_276 {dimension_numbers = #tpu.dot_dimension_numbers<[1], [0], [0], [1], [0, 0, 1, 1], [], []>} : vector<2x16xbf16>, vector<16x32xbf16>, vector<2x32xf32> -> vector<2x32xf32>
    %654 = arith.truncf %650 : vector<2x16xf32> to vector<2x16xbf16>
    %c0_277 = arith.constant 0 : index
    %c0_278 = arith.constant 0 : index
    %655 = vector.load %arg26[%c0_277, %c0_278] : memref<16x32xbf16, #tpu.memory_space<vmem>>, vector<16x32xbf16>
    %cst_279 = arith.constant dense<0.000000e+00> : vector<2x32xf32>
    %656 = tpu.matmul %654, %655, %cst_279 {dimension_numbers = #tpu.dot_dimension_numbers<[1], [0], [0], [1], [0, 0, 1, 1], [], []>} : vector<2x16xbf16>, vector<16x32xbf16>, vector<2x32xf32> -> vector<2x32xf32>
    %657 = arith.addf %653, %656 : vector<2x32xf32>
    %c0_280 = arith.constant 0 : index
    %c0_281 = arith.constant 0 : index
    %658 = vector.load %arg27[%c0_280, %c0_281] : memref<1x32xf32, #tpu.memory_space<vmem>>, vector<1x32xf32>
    %659 = vector.broadcast %658 : vector<1x32xf32> to vector<2x32xf32>
    %660 = arith.addf %657, %659 : vector<2x32xf32>
    %cst_282 = arith.constant 0.000000e+00 : f32
    %661 = vector.broadcast %cst_282 : f32 to vector<2x32xf32>
    %662 = arith.maximumf %660, %661 : vector<2x32xf32>
    %663 = arith.truncf %662 : vector<2x32xf32> to vector<2x32xbf16>
    %c0_283 = arith.constant 0 : index
    %c0_284 = arith.constant 0 : index
    %664 = vector.load %arg28[%c0_283, %c0_284] : memref<32x16xbf16, #tpu.memory_space<vmem>>, vector<32x16xbf16>
    %cst_285 = arith.constant dense<0.000000e+00> : vector<2x16xf32>
    %665 = tpu.matmul %663, %664, %cst_285 {dimension_numbers = #tpu.dot_dimension_numbers<[1], [0], [0], [1], [0, 0, 1, 1], [], []>} : vector<2x32xbf16>, vector<32x16xbf16>, vector<2x16xf32> -> vector<2x16xf32>
    %c0_286 = arith.constant 0 : index
    %c0_287 = arith.constant 0 : index
    %666 = vector.load %arg29[%c0_286, %c0_287] : memref<1x16xf32, #tpu.memory_space<vmem>>, vector<1x16xf32>
    %667 = vector.broadcast %666 : vector<1x16xf32> to vector<2x16xf32>
    %668 = arith.addf %665, %667 : vector<2x16xf32>
    %cst_288 = arith.constant 0.000000e+00 : f32
    %669 = vector.broadcast %cst_288 : f32 to vector<2x16xf32>
    %670 = arith.maximumf %668, %669 : vector<2x16xf32>
    %671 = arith.truncf %670 : vector<2x16xf32> to vector<2x16xbf16>
    %c0_289 = arith.constant 0 : index
    %c0_290 = arith.constant 0 : index
    %672 = vector.load %arg30[%c0_289, %c0_290] : memref<16x1xbf16, #tpu.memory_space<vmem>>, vector<16x1xbf16>
    %cst_291 = arith.constant dense<0.000000e+00> : vector<2x1xf32>
    %673 = tpu.matmul %671, %672, %cst_291 {dimension_numbers = #tpu.dot_dimension_numbers<[1], [0], [0], [1], [0, 0, 1, 1], [], []>} : vector<2x16xbf16>, vector<16x1xbf16>, vector<2x1xf32> -> vector<2x1xf32>
    %c0_292 = arith.constant 0 : index
    %c0_293 = arith.constant 0 : index
    %674 = vector.load %arg31[%c0_292, %c0_293] : memref<1x1xf32, #tpu.memory_space<vmem>>, vector<1x1xf32>
    %675 = vector.broadcast %674 : vector<1x1xf32> to vector<2x1xf32>
    %676 = arith.addf %673, %675 : vector<2x1xf32>
    %c0_294 = arith.constant 0 : index
    %c0_295 = arith.constant 0 : index
    %677 = vector.load %arg32[%c0_294, %c0_295] : memref<2x1xf32, #tpu.memory_space<vmem>>, vector<2x1xf32>
    tpu.vector_store %arg32[%c0_294, %c0_295], %676 {strides = array<i32>} : memref<2x1xf32, #tpu.memory_space<vmem>>, vector<2x1xf32>,
    return
  }
  func.func @transform_0(%arg0: i32) -> (i32, i32) {
    %c0_i32 = arith.constant 0 : i32
    %c0_i32_0 = arith.constant 0 : i32
    %c0_i32_1 = arith.constant 0 : i32
    return %c0_i32, %c0_i32_0 : i32, i32
  }
  func.func @transform_1(%arg0: i32) -> (i32, i32) {
    %c0_i32 = arith.constant 0 : i32
    %c0_i32_0 = arith.constant 0 : i32
    %c0_i32_1 = arith.constant 0 : i32
    return %c0_i32, %c0_i32_0 : i32, i32
  }
  func.func @transform_2(%arg0: i32) -> (i32, i32) {
    %c0_i32 = arith.constant 0 : i32
    %c0_i32_0 = arith.constant 0 : i32
    %c0_i32_1 = arith.constant 0 : i32
    return %c0_i32, %c0_i32_0 : i32, i32
  }
  func.func @transform_3(%arg0: i32) -> (i32, i32) {
    %c0_i32 = arith.constant 0 : i32
    %c0_i32_0 = arith.constant 0 : i32
    %c0_i32_1 = arith.constant 0 : i32
    return %c0_i32, %c0_i32_0 : i32, i32
  }
  func.func @transform_4(%arg0: i32) -> (i32, i32) {
    %c0_i32 = arith.constant 0 : i32
    %c0_i32_0 = arith.constant 0 : i32
    %c0_i32_1 = arith.constant 0 : i32
    return %c0_i32, %c0_i32_0 : i32, i32
  }
  func.func @transform_5(%arg0: i32) -> (i32, i32) {
    %c0_i32 = arith.constant 0 : i32
    %c0_i32_0 = arith.constant 0 : i32
    %c0_i32_1 = arith.constant 0 : i32
    return %c0_i32, %c0_i32_0 : i32, i32
  }
  func.func @transform_6(%arg0: i32) -> (i32, i32) {
    %c0_i32 = arith.constant 0 : i32
    %c0_i32_0 = arith.constant 0 : i32
    %c0_i32_1 = arith.constant 0 : i32
    return %c0_i32, %c0_i32_0 : i32, i32
  }
  func.func @transform_7(%arg0: i32) -> (i32, i32) {
    %c0_i32 = arith.constant 0 : i32
    %c0_i32_0 = arith.constant 0 : i32
    %c0_i32_1 = arith.constant 0 : i32
    return %c0_i32, %c0_i32_0 : i32, i32
  }
  func.func @transform_8(%arg0: i32) -> (i32, i32) {
    %c0_i32 = arith.constant 0 : i32
    %c0_i32_0 = arith.constant 0 : i32
    %c0_i32_1 = arith.constant 0 : i32
    return %c0_i32, %c0_i32_0 : i32, i32
  }
  func.func @transform_9(%arg0: i32) -> (i32, i32) {
    %c0_i32 = arith.constant 0 : i32
    %c0_i32_0 = arith.constant 0 : i32
    %c0_i32_1 = arith.constant 0 : i32
    return %c0_i32, %c0_i32_0 : i32, i32
  }
  func.func @transform_10(%arg0: i32) -> (i32, i32) {
    %c0_i32 = arith.constant 0 : i32
    %c0_i32_0 = arith.constant 0 : i32
    %c0_i32_1 = arith.constant 0 : i32
    return %c0_i32, %c0_i32_0 : i32, i32
  }
  func.func @transform_11(%arg0: i32) -> (i32, i32) {
    %c0_i32 = arith.constant 0 : i32
    %c0_i32_0 = arith.constant 0 : i32
    %c0_i32_1 = arith.constant 0 : i32
    return %c0_i32, %c0_i32_0 : i32, i32
  }
  func.func @transform_12(%arg0: i32) -> (i32, i32) {
    %c0_i32 = arith.constant 0 : i32
    %c0_i32_0 = arith.constant 0 : i32
    %c0_i32_1 = arith.constant 0 : i32
    return %c0_i32, %c0_i32_0 : i32, i32
  }
  func.func @transform_13(%arg0: i32) -> (i32, i32) {
    %c0_i32 = arith.constant 0 : i32
    %c0_i32_0 = arith.constant 0 : i32
    %c0_i32_1 = arith.constant 0 : i32
    return %c0_i32, %c0_i32_0 : i32, i32
  }
  func.func @transform_14(%arg0: i32) -> (i32, i32, i32) {
    %c0_i32 = arith.constant 0 : i32
    %c0_i32_0 = arith.constant 0 : i32
    %c0_i32_1 = arith.constant 0 : i32
    %c0_i32_2 = arith.constant 0 : i32
    return %c0_i32, %c0_i32_0, %c0_i32_1 : i32, i32, i32
  }
  func.func @transform_15(%arg0: i32) -> (i32, i32, i32) {
    %c0_i32 = arith.constant 0 : i32
    %c0_i32_0 = arith.constant 0 : i32
    %c0_i32_1 = arith.constant 0 : i32
    %c0_i32_2 = arith.constant 0 : i32
    return %c0_i32, %c0_i32_0, %c0_i32_1 : i32, i32, i32
  }
  func.func @transform_16(%arg0: i32) -> (i32, i32, i32) {
    %c0_i32 = arith.constant 0 : i32
    %c0_i32_0 = arith.constant 0 : i32
    %c0_i32_1 = arith.constant 0 : i32
    %c0_i32_2 = arith.constant 0 : i32
    return %c0_i32, %c0_i32_0, %c0_i32_1 : i32, i32, i32
  }
  func.func @transform_17(%arg0: i32) -> (i32, i32, i32) {
    %c0_i32 = arith.constant 0 : i32
    %c0_i32_0 = arith.constant 0 : i32
    %c0_i32_1 = arith.constant 0 : i32
    %c0_i32_2 = arith.constant 0 : i32
    return %c0_i32, %c0_i32_0, %c0_i32_1 : i32, i32, i32
  }
  func.func @transform_18(%arg0: i32) -> (i32, i32, i32) {
    %c0_i32 = arith.constant 0 : i32
    %c0_i32_0 = arith.constant 0 : i32
    %c0_i32_1 = arith.constant 0 : i32
    %c0_i32_2 = arith.constant 0 : i32
    return %c0_i32, %c0_i32_0, %c0_i32_1 : i32, i32, i32
  }
  func.func @transform_19(%arg0: i32) -> (i32, i32, i32) {
    %c0_i32 = arith.constant 0 : i32
    %c0_i32_0 = arith.constant 0 : i32
    %c0_i32_1 = arith.constant 0 : i32
    %c0_i32_2 = arith.constant 0 : i32
    return %c0_i32, %c0_i32_0, %c0_i32_1 : i32, i32, i32
  }
  func.func @transform_20(%arg0: i32) -> (i32, i32, i32) {
    %c0_i32 = arith.constant 0 : i32
    %c0_i32_0 = arith.constant 0 : i32
    %c0_i32_1 = arith.constant 0 : i32
    %c0_i32_2 = arith.constant 0 : i32
    return %c0_i32, %c0_i32_0, %c0_i32_1 : i32, i32, i32
  }
  func.func @transform_21(%arg0: i32) -> (i32, i32, i32) {
    %c0_i32 = arith.constant 0 : i32
    %c0_i32_0 = arith.constant 0 : i32
    %c0_i32_1 = arith.constant 0 : i32
    %c0_i32_2 = arith.constant 0 : i32
    return %c0_i32, %c0_i32_0, %c0_i32_1 : i32, i32, i32
  }
  func.func @transform_22(%arg0: i32) -> (i32, i32, i32) {
    %c0_i32 = arith.constant 0 : i32
    %c0_i32_0 = arith.constant 0 : i32
    %c0_i32_1 = arith.constant 0 : i32
    %c0_i32_2 = arith.constant 0 : i32
    return %c0_i32, %c0_i32_0, %c0_i32_1 : i32, i32, i32
  }
  func.func @transform_23(%arg0: i32) -> (i32, i32) {
    %c0_i32 = arith.constant 0 : i32
    %c0_i32_0 = arith.constant 0 : i32
    %c0_i32_1 = arith.constant 0 : i32
    return %c0_i32, %c0_i32_0 : i32, i32
  }
  func.func @transform_24(%arg0: i32) -> (i32, i32) {
    %c0_i32 = arith.constant 0 : i32
    %c0_i32_0 = arith.constant 0 : i32
    %c0_i32_1 = arith.constant 0 : i32
    return %c0_i32, %c0_i32_0 : i32, i32
  }
  func.func @transform_25(%arg0: i32) -> (i32, i32) {
    %c0_i32 = arith.constant 0 : i32
    %c0_i32_0 = arith.constant 0 : i32
    %c0_i32_1 = arith.constant 0 : i32
    return %c0_i32, %c0_i32_0 : i32, i32
  }
  func.func @transform_26(%arg0: i32) -> (i32, i32) {
    %c0_i32 = arith.constant 0 : i32
    %c0_i32_0 = arith.constant 0 : i32
    %c0_i32_1 = arith.constant 0 : i32
    return %c0_i32, %c0_i32_0 : i32, i32
  }
  func.func @transform_27(%arg0: i32) -> (i32, i32) {
    %c0_i32 = arith.constant 0 : i32
    %c0_i32_0 = arith.constant 0 : i32
    %c0_i32_1 = arith.constant 0 : i32
    return %c0_i32, %c0_i32_0 : i32, i32
  }
  func.func @transform_28(%arg0: i32) -> (i32, i32) {
    %c0_i32 = arith.constant 0 : i32
    %c0_i32_0 = arith.constant 0 : i32
    %c0_i32_1 = arith.constant 0 : i32
    return %c0_i32, %c0_i32_0 : i32, i32
  }
  func.func @transform_29(%arg0: i32) -> (i32, i32) {
    %c0_i32 = arith.constant 0 : i32
    %c0_i32_0 = arith.constant 0 : i32
    %c0_i32_1 = arith.constant 0 : i32
    return %c0_i32, %c0_i32_0 : i32, i32
  }
  func.func @transform_30(%arg0: i32) -> (i32, i32) {
    %c0_i32 = arith.constant 0 : i32
    %c0_i32_0 = arith.constant 0 : i32
    %c0_i32_1 = arith.constant 0 : i32
    return %c0_i32, %c0_i32_0 : i32, i32
  }
  func.func @transform_31(%arg0: i32) -> (i32, i32) {
    %c0_i32 = arith.constant 0 : i32
    %c0_i32_0 = arith.constant 0 : i32
    %c0_i32_1 = arith.constant 0 : i32
    return %c0_i32, %c0_i32_0 : i32, i32
  }
}

</mosaic_0001>

<llo_original>
// kernel: gnn_trans_forward.1
$region0: #{gnn_trans_forward.1}
  #allocation0 [shape = 'u32[]', space=smem, size = 0x4, offset = 0x4, fixed_abs, tag = 'smem constant byte address 0x4 - core index']
  #allocation1 [shape = 'u32[144,128]{1,0:T(1,128)}', space=vmem, size = 0x12000, scoped, tag = 'internal scratch']
  #allocation2 [shape = 'f32[1,1]{1,0:T(1,128)S(1)}', space=vmem, size = 0x200, scoped, tag = 'scoped memory for gnn_trans_forward.1']
  %s0 = inlined_call_operand.smem [shape: u32[32], index: -1, kind: input, shape index: {}]
  %s1 = sld [smem:[%s0]]
  %s2 = scalar_lea.smem %s0, 1
  %s3 = sld [smem:[%s2]]
  %s4 = scalar_lea.smem %s0, 2
  %s5 = sld [smem:[%s4]]
  %s6 = scalar_lea.smem %s0, 3
  %s7 = sld [smem:[%s6]]
  %s8 = scalar_lea.smem %s0, 4
  %s9 = sld [smem:[%s8]]
  %s10 = scalar_lea.smem %s0, 5
  %s11 = sld [smem:[%s10]]
  %s12 = scalar_lea.smem %s0, 6
  %s13 = sld [smem:[%s12]]
  %s14 = scalar_lea.smem %s0, 7
  %s15 = sld [smem:[%s14]]
  %s16 = scalar_lea.smem %s0, 8
  %s17 = sld [smem:[%s16]]
  %s18 = scalar_lea.smem %s0, 9
  %s19 = sld [smem:[%s18]]
  %s20 = scalar_lea.smem %s0, 10
  %s21 = sld [smem:[%s20]]
  %s22 = scalar_lea.smem %s0, 11
  %s23 = sld [smem:[%s22]]
  %s24 = scalar_lea.smem %s0, 12
  %s25 = sld [smem:[%s24]]
  %s26 = scalar_lea.smem %s0, 13
  %s27 = sld [smem:[%s26]]
  %s28 = scalar_lea.smem %s0, 14
  %s29 = sld [smem:[%s28]]
  %s30 = scalar_lea.smem %s0, 15
  %s31 = sld [smem:[%s30]]
  %s32 = scalar_lea.smem %s0, 16
  %s33 = sld [smem:[%s32]]
  %s34 = scalar_lea.smem %s0, 17
  %s35 = sld [smem:[%s34]]
  %s36 = scalar_lea.smem %s0, 18
  %s37 = sld [smem:[%s36]]
  %s38 = scalar_lea.smem %s0, 19
  %s39 = sld [smem:[%s38]]
  %s40 = scalar_lea.smem %s0, 20
  %s41 = sld [smem:[%s40]]
  %s42 = scalar_lea.smem %s0, 21
  %s43 = sld [smem:[%s42]]
  %s44 = scalar_lea.smem %s0, 22
  %s45 = sld [smem:[%s44]]
  %s46 = scalar_lea.smem %s0, 23
  %s47 = sld [smem:[%s46]]
  %s48 = scalar_lea.smem %s0, 24
  %s49 = sld [smem:[%s48]]
  %s50 = scalar_lea.smem %s0, 25
  %s51 = sld [smem:[%s50]]
  %s52 = scalar_lea.smem %s0, 26
  %s53 = sld [smem:[%s52]]
  %s54 = scalar_lea.smem %s0, 27
  %s55 = sld [smem:[%s54]]
  %s56 = scalar_lea.smem %s0, 28
  %s57 = sld [smem:[%s56]]
  %s58 = scalar_lea.smem %s0, 29
  %s59 = sld [smem:[%s58]]
  %s60 = scalar_lea.smem %s0, 30
  %s61 = sld [smem:[%s60]]
  %s62 = scalar_lea.smem %s0, 31
  %s63 = sld [smem:[%s62]]
  %s64 = sld [smem:[#allocation0]]
  $region134: #{gnn_trans_forward.1} parent=0
    _
  %s66 = ssub.s32 1, %s64
  %s67 = scalar_select 0, %s66, %s64
  %v68 = vstv %s61
  %69 = vst [vmem:[#allocation2] sm:$0x1] %v68
  // Predicated region
  $region2: #{gnn_trans_forward.1} parent=0 // pred_check
    _
  $region3: #{gnn_trans_forward.1} parent=0 // pred_check_branch
    %71 = sbr.rel (0) target = $region5
  $region4: #{gnn_trans_forward.1} parent=0 // pred_region
    _
  $region5: #{gnn_trans_forward.1} parent=0 // pred_fallthru
    _
  // Predicated region
  $region6: #{gnn_trans_forward.1} parent=0 // pred_check
    _
  $region7: #{gnn_trans_forward.1} parent=0 // pred_check_branch
    %73 = sbr.rel (0) target = $region9
  $region8: #{gnn_trans_forward.1} parent=0 // pred_region
    _
  $region9: #{gnn_trans_forward.1} parent=0 // pred_fallthru
    _
  // Predicated region
  $region10: #{gnn_trans_forward.1} parent=0 // pred_check
    _
  $region11: #{gnn_trans_forward.1} parent=0 // pred_check_branch
    %75 = sbr.rel (0) target = $region13
  $region12: #{gnn_trans_forward.1} parent=0 // pred_region
    _
  $region13: #{gnn_trans_forward.1} parent=0 // pred_fallthru
    _
  // Predicated region
  $region14: #{gnn_trans_forward.1} parent=0 // pred_check
    _
  $region15: #{gnn_trans_forward.1} parent=0 // pred_check_branch
    %77 = sbr.rel (0) target = $region17
  $region16: #{gnn_trans_forward.1} parent=0 // pred_region
    _
  $region17: #{gnn_trans_forward.1} parent=0 // pred_fallthru
    _
  // Predicated region
  $region18: #{gnn_trans_forward.1} parent=0 // pred_check
    _
  $region19: #{gnn_trans_forward.1} parent=0 // pred_check_branch
    %79 = sbr.rel (0) target = $region21
  $region20: #{gnn_trans_forward.1} parent=0 // pred_region
    _
  $region21: #{gnn_trans_forward.1} parent=0 // pred_fallthru
    _
  // Predicated region
  $region22: #{gnn_trans_forward.1} parent=0 // pred_check
    _
  $region23: #{gnn_trans_forward.1} parent=0 // pred_check_branch
    %81 = sbr.rel (0) target = $region25
  $region24: #{gnn_trans_forward.1} parent=0 // pred_region
    _
  $region25: #{gnn_trans_forward.1} parent=0 // pred_fallthru
    _
  // Predicated region
  $region26: #{gnn_trans_forward.1} parent=0 // pred_check
    _
  $region27: #{gnn_trans_forward.1} parent=0 // pred_check_branch
    %83 = sbr.rel (0) target = $region29
  $region28: #{gnn_trans_forward.1} parent=0 // pred_region
    _
  $region29: #{gnn_trans_forward.1} parent=0 // pred_fallthru
    _
  // Predicated region
  $region30: #{gnn_trans_forward.1} parent=0 // pred_check
    _
  $region31: #{gnn_trans_forward.1} parent=0 // pred_check_branch
    %85 = sbr.rel (0) target = $region33
  $region32: #{gnn_trans_forward.1} parent=0 // pred_region
    _
  $region33: #{gnn_trans_forward.1} parent=0 // pred_fallthru
    _
  // Predicated region
  $region34: #{gnn_trans_forward.1} parent=0 // pred_check
    _
  $region35: #{gnn_trans_forward.1} parent=0 // pred_check_branch
    %87 = sbr.rel (0) target = $region37
  $region36: #{gnn_trans_forward.1} parent=0 // pred_region
    _
  $region37: #{gnn_trans_forward.1} parent=0 // pred_fallthru
    _
  // Predicated region
  $region38: #{gnn_trans_forward.1} parent=0 // pred_check
    _
  $region39: #{gnn_trans_forward.1} parent=0 // pred_check_branch
    %89 = sbr.rel (0) target = $region41
  $region40: #{gnn_trans_forward.1} parent=0 // pred_region
    _
  $region41: #{gnn_trans_forward.1} parent=0 // pred_fallthru
    _
  // Predicated region
  $region42: #{gnn_trans_forward.1} parent=0 // pred_check
    _
  $region43: #{gnn_trans_forward.1} parent=0 // pred_check_branch
    %91 = sbr.rel (0) target = $region45
  $region44: #{gnn_trans_forward.1} parent=0 // pred_region
    _
  $region45: #{gnn_trans_forward.1} parent=0 // pred_fallthru
    _
  // Predicated region
  $region46: #{gnn_trans_forward.1} parent=0 // pred_check
    _
  $region47: #{gnn_trans_forward.1} parent=0 // pred_check_branch
    %93 = sbr.rel (0) target = $region49
  $region48: #{gnn_trans_forward.1} parent=0 // pred_region
    _
  $region49: #{gnn_trans_forward.1} parent=0 // pred_fallthru
    _
  // Predicated region
  $region50: #{gnn_trans_forward.1} parent=0 // pred_check
    _
  $region51: #{gnn_trans_forward.1} parent=0 // pred_check_branch
    %95 = sbr.rel (0) target = $region53
  $region52: #{gnn_trans_forward.1} parent=0 // pred_region
    _
  $region53: #{gnn_trans_forward.1} parent=0 // pred_fallthru
    _
  // Predicated region
  $region54: #{gnn_trans_forward.1} parent=0 // pred_check
    _
  $region55: #{gnn_trans_forward.1} parent=0 // pred_check_branch
    %97 = sbr.rel (0) target = $region57
  $region56: #{gnn_trans_forward.1} parent=0 // pred_region
    _
  $region57: #{gnn_trans_forward.1} parent=0 // pred_fallthru
    _
  // Predicated region
  $region58: #{gnn_trans_forward.1} parent=0 // pred_check
    _
  $region59: #{gnn_trans_forward.1} parent=0 // pred_check_branch
    %99 = sbr.rel (0) target = $region61
  $region60: #{gnn_trans_forward.1} parent=0 // pred_region
    _
  $region61: #{gnn_trans_forward.1} parent=0 // pred_fallthru
    _
  // Predicated region
  $region62: #{gnn_trans_forward.1} parent=0 // pred_check
    _
  $region63: #{gnn_trans_forward.1} parent=0 // pred_check_branch
    %101 = sbr.rel (0) target = $region65
  $region64: #{gnn_trans_forward.1} parent=0 // pred_region
    _
  $region65: #{gnn_trans_forward.1} parent=0 // pred_fallthru
    _
  // Predicated region
  $region66: #{gnn_trans_forward.1} parent=0 // pred_check
    _
  $region67: #{gnn_trans_forward.1} parent=0 // pred_check_branch
    %103 = sbr.rel (0) target = $region69
  $region68: #{gnn_trans_forward.1} parent=0 // pred_region
    _
  $region69: #{gnn_trans_forward.1} parent=0 // pred_fallthru
    _
  // Predicated region
  $region70: #{gnn_trans_forward.1} parent=0 // pred_check
    _
  $region71: #{gnn_trans_forward.1} parent=0 // pred_check_branch
    %105 = sbr.rel (0) target = $region73
  $region72: #{gnn_trans_forward.1} parent=0 // pred_region
    _
  $region73: #{gnn_trans_forward.1} parent=0 // pred_fallthru
    _
  // Predicated region
  $region74: #{gnn_trans_forward.1} parent=0 // pred_check
    _
  $region75: #{gnn_trans_forward.1} parent=0 // pred_check_branch
    %107 = sbr.rel (0) target = $region77
  $region76: #{gnn_trans_forward.1} parent=0 // pred_region
    _
  $region77: #{gnn_trans_forward.1} parent=0 // pred_fallthru
    _
  // Predicated region
  $region78: #{gnn_trans_forward.1} parent=0 // pred_check
    _
  $region79: #{gnn_trans_forward.1} parent=0 // pred_check_branch
    %109 = sbr.rel (0) target = $region81
  $region80: #{gnn_trans_forward.1} parent=0 // pred_region
    _
  $region81: #{gnn_trans_forward.1} parent=0 // pred_fallthru
    _
  // Predicated region
  $region82: #{gnn_trans_forward.1} parent=0 // pred_check
    _
  $region83: #{gnn_trans_forward.1} parent=0 // pred_check_branch
    %111 = sbr.rel (0) target = $region85
  $region84: #{gnn_trans_forward.1} parent=0 // pred_region
    _
  $region85: #{gnn_trans_forward.1} parent=0 // pred_fallthru
    _
  // Predicated region
  $region86: #{gnn_trans_forward.1} parent=0 // pred_check
    _
  $region87: #{gnn_trans_forward.1} parent=0 // pred_check_branch
    %113 = sbr.rel (0) target = $region89
  $region88: #{gnn_trans_forward.1} parent=0 // pred_region
    _
  $region89: #{gnn_trans_forward.1} parent=0 // pred_fallthru
    _
  // Predicated region
  $region90: #{gnn_trans_forward.1} parent=0 // pred_check
    _
  $region91: #{gnn_trans_forward.1} parent=0 // pred_check_branch
    %115 = sbr.rel (0) target = $region93
  $region92: #{gnn_trans_forward.1} parent=0 // pred_region
    _
  $region93: #{gnn_trans_forward.1} parent=0 // pred_fallthru
    _
  // Predicated region
  $region94: #{gnn_trans_forward.1} parent=0 // pred_check
    _
  $region95: #{gnn_trans_forward.1} parent=0 // pred_check_branch
    %117 = sbr.rel (0) target = $region97
  $region96: #{gnn_trans_forward.1} parent=0 // pred_region
    _
  $region97: #{gnn_trans_forward.1} parent=0 // pred_fallthru
    _
  // Predicated region
  $region98: #{gnn_trans_forward.1} parent=0 // pred_check
    _
  $region99: #{gnn_trans_forward.1} parent=0 // pred_check_branch
    %119 = sbr.rel (0) target = $region101
  $region100: #{gnn_trans_forward.1} parent=0 // pred_region
    _
  $region101: #{gnn_trans_forward.1} parent=0 // pred_fallthru
    _
  // Predicated region
  $region102: #{gnn_trans_forward.1} parent=0 // pred_check
    _
  $region103: #{gnn_trans_forward.1} parent=0 // pred_check_branch
    %121 = sbr.rel (0) target = $region105
  $region104: #{gnn_trans_forward.1} parent=0 // pred_region
    _
  $region105: #{gnn_trans_forward.1} parent=0 // pred_fallthru
    _
  // Predicated region
  $region106: #{gnn_trans_forward.1} parent=0 // pred_check
    _
  $region107: #{gnn_trans_forward.1} parent=0 // pred_check_branch
    %123 = sbr.rel (0) target = $region109
  $region108: #{gnn_trans_forward.1} parent=0 // pred_region
    _
  $region109: #{gnn_trans_forward.1} parent=0 // pred_fallthru
    _
  // Predicated region
  $region110: #{gnn_trans_forward.1} parent=0 // pred_check
    _
  $region111: #{gnn_trans_forward.1} parent=0 // pred_check_branch
    %125 = sbr.rel (0) target = $region113
  $region112: #{gnn_trans_forward.1} parent=0 // pred_region
    _
  $region113: #{gnn_trans_forward.1} parent=0 // pred_fallthru
    _
  // Predicated region
  $region114: #{gnn_trans_forward.1} parent=0 // pred_check
    _
  $region115: #{gnn_trans_forward.1} parent=0 // pred_check_branch
    %127 = sbr.rel (0) target = $region117
  $region116: #{gnn_trans_forward.1} parent=0 // pred_region
    _
  $region117: #{gnn_trans_forward.1} parent=0 // pred_fallthru
    _
  // Predicated region
  $region118: #{gnn_trans_forward.1} parent=0 // pred_check
    _
  $region119: #{gnn_trans_forward.1} parent=0 // pred_check_branch
    %129 = sbr.rel (0) target = $region121
  $region120: #{gnn_trans_forward.1} parent=0 // pred_region
    _
  $region121: #{gnn_trans_forward.1} parent=0 // pred_fallthru
    _
  // Predicated region
  $region122: #{gnn_trans_forward.1} parent=0 // pred_check
    _
  $region123: #{gnn_trans_forward.1} parent=0 // pred_check_branch
    %131 = sbr.rel (0) target = $region125
  $region124: #{gnn_trans_forward.1} parent=0 // pred_region
    _
  $region125: #{gnn_trans_forward.1} parent=0 // pred_fallthru
    _
  %v133 = vlaneseq
  %v134 = vshrl.u32 %v133, 7
  %v135 = vadd.s32 %v134, 8
  %v136 = vld [vmem:[%s5] sm:$0x1]
  %v137 = vlaneseq
  %v138 = vshrl.u32 %v137, 7
  %v139 = vsub.s32 0, %v138
  %v140 = vrot.slane %v136, %v139
  %vm141 = vcmp.eq.s32.totalorder %v134, %v140
  %vm142 = vcmp.eq.s32.totalorder %v135, %v140
  %v143 = vsel %vm141, 1.0, 0.0
  %v144 = vsel %vm142, 1.0, 0.0
  %v145 = vld [vmem:[%s7] sm:$0x1]
  %v146 = vlaneseq
  %v147 = vshrl.u32 %v146, 7
  %v148 = vsub.s32 0, %v147
  %v149 = vrot.slane %v145, %v148
  %vm150 = vcmp.eq.s32.totalorder %v134, %v149
  %vm151 = vcmp.eq.s32.totalorder %v135, %v149
  %v152 = vsel %vm150, 1.0, 0.0
  %v153 = vsel %vm151, 1.0, 0.0
  %v154 = vlaneseq
  %v155 = vand.u32 %v154, 127
  %v156 = vld [vmem:[%s9] sm:$0xff]
  %v157 = vld [vmem:[%s9 + $0x8] sm:$0xff]
  %158 = vset.pattern.permute.xlu0 0
  %159 = vperm.xlu0 %158, %v156
  %v160 = vpop.permute.xlu0 %159
  %161 = vset.pattern.permute.xlu0 0
  %162 = vperm.xlu0 %161, %v157
  %v163 = vpop.permute.xlu0 %162
  %vm164 = vcmp.eq.s32.totalorder %v160, %v155
  %vm165 = vcmp.eq.s32.totalorder %v163, %v155
  %v166 = vsel %vm164, 1.0, 0.0
  %v167 = vsel %vm165, 1.0, 0.0
  %v168 = vld [vmem:[%s3] sm:$0xf]
  %v169 = vld [vmem:[%s3 + $0x4] sm:$0xf]
  %v170 = vld [vmem:[%s3 + $0x8] sm:$0xf]
  %v171 = vld [vmem:[%s3 + $0xc] sm:$0xf]
  %v172 = vld [vmem:[%s3 + $0x10] sm:$0xf]
  %v173 = vld [vmem:[%s3 + $0x14] sm:$0xf]
  %v174 = vld [vmem:[%s3 + $0x18] sm:$0xf]
  %v175 = vld [vmem:[%s3 + $0x1c] sm:$0xf]
  %v176 = vld [vmem:[%s3 + $0x20] sm:$0xf]
  %v177 = vld [vmem:[%s3 + $0x24] sm:$0xf]
  %v178 = vld [vmem:[%s3 + $0x28] sm:$0xf]
  %v179 = vld [vmem:[%s3 + $0x2c] sm:$0xf]
  %v180 = vld [vmem:[%s3 + $0x30] sm:$0xf]
  %v181 = vld [vmem:[%s3 + $0x34] sm:$0xf]
  %v182 = vld [vmem:[%s3 + $0x38] sm:$0xf]
  %v183 = vld [vmem:[%s3 + $0x3c] sm:$0xf]
  %v184 = vld [vmem:[%s1] sm:$0xf]
  %v185 = vld [vmem:[%s1 + $0x4] sm:$0xf]
  %v186 = vld [vmem:[%s11] sm:$0xf]
  %v187 = vld [vmem:[%s13] sm:$0x1]
  %v188 = vld [vmem:[%s15] sm:$0x3]
  %v189 = vld [vmem:[%s17] sm:$0xff]
  %v190 = vld [vmem:[%s17 + $0x8] sm:$0xff]
  %v191 = vld [vmem:[%s17 + $0x10] sm:$0xff]
  %v192 = vld [vmem:[%s17 + $0x18] sm:$0xff]
  %v193 = vld [vmem:[%s19] sm:$0xff]
  %v194 = vld [vmem:[%s19 + $0x8] sm:$0xff]
  %v195 = vld [vmem:[%s19 + $0x10] sm:$0xff]
  %v196 = vld [vmem:[%s19 + $0x18] sm:$0xff]
  %v197 = vld [vmem:[%s21] sm:$0xf]
  %v198 = vld [vmem:[%s21 + $0x4] sm:$0xf]
  %v199 = vld [vmem:[%s21 + $0x8] sm:$0xf]
  %v200 = vld [vmem:[%s21 + $0xc] sm:$0xf]
  %v201 = vld [vmem:[%s23] sm:$0x1]
  %v202 = vld [vmem:[%s25] sm:$0x1]
  %v203 = vld [vmem:[%s27] sm:$0x1]
  %204 = vxpose.xlu0.b32.start [1/16] 1.0, 128
  %205 = vxpose.xlu0.b32.cont [2/16] 1.0, 128
  %206 = vxpose.xlu0.b32.cont [3/16] 0.0, 128
  %207 = vxpose.xlu0.b32.cont [4/16] 0.0, 128
  %208 = vxpose.xlu0.b32.cont [5/16] 0.0, 128
  %209 = vxpose.xlu0.b32.cont [6/16] 0.0, 128
  %210 = vxpose.xlu0.b32.cont [7/16] 0.0, 128
  %211 = vxpose.xlu0.b32.cont [8/16] 0.0, 128
  %212 = vxpose.xlu0.b32.cont [9/16] 0.0, 128
  %213 = vxpose.xlu0.b32.cont [10/16] 0.0, 128
  %214 = vxpose.xlu0.b32.cont [11/16] 0.0, 128
  %215 = vxpose.xlu0.b32.cont [12/16] 0.0, 128
  %216 = vxpose.xlu0.b32.cont [13/16] 0.0, 128
  %217 = vxpose.xlu0.b32.cont [14/16] 0.0, 128
  %218 = vxpose.xlu0.b32.cont [15/16] 0.0, 128
  %219 = vxpose.xlu0.b32.end [16/16] 0.0, 128
  %v220 = vpop.trf.xlu0
  %v221 = vpop.trf.xlu0
  %v222 = vpop.trf.xlu0
  %v223 = vpop.trf.xlu0
  %v224 = vpop.trf.xlu0
  %v225 = vpop.trf.xlu0
  %v226 = vpop.trf.xlu0
  %v227 = vpop.trf.xlu0
  %v228 = vpop.trf.xlu0
  %v229 = vpop.trf.xlu0
  %v230 = vpop.trf.xlu0
  %v231 = vpop.trf.xlu0
  %v232 = vpop.trf.xlu0
  %v233 = vpop.trf.xlu0
  %v234 = vpop.trf.xlu0
  %v235 = vpop.trf.xlu0
  %vm236 = vcmask 130048
  %v238 = vsel %vm236, %v220, 0
  %240 = vmatprep.subr.mxu0 0.0
  %241 = vmatpush1.msra.mxu0 %v143
  %242 = vmatprep.subr.mxu0 0.0
  %243 = vmatpush1.msra.mxu0 %v144
  %244 = vmatprep.subr.mxu0 0.0
  %245 = vmatpush1.msra.mxu0 0.0
  %246 = vmatprep.subr.mxu0 0.0
  %247 = vmatpush1.msra.mxu0 0.0
  %248 = vmatprep.subr.mxu0 0.0
  %249 = vmatpush1.msra.mxu0 0.0
  %250 = vmatprep.subr.mxu0 0.0
  %251 = vmatpush1.msra.mxu0 0.0
  %252 = vmatprep.subr.mxu0 0.0
  %253 = vmatpush1.msra.mxu0 0.0
  %254 = vmatprep.subr.mxu0 0.0
  %255 = vmatpush1.msra.mxu0 0.0
  %256 = vmatprep.subr.mxu0 0.0
  %257 = vmatpush1.msra.mxu0 0.0
  %258 = vmatprep.subr.mxu0 0.0
  %259 = vmatpush1.msra.mxu0 0.0
  %260 = vmatprep.subr.mxu0 0.0
  %261 = vmatpush1.msra.mxu0 0.0
  %262 = vmatprep.subr.mxu0 0.0
  %263 = vmatpush1.msra.mxu0 0.0
  %264 = vmatprep.subr.mxu0 0.0
  %265 = vmatpush1.msra.mxu0 0.0
  %266 = vmatprep.subr.mxu0 0.0
  %267 = vmatpush1.msra.mxu0 0.0
  %268 = vmatprep.subr.mxu0 0.0
  %269 = vmatpush1.msra.mxu0 0.0
  %270 = vmatprep.subr.mxu0 0.0
  %271 = vmatpush1.msra.mxu0 0.0
  %272 = vmatprep.subr.mxu0 0.0
  %273 = vmatpush1.msra.mxu0 0.0
  %274 = vmatprep.subr.mxu0 0.0
  %275 = vmatpush1.msra.mxu0 0.0
  %276 = vmatprep.subr.mxu0 0.0
  %277 = vmatpush1.msra.mxu0 0.0
  %278 = vmatprep.subr.mxu0 0.0
  %279 = vmatpush1.msra.mxu0 0.0
  %280 = vmatprep.subr.mxu0 0.0
  %281 = vmatpush1.msra.mxu0 0.0
  %282 = vmatprep.subr.mxu0 0.0
  %283 = vmatpush1.msra.mxu0 0.0
  %284 = vmatprep.subr.mxu0 0.0
  %285 = vmatpush1.msra.mxu0 0.0
  %286 = vmatprep.subr.mxu0 0.0
  %287 = vmatpush1.msra.mxu0 0.0
  %288 = vmatprep.subr.mxu0 0.0
  %289 = vmatpush1.msra.mxu0 0.0
  %290 = vmatprep.subr.mxu0 0.0
  %291 = vmatpush1.msra.mxu0 0.0
  %292 = vmatprep.subr.mxu0 0.0
  %293 = vmatpush1.msra.mxu0 0.0
  %294 = vmatprep.subr.mxu0 0.0
  %295 = vmatpush1.msra.mxu0 0.0
  %296 = vmatprep.subr.mxu0 0.0
  %297 = vmatpush1.msra.mxu0 0.0
  %298 = vmatprep.subr.mxu0 0.0
  %299 = vmatpush1.msra.mxu0 0.0
  %300 = vmatprep.subr.mxu0 0.0
  %301 = vmatpush1.msra.mxu0 0.0
  %302 = vmatprep.subr.mxu0 0.0
  %303 = vmatpush1.msra.mxu0 0.0
  %304 = vmatprep.mubr.f32.mxu0 0.0
  %305 = vmatmul.mubr.f32.gmra.mrb[0].mxu0 %v238
  %v306 = vpop.f32.mrb[0].mxu0
  %v307 = vadd.f32 0.0, %v306
  %v308 = vpop.f32.mrb[0].mxu0
  %309 = vdwg.mxu0
  %310 = vmatprep.subr.mxu0 0.0
  %311 = vmatpush1.msra.mxu0 %v152
  %312 = vmatprep.subr.mxu0 0.0
  %313 = vmatpush1.msra.mxu0 %v153
  %314 = vmatprep.subr.mxu0 0.0
  %315 = vmatpush1.msra.mxu0 0.0
  %316 = vmatprep.subr.mxu0 0.0
  %317 = vmatpush1.msra.mxu0 0.0
  %318 = vmatprep.subr.mxu0 0.0
  %319 = vmatpush1.msra.mxu0 0.0
  %320 = vmatprep.subr.mxu0 0.0
  %321 = vmatpush1.msra.mxu0 0.0
  %322 = vmatprep.subr.mxu0 0.0
  %323 = vmatpush1.msra.mxu0 0.0
  %324 = vmatprep.subr.mxu0 0.0
  %325 = vmatpush1.msra.mxu0 0.0
  %326 = vmatprep.subr.mxu0 0.0
  %327 = vmatpush1.msra.mxu0 0.0
  %328 = vmatprep.subr.mxu0 0.0
  %329 = vmatpush1.msra.mxu0 0.0
  %330 = vmatprep.subr.mxu0 0.0
  %331 = vmatpush1.msra.mxu0 0.0
  %332 = vmatprep.subr.mxu0 0.0
  %333 = vmatpush1.msra.mxu0 0.0
  %334 = vmatprep.subr.mxu0 0.0
  %335 = vmatpush1.msra.mxu0 0.0
  %336 = vmatprep.subr.mxu0 0.0
  %337 = vmatpush1.msra.mxu0 0.0
  %338 = vmatprep.subr.mxu0 0.0
  %339 = vmatpush1.msra.mxu0 0.0
  %340 = vmatprep.subr.mxu0 0.0
  %341 = vmatpush1.msra.mxu0 0.0
  %342 = vmatprep.subr.mxu0 0.0
  %343 = vmatpush1.msra.mxu0 0.0
  %344 = vmatprep.subr.mxu0 0.0
  %345 = vmatpush1.msra.mxu0 0.0
  %346 = vmatprep.subr.mxu0 0.0
  %347 = vmatpush1.msra.mxu0 0.0
  %348 = vmatprep.subr.mxu0 0.0
  %349 = vmatpush1.msra.mxu0 0.0
  %350 = vmatprep.subr.mxu0 0.0
  %351 = vmatpush1.msra.mxu0 0.0
  %352 = vmatprep.subr.mxu0 0.0
  %353 = vmatpush1.msra.mxu0 0.0
  %354 = vmatprep.subr.mxu0 0.0
  %355 = vmatpush1.msra.mxu0 0.0
  %356 = vmatprep.subr.mxu0 0.0
  %357 = vmatpush1.msra.mxu0 0.0
  %358 = vmatprep.subr.mxu0 0.0
  %359 = vmatpush1.msra.mxu0 0.0
  %360 = vmatprep.subr.mxu0 0.0
  %361 = vmatpush1.msra.mxu0 0.0
  %362 = vmatprep.subr.mxu0 0.0
  %363 = vmatpush1.msra.mxu0 0.0
  %364 = vmatprep.subr.mxu0 0.0
  %365 = vmatpush1.msra.mxu0 0.0
  %366 = vmatprep.subr.mxu0 0.0
  %367 = vmatpush1.msra.mxu0 0.0
  %368 = vmatprep.subr.mxu0 0.0
  %369 = vmatpush1.msra.mxu0 0.0
  %370 = vmatprep.subr.mxu0 0.0
  %371 = vmatpush1.msra.mxu0 0.0
  %372 = vmatprep.subr.mxu0 0.0
  %373 = vmatpush1.msra.mxu0 0.0
  %374 = vmatprep.mubr.f32.mxu0 0.0
  %375 = vmatmul.mubr.f32.gmra.mrb[0].mxu0 %v238
  %v376 = vpop.f32.mrb[0].mxu0
  %v377 = vadd.f32 0.0, %v376
  %v378 = vpop.f32.mrb[0].mxu0
  %379 = vdwg.mxu0
  %v380 = vmul.f32 %v307, %v377
  %v381 = vlaneseq
  %v382 = vshrl.u32 %v381, 7
  %v383 = vsub.s32 0, %v382
  %v384 = vrot.slane %v380, %v383
  %v385 = vmul.f32 %v143, %v384
  %v386 = vmul.f32 %v144, %v384
  %v387 = vpack.c.bf16 %v386, %v385
  %v388 = vmul.f32 %v152, %v384
  %v389 = vmul.f32 %v153, %v384
  %vm390 = vcmp.gt.f32.partialorder %v388, 0.0
  %vm391 = vcmp.gt.f32.partialorder %v389, 0.0
  %v393 = vlaneseq
  %v394 = vshrl.u32 %v393, 7
  %v395 = vsub.s32 0, %v394
  %v396 = vrot.slane %v187, %v395
  %v400 = vunpack.c.l.b16 %v184
  %v401 = vunpack.c.l.b16 %v185
  %v402 = vpack.c.b16 %v401, %v400
  %vm403 = vcmask 64512
  %v405 = vsel %vm403, %v402, 0
  %vm407 = vcmask 1043456
  %v409 = vsel %vm407, %v186, 0
  %411 = vmatprep.subr.bf16.mxu0 0
  %412 = vmatpush1.bf16.msra.mxu0 %v409
  %413 = vmatprep.subr.bf16.mxu0 0
  %414 = vmatpush1.bf16.msra.mxu0 0
  %415 = vmatprep.subr.bf16.mxu0 0
  %416 = vmatpush1.bf16.msra.mxu0 0
  %417 = vmatprep.subr.bf16.mxu0 0
  %418 = vmatpush1.bf16.msra.mxu0 0
  %419 = vmatprep.subr.bf16.mxu0 0
  %420 = vmatpush1.bf16.msra.mxu0 0
  %421 = vmatprep.subr.bf16.mxu0 0
  %422 = vmatpush1.bf16.msra.mxu0 0
  %423 = vmatprep.subr.bf16.mxu0 0
  %424 = vmatpush1.bf16.msra.mxu0 0
  %425 = vmatprep.subr.bf16.mxu0 0
  %426 = vmatpush1.bf16.msra.mxu0 0
  %427 = vmatprep.subr.bf16.mxu0 0
  %428 = vmatpush1.bf16.msra.mxu0 0
  %429 = vmatprep.subr.bf16.mxu0 0
  %430 = vmatpush1.bf16.msra.mxu0 0
  %431 = vmatprep.subr.bf16.mxu0 0
  %432 = vmatpush1.bf16.msra.mxu0 0
  %433 = vmatprep.subr.bf16.mxu0 0
  %434 = vmatpush1.bf16.msra.mxu0 0
  %435 = vmatprep.subr.bf16.mxu0 0
  %436 = vmatpush1.bf16.msra.mxu0 0
  %437 = vmatprep.subr.bf16.mxu0 0
  %438 = vmatpush1.bf16.msra.mxu0 0
  %439 = vmatprep.subr.bf16.mxu0 0
  %440 = vmatpush1.bf16.msra.mxu0 0
  %441 = vmatprep.subr.bf16.mxu0 0
  %442 = vmatpush1.bf16.msra.mxu0 0
  %443 = vmatprep.mubr.bf16.mxu0 0
  %444 = vmatmul.mubr.bf16.gmra.mrb[0].mxu0 %v405
  %v445 = vpop.f32.mrb[0].mxu0
  %v446 = vadd.f32 %v396, %v445
  %v447 = vpop.f32.mrb[0].mxu0
  %v448 = vpop.f32.mrb[0].mxu0
  %v449 = vadd.f32 %v396, %v448
  %v450 = vpop.f32.mrb[0].mxu0
  %451 = vdwg.mxu0
  %v452 = vpack.c.bf16 %v449, %v446
  %v469 = vunpack.c.l.b16 %v168
  %v470 = vunpack.c.l.b16 %v169
  %v471 = vunpack.c.l.b16 %v170
  %v472 = vunpack.c.l.b16 %v171
  %v473 = vunpack.c.l.b16 %v172
  %v474 = vunpack.c.l.b16 %v173
  %v475 = vunpack.c.l.b16 %v174
  %v476 = vunpack.c.l.b16 %v175
  %v477 = vunpack.c.l.b16 %v176
  %v478 = vunpack.c.l.b16 %v177
  %v479 = vunpack.c.l.b16 %v178
  %v480 = vunpack.c.l.b16 %v179
  %v481 = vunpack.c.l.b16 %v180
  %v482 = vunpack.c.l.b16 %v181
  %v483 = vunpack.c.l.b16 %v182
  %v484 = vunpack.c.l.b16 %v183
  %v485 = vpack.c.b16 %v470, %v469
  %v486 = vpack.c.b16 %v472, %v471
  %v487 = vpack.c.b16 %v474, %v473
  %v488 = vpack.c.b16 %v476, %v475
  %v489 = vpack.c.b16 %v478, %v477
  %v490 = vpack.c.b16 %v480, %v479
  %v491 = vpack.c.b16 %v482, %v481
  %v492 = vpack.c.b16 %v484, %v483
  %vm493 = vcmask 31744
  %v495 = vsel %vm493, %v485, 0
  %v498 = vsel %vm493, %v486, 0
  %v501 = vsel %vm493, %v487, 0
  %v504 = vsel %vm493, %v488, 0
  %v507 = vsel %vm493, %v489, 0
  %v510 = vsel %vm493, %v490, 0
  %v513 = vsel %vm493, %v491, 0
  %v516 = vsel %vm493, %v492, 0
  %vm518 = vcmask 1041408
  %v520 = vsel %vm518, %v188, 0
  %522 = vmatprep.subr.bf16.mxu0 0
  %523 = vmatpush1.bf16.msra.mxu0 %v520
  %524 = vmatprep.subr.bf16.mxu0 0
  %525 = vmatpush1.bf16.msra.mxu0 0
  %526 = vmatprep.subr.bf16.mxu0 0
  %527 = vmatpush1.bf16.msra.mxu0 0
  %528 = vmatprep.subr.bf16.mxu0 0
  %529 = vmatpush1.bf16.msra.mxu0 0
  %530 = vmatprep.subr.bf16.mxu0 0
  %531 = vmatpush1.bf16.msra.mxu0 0
  %532 = vmatprep.subr.bf16.mxu0 0
  %533 = vmatpush1.bf16.msra.mxu0 0
  %534 = vmatprep.subr.bf16.mxu0 0
  %535 = vmatpush1.bf16.msra.mxu0 0
  %536 = vmatprep.subr.bf16.mxu0 0
  %537 = vmatpush1.bf16.msra.mxu0 0
  %538 = vmatprep.subr.bf16.mxu0 0
  %539 = vmatpush1.bf16.msra.mxu0 0
  %540 = vmatprep.subr.bf16.mxu0 0
  %541 = vmatpush1.bf16.msra.mxu0 0
  %542 = vmatprep.subr.bf16.mxu0 0
  %543 = vmatpush1.bf16.msra.mxu0 0
  %544 = vmatprep.subr.bf16.mxu0 0
  %545 = vmatpush1.bf16.msra.mxu0 0
  %546 = vmatprep.subr.bf16.mxu0 0
  %547 = vmatpush1.bf16.msra.mxu0 0
  %548 = vmatprep.subr.bf16.mxu0 0
  %549 = vmatpush1.bf16.msra.mxu0 0
  %550 = vmatprep.subr.bf16.mxu0 0
  %551 = vmatpush1.bf16.msra.mxu0 0
  %552 = vmatprep.subr.bf16.mxu0 0
  %553 = vmatpush1.bf16.msra.mxu0 0
  %554 = vmatprep.mubr.bf16.mxu0 0
  %555 = vmatmul.mubr.bf16.gmra.mrb[0].mxu0 %v495
  %v556 = vpop.f32.mrb[0].mxu0
  %v557 = vadd.f32 0.0, %v556
  %v558 = vpop.f32.mrb[0].mxu0
  %v559 = vpop.f32.mrb[0].mxu0
  %v560 = vadd.f32 0.0, %v559
  %v561 = vpop.f32.mrb[0].mxu0
  %562 = vmatprep.mubr.bf16.mxu0 0
  %563 = vmatmul.mubr.bf16.gmra.mrb[0].mxu0 %v498
  %v564 = vpop.f32.mrb[0].mxu0
  %v565 = vadd.f32 0.0, %v564
  %v566 = vpop.f32.mrb[0].mxu0
  %v567 = vpop.f32.mrb[0].mxu0
  %v568 = vadd.f32 0.0, %v567
  %v569 = vpop.f32.mrb[0].mxu0
  %570 = vmatprep.mubr.bf16.mxu0 0
  %571 = vmatmul.mubr.bf16.gmra.mrb[0].mxu0 %v501
  %v572 = vpop.f32.mrb[0].mxu0
  %v573 = vadd.f32 0.0, %v572
  %v574 = vpop.f32.mrb[0].mxu0
  %v575 = vpop.f32.mrb[0].mxu0
  %v576 = vadd.f32 0.0, %v575
  %v577 = vpop.f32.mrb[0].mxu0
  %578 = vmatprep.mubr.bf16.mxu0 0
  %579 = vmatmul.mubr.bf16.gmra.mrb[0].mxu0 %v504
  %v580 = vpop.f32.mrb[0].mxu0
  %v581 = vadd.f32 0.0, %v580
  %v582 = vpop.f32.mrb[0].mxu0
  %v583 = vpop.f32.mrb[0].mxu0
  %v584 = vadd.f32 0.0, %v583
  %v585 = vpop.f32.mrb[0].mxu0
  %586 = vmatprep.mubr.bf16.mxu0 0
  %587 = vmatmul.mubr.bf16.gmra.mrb[0].mxu0 %v507
  %v588 = vpop.f32.mrb[0].mxu0
  %v589 = vadd.f32 0.0, %v588
  %v590 = vpop.f32.mrb[0].mxu0
  %v591 = vpop.f32.mrb[0].mxu0
  %v592 = vadd.f32 0.0, %v591
  %v593 = vpop.f32.mrb[0].mxu0
  %594 = vmatprep.mubr.bf16.mxu0 0
  %595 = vmatmul.mubr.bf16.gmra.mrb[0].mxu0 %v510
  %v596 = vpop.f32.mrb[0].mxu0
  %v597 = vadd.f32 0.0, %v596
  %v598 = vpop.f32.mrb[0].mxu0
  %v599 = vpop.f32.mrb[0].mxu0
  %v600 = vadd.f32 0.0, %v599
  %v601 = vpop.f32.mrb[0].mxu0
  %602 = vmatprep.mubr.bf16.mxu0 0
  %603 = vmatmul.mubr.bf16.gmra.mrb[0].mxu0 %v513
  %v604 = vpop.f32.mrb[0].mxu0
  %v605 = vadd.f32 0.0, %v604
  %v606 = vpop.f32.mrb[0].mxu0
  %v607 = vpop.f32.mrb[0].mxu0
  %v608 = vadd.f32 0.0, %v607
  %v609 = vpop.f32.mrb[0].mxu0
  %610 = vmatprep.mubr.bf16.mxu0 0
  %611 = vmatmul.mubr.bf16.gmra.mrb[0].mxu0 %v516
  %v612 = vpop.f32.mrb[0].mxu0
  %v613 = vadd.f32 0.0, %v612
  %v614 = vpop.f32.mrb[0].mxu0
  %v615 = vpop.f32.mrb[0].mxu0
  %v616 = vadd.f32 0.0, %v615
  %v617 = vpop.f32.mrb[0].mxu0
  %618 = vdwg.mxu0
  %619 = vxpose.xlu0.c.b16.start [1/8] %v387, 128
  %620 = vxpose.xlu0.c.b16.cont [2/8] 0, 128
  %621 = vxpose.xlu0.c.b16.cont [3/8] 0, 128
  %622 = vxpose.xlu0.c.b16.cont [4/8] 0, 128
  %623 = vxpose.xlu0.c.b16.cont [5/8] 0, 128
  %624 = vxpose.xlu0.c.b16.cont [6/8] 0, 128
  %625 = vxpose.xlu0.c.b16.cont [7/8] 0, 128
  %626 = vxpose.xlu0.c.b16.end [8/8] 0, 128
  %v627 = vpop.trf.xlu0
  %v628 = vpop.trf.xlu0
  %v629 = vpop.trf.xlu0
  %v630 = vpop.trf.xlu0
  %v631 = vpop.trf.xlu0
  %v632 = vpop.trf.xlu0
  %v633 = vpop.trf.xlu0
  %v634 = vpop.trf.xlu0
  %636 = vrot.lane.b32.xlu0 %v452, 96
  %v637 = vpop.permute.xlu0 %636
  %v640 = vsel %vm236, %v627, 0
  %v643 = vsel %vm236, %v628, 0
  %v646 = vsel %vm236, %v629, 0
  %v649 = vsel %vm236, %v630, 0
  %v652 = vsel %vm236, %v631, 0
  %v655 = vsel %vm236, %v632, 0
  %v658 = vsel %vm236, %v633, 0
  %v661 = vsel %vm236, %v634, 0
  %663 = vmatprep.subr.bf16.mxu0 0
  %664 = vmatpush1.bf16.msra.mxu0 %v637
  %665 = vmatprep.subr.bf16.mxu0 0
  %666 = vmatpush1.bf16.msra.mxu0 0
  %667 = vmatprep.subr.bf16.mxu0 0
  %668 = vmatpush1.bf16.msra.mxu0 0
  %669 = vmatprep.subr.bf16.mxu0 0
  %670 = vmatpush1.bf16.msra.mxu0 0
  %671 = vmatprep.subr.bf16.mxu0 0
  %672 = vmatpush1.bf16.msra.mxu0 0
  %673 = vmatprep.subr.bf16.mxu0 0
  %674 = vmatpush1.bf16.msra.mxu0 0
  %675 = vmatprep.subr.bf16.mxu0 0
  %676 = vmatpush1.bf16.msra.mxu0 0
  %677 = vmatprep.subr.bf16.mxu0 0
  %678 = vmatpush1.bf16.msra.mxu0 0
  %679 = vmatprep.subr.bf16.mxu0 0
  %680 = vmatpush1.bf16.msra.mxu0 0
  %681 = vmatprep.subr.bf16.mxu0 0
  %682 = vmatpush1.bf16.msra.mxu0 0
  %683 = vmatprep.subr.bf16.mxu0 0
  %684 = vmatpush1.bf16.msra.mxu0 0
  %685 = vmatprep.subr.bf16.mxu0 0
  %686 = vmatpush1.bf16.msra.mxu0 0
  %687 = vmatprep.subr.bf16.mxu0 0
  %688 = vmatpush1.bf16.msra.mxu0 0
  %689 = vmatprep.subr.bf16.mxu0 0
  %690 = vmatpush1.bf16.msra.mxu0 0
  %691 = vmatprep.subr.bf16.mxu0 0
  %692 = vmatpush1.bf16.msra.mxu0 0
  %693 = vmatprep.subr.bf16.mxu0 0
  %694 = vmatpush1.bf16.msra.mxu0 0
  %695 = vmatprep.mubr.bf16.mxu0 0
  %696 = vmatmul.mubr.bf16.gmra.mrb[0].mxu0 %v640
  %v697 = vpop.f32.mrb[0].mxu0
  %v698 = vadd.f32 %v557, %v697
  %v699 = vpop.f32.mrb[0].mxu0
  %v700 = vpop.f32.mrb[0].mxu0
  %v701 = vadd.f32 %v560, %v700
  %v702 = vpop.f32.mrb[0].mxu0
  %703 = vmatprep.mubr.bf16.mxu0 0
  %704 = vmatmul.mubr.bf16.gmra.mrb[0].mxu0 %v643
  %v705 = vpop.f32.mrb[0].mxu0
  %v706 = vadd.f32 %v565, %v705
  %v707 = vpop.f32.mrb[0].mxu0
  %v708 = vpop.f32.mrb[0].mxu0
  %v709 = vadd.f32 %v568, %v708
  %v710 = vpop.f32.mrb[0].mxu0
  %711 = vmatprep.mubr.bf16.mxu0 0
  %712 = vmatmul.mubr.bf16.gmra.mrb[0].mxu0 %v646
  %v713 = vpop.f32.mrb[0].mxu0
  %v714 = vadd.f32 %v573, %v713
  %v715 = vpop.f32.mrb[0].mxu0
  %v716 = vpop.f32.mrb[0].mxu0
  %v717 = vadd.f32 %v576, %v716
  %v718 = vpop.f32.mrb[0].mxu0
  %719 = vmatprep.mubr.bf16.mxu0 0
  %720 = vmatmul.mubr.bf16.gmra.mrb[0].mxu0 %v649
  %v721 = vpop.f32.mrb[0].mxu0
  %v722 = vadd.f32 %v581, %v721
  %v723 = vpop.f32.mrb[0].mxu0
  %v724 = vpop.f32.mrb[0].mxu0
  %v725 = vadd.f32 %v584, %v724
  %v726 = vpop.f32.mrb[0].mxu0
  %727 = vmatprep.mubr.bf16.mxu0 0
  %728 = vmatmul.mubr.bf16.gmra.mrb[0].mxu0 %v652
  %v729 = vpop.f32.mrb[0].mxu0
  %v730 = vadd.f32 %v589, %v729
  %v731 = vpop.f32.mrb[0].mxu0
  %v732 = vpop.f32.mrb[0].mxu0
  %v733 = vadd.f32 %v592, %v732
  %v734 = vpop.f32.mrb[0].mxu0
  %735 = vmatprep.mubr.bf16.mxu0 0
  %736 = vmatmul.mubr.bf16.gmra.mrb[0].mxu0 %v655
  %v737 = vpop.f32.mrb[0].mxu0
  %v738 = vadd.f32 %v597, %v737
  %v739 = vpop.f32.mrb[0].mxu0
  %v740 = vpop.f32.mrb[0].mxu0
  %v741 = vadd.f32 %v600, %v740
  %v742 = vpop.f32.mrb[0].mxu0
  %743 = vmatprep.mubr.bf16.mxu0 0
  %744 = vmatmul.mubr.bf16.gmra.mrb[0].mxu0 %v658
  %v745 = vpop.f32.mrb[0].mxu0
  %v746 = vadd.f32 %v605, %v745
  %v747 = vpop.f32.mrb[0].mxu0
  %v748 = vpop.f32.mrb[0].mxu0
  %v749 = vadd.f32 %v608, %v748
  %v750 = vpop.f32.mrb[0].mxu0
  %751 = vmatprep.mubr.bf16.mxu0 0
  %752 = vmatmul.mubr.bf16.gmra.mrb[0].mxu0 %v661
  %v753 = vpop.f32.mrb[0].mxu0
  %v754 = vadd.f32 %v613, %v753
  %v755 = vpop.f32.mrb[0].mxu0
  %v756 = vpop.f32.mrb[0].mxu0
  %v757 = vadd.f32 %v616, %v756
  %v758 = vpop.f32.mrb[0].mxu0
  %759 = vdwg.mxu0
  %760 = vrot.lane.b32.xlu0 %v452, 64
  %v761 = vpop.permute.xlu0 %760
  %763 = vmatprep.subr.bf16.mxu0 0
  %764 = vmatpush1.bf16.msra.mxu0 %v761
  %765 = vmatprep.subr.bf16.mxu0 0
  %766 = vmatpush1.bf16.msra.mxu0 0
  %767 = vmatprep.subr.bf16.mxu0 0
  %768 = vmatpush1.bf16.msra.mxu0 0
  %769 = vmatprep.subr.bf16.mxu0 0
  %770 = vmatpush1.bf16.msra.mxu0 0
  %771 = vmatprep.subr.bf16.mxu0 0
  %772 = vmatpush1.bf16.msra.mxu0 0
  %773 = vmatprep.subr.bf16.mxu0 0
  %774 = vmatpush1.bf16.msra.mxu0 0
  %775 = vmatprep.subr.bf16.mxu0 0
  %776 = vmatpush1.bf16.msra.mxu0 0
  %777 = vmatprep.subr.bf16.mxu0 0
  %778 = vmatpush1.bf16.msra.mxu0 0
  %779 = vmatprep.subr.bf16.mxu0 0
  %780 = vmatpush1.bf16.msra.mxu0 0
  %781 = vmatprep.subr.bf16.mxu0 0
  %782 = vmatpush1.bf16.msra.mxu0 0
  %783 = vmatprep.subr.bf16.mxu0 0
  %784 = vmatpush1.bf16.msra.mxu0 0
  %785 = vmatprep.subr.bf16.mxu0 0
  %786 = vmatpush1.bf16.msra.mxu0 0
  %787 = vmatprep.subr.bf16.mxu0 0
  %788 = vmatpush1.bf16.msra.mxu0 0
  %789 = vmatprep.subr.bf16.mxu0 0
  %790 = vmatpush1.bf16.msra.mxu0 0
  %791 = vmatprep.subr.bf16.mxu0 0
  %792 = vmatpush1.bf16.msra.mxu0 0
  %793 = vmatprep.subr.bf16.mxu0 0
  %794 = vmatpush1.bf16.msra.mxu0 0
  %795 = vmatprep.mubr.bf16.mxu0 0
  %796 = vmatmul.mubr.bf16.gmra.mrb[0].mxu0 %v640
  %v797 = vpop.f32.mrb[0].mxu0
  %v798 = vadd.f32 %v557, %v797
  %v799 = vpop.f32.mrb[0].mxu0
  %v800 = vpop.f32.mrb[0].mxu0
  %v801 = vadd.f32 %v560, %v800
  %v802 = vpop.f32.mrb[0].mxu0
  %803 = vmatprep.mubr.bf16.mxu0 0
  %804 = vmatmul.mubr.bf16.gmra.mrb[0].mxu0 %v643
  %v805 = vpop.f32.mrb[0].mxu0
  %v806 = vadd.f32 %v565, %v805
  %v807 = vpop.f32.mrb[0].mxu0
  %v808 = vpop.f32.mrb[0].mxu0
  %v809 = vadd.f32 %v568, %v808
  %v810 = vpop.f32.mrb[0].mxu0
  %811 = vmatprep.mubr.bf16.mxu0 0
  %812 = vmatmul.mubr.bf16.gmra.mrb[0].mxu0 %v646
  %v813 = vpop.f32.mrb[0].mxu0
  %v814 = vadd.f32 %v573, %v813
  %v815 = vpop.f32.mrb[0].mxu0
  %v816 = vpop.f32.mrb[0].mxu0
  %v817 = vadd.f32 %v576, %v816
  %v818 = vpop.f32.mrb[0].mxu0
  %819 = vmatprep.mubr.bf16.mxu0 0
  %820 = vmatmul.mubr.bf16.gmra.mrb[0].mxu0 %v649
  %v821 = vpop.f32.mrb[0].mxu0
  %v822 = vadd.f32 %v581, %v821
  %v823 = vpop.f32.mrb[0].mxu0
  %v824 = vpop.f32.mrb[0].mxu0
  %v825 = vadd.f32 %v584, %v824
  %v826 = vpop.f32.mrb[0].mxu0
  %827 = vmatprep.mubr.bf16.mxu0 0
  %828 = vmatmul.mubr.bf16.gmra.mrb[0].mxu0 %v652
  %v829 = vpop.f32.mrb[0].mxu0
  %v830 = vadd.f32 %v589, %v829
  %v831 = vpop.f32.mrb[0].mxu0
  %v832 = vpop.f32.mrb[0].mxu0
  %v833 = vadd.f32 %v592, %v832
  %v834 = vpop.f32.mrb[0].mxu0
  %835 = vmatprep.mubr.bf16.mxu0 0
  %836 = vmatmul.mubr.bf16.gmra.mrb[0].mxu0 %v655
  %v837 = vpop.f32.mrb[0].mxu0
  %v838 = vadd.f32 %v597, %v837
  %v839 = vpop.f32.mrb[0].mxu0
  %v840 = vpop.f32.mrb[0].mxu0
  %v841 = vadd.f32 %v600, %v840
  %v842 = vpop.f32.mrb[0].mxu0
  %843 = vmatprep.mubr.bf16.mxu0 0
  %844 = vmatmul.mubr.bf16.gmra.mrb[0].mxu0 %v658
  %v845 = vpop.f32.mrb[0].mxu0
  %v846 = vadd.f32 %v605, %v845
  %v847 = vpop.f32.mrb[0].mxu0
  %v848 = vpop.f32.mrb[0].mxu0
  %v849 = vadd.f32 %v608, %v848
  %v850 = vpop.f32.mrb[0].mxu0
  %851 = vmatprep.mubr.bf16.mxu0 0
  %852 = vmatmul.mubr.bf16.gmra.mrb[0].mxu0 %v661
  %v853 = vpop.f32.mrb[0].mxu0
  %v854 = vadd.f32 %v613, %v853
  %v855 = vpop.f32.mrb[0].mxu0
  %v856 = vpop.f32.mrb[0].mxu0
  %v857 = vadd.f32 %v616, %v856
  %v858 = vpop.f32.mrb[0].mxu0
  %859 = vdwg.mxu0
  %v860 = vpack.c.bf16 %v701, %v698
  %v861 = vpack.c.bf16 %v709, %v706
  %v862 = vpack.c.bf16 %v717, %v714
  %v863 = vpack.c.bf16 %v725, %v722
  %v864 = vpack.c.bf16 %v733, %v730
  %v865 = vpack.c.bf16 %v741, %v738
  %v866 = vpack.c.bf16 %v749, %v746
  %v867 = vpack.c.bf16 %v757, %v754
  %vm868 = vcmp.ge.s32.totalorder %v155, 0
  %vm869 = vcmp.lt.s32.totalorder %v155, 16
  %vm870 = vmand %vm868, %vm869
  %v871 = vsel %vm870, 1, 0
  %vm872 = vcmp.eq.s32.totalorder %v871, 1
  %v873 = vsel %vm872, %v446, 0.0
  %v874 = vsel %vm872, %v449, 0.0
  %v875 = vpack.c.bf16 %v874, %v873
  %v876 = vsel %vm872, %v798, 0.0
  %v877 = vsel %vm872, %v801, 0.0
  %v878 = vsel %vm872, %v806, 0.0
  %v879 = vsel %vm872, %v809, 0.0
  %v880 = vsel %vm872, %v814, 0.0
  %v881 = vsel %vm872, %v817, 0.0
  %v882 = vsel %vm872, %v822, 0.0
  %v883 = vsel %vm872, %v825, 0.0
  %v884 = vsel %vm872, %v830, 0.0
  %v885 = vsel %vm872, %v833, 0.0
  %v886 = vsel %vm872, %v838, 0.0
  %v887 = vsel %vm872, %v841, 0.0
  %v888 = vsel %vm872, %v846, 0.0
  %v889 = vsel %vm872, %v849, 0.0
  %v890 = vsel %vm872, %v854, 0.0
  %v891 = vsel %vm872, %v857, 0.0
  %v892 = vpack.c.bf16 %v877, %v876
  %v893 = vpack.c.bf16 %v879, %v878
  %v894 = vpack.c.bf16 %v881, %v880
  %v895 = vpack.c.bf16 %v883, %v882
  %v896 = vpack.c.bf16 %v885, %v884
  %v897 = vpack.c.bf16 %v887, %v886
  %v898 = vpack.c.bf16 %v889, %v888
  %v899 = vpack.c.bf16 %v891, %v890
  %vm900 = vcmask 261120
  %v902 = vsel %vm900, %v875, 0
  %v905 = vsel %vm900, %v860, 0
  %v908 = vsel %vm900, %v861, 0
  %v911 = vsel %vm900, %v862, 0
  %v914 = vsel %vm900, %v863, 0
  %v917 = vsel %vm900, %v864, 0
  %v920 = vsel %vm900, %v865, 0
  %v923 = vsel %vm900, %v866, 0
  %v926 = vsel %vm900, %v867, 0
  %928 = vmatprep.subr.bf16.mxu0 0
  %929 = vmatpush1.bf16.xpose.msra.mxu0 %v905
  %930 = vmatprep.subr.bf16.mxu0 0
  %931 = vmatpush1.bf16.xpose.msra.mxu0 %v908
  %932 = vmatprep.subr.bf16.mxu0 0
  %933 = vmatpush1.bf16.xpose.msra.mxu0 %v911
  %934 = vmatprep.subr.bf16.mxu0 0
  %935 = vmatpush1.bf16.xpose.msra.mxu0 %v914
  %936 = vmatprep.subr.bf16.mxu0 0
  %937 = vmatpush1.bf16.xpose.msra.mxu0 %v917
  %938 = vmatprep.subr.bf16.mxu0 0
  %939 = vmatpush1.bf16.xpose.msra.mxu0 %v920
  %940 = vmatprep.subr.bf16.mxu0 0
  %941 = vmatpush1.bf16.xpose.msra.mxu0 %v923
  %942 = vmatprep.subr.bf16.mxu0 0
  %943 = vmatpush1.bf16.xpose.msra.mxu0 %v926
  %944 = vmatprep.subr.bf16.mxu0 0
  %945 = vmatpush1.bf16.xpose.msra.mxu0 0
  %946 = vmatprep.subr.bf16.mxu0 0
  %947 = vmatpush1.bf16.xpose.msra.mxu0 0
  %948 = vmatprep.subr.bf16.mxu0 0
  %949 = vmatpush1.bf16.xpose.msra.mxu0 0
  %950 = vmatprep.subr.bf16.mxu0 0
  %951 = vmatpush1.bf16.xpose.msra.mxu0 0
  %952 = vmatprep.subr.bf16.mxu0 0
  %953 = vmatpush1.bf16.xpose.msra.mxu0 0
  %954 = vmatprep.subr.bf16.mxu0 0
  %955 = vmatpush1.bf16.xpose.msra.mxu0 0
  %956 = vmatprep.subr.bf16.mxu0 0
  %957 = vmatpush1.bf16.xpose.msra.mxu0 0
  %958 = vmatprep.subr.bf16.mxu0 0
  %959 = vmatpush1.bf16.xpose.msra.mxu0 0
  %960 = vmatprep.mubr.bf16.mxu0 0
  %961 = vmatmul.mubr.bf16.gmra.mrb[0].mxu0 %v902
  %v962 = vpop.f32.mrb[0].mxu0
  %v963 = vadd.f32 0.0, %v962
  %v964 = vpop.f32.mrb[0].mxu0
  %v965 = vpop.f32.mrb[0].mxu0
  %v966 = vadd.f32 0.0, %v965
  %v967 = vpop.f32.mrb[0].mxu0
  %968 = vdwg.mxu0
  %v969 = vmul.f32 %v963, 0.25
  %v970 = vmul.f32 %v966, 0.25
  %v971 = vsel %vm390, %v969, -1e+30
  %v972 = vsel %vm391, %v970, -1e+30
  %973 = vmax.xlane.f32.xlu0 %v971
  %v974 = vpop.xlane.xlu0 %973
  %975 = vmax.xlane.f32.xlu0 %v972
  %v976 = vpop.xlane.xlu0 %975
  %v977 = vsub.f32 %v971, %v974
  %v978 = vsub.f32 %v972, %v976
  %v979 = vmul.f32 %v977, 1.442695
  %v980 = vpow.pop %v979
  %v981 = vmul.f32 %v978, 1.442695
  %v982 = vpow.pop %v981
  %v983 = vsel %vm390, %v980, 0.0
  %v984 = vsel %vm391, %v982, 0.0
  %985 = vadd.xlane.f32.xlu0 %v983
  %v986 = vpop.xlane.xlu0 %985
  %987 = vadd.xlane.f32.xlu0 %v984
  %v988 = vpop.xlane.xlu0 %987
  %vm989 = vcmp.gt.f32.partialorder %v986, 0.0
  %vm990 = vcmp.gt.f32.partialorder %v988, 0.0
  %v991 = vsel %vm989, %v986, 1.0
  %v992 = vsel %vm990, %v988, 1.0
  %v993 = vrcp.pop %v991
  %v994 = vmul.f32 %v983, %v993
  %v995 = vrcp.pop %v992
  %v996 = vmul.f32 %v984, %v995
  %v997 = vpack.c.bf16 %v996, %v994
  %vm998 = vcmp.ge.s32.totalorder %v155, 16
  %vm999 = vcmp.lt.s32.totalorder %v155, 32
  %vm1000 = vmand %vm998, %vm999
  %v1001 = vsel %vm1000, 1, 0
  %vm1002 = vcmp.eq.s32.totalorder %v1001, 1
  %v1003 = vsel %vm1002, %v446, 0.0
  %v1004 = vsel %vm1002, %v449, 0.0
  %v1005 = vpack.c.bf16 %v1004, %v1003
  %v1006 = vsel %vm1002, %v798, 0.0
  %v1007 = vsel %vm1002, %v801, 0.0
  %v1008 = vsel %vm1002, %v806, 0.0
  %v1009 = vsel %vm1002, %v809, 0.0
  %v1010 = vsel %vm1002, %v814, 0.0
  %v1011 = vsel %vm1002, %v817, 0.0
  %v1012 = vsel %vm1002, %v822, 0.0
  %v1013 = vsel %vm1002, %v825, 0.0
  %v1014 = vsel %vm1002, %v830, 0.0
  %v1015 = vsel %vm1002, %v833, 0.0
  %v1016 = vsel %vm1002, %v838, 0.0
  %v1017 = vsel %vm1002, %v841, 0.0
  %v1018 = vsel %vm1002, %v846, 0.0
  %v1019 = vsel %vm1002, %v849, 0.0
  %v1020 = vsel %vm1002, %v854, 0.0
  %v1021 = vsel %vm1002, %v857, 0.0
  %v1022 = vpack.c.bf16 %v1007, %v1006
  %v1023 = vpack.c.bf16 %v1009, %v1008
  %v1024 = vpack.c.bf16 %v1011, %v1010
  %v1025 = vpack.c.bf16 %v1013, %v1012
  %v1026 = vpack.c.bf16 %v1015, %v1014
  %v1027 = vpack.c.bf16 %v1017, %v1016
  %v1028 = vpack.c.bf16 %v1019, %v1018
  %v1029 = vpack.c.bf16 %v1021, %v1020
  %v1031 = vsel %vm900, %v1005, 0
  %1033 = vmatprep.subr.bf16.mxu0 0
  %1034 = vmatpush1.bf16.xpose.msra.mxu0 %v905
  %1035 = vmatprep.subr.bf16.mxu0 0
  %1036 = vmatpush1.bf16.xpose.msra.mxu0 %v908
  %1037 = vmatprep.subr.bf16.mxu0 0
  %1038 = vmatpush1.bf16.xpose.msra.mxu0 %v911
  %1039 = vmatprep.subr.bf16.mxu0 0
  %1040 = vmatpush1.bf16.xpose.msra.mxu0 %v914
  %1041 = vmatprep.subr.bf16.mxu0 0
  %1042 = vmatpush1.bf16.xpose.msra.mxu0 %v917
  %1043 = vmatprep.subr.bf16.mxu0 0
  %1044 = vmatpush1.bf16.xpose.msra.mxu0 %v920
  %1045 = vmatprep.subr.bf16.mxu0 0
  %1046 = vmatpush1.bf16.xpose.msra.mxu0 %v923
  %1047 = vmatprep.subr.bf16.mxu0 0
  %1048 = vmatpush1.bf16.xpose.msra.mxu0 %v926
  %1049 = vmatprep.subr.bf16.mxu0 0
  %1050 = vmatpush1.bf16.xpose.msra.mxu0 0
  %1051 = vmatprep.subr.bf16.mxu0 0
  %1052 = vmatpush1.bf16.xpose.msra.mxu0 0
  %1053 = vmatprep.subr.bf16.mxu0 0
  %1054 = vmatpush1.bf16.xpose.msra.mxu0 0
  %1055 = vmatprep.subr.bf16.mxu0 0
  %1056 = vmatpush1.bf16.xpose.msra.mxu0 0
  %1057 = vmatprep.subr.bf16.mxu0 0
  %1058 = vmatpush1.bf16.xpose.msra.mxu0 0
  %1059 = vmatprep.subr.bf16.mxu0 0
  %1060 = vmatpush1.bf16.xpose.msra.mxu0 0
  %1061 = vmatprep.subr.bf16.mxu0 0
  %1062 = vmatpush1.bf16.xpose.msra.mxu0 0
  %1063 = vmatprep.subr.bf16.mxu0 0
  %1064 = vmatpush1.bf16.xpose.msra.mxu0 0
  %1065 = vmatprep.mubr.bf16.mxu0 0
  %1066 = vmatmul.mubr.bf16.gmra.mrb[0].mxu0 %v1031
  %v1067 = vpop.f32.mrb[0].mxu0
  %v1068 = vadd.f32 0.0, %v1067
  %v1069 = vpop.f32.mrb[0].mxu0
  %v1070 = vpop.f32.mrb[0].mxu0
  %v1071 = vadd.f32 0.0, %v1070
  %v1072 = vpop.f32.mrb[0].mxu0
  %1073 = vdwg.mxu0
  %v1074 = vmul.f32 %v1068, 0.25
  %v1075 = vmul.f32 %v1071, 0.25
  %v1076 = vsel %vm390, %v1074, -1e+30
  %v1077 = vsel %vm391, %v1075, -1e+30
  %1078 = vmax.xlane.f32.xlu0 %v1076
  %v1079 = vpop.xlane.xlu0 %1078
  %1080 = vmax.xlane.f32.xlu0 %v1077
  %v1081 = vpop.xlane.xlu0 %1080
  %v1082 = vsub.f32 %v1076, %v1079
  %v1083 = vsub.f32 %v1077, %v1081
  %v1084 = vmul.f32 %v1082, 1.442695
  %v1085 = vpow.pop %v1084
  %v1086 = vmul.f32 %v1083, 1.442695
  %v1087 = vpow.pop %v1086
  %v1088 = vsel %vm390, %v1085, 0.0
  %v1089 = vsel %vm391, %v1087, 0.0
  %1090 = vadd.xlane.f32.xlu0 %v1088
  %v1091 = vpop.xlane.xlu0 %1090
  %1092 = vadd.xlane.f32.xlu0 %v1089
  %v1093 = vpop.xlane.xlu0 %1092
  %vm1094 = vcmp.gt.f32.partialorder %v1091, 0.0
  %vm1095 = vcmp.gt.f32.partialorder %v1093, 0.0
  %v1096 = vsel %vm1094, %v1091, 1.0
  %v1097 = vsel %vm1095, %v1093, 1.0
  %v1098 = vrcp.pop %v1096
  %v1099 = vmul.f32 %v1088, %v1098
  %v1100 = vrcp.pop %v1097
  %v1101 = vmul.f32 %v1089, %v1100
  %v1102 = vpack.c.bf16 %v1101, %v1099
  %1103 = vmatprep.subr.bf16.mxu0 0
  %1104 = vmatpush1.bf16.msra.mxu0 %v1022
  %1105 = vmatprep.subr.bf16.mxu0 0
  %1106 = vmatpush1.bf16.msra.mxu0 %v1023
  %1107 = vmatprep.subr.bf16.mxu0 0
  %1108 = vmatpush1.bf16.msra.mxu0 %v1024
  %1109 = vmatprep.subr.bf16.mxu0 0
  %1110 = vmatpush1.bf16.msra.mxu0 %v1025
  %1111 = vmatprep.subr.bf16.mxu0 0
  %1112 = vmatpush1.bf16.msra.mxu0 %v1026
  %1113 = vmatprep.subr.bf16.mxu0 0
  %1114 = vmatpush1.bf16.msra.mxu0 %v1027
  %1115 = vmatprep.subr.bf16.mxu0 0
  %1116 = vmatpush1.bf16.msra.mxu0 %v1028
  %1117 = vmatprep.subr.bf16.mxu0 0
  %1118 = vmatpush1.bf16.msra.mxu0 %v1029
  %1119 = vmatprep.subr.bf16.mxu0 0
  %1120 = vmatpush1.bf16.msra.mxu0 0
  %1121 = vmatprep.subr.bf16.mxu0 0
  %1122 = vmatpush1.bf16.msra.mxu0 0
  %1123 = vmatprep.subr.bf16.mxu0 0
  %1124 = vmatpush1.bf16.msra.mxu0 0
  %1125 = vmatprep.subr.bf16.mxu0 0
  %1126 = vmatpush1.bf16.msra.mxu0 0
  %1127 = vmatprep.subr.bf16.mxu0 0
  %1128 = vmatpush1.bf16.msra.mxu0 0
  %1129 = vmatprep.subr.bf16.mxu0 0
  %1130 = vmatpush1.bf16.msra.mxu0 0
  %1131 = vmatprep.subr.bf16.mxu0 0
  %1132 = vmatpush1.bf16.msra.mxu0 0
  %1133 = vmatprep.subr.bf16.mxu0 0
  %1134 = vmatpush1.bf16.msra.mxu0 0
  %1135 = vmatprep.mubr.bf16.mxu0 0
  %1136 = vmatmul.mubr.bf16.gmra.mrb[0].mxu0 %v1102
  %v1137 = vpop.f32.mrb[0].mxu0
  %v1138 = vadd.f32 0.0, %v1137
  %v1139 = vpop.f32.mrb[0].mxu0
  %v1140 = vpop.f32.mrb[0].mxu0
  %v1141 = vadd.f32 0.0, %v1140
  %v1142 = vpop.f32.mrb[0].mxu0
  %1143 = vdwg.mxu0
  %1144 = vmatprep.subr.bf16.mxu0 0
  %1145 = vmatpush1.bf16.msra.mxu0 %v892
  %1146 = vmatprep.subr.bf16.mxu0 0
  %1147 = vmatpush1.bf16.msra.mxu0 %v893
  %1148 = vmatprep.subr.bf16.mxu0 0
  %1149 = vmatpush1.bf16.msra.mxu0 %v894
  %1150 = vmatprep.subr.bf16.mxu0 0
  %1151 = vmatpush1.bf16.msra.mxu0 %v895
  %1152 = vmatprep.subr.bf16.mxu0 0
  %1153 = vmatpush1.bf16.msra.mxu0 %v896
  %1154 = vmatprep.subr.bf16.mxu0 0
  %1155 = vmatpush1.bf16.msra.mxu0 %v897
  %1156 = vmatprep.subr.bf16.mxu0 0
  %1157 = vmatpush1.bf16.msra.mxu0 %v898
  %1158 = vmatprep.subr.bf16.mxu0 0
  %1159 = vmatpush1.bf16.msra.mxu0 %v899
  %1160 = vmatprep.subr.bf16.mxu0 0
  %1161 = vmatpush1.bf16.msra.mxu0 0
  %1162 = vmatprep.subr.bf16.mxu0 0
  %1163 = vmatpush1.bf16.msra.mxu0 0
  %1164 = vmatprep.subr.bf16.mxu0 0
  %1165 = vmatpush1.bf16.msra.mxu0 0
  %1166 = vmatprep.subr.bf16.mxu0 0
  %1167 = vmatpush1.bf16.msra.mxu0 0
  %1168 = vmatprep.subr.bf16.mxu0 0
  %1169 = vmatpush1.bf16.msra.mxu0 0
  %1170 = vmatprep.subr.bf16.mxu0 0
  %1171 = vmatpush1.bf16.msra.mxu0 0
  %1172 = vmatprep.subr.bf16.mxu0 0
  %1173 = vmatpush1.bf16.msra.mxu0 0
  %1174 = vmatprep.subr.bf16.mxu0 0
  %1175 = vmatpush1.bf16.msra.mxu0 0
  %1176 = vmatprep.mubr.bf16.mxu0 0
  %1177 = vmatmul.mubr.bf16.gmra.mrb[0].mxu0 %v997
  %v1178 = vpop.f32.mrb[0].mxu0
  %v1179 = vadd.f32 %v1138, %v1178
  %v1180 = vpop.f32.mrb[0].mxu0
  %v1181 = vpop.f32.mrb[0].mxu0
  %v1182 = vadd.f32 %v1141, %v1181
  %v1183 = vpop.f32.mrb[0].mxu0
  %1184 = vdwg.mxu0
  %v1186 = vsel %vm900, %v1179, 0
  %v1189 = vsel %vm900, %v1182, 0
  %1191 = vmatprep.subr.mxu0 0.0
  %1192 = vmatpush1.msra.mxu0 %v189
  %1193 = vmatprep.subr.mxu0 0.0
  %1194 = vmatpush1.msra.mxu0 %v190
  %1195 = vmatprep.subr.mxu0 0.0
  %1196 = vmatpush1.msra.mxu0 %v191
  %1197 = vmatprep.subr.mxu0 0.0
  %1198 = vmatpush1.msra.mxu0 %v192
  %1199 = vmatprep.subr.mxu0 0.0
  %1200 = vmatpush1.msra.mxu0 0.0
  %1201 = vmatprep.subr.mxu0 0.0
  %1202 = vmatpush1.msra.mxu0 0.0
  %1203 = vmatprep.subr.mxu0 0.0
  %1204 = vmatpush1.msra.mxu0 0.0
  %1205 = vmatprep.subr.mxu0 0.0
  %1206 = vmatpush1.msra.mxu0 0.0
  %1207 = vmatprep.subr.mxu0 0.0
  %1208 = vmatpush1.msra.mxu0 0.0
  %1209 = vmatprep.subr.mxu0 0.0
  %1210 = vmatpush1.msra.mxu0 0.0
  %1211 = vmatprep.subr.mxu0 0.0
  %1212 = vmatpush1.msra.mxu0 0.0
  %1213 = vmatprep.subr.mxu0 0.0
  %1214 = vmatpush1.msra.mxu0 0.0
  %1215 = vmatprep.subr.mxu0 0.0
  %1216 = vmatpush1.msra.mxu0 0.0
  %1217 = vmatprep.subr.mxu0 0.0
  %1218 = vmatpush1.msra.mxu0 0.0
  %1219 = vmatprep.subr.mxu0 0.0
  %1220 = vmatpush1.msra.mxu0 0.0
  %1221 = vmatprep.subr.mxu0 0.0
  %1222 = vmatpush1.msra.mxu0 0.0
  %1223 = vmatprep.subr.mxu0 0.0
  %1224 = vmatpush1.msra.mxu0 0.0
  %1225 = vmatprep.subr.mxu0 0.0
  %1226 = vmatpush1.msra.mxu0 0.0
  %1227 = vmatprep.subr.mxu0 0.0
  %1228 = vmatpush1.msra.mxu0 0.0
  %1229 = vmatprep.subr.mxu0 0.0
  %1230 = vmatpush1.msra.mxu0 0.0
  %1231 = vmatprep.subr.mxu0 0.0
  %1232 = vmatpush1.msra.mxu0 0.0
  %1233 = vmatprep.subr.mxu0 0.0
  %1234 = vmatpush1.msra.mxu0 0.0
  %1235 = vmatprep.subr.mxu0 0.0
  %1236 = vmatpush1.msra.mxu0 0.0
  %1237 = vmatprep.subr.mxu0 0.0
  %1238 = vmatpush1.msra.mxu0 0.0
  %1239 = vmatprep.subr.mxu0 0.0
  %1240 = vmatpush1.msra.mxu0 0.0
  %1241 = vmatprep.subr.mxu0 0.0
  %1242 = vmatpush1.msra.mxu0 0.0
  %1243 = vmatprep.subr.mxu0 0.0
  %1244 = vmatpush1.msra.mxu0 0.0
  %1245 = vmatprep.subr.mxu0 0.0
  %1246 = vmatpush1.msra.mxu0 0.0
  %1247 = vmatprep.subr.mxu0 0.0
  %1248 = vmatpush1.msra.mxu0 0.0
  %1249 = vmatprep.subr.mxu0 0.0
  %1250 = vmatpush1.msra.mxu0 0.0
  %1251 = vmatprep.subr.mxu0 0.0
  %1252 = vmatpush1.msra.mxu0 0.0
  %1253 = vmatprep.subr.mxu0 0.0
  %1254 = vmatpush1.msra.mxu0 0.0
  %1255 = vmatprep.mubr.f32.mxu0 0.0
  %1256 = vmatmul.mubr.f32.gmra.mrb[0].mxu0 %v1186
  %v1257 = vpop.f32.mrb[0].mxu0
  %v1258 = vadd.f32 0.0, %v1257
  %v1259 = vpop.f32.mrb[0].mxu0
  %1260 = vmatprep.mubr.f32.mxu0 0.0
  %1261 = vmatmul.mubr.f32.gmra.mrb[0].mxu0 %v1189
  %v1262 = vpop.f32.mrb[0].mxu0
  %v1263 = vadd.f32 0.0, %v1262
  %v1264 = vpop.f32.mrb[0].mxu0
  %1265 = vdwg.mxu0
  %1268 = vrot.lane.b32.xlu0 %v446, 32
  %v1269 = vpop.permute.xlu0 %1268
  %1270 = vrot.lane.b32.xlu0 %v449, 32
  %v1271 = vpop.permute.xlu0 %1270
  %v1272 = vsel %vm900, %v1269, 0
  %v1274 = vsel %vm900, %v1271, 0
  %1276 = vmatprep.subr.mxu0 0.0
  %1277 = vmatpush1.msra.mxu0 %v193
  %1278 = vmatprep.subr.mxu0 0.0
  %1279 = vmatpush1.msra.mxu0 %v194
  %1280 = vmatprep.subr.mxu0 0.0
  %1281 = vmatpush1.msra.mxu0 %v195
  %1282 = vmatprep.subr.mxu0 0.0
  %1283 = vmatpush1.msra.mxu0 %v196
  %1284 = vmatprep.subr.mxu0 0.0
  %1285 = vmatpush1.msra.mxu0 0.0
  %1286 = vmatprep.subr.mxu0 0.0
  %1287 = vmatpush1.msra.mxu0 0.0
  %1288 = vmatprep.subr.mxu0 0.0
  %1289 = vmatpush1.msra.mxu0 0.0
  %1290 = vmatprep.subr.mxu0 0.0
  %1291 = vmatpush1.msra.mxu0 0.0
  %1292 = vmatprep.subr.mxu0 0.0
  %1293 = vmatpush1.msra.mxu0 0.0
  %1294 = vmatprep.subr.mxu0 0.0
  %1295 = vmatpush1.msra.mxu0 0.0
  %1296 = vmatprep.subr.mxu0 0.0
  %1297 = vmatpush1.msra.mxu0 0.0
  %1298 = vmatprep.subr.mxu0 0.0
  %1299 = vmatpush1.msra.mxu0 0.0
  %1300 = vmatprep.subr.mxu0 0.0
  %1301 = vmatpush1.msra.mxu0 0.0
  %1302 = vmatprep.subr.mxu0 0.0
  %1303 = vmatpush1.msra.mxu0 0.0
  %1304 = vmatprep.subr.mxu0 0.0
  %1305 = vmatpush1.msra.mxu0 0.0
  %1306 = vmatprep.subr.mxu0 0.0
  %1307 = vmatpush1.msra.mxu0 0.0
  %1308 = vmatprep.subr.mxu0 0.0
  %1309 = vmatpush1.msra.mxu0 0.0
  %1310 = vmatprep.subr.mxu0 0.0
  %1311 = vmatpush1.msra.mxu0 0.0
  %1312 = vmatprep.subr.mxu0 0.0
  %1313 = vmatpush1.msra.mxu0 0.0
  %1314 = vmatprep.subr.mxu0 0.0
  %1315 = vmatpush1.msra.mxu0 0.0
  %1316 = vmatprep.subr.mxu0 0.0
  %1317 = vmatpush1.msra.mxu0 0.0
  %1318 = vmatprep.subr.mxu0 0.0
  %1319 = vmatpush1.msra.mxu0 0.0
  %1320 = vmatprep.subr.mxu0 0.0
  %1321 = vmatpush1.msra.mxu0 0.0
  %1322 = vmatprep.subr.mxu0 0.0
  %1323 = vmatpush1.msra.mxu0 0.0
  %1324 = vmatprep.subr.mxu0 0.0
  %1325 = vmatpush1.msra.mxu0 0.0
  %1326 = vmatprep.subr.mxu0 0.0
  %1327 = vmatpush1.msra.mxu0 0.0
  %1328 = vmatprep.subr.mxu0 0.0
  %1329 = vmatpush1.msra.mxu0 0.0
  %1330 = vmatprep.subr.mxu0 0.0
  %1331 = vmatpush1.msra.mxu0 0.0
  %1332 = vmatprep.subr.mxu0 0.0
  %1333 = vmatpush1.msra.mxu0 0.0
  %1334 = vmatprep.subr.mxu0 0.0
  %1335 = vmatpush1.msra.mxu0 0.0
  %1336 = vmatprep.subr.mxu0 0.0
  %1337 = vmatpush1.msra.mxu0 0.0
  %1338 = vmatprep.subr.mxu0 0.0
  %1339 = vmatpush1.msra.mxu0 0.0
  %1340 = vmatprep.mubr.f32.mxu0 0.0
  %1341 = vmatmul.mubr.f32.gmra.mrb[0].mxu0 %v1272
  %v1342 = vpop.f32.mrb[0].mxu0
  %v1343 = vadd.f32 %v1258, %v1342
  %v1344 = vpop.f32.mrb[0].mxu0
  %1345 = vmatprep.mubr.f32.mxu0 0.0
  %1346 = vmatmul.mubr.f32.gmra.mrb[0].mxu0 %v1274
  %v1347 = vpop.f32.mrb[0].mxu0
  %v1348 = vadd.f32 %v1263, %v1347
  %v1349 = vpop.f32.mrb[0].mxu0
  %1350 = vdwg.mxu0
  %v1351 = vsub.f32 0.0, %v1343
  %v1352 = vsub.f32 0.0, %v1348
  %v1353 = vmul.f32 %v1351, 1.442695
  %v1354 = vpow.pop %v1353
  %v1355 = vmul.f32 %v1352, 1.442695
  %v1356 = vpow.pop %v1355
  %v1357 = vadd.f32 %v1354, 1.0
  %v1358 = vadd.f32 %v1356, 1.0
  %v1359 = vrcp.pop %v1357
  %v1360 = vmul.f32 1.0, %v1359
  %v1361 = vrcp.pop %v1358
  %v1362 = vmul.f32 1.0, %v1361
  %1364 = vset.pattern.permute.xlu0 0
  %1365 = vperm.xlu0 %1364, %v1360
  %v1366 = vpop.permute.xlu0 %1365
  %1369 = vset.pattern.permute.xlu0 0
  %1370 = vperm.xlu0 %1369, %v1362
  %v1371 = vpop.permute.xlu0 %1370
  %v1373 = vmul.f32 %v1366, %v446
  %v1374 = vmul.f32 %v1371, %v449
  %v1375 = vsub.f32 1.0, %v1360
  %v1376 = vsub.f32 1.0, %v1362
  %1378 = vset.pattern.permute.xlu0 0
  %1379 = vperm.xlu0 %1378, %v1375
  %v1380 = vpop.permute.xlu0 %1379
  %1383 = vset.pattern.permute.xlu0 0
  %1384 = vperm.xlu0 %1383, %v1376
  %v1385 = vpop.permute.xlu0 %1384
  %v1387 = vmul.f32 %v1380, %v1179
  %v1388 = vmul.f32 %v1385, %v1182
  %1391 = vrot.lane.b32.xlu0 %v1387, 96
  %v1392 = vpop.permute.xlu0 %1391
  %1393 = vrot.lane.b32.xlu0 %v1388, 96
  %v1394 = vpop.permute.xlu0 %1393
  %v1397 = vadd.f32 %v1373, %v1392
  %v1398 = vadd.f32 %v1374, %v1394
  %v1399 = vpack.c.bf16 %v1398, %v1397
  %v1401 = vlaneseq
  %v1402 = vshrl.u32 %v1401, 7
  %v1403 = vsub.s32 0, %v1402
  %v1404 = vrot.slane %v201, %v1403
  %1407 = vrot.lane.b32.xlu0 %v1399, 32
  %v1408 = vpop.permute.xlu0 %1407
  %v1413 = vunpack.c.l.b16 %v197
  %v1414 = vunpack.c.l.b16 %v198
  %v1415 = vunpack.c.l.b16 %v199
  %v1416 = vunpack.c.l.b16 %v200
  %v1417 = vpack.c.b16 %v1414, %v1413
  %v1418 = vpack.c.b16 %v1416, %v1415
  %v1422 = vsel %vm900, %v1408, 0
  %1424 = vmatprep.subr.bf16.mxu0 0
  %1425 = vmatpush1.bf16.msra.mxu0 %v1417
  %1426 = vmatprep.subr.bf16.mxu0 0
  %1427 = vmatpush1.bf16.msra.mxu0 %v1418
  %1428 = vmatprep.subr.bf16.mxu0 0
  %1429 = vmatpush1.bf16.msra.mxu0 0
  %1430 = vmatprep.subr.bf16.mxu0 0
  %1431 = vmatpush1.bf16.msra.mxu0 0
  %1432 = vmatprep.subr.bf16.mxu0 0
  %1433 = vmatpush1.bf16.msra.mxu0 0
  %1434 = vmatprep.subr.bf16.mxu0 0
  %1435 = vmatpush1.bf16.msra.mxu0 0
  %1436 = vmatprep.subr.bf16.mxu0 0
  %1437 = vmatpush1.bf16.msra.mxu0 0
  %1438 = vmatprep.subr.bf16.mxu0 0
  %1439 = vmatpush1.bf16.msra.mxu0 0
  %1440 = vmatprep.subr.bf16.mxu0 0
  %1441 = vmatpush1.bf16.msra.mxu0 0
  %1442 = vmatprep.subr.bf16.mxu0 0
  %1443 = vmatpush1.bf16.msra.mxu0 0
  %1444 = vmatprep.subr.bf16.mxu0 0
  %1445 = vmatpush1.bf16.msra.mxu0 0
  %1446 = vmatprep.subr.bf16.mxu0 0
  %1447 = vmatpush1.bf16.msra.mxu0 0
  %1448 = vmatprep.subr.bf16.mxu0 0
  %1449 = vmatpush1.bf16.msra.mxu0 0
  %1450 = vmatprep.subr.bf16.mxu0 0
  %1451 = vmatpush1.bf16.msra.mxu0 0
  %1452 = vmatprep.subr.bf16.mxu0 0
  %1453 = vmatpush1.bf16.msra.mxu0 0
  %1454 = vmatprep.subr.bf16.mxu0 0
  %1455 = vmatpush1.bf16.msra.mxu0 0
  %1456 = vmatprep.mubr.bf16.mxu0 0
  %1457 = vmatmul.mubr.bf16.gmra.mrb[0].mxu0 %v1422
  %v1458 = vpop.f32.mrb[0].mxu0
  %v1459 = vadd.f32 %v1404, %v1458
  %v1460 = vpop.f32.mrb[0].mxu0
  %v1461 = vpop.f32.mrb[0].mxu0
  %v1462 = vadd.f32 %v1404, %v1461
  %v1463 = vpop.f32.mrb[0].mxu0
  %1464 = vdwg.mxu0
  %v1465 = vmax.f32 %v1459, 0.0
  %v1466 = vmax.f32 %v1462, 0.0
  %v1468 = vlaneseq
  %v1469 = vshrl.u32 %v1468, 7
  %v1470 = vsub.s32 0, %v1469
  %v1471 = vrot.slane %v202, %v1470
  %v1473 = vmul.f32 %v1465, %v1471
  %v1474 = vmul.f32 %v1466, %v1471
  %v1476 = vlaneseq
  %v1477 = vshrl.u32 %v1476, 7
  %v1478 = vsub.s32 0, %v1477
  %v1479 = vrot.slane %v203, %v1478
  %v1481 = vadd.f32 %v1473, %v1479
  %v1482 = vadd.f32 %v1474, %v1479
  %v1483 = vpack.c.bf16 %v1482, %v1481
  %v1484 = vld [vmem:[%s29] sm:$0xf]
  %v1485 = vld [vmem:[%s29 + $0x4] sm:$0xf]
  %v1486 = vld [vmem:[%s31] sm:$0x1]
  %v1487 = vld [vmem:[%s33] sm:$0x3]
  %v1488 = vld [vmem:[%s35] sm:$0xff]
  %v1489 = vld [vmem:[%s35 + $0x8] sm:$0xff]
  %v1490 = vld [vmem:[%s35 + $0x10] sm:$0xff]
  %v1491 = vld [vmem:[%s35 + $0x18] sm:$0xff]
  %v1492 = vld [vmem:[%s37] sm:$0xff]
  %v1493 = vld [vmem:[%s37 + $0x8] sm:$0xff]
  %v1494 = vld [vmem:[%s37 + $0x10] sm:$0xff]
  %v1495 = vld [vmem:[%s37 + $0x18] sm:$0xff]
  %v1496 = vld [vmem:[%s39] sm:$0xf]
  %v1497 = vld [vmem:[%s39 + $0x4] sm:$0xf]
  %v1498 = vld [vmem:[%s39 + $0x8] sm:$0xf]
  %v1499 = vld [vmem:[%s39 + $0xc] sm:$0xf]
  %v1500 = vld [vmem:[%s41] sm:$0x1]
  %v1501 = vld [vmem:[%s43] sm:$0x1]
  %v1502 = vld [vmem:[%s45] sm:$0x1]
  %v1504 = vlaneseq
  %v1505 = vshrl.u32 %v1504, 7
  %v1506 = vsub.s32 0, %v1505
  %v1507 = vrot.slane %v1486, %v1506
  %v1511 = vunpack.c.l.b16 %v1484
  %v1512 = vunpack.c.l.b16 %v1485
  %v1513 = vpack.c.b16 %v1512, %v1511
  %v1516 = vsel %vm236, %v1483, 0
  %1518 = vmatprep.subr.bf16.mxu0 0
  %1519 = vmatpush1.bf16.msra.mxu0 %v1513
  %1520 = vmatprep.subr.bf16.mxu0 0
  %1521 = vmatpush1.bf16.msra.mxu0 0
  %1522 = vmatprep.subr.bf16.mxu0 0
  %1523 = vmatpush1.bf16.msra.mxu0 0
  %1524 = vmatprep.subr.bf16.mxu0 0
  %1525 = vmatpush1.bf16.msra.mxu0 0
  %1526 = vmatprep.subr.bf16.mxu0 0
  %1527 = vmatpush1.bf16.msra.mxu0 0
  %1528 = vmatprep.subr.bf16.mxu0 0
  %1529 = vmatpush1.bf16.msra.mxu0 0
  %1530 = vmatprep.subr.bf16.mxu0 0
  %1531 = vmatpush1.bf16.msra.mxu0 0
  %1532 = vmatprep.subr.bf16.mxu0 0
  %1533 = vmatpush1.bf16.msra.mxu0 0
  %1534 = vmatprep.subr.bf16.mxu0 0
  %1535 = vmatpush1.bf16.msra.mxu0 0
  %1536 = vmatprep.subr.bf16.mxu0 0
  %1537 = vmatpush1.bf16.msra.mxu0 0
  %1538 = vmatprep.subr.bf16.mxu0 0
  %1539 = vmatpush1.bf16.msra.mxu0 0
  %1540 = vmatprep.subr.bf16.mxu0 0
  %1541 = vmatpush1.bf16.msra.mxu0 0
  %1542 = vmatprep.subr.bf16.mxu0 0
  %1543 = vmatpush1.bf16.msra.mxu0 0
  %1544 = vmatprep.subr.bf16.mxu0 0
  %1545 = vmatpush1.bf16.msra.mxu0 0
  %1546 = vmatprep.subr.bf16.mxu0 0
  %1547 = vmatpush1.bf16.msra.mxu0 0
  %1548 = vmatprep.subr.bf16.mxu0 0
  %1549 = vmatpush1.bf16.msra.mxu0 0
  %1550 = vmatprep.mubr.bf16.mxu0 0
  %1551 = vmatmul.mubr.bf16.gmra.mrb[0].mxu0 %v1516
  %v1552 = vpop.f32.mrb[0].mxu0
  %v1553 = vadd.f32 %v1507, %v1552
  %v1554 = vpop.f32.mrb[0].mxu0
  %v1555 = vpop.f32.mrb[0].mxu0
  %v1556 = vadd.f32 %v1507, %v1555
  %v1557 = vpop.f32.mrb[0].mxu0
  %1558 = vdwg.mxu0
  %v1559 = vpack.c.bf16 %v1556, %v1553
  %v1561 = vsel %vm518, %v1487, 0
  %1563 = vmatprep.subr.bf16.mxu0 0
  %1564 = vmatpush1.bf16.msra.mxu0 %v1561
  %1565 = vmatprep.subr.bf16.mxu0 0
  %1566 = vmatpush1.bf16.msra.mxu0 0
  %1567 = vmatprep.subr.bf16.mxu0 0
  %1568 = vmatpush1.bf16.msra.mxu0 0
  %1569 = vmatprep.subr.bf16.mxu0 0
  %1570 = vmatpush1.bf16.msra.mxu0 0
  %1571 = vmatprep.subr.bf16.mxu0 0
  %1572 = vmatpush1.bf16.msra.mxu0 0
  %1573 = vmatprep.subr.bf16.mxu0 0
  %1574 = vmatpush1.bf16.msra.mxu0 0
  %1575 = vmatprep.subr.bf16.mxu0 0
  %1576 = vmatpush1.bf16.msra.mxu0 0
  %1577 = vmatprep.subr.bf16.mxu0 0
  %1578 = vmatpush1.bf16.msra.mxu0 0
  %1579 = vmatprep.subr.bf16.mxu0 0
  %1580 = vmatpush1.bf16.msra.mxu0 0
  %1581 = vmatprep.subr.bf16.mxu0 0
  %1582 = vmatpush1.bf16.msra.mxu0 0
  %1583 = vmatprep.subr.bf16.mxu0 0
  %1584 = vmatpush1.bf16.msra.mxu0 0
  %1585 = vmatprep.subr.bf16.mxu0 0
  %1586 = vmatpush1.bf16.msra.mxu0 0
  %1587 = vmatprep.subr.bf16.mxu0 0
  %1588 = vmatpush1.bf16.msra.mxu0 0
  %1589 = vmatprep.subr.bf16.mxu0 0
  %1590 = vmatpush1.bf16.msra.mxu0 0
  %1591 = vmatprep.subr.bf16.mxu0 0
  %1592 = vmatpush1.bf16.msra.mxu0 0
  %1593 = vmatprep.subr.bf16.mxu0 0
  %1594 = vmatpush1.bf16.msra.mxu0 0
  %1595 = vmatprep.mubr.bf16.mxu0 0
  %1596 = vmatmul.mubr.bf16.gmra.mrb[0].mxu0 %v495
  %v1597 = vpop.f32.mrb[0].mxu0
  %v1598 = vadd.f32 0.0, %v1597
  %v1599 = vpop.f32.mrb[0].mxu0
  %v1600 = vpop.f32.mrb[0].mxu0
  %v1601 = vadd.f32 0.0, %v1600
  %v1602 = vpop.f32.mrb[0].mxu0
  %1603 = vmatprep.mubr.bf16.mxu0 0
  %1604 = vmatmul.mubr.bf16.gmra.mrb[0].mxu0 %v498
  %v1605 = vpop.f32.mrb[0].mxu0
  %v1606 = vadd.f32 0.0, %v1605
  %v1607 = vpop.f32.mrb[0].mxu0
  %v1608 = vpop.f32.mrb[0].mxu0
  %v1609 = vadd.f32 0.0, %v1608
  %v1610 = vpop.f32.mrb[0].mxu0
  %1611 = vmatprep.mubr.bf16.mxu0 0
  %1612 = vmatmul.mubr.bf16.gmra.mrb[0].mxu0 %v501
  %v1613 = vpop.f32.mrb[0].mxu0
  %v1614 = vadd.f32 0.0, %v1613
  %v1615 = vpop.f32.mrb[0].mxu0
  %v1616 = vpop.f32.mrb[0].mxu0
  %v1617 = vadd.f32 0.0, %v1616
  %v1618 = vpop.f32.mrb[0].mxu0
  %1619 = vmatprep.mubr.bf16.mxu0 0
  %1620 = vmatmul.mubr.bf16.gmra.mrb[0].mxu0 %v504
  %v1621 = vpop.f32.mrb[0].mxu0
  %v1622 = vadd.f32 0.0, %v1621
  %v1623 = vpop.f32.mrb[0].mxu0
  %v1624 = vpop.f32.mrb[0].mxu0
  %v1625 = vadd.f32 0.0, %v1624
  %v1626 = vpop.f32.mrb[0].mxu0
  %1627 = vmatprep.mubr.bf16.mxu0 0
  %1628 = vmatmul.mubr.bf16.gmra.mrb[0].mxu0 %v507
  %v1629 = vpop.f32.mrb[0].mxu0
  %v1630 = vadd.f32 0.0, %v1629
  %v1631 = vpop.f32.mrb[0].mxu0
  %v1632 = vpop.f32.mrb[0].mxu0
  %v1633 = vadd.f32 0.0, %v1632
  %v1634 = vpop.f32.mrb[0].mxu0
  %1635 = vmatprep.mubr.bf16.mxu0 0
  %1636 = vmatmul.mubr.bf16.gmra.mrb[0].mxu0 %v510
  %v1637 = vpop.f32.mrb[0].mxu0
  %v1638 = vadd.f32 0.0, %v1637
  %v1639 = vpop.f32.mrb[0].mxu0
  %v1640 = vpop.f32.mrb[0].mxu0
  %v1641 = vadd.f32 0.0, %v1640
  %v1642 = vpop.f32.mrb[0].mxu0
  %1643 = vmatprep.mubr.bf16.mxu0 0
  %1644 = vmatmul.mubr.bf16.gmra.mrb[0].mxu0 %v513
  %v1645 = vpop.f32.mrb[0].mxu0
  %v1646 = vadd.f32 0.0, %v1645
  %v1647 = vpop.f32.mrb[0].mxu0
  %v1648 = vpop.f32.mrb[0].mxu0
  %v1649 = vadd.f32 0.0, %v1648
  %v1650 = vpop.f32.mrb[0].mxu0
  %1651 = vmatprep.mubr.bf16.mxu0 0
  %1652 = vmatmul.mubr.bf16.gmra.mrb[0].mxu0 %v516
  %v1653 = vpop.f32.mrb[0].mxu0
  %v1654 = vadd.f32 0.0, %v1653
  %v1655 = vpop.f32.mrb[0].mxu0
  %v1656 = vpop.f32.mrb[0].mxu0
  %v1657 = vadd.f32 0.0, %v1656
  %v1658 = vpop.f32.mrb[0].mxu0
  %1659 = vdwg.mxu0
  %1661 = vrot.lane.b32.xlu0 %v1559, 96
  %v1662 = vpop.permute.xlu0 %1661
  %1664 = vmatprep.subr.bf16.mxu0 0
  %1665 = vmatpush1.bf16.msra.mxu0 %v1662
  %1666 = vmatprep.subr.bf16.mxu0 0
  %1667 = vmatpush1.bf16.msra.mxu0 0
  %1668 = vmatprep.subr.bf16.mxu0 0
  %1669 = vmatpush1.bf16.msra.mxu0 0
  %1670 = vmatprep.subr.bf16.mxu0 0
  %1671 = vmatpush1.bf16.msra.mxu0 0
  %1672 = vmatprep.subr.bf16.mxu0 0
  %1673 = vmatpush1.bf16.msra.mxu0 0
  %1674 = vmatprep.subr.bf16.mxu0 0
  %1675 = vmatpush1.bf16.msra.mxu0 0
  %1676 = vmatprep.subr.bf16.mxu0 0
  %1677 = vmatpush1.bf16.msra.mxu0 0
  %1678 = vmatprep.subr.bf16.mxu0 0
  %1679 = vmatpush1.bf16.msra.mxu0 0
  %1680 = vmatprep.subr.bf16.mxu0 0
  %1681 = vmatpush1.bf16.msra.mxu0 0
  %1682 = vmatprep.subr.bf16.mxu0 0
  %1683 = vmatpush1.bf16.msra.mxu0 0
  %1684 = vmatprep.subr.bf16.mxu0 0
  %1685 = vmatpush1.bf16.msra.mxu0 0
  %1686 = vmatprep.subr.bf16.mxu0 0
  %1687 = vmatpush1.bf16.msra.mxu0 0
  %1688 = vmatprep.subr.bf16.mxu0 0
  %1689 = vmatpush1.bf16.msra.mxu0 0
  %1690 = vmatprep.subr.bf16.mxu0 0
  %1691 = vmatpush1.bf16.msra.mxu0 0
  %1692 = vmatprep.subr.bf16.mxu0 0
  %1693 = vmatpush1.bf16.msra.mxu0 0
  %1694 = vmatprep.subr.bf16.mxu0 0
  %1695 = vmatpush1.bf16.msra.mxu0 0
  %1696 = vmatprep.mubr.bf16.mxu0 0
  %1697 = vmatmul.mubr.bf16.gmra.mrb[0].mxu0 %v640
  %v1698 = vpop.f32.mrb[0].mxu0
  %v1699 = vadd.f32 %v1598, %v1698
  %v1700 = vpop.f32.mrb[0].mxu0
  %v1701 = vpop.f32.mrb[0].mxu0
  %v1702 = vadd.f32 %v1601, %v1701
  %v1703 = vpop.f32.mrb[0].mxu0
  %1704 = vmatprep.mubr.bf16.mxu0 0
  %1705 = vmatmul.mubr.bf16.gmra.mrb[0].mxu0 %v643
  %v1706 = vpop.f32.mrb[0].mxu0
  %v1707 = vadd.f32 %v1606, %v1706
  %v1708 = vpop.f32.mrb[0].mxu0
  %v1709 = vpop.f32.mrb[0].mxu0
  %v1710 = vadd.f32 %v1609, %v1709
  %v1711 = vpop.f32.mrb[0].mxu0
  %1712 = vmatprep.mubr.bf16.mxu0 0
  %1713 = vmatmul.mubr.bf16.gmra.mrb[0].mxu0 %v646
  %v1714 = vpop.f32.mrb[0].mxu0
  %v1715 = vadd.f32 %v1614, %v1714
  %v1716 = vpop.f32.mrb[0].mxu0
  %v1717 = vpop.f32.mrb[0].mxu0
  %v1718 = vadd.f32 %v1617, %v1717
  %v1719 = vpop.f32.mrb[0].mxu0
  %1720 = vmatprep.mubr.bf16.mxu0 0
  %1721 = vmatmul.mubr.bf16.gmra.mrb[0].mxu0 %v649
  %v1722 = vpop.f32.mrb[0].mxu0
  %v1723 = vadd.f32 %v1622, %v1722
  %v1724 = vpop.f32.mrb[0].mxu0
  %v1725 = vpop.f32.mrb[0].mxu0
  %v1726 = vadd.f32 %v1625, %v1725
  %v1727 = vpop.f32.mrb[0].mxu0
  %1728 = vmatprep.mubr.bf16.mxu0 0
  %1729 = vmatmul.mubr.bf16.gmra.mrb[0].mxu0 %v652
  %v1730 = vpop.f32.mrb[0].mxu0
  %v1731 = vadd.f32 %v1630, %v1730
  %v1732 = vpop.f32.mrb[0].mxu0
  %v1733 = vpop.f32.mrb[0].mxu0
  %v1734 = vadd.f32 %v1633, %v1733
  %v1735 = vpop.f32.mrb[0].mxu0
  %1736 = vmatprep.mubr.bf16.mxu0 0
  %1737 = vmatmul.mubr.bf16.gmra.mrb[0].mxu0 %v655
  %v1738 = vpop.f32.mrb[0].mxu0
  %v1739 = vadd.f32 %v1638, %v1738
  %v1740 = vpop.f32.mrb[0].mxu0
  %v1741 = vpop.f32.mrb[0].mxu0
  %v1742 = vadd.f32 %v1641, %v1741
  %v1743 = vpop.f32.mrb[0].mxu0
  %1744 = vmatprep.mubr.bf16.mxu0 0
  %1745 = vmatmul.mubr.bf16.gmra.mrb[0].mxu0 %v658
  %v1746 = vpop.f32.mrb[0].mxu0
  %v1747 = vadd.f32 %v1646, %v1746
  %v1748 = vpop.f32.mrb[0].mxu0
  %v1749 = vpop.f32.mrb[0].mxu0
  %v1750 = vadd.f32 %v1649, %v1749
  %v1751 = vpop.f32.mrb[0].mxu0
  %1752 = vmatprep.mubr.bf16.mxu0 0
  %1753 = vmatmul.mubr.bf16.gmra.mrb[0].mxu0 %v661
  %v1754 = vpop.f32.mrb[0].mxu0
  %v1755 = vadd.f32 %v1654, %v1754
  %v1756 = vpop.f32.mrb[0].mxu0
  %v1757 = vpop.f32.mrb[0].mxu0
  %v1758 = vadd.f32 %v1657, %v1757
  %v1759 = vpop.f32.mrb[0].mxu0
  %1760 = vdwg.mxu0
  %1761 = vrot.lane.b32.xlu0 %v1559, 64
  %v1762 = vpop.permute.xlu0 %1761
  %1764 = vmatprep.subr.bf16.mxu0 0
  %1765 = vmatpush1.bf16.msra.mxu0 %v1762
  %1766 = vmatprep.subr.bf16.mxu0 0
  %1767 = vmatpush1.bf16.msra.mxu0 0
  %1768 = vmatprep.subr.bf16.mxu0 0
  %1769 = vmatpush1.bf16.msra.mxu0 0
  %1770 = vmatprep.subr.bf16.mxu0 0
  %1771 = vmatpush1.bf16.msra.mxu0 0
  %1772 = vmatprep.subr.bf16.mxu0 0
  %1773 = vmatpush1.bf16.msra.mxu0 0
  %1774 = vmatprep.subr.bf16.mxu0 0
  %1775 = vmatpush1.bf16.msra.mxu0 0
  %1776 = vmatprep.subr.bf16.mxu0 0
  %1777 = vmatpush1.bf16.msra.mxu0 0
  %1778 = vmatprep.subr.bf16.mxu0 0
  %1779 = vmatpush1.bf16.msra.mxu0 0
  %1780 = vmatprep.subr.bf16.mxu0 0
  %1781 = vmatpush1.bf16.msra.mxu0 0
  %1782 = vmatprep.subr.bf16.mxu0 0
  %1783 = vmatpush1.bf16.msra.mxu0 0
  %1784 = vmatprep.subr.bf16.mxu0 0
  %1785 = vmatpush1.bf16.msra.mxu0 0
  %1786 = vmatprep.subr.bf16.mxu0 0
  %1787 = vmatpush1.bf16.msra.mxu0 0
  %1788 = vmatprep.subr.bf16.mxu0 0
  %1789 = vmatpush1.bf16.msra.mxu0 0
  %1790 = vmatprep.subr.bf16.mxu0 0
  %1791 = vmatpush1.bf16.msra.mxu0 0
  %1792 = vmatprep.subr.bf16.mxu0 0
  %1793 = vmatpush1.bf16.msra.mxu0 0
  %1794 = vmatprep.subr.bf16.mxu0 0
  %1795 = vmatpush1.bf16.msra.mxu0 0
  %1796 = vmatprep.mubr.bf16.mxu0 0
  %1797 = vmatmul.mubr.bf16.gmra.mrb[0].mxu0 %v640
  %v1798 = vpop.f32.mrb[0].mxu0
  %v1799 = vadd.f32 %v1598, %v1798
  %v1800 = vpop.f32.mrb[0].mxu0
  %v1801 = vpop.f32.mrb[0].mxu0
  %v1802 = vadd.f32 %v1601, %v1801
  %v1803 = vpop.f32.mrb[0].mxu0
  %1804 = vmatprep.mubr.bf16.mxu0 0
  %1805 = vmatmul.mubr.bf16.gmra.mrb[0].mxu0 %v643
  %v1806 = vpop.f32.mrb[0].mxu0
  %v1807 = vadd.f32 %v1606, %v1806
  %v1808 = vpop.f32.mrb[0].mxu0
  %v1809 = vpop.f32.mrb[0].mxu0
  %v1810 = vadd.f32 %v1609, %v1809
  %v1811 = vpop.f32.mrb[0].mxu0
  %1812 = vmatprep.mubr.bf16.mxu0 0
  %1813 = vmatmul.mubr.bf16.gmra.mrb[0].mxu0 %v646
  %v1814 = vpop.f32.mrb[0].mxu0
  %v1815 = vadd.f32 %v1614, %v1814
  %v1816 = vpop.f32.mrb[0].mxu0
  %v1817 = vpop.f32.mrb[0].mxu0
  %v1818 = vadd.f32 %v1617, %v1817
  %v1819 = vpop.f32.mrb[0].mxu0
  %1820 = vmatprep.mubr.bf16.mxu0 0
  %1821 = vmatmul.mubr.bf16.gmra.mrb[0].mxu0 %v649
  %v1822 = vpop.f32.mrb[0].mxu0
  %v1823 = vadd.f32 %v1622, %v1822
  %v1824 = vpop.f32.mrb[0].mxu0
  %v1825 = vpop.f32.mrb[0].mxu0
  %v1826 = vadd.f32 %v1625, %v1825
  %v1827 = vpop.f32.mrb[0].mxu0
  %1828 = vmatprep.mubr.bf16.mxu0 0
  %1829 = vmatmul.mubr.bf16.gmra.mrb[0].mxu0 %v652
  %v1830 = vpop.f32.mrb[0].mxu0
  %v1831 = vadd.f32 %v1630, %v1830
  %v1832 = vpop.f32.mrb[0].mxu0
  %v1833 = vpop.f32.mrb[0].mxu0
  %v1834 = vadd.f32 %v1633, %v1833
  %v1835 = vpop.f32.mrb[0].mxu0
  %1836 = vmatprep.mubr.bf16.mxu0 0
  %1837 = vmatmul.mubr.bf16.gmra.mrb[0].mxu0 %v655
  %v1838 = vpop.f32.mrb[0].mxu0
  %v1839 = vadd.f32 %v1638, %v1838
  %v1840 = vpop.f32.mrb[0].mxu0
  %v1841 = vpop.f32.mrb[0].mxu0
  %v1842 = vadd.f32 %v1641, %v1841
  %v1843 = vpop.f32.mrb[0].mxu0
  %1844 = vmatprep.mubr.bf16.mxu0 0
  %1845 = vmatmul.mubr.bf16.gmra.mrb[0].mxu0 %v658
  %v1846 = vpop.f32.mrb[0].mxu0
  %v1847 = vadd.f32 %v1646, %v1846
  %v1848 = vpop.f32.mrb[0].mxu0
  %v1849 = vpop.f32.mrb[0].mxu0
  %v1850 = vadd.f32 %v1649, %v1849
  %v1851 = vpop.f32.mrb[0].mxu0
  %1852 = vmatprep.mubr.bf16.mxu0 0
  %1853 = vmatmul.mubr.bf16.gmra.mrb[0].mxu0 %v661
  %v1854 = vpop.f32.mrb[0].mxu0
  %v1855 = vadd.f32 %v1654, %v1854
  %v1856 = vpop.f32.mrb[0].mxu0
  %v1857 = vpop.f32.mrb[0].mxu0
  %v1858 = vadd.f32 %v1657, %v1857
  %v1859 = vpop.f32.mrb[0].mxu0
  %1860 = vdwg.mxu0
  %v1861 = vpack.c.bf16 %v1702, %v1699
  %v1862 = vpack.c.bf16 %v1710, %v1707
  %v1863 = vpack.c.bf16 %v1718, %v1715
  %v1864 = vpack.c.bf16 %v1726, %v1723
  %v1865 = vpack.c.bf16 %v1734, %v1731
  %v1866 = vpack.c.bf16 %v1742, %v1739
  %v1867 = vpack.c.bf16 %v1750, %v1747
  %v1868 = vpack.c.bf16 %v1758, %v1755
  %v1869 = vsel %vm872, %v1553, 0.0
  %v1870 = vsel %vm872, %v1556, 0.0
  %v1871 = vpack.c.bf16 %v1870, %v1869
  %v1872 = vsel %vm872, %v1799, 0.0
  %v1873 = vsel %vm872, %v1802, 0.0
  %v1874 = vsel %vm872, %v1807, 0.0
  %v1875 = vsel %vm872, %v1810, 0.0
  %v1876 = vsel %vm872, %v1815, 0.0
  %v1877 = vsel %vm872, %v1818, 0.0
  %v1878 = vsel %vm872, %v1823, 0.0
  %v1879 = vsel %vm872, %v1826, 0.0
  %v1880 = vsel %vm872, %v1831, 0.0
  %v1881 = vsel %vm872, %v1834, 0.0
  %v1882 = vsel %vm872, %v1839, 0.0
  %v1883 = vsel %vm872, %v1842, 0.0
  %v1884 = vsel %vm872, %v1847, 0.0
  %v1885 = vsel %vm872, %v1850, 0.0
  %v1886 = vsel %vm872, %v1855, 0.0
  %v1887 = vsel %vm872, %v1858, 0.0
  %v1888 = vpack.c.bf16 %v1873, %v1872
  %v1889 = vpack.c.bf16 %v1875, %v1874
  %v1890 = vpack.c.bf16 %v1877, %v1876
  %v1891 = vpack.c.bf16 %v1879, %v1878
  %v1892 = vpack.c.bf16 %v1881, %v1880
  %v1893 = vpack.c.bf16 %v1883, %v1882
  %v1894 = vpack.c.bf16 %v1885, %v1884
  %v1895 = vpack.c.bf16 %v1887, %v1886
  %v1897 = vsel %vm900, %v1871, 0
  %v1900 = vsel %vm900, %v1861, 0
  %v1903 = vsel %vm900, %v1862, 0
  %v1906 = vsel %vm900, %v1863, 0
  %v1909 = vsel %vm900, %v1864, 0
  %v1912 = vsel %vm900, %v1865, 0
  %v1915 = vsel %vm900, %v1866, 0
  %v1918 = vsel %vm900, %v1867, 0
  %v1921 = vsel %vm900, %v1868, 0
  %1923 = vmatprep.subr.bf16.mxu0 0
  %1924 = vmatpush1.bf16.xpose.msra.mxu0 %v1900
  %1925 = vmatprep.subr.bf16.mxu0 0
  %1926 = vmatpush1.bf16.xpose.msra.mxu0 %v1903
  %1927 = vmatprep.subr.bf16.mxu0 0
  %1928 = vmatpush1.bf16.xpose.msra.mxu0 %v1906
  %1929 = vmatprep.subr.bf16.mxu0 0
  %1930 = vmatpush1.bf16.xpose.msra.mxu0 %v1909
  %1931 = vmatprep.subr.bf16.mxu0 0
  %1932 = vmatpush1.bf16.xpose.msra.mxu0 %v1912
  %1933 = vmatprep.subr.bf16.mxu0 0
  %1934 = vmatpush1.bf16.xpose.msra.mxu0 %v1915
  %1935 = vmatprep.subr.bf16.mxu0 0
  %1936 = vmatpush1.bf16.xpose.msra.mxu0 %v1918
  %1937 = vmatprep.subr.bf16.mxu0 0
  %1938 = vmatpush1.bf16.xpose.msra.mxu0 %v1921
  %1939 = vmatprep.subr.bf16.mxu0 0
  %1940 = vmatpush1.bf16.xpose.msra.mxu0 0
  %1941 = vmatprep.subr.bf16.mxu0 0
  %1942 = vmatpush1.bf16.xpose.msra.mxu0 0
  %1943 = vmatprep.subr.bf16.mxu0 0
  %1944 = vmatpush1.bf16.xpose.msra.mxu0 0
  %1945 = vmatprep.subr.bf16.mxu0 0
  %1946 = vmatpush1.bf16.xpose.msra.mxu0 0
  %1947 = vmatprep.subr.bf16.mxu0 0
  %1948 = vmatpush1.bf16.xpose.msra.mxu0 0
  %1949 = vmatprep.subr.bf16.mxu0 0
  %1950 = vmatpush1.bf16.xpose.msra.mxu0 0
  %1951 = vmatprep.subr.bf16.mxu0 0
  %1952 = vmatpush1.bf16.xpose.msra.mxu0 0
  %1953 = vmatprep.subr.bf16.mxu0 0
  %1954 = vmatpush1.bf16.xpose.msra.mxu0 0
  %1955 = vmatprep.mubr.bf16.mxu0 0
  %1956 = vmatmul.mubr.bf16.gmra.mrb[0].mxu0 %v1897
  %v1957 = vpop.f32.mrb[0].mxu0
  %v1958 = vadd.f32 0.0, %v1957
  %v1959 = vpop.f32.mrb[0].mxu0
  %v1960 = vpop.f32.mrb[0].mxu0
  %v1961 = vadd.f32 0.0, %v1960
  %v1962 = vpop.f32.mrb[0].mxu0
  %1963 = vdwg.mxu0
  %v1964 = vmul.f32 %v1958, 0.25
  %v1965 = vmul.f32 %v1961, 0.25
  %v1966 = vsel %vm390, %v1964, -1e+30
  %v1967 = vsel %vm391, %v1965, -1e+30
  %1968 = vmax.xlane.f32.xlu0 %v1966
  %v1969 = vpop.xlane.xlu0 %1968
  %1970 = vmax.xlane.f32.xlu0 %v1967
  %v1971 = vpop.xlane.xlu0 %1970
  %v1972 = vsub.f32 %v1966, %v1969
  %v1973 = vsub.f32 %v1967, %v1971
  %v1974 = vmul.f32 %v1972, 1.442695
  %v1975 = vpow.pop %v1974
  %v1976 = vmul.f32 %v1973, 1.442695
  %v1977 = vpow.pop %v1976
  %v1978 = vsel %vm390, %v1975, 0.0
  %v1979 = vsel %vm391, %v1977, 0.0
  %1980 = vadd.xlane.f32.xlu0 %v1978
  %v1981 = vpop.xlane.xlu0 %1980
  %1982 = vadd.xlane.f32.xlu0 %v1979
  %v1983 = vpop.xlane.xlu0 %1982
  %vm1984 = vcmp.gt.f32.partialorder %v1981, 0.0
  %vm1985 = vcmp.gt.f32.partialorder %v1983, 0.0
  %v1986 = vsel %vm1984, %v1981, 1.0
  %v1987 = vsel %vm1985, %v1983, 1.0
  %v1988 = vrcp.pop %v1986
  %v1989 = vmul.f32 %v1978, %v1988
  %v1990 = vrcp.pop %v1987
  %v1991 = vmul.f32 %v1979, %v1990
  %v1992 = vpack.c.bf16 %v1991, %v1989
  %v1993 = vsel %vm1002, %v1553, 0.0
  %v1994 = vsel %vm1002, %v1556, 0.0
  %v1995 = vpack.c.bf16 %v1994, %v1993
  %v1996 = vsel %vm1002, %v1799, 0.0
  %v1997 = vsel %vm1002, %v1802, 0.0
  %v1998 = vsel %vm1002, %v1807, 0.0
  %v1999 = vsel %vm1002, %v1810, 0.0
  %v2000 = vsel %vm1002, %v1815, 0.0
  %v2001 = vsel %vm1002, %v1818, 0.0
  %v2002 = vsel %vm1002, %v1823, 0.0
  %v2003 = vsel %vm1002, %v1826, 0.0
  %v2004 = vsel %vm1002, %v1831, 0.0
  %v2005 = vsel %vm1002, %v1834, 0.0
  %v2006 = vsel %vm1002, %v1839, 0.0
  %v2007 = vsel %vm1002, %v1842, 0.0
  %v2008 = vsel %vm1002, %v1847, 0.0
  %v2009 = vsel %vm1002, %v1850, 0.0
  %v2010 = vsel %vm1002, %v1855, 0.0
  %v2011 = vsel %vm1002, %v1858, 0.0
  %v2012 = vpack.c.bf16 %v1997, %v1996
  %v2013 = vpack.c.bf16 %v1999, %v1998
  %v2014 = vpack.c.bf16 %v2001, %v2000
  %v2015 = vpack.c.bf16 %v2003, %v2002
  %v2016 = vpack.c.bf16 %v2005, %v2004
  %v2017 = vpack.c.bf16 %v2007, %v2006
  %v2018 = vpack.c.bf16 %v2009, %v2008
  %v2019 = vpack.c.bf16 %v2011, %v2010
  %v2021 = vsel %vm900, %v1995, 0
  %2023 = vmatprep.subr.bf16.mxu0 0
  %2024 = vmatpush1.bf16.xpose.msra.mxu0 %v1900
  %2025 = vmatprep.subr.bf16.mxu0 0
  %2026 = vmatpush1.bf16.xpose.msra.mxu0 %v1903
  %2027 = vmatprep.subr.bf16.mxu0 0
  %2028 = vmatpush1.bf16.xpose.msra.mxu0 %v1906
  %2029 = vmatprep.subr.bf16.mxu0 0
  %2030 = vmatpush1.bf16.xpose.msra.mxu0 %v1909
  %2031 = vmatprep.subr.bf16.mxu0 0
  %2032 = vmatpush1.bf16.xpose.msra.mxu0 %v1912
  %2033 = vmatprep.subr.bf16.mxu0 0
  %2034 = vmatpush1.bf16.xpose.msra.mxu0 %v1915
  %2035 = vmatprep.subr.bf16.mxu0 0
  %2036 = vmatpush1.bf16.xpose.msra.mxu0 %v1918
  %2037 = vmatprep.subr.bf16.mxu0 0
  %2038 = vmatpush1.bf16.xpose.msra.mxu0 %v1921
  %2039 = vmatprep.subr.bf16.mxu0 0
  %2040 = vmatpush1.bf16.xpose.msra.mxu0 0
  %2041 = vmatprep.subr.bf16.mxu0 0
  %2042 = vmatpush1.bf16.xpose.msra.mxu0 0
  %2043 = vmatprep.subr.bf16.mxu0 0
  %2044 = vmatpush1.bf16.xpose.msra.mxu0 0
  %2045 = vmatprep.subr.bf16.mxu0 0
  %2046 = vmatpush1.bf16.xpose.msra.mxu0 0
  %2047 = vmatprep.subr.bf16.mxu0 0
  %2048 = vmatpush1.bf16.xpose.msra.mxu0 0
  %2049 = vmatprep.subr.bf16.mxu0 0
  %2050 = vmatpush1.bf16.xpose.msra.mxu0 0
  %2051 = vmatprep.subr.bf16.mxu0 0
  %2052 = vmatpush1.bf16.xpose.msra.mxu0 0
  %2053 = vmatprep.subr.bf16.mxu0 0
  %2054 = vmatpush1.bf16.xpose.msra.mxu0 0
  %2055 = vmatprep.mubr.bf16.mxu0 0
  %2056 = vmatmul.mubr.bf16.gmra.mrb[0].mxu0 %v2021
  %v2057 = vpop.f32.mrb[0].mxu0
  %v2058 = vadd.f32 0.0, %v2057
  %v2059 = vpop.f32.mrb[0].mxu0
  %v2060 = vpop.f32.mrb[0].mxu0
  %v2061 = vadd.f32 0.0, %v2060
  %v2062 = vpop.f32.mrb[0].mxu0
  %2063 = vdwg.mxu0
  %v2064 = vmul.f32 %v2058, 0.25
  %v2065 = vmul.f32 %v2061, 0.25
  %v2066 = vsel %vm390, %v2064, -1e+30
  %v2067 = vsel %vm391, %v2065, -1e+30
  %2068 = vmax.xlane.f32.xlu0 %v2066
  %v2069 = vpop.xlane.xlu0 %2068
  %2070 = vmax.xlane.f32.xlu0 %v2067
  %v2071 = vpop.xlane.xlu0 %2070
  %v2072 = vsub.f32 %v2066, %v2069
  %v2073 = vsub.f32 %v2067, %v2071
  %v2074 = vmul.f32 %v2072, 1.442695
  %v2075 = vpow.pop %v2074
  %v2076 = vmul.f32 %v2073, 1.442695
  %v2077 = vpow.pop %v2076
  %v2078 = vsel %vm390, %v2075, 0.0
  %v2079 = vsel %vm391, %v2077, 0.0
  %2080 = vadd.xlane.f32.xlu0 %v2078
  %v2081 = vpop.xlane.xlu0 %2080
  %2082 = vadd.xlane.f32.xlu0 %v2079
  %v2083 = vpop.xlane.xlu0 %2082
  %vm2084 = vcmp.gt.f32.partialorder %v2081, 0.0
  %vm2085 = vcmp.gt.f32.partialorder %v2083, 0.0
  %v2086 = vsel %vm2084, %v2081, 1.0
  %v2087 = vsel %vm2085, %v2083, 1.0
  %v2088 = vrcp.pop %v2086
  %v2089 = vmul.f32 %v2078, %v2088
  %v2090 = vrcp.pop %v2087
  %v2091 = vmul.f32 %v2079, %v2090
  %v2092 = vpack.c.bf16 %v2091, %v2089
  %2093 = vmatprep.subr.bf16.mxu0 0
  %2094 = vmatpush1.bf16.msra.mxu0 %v2012
  %2095 = vmatprep.subr.bf16.mxu0 0
  %2096 = vmatpush1.bf16.msra.mxu0 %v2013
  %2097 = vmatprep.subr.bf16.mxu0 0
  %2098 = vmatpush1.bf16.msra.mxu0 %v2014
  %2099 = vmatprep.subr.bf16.mxu0 0
  %2100 = vmatpush1.bf16.msra.mxu0 %v2015
  %2101 = vmatprep.subr.bf16.mxu0 0
  %2102 = vmatpush1.bf16.msra.mxu0 %v2016
  %2103 = vmatprep.subr.bf16.mxu0 0
  %2104 = vmatpush1.bf16.msra.mxu0 %v2017
  %2105 = vmatprep.subr.bf16.mxu0 0
  %2106 = vmatpush1.bf16.msra.mxu0 %v2018
  %2107 = vmatprep.subr.bf16.mxu0 0
  %2108 = vmatpush1.bf16.msra.mxu0 %v2019
  %2109 = vmatprep.subr.bf16.mxu0 0
  %2110 = vmatpush1.bf16.msra.mxu0 0
  %2111 = vmatprep.subr.bf16.mxu0 0
  %2112 = vmatpush1.bf16.msra.mxu0 0
  %2113 = vmatprep.subr.bf16.mxu0 0
  %2114 = vmatpush1.bf16.msra.mxu0 0
  %2115 = vmatprep.subr.bf16.mxu0 0
  %2116 = vmatpush1.bf16.msra.mxu0 0
  %2117 = vmatprep.subr.bf16.mxu0 0
  %2118 = vmatpush1.bf16.msra.mxu0 0
  %2119 = vmatprep.subr.bf16.mxu0 0
  %2120 = vmatpush1.bf16.msra.mxu0 0
  %2121 = vmatprep.subr.bf16.mxu0 0
  %2122 = vmatpush1.bf16.msra.mxu0 0
  %2123 = vmatprep.subr.bf16.mxu0 0
  %2124 = vmatpush1.bf16.msra.mxu0 0
  %2125 = vmatprep.mubr.bf16.mxu0 0
  %2126 = vmatmul.mubr.bf16.gmra.mrb[0].mxu0 %v2092
  %v2127 = vpop.f32.mrb[0].mxu0
  %v2128 = vadd.f32 0.0, %v2127
  %v2129 = vpop.f32.mrb[0].mxu0
  %v2130 = vpop.f32.mrb[0].mxu0
  %v2131 = vadd.f32 0.0, %v2130
  %v2132 = vpop.f32.mrb[0].mxu0
  %2133 = vdwg.mxu0
  %2134 = vmatprep.subr.bf16.mxu0 0
  %2135 = vmatpush1.bf16.msra.mxu0 %v1888
  %2136 = vmatprep.subr.bf16.mxu0 0
  %2137 = vmatpush1.bf16.msra.mxu0 %v1889
  %2138 = vmatprep.subr.bf16.mxu0 0
  %2139 = vmatpush1.bf16.msra.mxu0 %v1890
  %2140 = vmatprep.subr.bf16.mxu0 0
  %2141 = vmatpush1.bf16.msra.mxu0 %v1891
  %2142 = vmatprep.subr.bf16.mxu0 0
  %2143 = vmatpush1.bf16.msra.mxu0 %v1892
  %2144 = vmatprep.subr.bf16.mxu0 0
  %2145 = vmatpush1.bf16.msra.mxu0 %v1893
  %2146 = vmatprep.subr.bf16.mxu0 0
  %2147 = vmatpush1.bf16.msra.mxu0 %v1894
  %2148 = vmatprep.subr.bf16.mxu0 0
  %2149 = vmatpush1.bf16.msra.mxu0 %v1895
  %2150 = vmatprep.subr.bf16.mxu0 0
  %2151 = vmatpush1.bf16.msra.mxu0 0
  %2152 = vmatprep.subr.bf16.mxu0 0
  %2153 = vmatpush1.bf16.msra.mxu0 0
  %2154 = vmatprep.subr.bf16.mxu0 0
  %2155 = vmatpush1.bf16.msra.mxu0 0
  %2156 = vmatprep.subr.bf16.mxu0 0
  %2157 = vmatpush1.bf16.msra.mxu0 0
  %2158 = vmatprep.subr.bf16.mxu0 0
  %2159 = vmatpush1.bf16.msra.mxu0 0
  %2160 = vmatprep.subr.bf16.mxu0 0
  %2161 = vmatpush1.bf16.msra.mxu0 0
  %2162 = vmatprep.subr.bf16.mxu0 0
  %2163 = vmatpush1.bf16.msra.mxu0 0
  %2164 = vmatprep.subr.bf16.mxu0 0
  %2165 = vmatpush1.bf16.msra.mxu0 0
  %2166 = vmatprep.mubr.bf16.mxu0 0
  %2167 = vmatmul.mubr.bf16.gmra.mrb[0].mxu0 %v1992
  %v2168 = vpop.f32.mrb[0].mxu0
  %v2169 = vadd.f32 %v2128, %v2168
  %v2170 = vpop.f32.mrb[0].mxu0
  %v2171 = vpop.f32.mrb[0].mxu0
  %v2172 = vadd.f32 %v2131, %v2171
  %v2173 = vpop.f32.mrb[0].mxu0
  %2174 = vdwg.mxu0
  %v2176 = vsel %vm900, %v2169, 0
  %v2179 = vsel %vm900, %v2172, 0
  %2181 = vmatprep.subr.mxu0 0.0
  %2182 = vmatpush1.msra.mxu0 %v1488
  %2183 = vmatprep.subr.mxu0 0.0
  %2184 = vmatpush1.msra.mxu0 %v1489
  %2185 = vmatprep.subr.mxu0 0.0
  %2186 = vmatpush1.msra.mxu0 %v1490
  %2187 = vmatprep.subr.mxu0 0.0
  %2188 = vmatpush1.msra.mxu0 %v1491
  %2189 = vmatprep.subr.mxu0 0.0
  %2190 = vmatpush1.msra.mxu0 0.0
  %2191 = vmatprep.subr.mxu0 0.0
  %2192 = vmatpush1.msra.mxu0 0.0
  %2193 = vmatprep.subr.mxu0 0.0
  %2194 = vmatpush1.msra.mxu0 0.0
  %2195 = vmatprep.subr.mxu0 0.0
  %2196 = vmatpush1.msra.mxu0 0.0
  %2197 = vmatprep.subr.mxu0 0.0
  %2198 = vmatpush1.msra.mxu0 0.0
  %2199 = vmatprep.subr.mxu0 0.0
  %2200 = vmatpush1.msra.mxu0 0.0
  %2201 = vmatprep.subr.mxu0 0.0
  %2202 = vmatpush1.msra.mxu0 0.0
  %2203 = vmatprep.subr.mxu0 0.0
  %2204 = vmatpush1.msra.mxu0 0.0
  %2205 = vmatprep.subr.mxu0 0.0
  %2206 = vmatpush1.msra.mxu0 0.0
  %2207 = vmatprep.subr.mxu0 0.0
  %2208 = vmatpush1.msra.mxu0 0.0
  %2209 = vmatprep.subr.mxu0 0.0
  %2210 = vmatpush1.msra.mxu0 0.0
  %2211 = vmatprep.subr.mxu0 0.0
  %2212 = vmatpush1.msra.mxu0 0.0
  %2213 = vmatprep.subr.mxu0 0.0
  %2214 = vmatpush1.msra.mxu0 0.0
  %2215 = vmatprep.subr.mxu0 0.0
  %2216 = vmatpush1.msra.mxu0 0.0
  %2217 = vmatprep.subr.mxu0 0.0
  %2218 = vmatpush1.msra.mxu0 0.0
  %2219 = vmatprep.subr.mxu0 0.0
  %2220 = vmatpush1.msra.mxu0 0.0
  %2221 = vmatprep.subr.mxu0 0.0
  %2222 = vmatpush1.msra.mxu0 0.0
  %2223 = vmatprep.subr.mxu0 0.0
  %2224 = vmatpush1.msra.mxu0 0.0
  %2225 = vmatprep.subr.mxu0 0.0
  %2226 = vmatpush1.msra.mxu0 0.0
  %2227 = vmatprep.subr.mxu0 0.0
  %2228 = vmatpush1.msra.mxu0 0.0
  %2229 = vmatprep.subr.mxu0 0.0
  %2230 = vmatpush1.msra.mxu0 0.0
  %2231 = vmatprep.subr.mxu0 0.0
  %2232 = vmatpush1.msra.mxu0 0.0
  %2233 = vmatprep.subr.mxu0 0.0
  %2234 = vmatpush1.msra.mxu0 0.0
  %2235 = vmatprep.subr.mxu0 0.0
  %2236 = vmatpush1.msra.mxu0 0.0
  %2237 = vmatprep.subr.mxu0 0.0
  %2238 = vmatpush1.msra.mxu0 0.0
  %2239 = vmatprep.subr.mxu0 0.0
  %2240 = vmatpush1.msra.mxu0 0.0
  %2241 = vmatprep.subr.mxu0 0.0
  %2242 = vmatpush1.msra.mxu0 0.0
  %2243 = vmatprep.subr.mxu0 0.0
  %2244 = vmatpush1.msra.mxu0 0.0
  %2245 = vmatprep.mubr.f32.mxu0 0.0
  %2246 = vmatmul.mubr.f32.gmra.mrb[0].mxu0 %v2176
  %v2247 = vpop.f32.mrb[0].mxu0
  %v2248 = vadd.f32 0.0, %v2247
  %v2249 = vpop.f32.mrb[0].mxu0
  %2250 = vmatprep.mubr.f32.mxu0 0.0
  %2251 = vmatmul.mubr.f32.gmra.mrb[0].mxu0 %v2179
  %v2252 = vpop.f32.mrb[0].mxu0
  %v2253 = vadd.f32 0.0, %v2252
  %v2254 = vpop.f32.mrb[0].mxu0
  %2255 = vdwg.mxu0
  %2258 = vrot.lane.b32.xlu0 %v1553, 32
  %v2259 = vpop.permute.xlu0 %2258
  %2260 = vrot.lane.b32.xlu0 %v1556, 32
  %v2261 = vpop.permute.xlu0 %2260
  %v2262 = vsel %vm900, %v2259, 0
  %v2264 = vsel %vm900, %v2261, 0
  %2266 = vmatprep.subr.mxu0 0.0
  %2267 = vmatpush1.msra.mxu0 %v1492
  %2268 = vmatprep.subr.mxu0 0.0
  %2269 = vmatpush1.msra.mxu0 %v1493
  %2270 = vmatprep.subr.mxu0 0.0
  %2271 = vmatpush1.msra.mxu0 %v1494
  %2272 = vmatprep.subr.mxu0 0.0
  %2273 = vmatpush1.msra.mxu0 %v1495
  %2274 = vmatprep.subr.mxu0 0.0
  %2275 = vmatpush1.msra.mxu0 0.0
  %2276 = vmatprep.subr.mxu0 0.0
  %2277 = vmatpush1.msra.mxu0 0.0
  %2278 = vmatprep.subr.mxu0 0.0
  %2279 = vmatpush1.msra.mxu0 0.0
  %2280 = vmatprep.subr.mxu0 0.0
  %2281 = vmatpush1.msra.mxu0 0.0
  %2282 = vmatprep.subr.mxu0 0.0
  %2283 = vmatpush1.msra.mxu0 0.0
  %2284 = vmatprep.subr.mxu0 0.0
  %2285 = vmatpush1.msra.mxu0 0.0
  %2286 = vmatprep.subr.mxu0 0.0
  %2287 = vmatpush1.msra.mxu0 0.0
  %2288 = vmatprep.subr.mxu0 0.0
  %2289 = vmatpush1.msra.mxu0 0.0
  %2290 = vmatprep.subr.mxu0 0.0
  %2291 = vmatpush1.msra.mxu0 0.0
  %2292 = vmatprep.subr.mxu0 0.0
  %2293 = vmatpush1.msra.mxu0 0.0
  %2294 = vmatprep.subr.mxu0 0.0
  %2295 = vmatpush1.msra.mxu0 0.0
  %2296 = vmatprep.subr.mxu0 0.0
  %2297 = vmatpush1.msra.mxu0 0.0
  %2298 = vmatprep.subr.mxu0 0.0
  %2299 = vmatpush1.msra.mxu0 0.0
  %2300 = vmatprep.subr.mxu0 0.0
  %2301 = vmatpush1.msra.mxu0 0.0
  %2302 = vmatprep.subr.mxu0 0.0
  %2303 = vmatpush1.msra.mxu0 0.0
  %2304 = vmatprep.subr.mxu0 0.0
  %2305 = vmatpush1.msra.mxu0 0.0
  %2306 = vmatprep.subr.mxu0 0.0
  %2307 = vmatpush1.msra.mxu0 0.0
  %2308 = vmatprep.subr.mxu0 0.0
  %2309 = vmatpush1.msra.mxu0 0.0
  %2310 = vmatprep.subr.mxu0 0.0
  %2311 = vmatpush1.msra.mxu0 0.0
  %2312 = vmatprep.subr.mxu0 0.0
  %2313 = vmatpush1.msra.mxu0 0.0
  %2314 = vmatprep.subr.mxu0 0.0
  %2315 = vmatpush1.msra.mxu0 0.0
  %2316 = vmatprep.subr.mxu0 0.0
  %2317 = vmatpush1.msra.mxu0 0.0
  %2318 = vmatprep.subr.mxu0 0.0
  %2319 = vmatpush1.msra.mxu0 0.0
  %2320 = vmatprep.subr.mxu0 0.0
  %2321 = vmatpush1.msra.mxu0 0.0
  %2322 = vmatprep.subr.mxu0 0.0
  %2323 = vmatpush1.msra.mxu0 0.0
  %2324 = vmatprep.subr.mxu0 0.0
  %2325 = vmatpush1.msra.mxu0 0.0
  %2326 = vmatprep.subr.mxu0 0.0
  %2327 = vmatpush1.msra.mxu0 0.0
  %2328 = vmatprep.subr.mxu0 0.0
  %2329 = vmatpush1.msra.mxu0 0.0
  %2330 = vmatprep.mubr.f32.mxu0 0.0
  %2331 = vmatmul.mubr.f32.gmra.mrb[0].mxu0 %v2262
  %v2332 = vpop.f32.mrb[0].mxu0
  %v2333 = vadd.f32 %v2248, %v2332
  %v2334 = vpop.f32.mrb[0].mxu0
  %2335 = vmatprep.mubr.f32.mxu0 0.0
  %2336 = vmatmul.mubr.f32.gmra.mrb[0].mxu0 %v2264
  %v2337 = vpop.f32.mrb[0].mxu0
  %v2338 = vadd.f32 %v2253, %v2337
  %v2339 = vpop.f32.mrb[0].mxu0
  %2340 = vdwg.mxu0
  %v2341 = vsub.f32 0.0, %v2333
  %v2342 = vsub.f32 0.0, %v2338
  %v2343 = vmul.f32 %v2341, 1.442695
  %v2344 = vpow.pop %v2343
  %v2345 = vmul.f32 %v2342, 1.442695
  %v2346 = vpow.pop %v2345
  %v2347 = vadd.f32 %v2344, 1.0
  %v2348 = vadd.f32 %v2346, 1.0
  %v2349 = vrcp.pop %v2347
  %v2350 = vmul.f32 1.0, %v2349
  %v2351 = vrcp.pop %v2348
  %v2352 = vmul.f32 1.0, %v2351
  %2354 = vset.pattern.permute.xlu0 0
  %2355 = vperm.xlu0 %2354, %v2350
  %v2356 = vpop.permute.xlu0 %2355
  %2359 = vset.pattern.permute.xlu0 0
  %2360 = vperm.xlu0 %2359, %v2352
  %v2361 = vpop.permute.xlu0 %2360
  %v2363 = vmul.f32 %v2356, %v1553
  %v2364 = vmul.f32 %v2361, %v1556
  %v2365 = vsub.f32 1.0, %v2350
  %v2366 = vsub.f32 1.0, %v2352
  %2368 = vset.pattern.permute.xlu0 0
  %2369 = vperm.xlu0 %2368, %v2365
  %v2370 = vpop.permute.xlu0 %2369
  %2373 = vset.pattern.permute.xlu0 0
  %2374 = vperm.xlu0 %2373, %v2366
  %v2375 = vpop.permute.xlu0 %2374
  %v2377 = vmul.f32 %v2370, %v2169
  %v2378 = vmul.f32 %v2375, %v2172
  %2381 = vrot.lane.b32.xlu0 %v2377, 96
  %v2382 = vpop.permute.xlu0 %2381
  %2383 = vrot.lane.b32.xlu0 %v2378, 96
  %v2384 = vpop.permute.xlu0 %2383
  %v2387 = vadd.f32 %v2363, %v2382
  %v2388 = vadd.f32 %v2364, %v2384
  %v2389 = vpack.c.bf16 %v2388, %v2387
  %v2391 = vlaneseq
  %v2392 = vshrl.u32 %v2391, 7
  %v2393 = vsub.s32 0, %v2392
  %v2394 = vrot.slane %v1500, %v2393
  %2397 = vrot.lane.b32.xlu0 %v2389, 32
  %v2398 = vpop.permute.xlu0 %2397
  %v2403 = vunpack.c.l.b16 %v1496
  %v2404 = vunpack.c.l.b16 %v1497
  %v2405 = vunpack.c.l.b16 %v1498
  %v2406 = vunpack.c.l.b16 %v1499
  %v2407 = vpack.c.b16 %v2404, %v2403
  %v2408 = vpack.c.b16 %v2406, %v2405
  %v2412 = vsel %vm900, %v2398, 0
  %2414 = vmatprep.subr.bf16.mxu0 0
  %2415 = vmatpush1.bf16.msra.mxu0 %v2407
  %2416 = vmatprep.subr.bf16.mxu0 0
  %2417 = vmatpush1.bf16.msra.mxu0 %v2408
  %2418 = vmatprep.subr.bf16.mxu0 0
  %2419 = vmatpush1.bf16.msra.mxu0 0
  %2420 = vmatprep.subr.bf16.mxu0 0
  %2421 = vmatpush1.bf16.msra.mxu0 0
  %2422 = vmatprep.subr.bf16.mxu0 0
  %2423 = vmatpush1.bf16.msra.mxu0 0
  %2424 = vmatprep.subr.bf16.mxu0 0
  %2425 = vmatpush1.bf16.msra.mxu0 0
  %2426 = vmatprep.subr.bf16.mxu0 0
  %2427 = vmatpush1.bf16.msra.mxu0 0
  %2428 = vmatprep.subr.bf16.mxu0 0
  %2429 = vmatpush1.bf16.msra.mxu0 0
  %2430 = vmatprep.subr.bf16.mxu0 0
  %2431 = vmatpush1.bf16.msra.mxu0 0
  %2432 = vmatprep.subr.bf16.mxu0 0
  %2433 = vmatpush1.bf16.msra.mxu0 0
  %2434 = vmatprep.subr.bf16.mxu0 0
  %2435 = vmatpush1.bf16.msra.mxu0 0
  %2436 = vmatprep.subr.bf16.mxu0 0
  %2437 = vmatpush1.bf16.msra.mxu0 0
  %2438 = vmatprep.subr.bf16.mxu0 0
  %2439 = vmatpush1.bf16.msra.mxu0 0
  %2440 = vmatprep.subr.bf16.mxu0 0
  %2441 = vmatpush1.bf16.msra.mxu0 0
  %2442 = vmatprep.subr.bf16.mxu0 0
  %2443 = vmatpush1.bf16.msra.mxu0 0
  %2444 = vmatprep.subr.bf16.mxu0 0
  %2445 = vmatpush1.bf16.msra.mxu0 0
  %2446 = vmatprep.mubr.bf16.mxu0 0
  %2447 = vmatmul.mubr.bf16.gmra.mrb[0].mxu0 %v2412
  %v2448 = vpop.f32.mrb[0].mxu0
  %v2449 = vadd.f32 %v2394, %v2448
  %v2450 = vpop.f32.mrb[0].mxu0
  %v2451 = vpop.f32.mrb[0].mxu0
  %v2452 = vadd.f32 %v2394, %v2451
  %v2453 = vpop.f32.mrb[0].mxu0
  %2454 = vdwg.mxu0
  %v2455 = vmax.f32 %v2449, 0.0
  %v2456 = vmax.f32 %v2452, 0.0
  %v2458 = vlaneseq
  %v2459 = vshrl.u32 %v2458, 7
  %v2460 = vsub.s32 0, %v2459
  %v2461 = vrot.slane %v1501, %v2460
  %v2463 = vmul.f32 %v2455, %v2461
  %v2464 = vmul.f32 %v2456, %v2461
  %v2466 = vlaneseq
  %v2467 = vshrl.u32 %v2466, 7
  %v2468 = vsub.s32 0, %v2467
  %v2469 = vrot.slane %v1502, %v2468
  %v2471 = vadd.f32 %v2463, %v2469
  %v2472 = vadd.f32 %v2464, %v2469
  %v2473 = vld [vmem:[%s47] sm:$0xff]
  %v2474 = vld [vmem:[%s47 + $0x8] sm:$0xff]
  %v2476 = vsel %vm236, %v2471, 0
  %v2479 = vsel %vm236, %v2472, 0
  %2481 = vmatprep.subr.mxu0 0.0
  %2482 = vmatpush1.msra.mxu0 %v2473
  %2483 = vmatprep.subr.mxu0 0.0
  %2484 = vmatpush1.msra.mxu0 %v2474
  %2485 = vmatprep.subr.mxu0 0.0
  %2486 = vmatpush1.msra.mxu0 0.0
  %2487 = vmatprep.subr.mxu0 0.0
  %2488 = vmatpush1.msra.mxu0 0.0
  %2489 = vmatprep.subr.mxu0 0.0
  %2490 = vmatpush1.msra.mxu0 0.0
  %2491 = vmatprep.subr.mxu0 0.0
  %2492 = vmatpush1.msra.mxu0 0.0
  %2493 = vmatprep.subr.mxu0 0.0
  %2494 = vmatpush1.msra.mxu0 0.0
  %2495 = vmatprep.subr.mxu0 0.0
  %2496 = vmatpush1.msra.mxu0 0.0
  %2497 = vmatprep.subr.mxu0 0.0
  %2498 = vmatpush1.msra.mxu0 0.0
  %2499 = vmatprep.subr.mxu0 0.0
  %2500 = vmatpush1.msra.mxu0 0.0
  %2501 = vmatprep.subr.mxu0 0.0
  %2502 = vmatpush1.msra.mxu0 0.0
  %2503 = vmatprep.subr.mxu0 0.0
  %2504 = vmatpush1.msra.mxu0 0.0
  %2505 = vmatprep.subr.mxu0 0.0
  %2506 = vmatpush1.msra.mxu0 0.0
  %2507 = vmatprep.subr.mxu0 0.0
  %2508 = vmatpush1.msra.mxu0 0.0
  %2509 = vmatprep.subr.mxu0 0.0
  %2510 = vmatpush1.msra.mxu0 0.0
  %2511 = vmatprep.subr.mxu0 0.0
  %2512 = vmatpush1.msra.mxu0 0.0
  %2513 = vmatprep.subr.mxu0 0.0
  %2514 = vmatpush1.msra.mxu0 0.0
  %2515 = vmatprep.subr.mxu0 0.0
  %2516 = vmatpush1.msra.mxu0 0.0
  %2517 = vmatprep.subr.mxu0 0.0
  %2518 = vmatpush1.msra.mxu0 0.0
  %2519 = vmatprep.subr.mxu0 0.0
  %2520 = vmatpush1.msra.mxu0 0.0
  %2521 = vmatprep.subr.mxu0 0.0
  %2522 = vmatpush1.msra.mxu0 0.0
  %2523 = vmatprep.subr.mxu0 0.0
  %2524 = vmatpush1.msra.mxu0 0.0
  %2525 = vmatprep.subr.mxu0 0.0
  %2526 = vmatpush1.msra.mxu0 0.0
  %2527 = vmatprep.subr.mxu0 0.0
  %2528 = vmatpush1.msra.mxu0 0.0
  %2529 = vmatprep.subr.mxu0 0.0
  %2530 = vmatpush1.msra.mxu0 0.0
  %2531 = vmatprep.subr.mxu0 0.0
  %2532 = vmatpush1.msra.mxu0 0.0
  %2533 = vmatprep.subr.mxu0 0.0
  %2534 = vmatpush1.msra.mxu0 0.0
  %2535 = vmatprep.subr.mxu0 0.0
  %2536 = vmatpush1.msra.mxu0 0.0
  %2537 = vmatprep.subr.mxu0 0.0
  %2538 = vmatpush1.msra.mxu0 0.0
  %2539 = vmatprep.subr.mxu0 0.0
  %2540 = vmatpush1.msra.mxu0 0.0
  %2541 = vmatprep.subr.mxu0 0.0
  %2542 = vmatpush1.msra.mxu0 0.0
  %2543 = vmatprep.subr.mxu0 0.0
  %2544 = vmatpush1.msra.mxu0 0.0
  %2545 = vmatprep.mubr.f32.mxu0 0.0
  %2546 = vmatmul.mubr.f32.gmra.mrb[0].mxu0 %v2476
  %v2547 = vpop.f32.mrb[0].mxu0
  %v2548 = vadd.f32 0.0, %v2547
  %v2549 = vpop.f32.mrb[0].mxu0
  %2550 = vmatprep.mubr.f32.mxu0 0.0
  %2551 = vmatmul.mubr.f32.gmra.mrb[0].mxu0 %v2479
  %v2552 = vpop.f32.mrb[0].mxu0
  %v2553 = vadd.f32 0.0, %v2552
  %v2554 = vpop.f32.mrb[0].mxu0
  %2555 = vdwg.mxu0
  %v2556 = vtanh.pop %v2548
  %v2557 = vtanh.pop %v2553
  %vm2558 = vcmp.eq.s32.totalorder %v134, %v155
  %vm2559 = vcmp.eq.s32.totalorder %v135, %v155
  %v2560 = vsel %vm2558, 1.0, 0.0
  %v2561 = vsel %vm2559, 1.0, 0.0
  %2562 = vxpose.xlu0.b32.start [1/16] %v2556, 128
  %2563 = vxpose.xlu0.b32.cont [2/16] %v2557, 128
  %2564 = vxpose.xlu0.b32.cont [3/16] 0.0, 128
  %2565 = vxpose.xlu0.b32.cont [4/16] 0.0, 128
  %2566 = vxpose.xlu0.b32.cont [5/16] 0.0, 128
  %2567 = vxpose.xlu0.b32.cont [6/16] 0.0, 128
  %2568 = vxpose.xlu0.b32.cont [7/16] 0.0, 128
  %2569 = vxpose.xlu0.b32.cont [8/16] 0.0, 128
  %2570 = vxpose.xlu0.b32.cont [9/16] 0.0, 128
  %2571 = vxpose.xlu0.b32.cont [10/16] 0.0, 128
  %2572 = vxpose.xlu0.b32.cont [11/16] 0.0, 128
  %2573 = vxpose.xlu0.b32.cont [12/16] 0.0, 128
  %2574 = vxpose.xlu0.b32.cont [13/16] 0.0, 128
  %2575 = vxpose.xlu0.b32.cont [14/16] 0.0, 128
  %2576 = vxpose.xlu0.b32.cont [15/16] 0.0, 128
  %2577 = vxpose.xlu0.b32.end [16/16] 0.0, 128
  %v2578 = vpop.trf.xlu0
  %v2579 = vpop.trf.xlu0
  %v2580 = vpop.trf.xlu0
  %v2581 = vpop.trf.xlu0
  %v2582 = vpop.trf.xlu0
  %v2583 = vpop.trf.xlu0
  %v2584 = vpop.trf.xlu0
  %v2585 = vpop.trf.xlu0
  %v2586 = vpop.trf.xlu0
  %v2587 = vpop.trf.xlu0
  %v2588 = vpop.trf.xlu0
  %v2589 = vpop.trf.xlu0
  %v2590 = vpop.trf.xlu0
  %v2591 = vpop.trf.xlu0
  %v2592 = vpop.trf.xlu0
  %v2593 = vpop.trf.xlu0
  %v2595 = vsel %vm236, %v2578, 0
  %2597 = vmatprep.subr.mxu0 0.0
  %2598 = vmatpush1.msra.mxu0 %v2560
  %2599 = vmatprep.subr.mxu0 0.0
  %2600 = vmatpush1.msra.mxu0 %v2561
  %2601 = vmatprep.subr.mxu0 0.0
  %2602 = vmatpush1.msra.mxu0 0.0
  %2603 = vmatprep.subr.mxu0 0.0
  %2604 = vmatpush1.msra.mxu0 0.0
  %2605 = vmatprep.subr.mxu0 0.0
  %2606 = vmatpush1.msra.mxu0 0.0
  %2607 = vmatprep.subr.mxu0 0.0
  %2608 = vmatpush1.msra.mxu0 0.0
  %2609 = vmatprep.subr.mxu0 0.0
  %2610 = vmatpush1.msra.mxu0 0.0
  %2611 = vmatprep.subr.mxu0 0.0
  %2612 = vmatpush1.msra.mxu0 0.0
  %2613 = vmatprep.subr.mxu0 0.0
  %2614 = vmatpush1.msra.mxu0 0.0
  %2615 = vmatprep.subr.mxu0 0.0
  %2616 = vmatpush1.msra.mxu0 0.0
  %2617 = vmatprep.subr.mxu0 0.0
  %2618 = vmatpush1.msra.mxu0 0.0
  %2619 = vmatprep.subr.mxu0 0.0
  %2620 = vmatpush1.msra.mxu0 0.0
  %2621 = vmatprep.subr.mxu0 0.0
  %2622 = vmatpush1.msra.mxu0 0.0
  %2623 = vmatprep.subr.mxu0 0.0
  %2624 = vmatpush1.msra.mxu0 0.0
  %2625 = vmatprep.subr.mxu0 0.0
  %2626 = vmatpush1.msra.mxu0 0.0
  %2627 = vmatprep.subr.mxu0 0.0
  %2628 = vmatpush1.msra.mxu0 0.0
  %2629 = vmatprep.subr.mxu0 0.0
  %2630 = vmatpush1.msra.mxu0 0.0
  %2631 = vmatprep.subr.mxu0 0.0
  %2632 = vmatpush1.msra.mxu0 0.0
  %2633 = vmatprep.subr.mxu0 0.0
  %2634 = vmatpush1.msra.mxu0 0.0
  %2635 = vmatprep.subr.mxu0 0.0
  %2636 = vmatpush1.msra.mxu0 0.0
  %2637 = vmatprep.subr.mxu0 0.0
  %2638 = vmatpush1.msra.mxu0 0.0
  %2639 = vmatprep.subr.mxu0 0.0
  %2640 = vmatpush1.msra.mxu0 0.0
  %2641 = vmatprep.subr.mxu0 0.0
  %2642 = vmatpush1.msra.mxu0 0.0
  %2643 = vmatprep.subr.mxu0 0.0
  %2644 = vmatpush1.msra.mxu0 0.0
  %2645 = vmatprep.subr.mxu0 0.0
  %2646 = vmatpush1.msra.mxu0 0.0
  %2647 = vmatprep.subr.mxu0 0.0
  %2648 = vmatpush1.msra.mxu0 0.0
  %2649 = vmatprep.subr.mxu0 0.0
  %2650 = vmatpush1.msra.mxu0 0.0
  %2651 = vmatprep.subr.mxu0 0.0
  %2652 = vmatpush1.msra.mxu0 0.0
  %2653 = vmatprep.subr.mxu0 0.0
  %2654 = vmatpush1.msra.mxu0 0.0
  %2655 = vmatprep.subr.mxu0 0.0
  %2656 = vmatpush1.msra.mxu0 0.0
  %2657 = vmatprep.subr.mxu0 0.0
  %2658 = vmatpush1.msra.mxu0 0.0
  %2659 = vmatprep.subr.mxu0 0.0
  %2660 = vmatpush1.msra.mxu0 0.0
  %2661 = vmatprep.mubr.f32.mxu0 0.0
  %2662 = vmatmul.mubr.f32.gmra.mrb[0].mxu0 %v2595
  %v2663 = vpop.f32.mrb[0].mxu0
  %v2664 = vadd.f32 0.0, %v2663
  %v2665 = vpop.f32.mrb[0].mxu0
  %2666 = vdwg.mxu0
  %2667 = vmatprep.subr.mxu0 0.0
  %2668 = vmatpush1.msra.mxu0 %v2560
  %2669 = vmatprep.subr.mxu0 0.0
  %2670 = vmatpush1.msra.mxu0 %v2561
  %2671 = vmatprep.subr.mxu0 0.0
  %2672 = vmatpush1.msra.mxu0 0.0
  %2673 = vmatprep.subr.mxu0 0.0
  %2674 = vmatpush1.msra.mxu0 0.0
  %2675 = vmatprep.subr.mxu0 0.0
  %2676 = vmatpush1.msra.mxu0 0.0
  %2677 = vmatprep.subr.mxu0 0.0
  %2678 = vmatpush1.msra.mxu0 0.0
  %2679 = vmatprep.subr.mxu0 0.0
  %2680 = vmatpush1.msra.mxu0 0.0
  %2681 = vmatprep.subr.mxu0 0.0
  %2682 = vmatpush1.msra.mxu0 0.0
  %2683 = vmatprep.subr.mxu0 0.0
  %2684 = vmatpush1.msra.mxu0 0.0
  %2685 = vmatprep.subr.mxu0 0.0
  %2686 = vmatpush1.msra.mxu0 0.0
  %2687 = vmatprep.subr.mxu0 0.0
  %2688 = vmatpush1.msra.mxu0 0.0
  %2689 = vmatprep.subr.mxu0 0.0
  %2690 = vmatpush1.msra.mxu0 0.0
  %2691 = vmatprep.subr.mxu0 0.0
  %2692 = vmatpush1.msra.mxu0 0.0
  %2693 = vmatprep.subr.mxu0 0.0
  %2694 = vmatpush1.msra.mxu0 0.0
  %2695 = vmatprep.subr.mxu0 0.0
  %2696 = vmatpush1.msra.mxu0 0.0
  %2697 = vmatprep.subr.mxu0 0.0
  %2698 = vmatpush1.msra.mxu0 0.0
  %2699 = vmatprep.subr.mxu0 0.0
  %2700 = vmatpush1.msra.mxu0 0.0
  %2701 = vmatprep.subr.mxu0 0.0
  %2702 = vmatpush1.msra.mxu0 0.0
  %2703 = vmatprep.subr.mxu0 0.0
  %2704 = vmatpush1.msra.mxu0 0.0
  %2705 = vmatprep.subr.mxu0 0.0
  %2706 = vmatpush1.msra.mxu0 0.0
  %2707 = vmatprep.subr.mxu0 0.0
  %2708 = vmatpush1.msra.mxu0 0.0
  %2709 = vmatprep.subr.mxu0 0.0
  %2710 = vmatpush1.msra.mxu0 0.0
  %2711 = vmatprep.subr.mxu0 0.0
  %2712 = vmatpush1.msra.mxu0 0.0
  %2713 = vmatprep.subr.mxu0 0.0
  %2714 = vmatpush1.msra.mxu0 0.0
  %2715 = vmatprep.subr.mxu0 0.0
  %2716 = vmatpush1.msra.mxu0 0.0
  %2717 = vmatprep.subr.mxu0 0.0
  %2718 = vmatpush1.msra.mxu0 0.0
  %2719 = vmatprep.subr.mxu0 0.0
  %2720 = vmatpush1.msra.mxu0 0.0
  %2721 = vmatprep.subr.mxu0 0.0
  %2722 = vmatpush1.msra.mxu0 0.0
  %2723 = vmatprep.subr.mxu0 0.0
  %2724 = vmatpush1.msra.mxu0 0.0
  %2725 = vmatprep.subr.mxu0 0.0
  %2726 = vmatpush1.msra.mxu0 0.0
  %2727 = vmatprep.subr.mxu0 0.0
  %2728 = vmatpush1.msra.mxu0 0.0
  %2729 = vmatprep.subr.mxu0 0.0
  %2730 = vmatpush1.msra.mxu0 0.0
  %2731 = vmatprep.mubr.f32.mxu0 0.0
  %2732 = vmatmul.mubr.f32.gmra.mrb[0].mxu0 %v238
  %v2733 = vpop.f32.mrb[0].mxu0
  %v2734 = vadd.f32 0.0, %v2733
  %v2735 = vpop.f32.mrb[0].mxu0
  %2736 = vdwg.mxu0
  %2737 = vxpose.xlu0.b32.start [1/16] %v166, 128
  %2738 = vxpose.xlu0.b32.cont [2/16] %v167, 128
  %2739 = vxpose.xlu0.b32.cont [3/16] 0.0, 128
  %2740 = vxpose.xlu0.b32.cont [4/16] 0.0, 128
  %2741 = vxpose.xlu0.b32.cont [5/16] 0.0, 128
  %2742 = vxpose.xlu0.b32.cont [6/16] 0.0, 128
  %2743 = vxpose.xlu0.b32.cont [7/16] 0.0, 128
  %2744 = vxpose.xlu0.b32.cont [8/16] 0.0, 128
  %2745 = vxpose.xlu0.b32.cont [9/16] 0.0, 128
  %2746 = vxpose.xlu0.b32.cont [10/16] 0.0, 128
  %2747 = vxpose.xlu0.b32.cont [11/16] 0.0, 128
  %2748 = vxpose.xlu0.b32.cont [12/16] 0.0, 128
  %2749 = vxpose.xlu0.b32.cont [13/16] 0.0, 128
  %2750 = vxpose.xlu0.b32.cont [14/16] 0.0, 128
  %2751 = vxpose.xlu0.b32.cont [15/16] 0.0, 128
  %2752 = vxpose.xlu0.b32.end [16/16] 0.0, 128
  %v2753 = vpop.trf.xlu0
  %v2754 = vpop.trf.xlu0
  %v2755 = vpop.trf.xlu0
  %v2756 = vpop.trf.xlu0
  %v2757 = vpop.trf.xlu0
  %v2758 = vpop.trf.xlu0
  %v2759 = vpop.trf.xlu0
  %v2760 = vpop.trf.xlu0
  %v2761 = vpop.trf.xlu0
  %v2762 = vpop.trf.xlu0
  %v2763 = vpop.trf.xlu0
  %v2764 = vpop.trf.xlu0
  %v2765 = vpop.trf.xlu0
  %v2766 = vpop.trf.xlu0
  %v2767 = vpop.trf.xlu0
  %v2768 = vpop.trf.xlu0
  %v2770 = vsel %vm236, %v2753, 0
  %2772 = vmatprep.subr.mxu0 0.0
  %2773 = vmatpush1.msra.mxu0 1.0
  %2774 = vmatprep.subr.mxu0 0.0
  %2775 = vmatpush1.msra.mxu0 1.0
  %2776 = vmatprep.subr.mxu0 0.0
  %2777 = vmatpush1.msra.mxu0 0.0
  %2778 = vmatprep.subr.mxu0 0.0
  %2779 = vmatpush1.msra.mxu0 0.0
  %2780 = vmatprep.subr.mxu0 0.0
  %2781 = vmatpush1.msra.mxu0 0.0
  %2782 = vmatprep.subr.mxu0 0.0
  %2783 = vmatpush1.msra.mxu0 0.0
  %2784 = vmatprep.subr.mxu0 0.0
  %2785 = vmatpush1.msra.mxu0 0.0
  %2786 = vmatprep.subr.mxu0 0.0
  %2787 = vmatpush1.msra.mxu0 0.0
  %2788 = vmatprep.subr.mxu0 0.0
  %2789 = vmatpush1.msra.mxu0 0.0
  %2790 = vmatprep.subr.mxu0 0.0
  %2791 = vmatpush1.msra.mxu0 0.0
  %2792 = vmatprep.subr.mxu0 0.0
  %2793 = vmatpush1.msra.mxu0 0.0
  %2794 = vmatprep.subr.mxu0 0.0
  %2795 = vmatpush1.msra.mxu0 0.0
  %2796 = vmatprep.subr.mxu0 0.0
  %2797 = vmatpush1.msra.mxu0 0.0
  %2798 = vmatprep.subr.mxu0 0.0
  %2799 = vmatpush1.msra.mxu0 0.0
  %2800 = vmatprep.subr.mxu0 0.0
  %2801 = vmatpush1.msra.mxu0 0.0
  %2802 = vmatprep.subr.mxu0 0.0
  %2803 = vmatpush1.msra.mxu0 0.0
  %2804 = vmatprep.subr.mxu0 0.0
  %2805 = vmatpush1.msra.mxu0 0.0
  %2806 = vmatprep.subr.mxu0 0.0
  %2807 = vmatpush1.msra.mxu0 0.0
  %2808 = vmatprep.subr.mxu0 0.0
  %2809 = vmatpush1.msra.mxu0 0.0
  %2810 = vmatprep.subr.mxu0 0.0
  %2811 = vmatpush1.msra.mxu0 0.0
  %2812 = vmatprep.subr.mxu0 0.0
  %2813 = vmatpush1.msra.mxu0 0.0
  %2814 = vmatprep.subr.mxu0 0.0
  %2815 = vmatpush1.msra.mxu0 0.0
  %2816 = vmatprep.subr.mxu0 0.0
  %2817 = vmatpush1.msra.mxu0 0.0
  %2818 = vmatprep.subr.mxu0 0.0
  %2819 = vmatpush1.msra.mxu0 0.0
  %2820 = vmatprep.subr.mxu0 0.0
  %2821 = vmatpush1.msra.mxu0 0.0
  %2822 = vmatprep.subr.mxu0 0.0
  %2823 = vmatpush1.msra.mxu0 0.0
  %2824 = vmatprep.subr.mxu0 0.0
  %2825 = vmatpush1.msra.mxu0 0.0
  %2826 = vmatprep.subr.mxu0 0.0
  %2827 = vmatpush1.msra.mxu0 0.0
  %2828 = vmatprep.subr.mxu0 0.0
  %2829 = vmatpush1.msra.mxu0 0.0
  %2830 = vmatprep.subr.mxu0 0.0
  %2831 = vmatpush1.msra.mxu0 0.0
  %2832 = vmatprep.subr.mxu0 0.0
  %2833 = vmatpush1.msra.mxu0 0.0
  %2834 = vmatprep.subr.mxu0 0.0
  %2835 = vmatpush1.msra.mxu0 0.0
  %2836 = vmatprep.mubr.f32.mxu0 0.0
  %2837 = vmatmul.mubr.f32.gmra.mrb[0].mxu0 %v2770
  %v2838 = vpop.f32.mrb[0].mxu0
  %v2839 = vadd.f32 0.0, %v2838
  %v2840 = vpop.f32.mrb[0].mxu0
  %2841 = vdwg.mxu0
  %v2842 = vmul.f32 %v2839, 0.5
  %vm2843 = vcmask 15360
  %v2845 = vsel %vm2843, %v166, 0
  %v2848 = vsel %vm2843, %v167, 0
  %v2851 = vsel %vm518, %v2842, 0
  %2853 = vmatprep.subr.mxu0 0.0
  %2854 = vmatpush1.msra.mxu0 %v2851
  %2855 = vmatprep.subr.mxu0 0.0
  %2856 = vmatpush1.msra.mxu0 0.0
  %2857 = vmatprep.subr.mxu0 0.0
  %2858 = vmatpush1.msra.mxu0 0.0
  %2859 = vmatprep.subr.mxu0 0.0
  %2860 = vmatpush1.msra.mxu0 0.0
  %2861 = vmatprep.subr.mxu0 0.0
  %2862 = vmatpush1.msra.mxu0 0.0
  %2863 = vmatprep.subr.mxu0 0.0
  %2864 = vmatpush1.msra.mxu0 0.0
  %2865 = vmatprep.subr.mxu0 0.0
  %2866 = vmatpush1.msra.mxu0 0.0
  %2867 = vmatprep.subr.mxu0 0.0
  %2868 = vmatpush1.msra.mxu0 0.0
  %2869 = vmatprep.subr.mxu0 0.0
  %2870 = vmatpush1.msra.mxu0 0.0
  %2871 = vmatprep.subr.mxu0 0.0
  %2872 = vmatpush1.msra.mxu0 0.0
  %2873 = vmatprep.subr.mxu0 0.0
  %2874 = vmatpush1.msra.mxu0 0.0
  %2875 = vmatprep.subr.mxu0 0.0
  %2876 = vmatpush1.msra.mxu0 0.0
  %2877 = vmatprep.subr.mxu0 0.0
  %2878 = vmatpush1.msra.mxu0 0.0
  %2879 = vmatprep.subr.mxu0 0.0
  %2880 = vmatpush1.msra.mxu0 0.0
  %2881 = vmatprep.subr.mxu0 0.0
  %2882 = vmatpush1.msra.mxu0 0.0
  %2883 = vmatprep.subr.mxu0 0.0
  %2884 = vmatpush1.msra.mxu0 0.0
  %2885 = vmatprep.subr.mxu0 0.0
  %2886 = vmatpush1.msra.mxu0 0.0
  %2887 = vmatprep.subr.mxu0 0.0
  %2888 = vmatpush1.msra.mxu0 0.0
  %2889 = vmatprep.subr.mxu0 0.0
  %2890 = vmatpush1.msra.mxu0 0.0
  %2891 = vmatprep.subr.mxu0 0.0
  %2892 = vmatpush1.msra.mxu0 0.0
  %2893 = vmatprep.subr.mxu0 0.0
  %2894 = vmatpush1.msra.mxu0 0.0
  %2895 = vmatprep.subr.mxu0 0.0
  %2896 = vmatpush1.msra.mxu0 0.0
  %2897 = vmatprep.subr.mxu0 0.0
  %2898 = vmatpush1.msra.mxu0 0.0
  %2899 = vmatprep.subr.mxu0 0.0
  %2900 = vmatpush1.msra.mxu0 0.0
  %2901 = vmatprep.subr.mxu0 0.0
  %2902 = vmatpush1.msra.mxu0 0.0
  %2903 = vmatprep.subr.mxu0 0.0
  %2904 = vmatpush1.msra.mxu0 0.0
  %2905 = vmatprep.subr.mxu0 0.0
  %2906 = vmatpush1.msra.mxu0 0.0
  %2907 = vmatprep.subr.mxu0 0.0
  %2908 = vmatpush1.msra.mxu0 0.0
  %2909 = vmatprep.subr.mxu0 0.0
  %2910 = vmatpush1.msra.mxu0 0.0
  %2911 = vmatprep.subr.mxu0 0.0
  %2912 = vmatpush1.msra.mxu0 0.0
  %2913 = vmatprep.subr.mxu0 0.0
  %2914 = vmatpush1.msra.mxu0 0.0
  %2915 = vmatprep.subr.mxu0 0.0
  %2916 = vmatpush1.msra.mxu0 0.0
  %2917 = vmatprep.mubr.f32.mxu0 0.0
  %2918 = vmatmul.mubr.f32.gmra.mrb[0].mxu0 %v2845
  %v2919 = vpop.f32.mrb[0].mxu0
  %v2920 = vadd.f32 0.0, %v2919
  %v2921 = vpop.f32.mrb[0].mxu0
  %2922 = vmatprep.mubr.f32.mxu0 0.0
  %2923 = vmatmul.mubr.f32.gmra.mrb[0].mxu0 %v2848
  %v2924 = vpop.f32.mrb[0].mxu0
  %v2925 = vadd.f32 0.0, %v2924
  %v2926 = vpop.f32.mrb[0].mxu0
  %2927 = vdwg.mxu0
  %2928 = vmatprep.subr.mxu0 0.0
  %2929 = vmatpush1.xpose.msra.mxu0 %v2845
  %2930 = vmatprep.subr.mxu0 0.0
  %2931 = vmatpush1.xpose.msra.mxu0 %v2848
  %2932 = vmatprep.subr.mxu0 0.0
  %2933 = vmatpush1.xpose.msra.mxu0 0.0
  %2934 = vmatprep.subr.mxu0 0.0
  %2935 = vmatpush1.xpose.msra.mxu0 0.0
  %2936 = vmatprep.subr.mxu0 0.0
  %2937 = vmatpush1.xpose.msra.mxu0 0.0
  %2938 = vmatprep.subr.mxu0 0.0
  %2939 = vmatpush1.xpose.msra.mxu0 0.0
  %2940 = vmatprep.subr.mxu0 0.0
  %2941 = vmatpush1.xpose.msra.mxu0 0.0
  %2942 = vmatprep.subr.mxu0 0.0
  %2943 = vmatpush1.xpose.msra.mxu0 0.0
  %2944 = vmatprep.subr.mxu0 0.0
  %2945 = vmatpush1.xpose.msra.mxu0 0.0
  %2946 = vmatprep.subr.mxu0 0.0
  %2947 = vmatpush1.xpose.msra.mxu0 0.0
  %2948 = vmatprep.subr.mxu0 0.0
  %2949 = vmatpush1.xpose.msra.mxu0 0.0
  %2950 = vmatprep.subr.mxu0 0.0
  %2951 = vmatpush1.xpose.msra.mxu0 0.0
  %2952 = vmatprep.subr.mxu0 0.0
  %2953 = vmatpush1.xpose.msra.mxu0 0.0
  %2954 = vmatprep.subr.mxu0 0.0
  %2955 = vmatpush1.xpose.msra.mxu0 0.0
  %2956 = vmatprep.subr.mxu0 0.0
  %2957 = vmatpush1.xpose.msra.mxu0 0.0
  %2958 = vmatprep.subr.mxu0 0.0
  %2959 = vmatpush1.xpose.msra.mxu0 0.0
  %2960 = vmatprep.subr.mxu0 0.0
  %2961 = vmatpush1.xpose.msra.mxu0 0.0
  %2962 = vmatprep.subr.mxu0 0.0
  %2963 = vmatpush1.xpose.msra.mxu0 0.0
  %2964 = vmatprep.subr.mxu0 0.0
  %2965 = vmatpush1.xpose.msra.mxu0 0.0
  %2966 = vmatprep.subr.mxu0 0.0
  %2967 = vmatpush1.xpose.msra.mxu0 0.0
  %2968 = vmatprep.subr.mxu0 0.0
  %2969 = vmatpush1.xpose.msra.mxu0 0.0
  %2970 = vmatprep.subr.mxu0 0.0
  %2971 = vmatpush1.xpose.msra.mxu0 0.0
  %2972 = vmatprep.subr.mxu0 0.0
  %2973 = vmatpush1.xpose.msra.mxu0 0.0
  %2974 = vmatprep.subr.mxu0 0.0
  %2975 = vmatpush1.xpose.msra.mxu0 0.0
  %2976 = vmatprep.subr.mxu0 0.0
  %2977 = vmatpush1.xpose.msra.mxu0 0.0
  %2978 = vmatprep.subr.mxu0 0.0
  %2979 = vmatpush1.xpose.msra.mxu0 0.0
  %2980 = vmatprep.subr.mxu0 0.0
  %2981 = vmatpush1.xpose.msra.mxu0 0.0
  %2982 = vmatprep.subr.mxu0 0.0
  %2983 = vmatpush1.xpose.msra.mxu0 0.0
  %2984 = vmatprep.subr.mxu0 0.0
  %2985 = vmatpush1.xpose.msra.mxu0 0.0
  %2986 = vmatprep.subr.mxu0 0.0
  %2987 = vmatpush1.xpose.msra.mxu0 0.0
  %2988 = vmatprep.subr.mxu0 0.0
  %2989 = vmatpush1.xpose.msra.mxu0 0.0
  %2990 = vmatprep.subr.mxu0 0.0
  %2991 = vmatpush1.xpose.msra.mxu0 0.0
  %2992 = vmatprep.mubr.f32.mxu0 0.0
  %2993 = vmatmul.mubr.f32.gmra.mrb[0].mxu0 %v2845
  %v2994 = vpop.f32.mrb[0].mxu0
  %v2995 = vadd.f32 0.0, %v2994
  %v2996 = vpop.f32.mrb[0].mxu0
  %2997 = vmatprep.mubr.f32.mxu0 0.0
  %2998 = vmatmul.mubr.f32.gmra.mrb[0].mxu0 %v2848
  %v2999 = vpop.f32.mrb[0].mxu0
  %v3000 = vadd.f32 0.0, %v2999
  %v3001 = vpop.f32.mrb[0].mxu0
  %3002 = vdwg.mxu0
  %3004 = vset.pattern.permute.xlu0 0
  %3005 = vperm.xlu0 %3004, %v2556
  %v3006 = vpop.permute.xlu0 %3005
  %3009 = vset.pattern.permute.xlu0 0
  %3010 = vperm.xlu0 %3009, %v2557
  %v3011 = vpop.permute.xlu0 %3010
  %v3013 = vlaneseq
  %v3014 = vshrl.u32 %v3013, 7
  %v3015 = vsub.s32 0, %v3014
  %v3016 = vrot.slane %v2664, %v3015
  %v3017 = vlaneseq
  %v3018 = vshrl.u32 %v3017, 7
  %v3019 = vsub.s32 0, %v3018
  %v3020 = vrot.slane %v2734, %v3019
  %vm3021 = vcmp.ne.s32.totalorder %v134, %v155
  %vm3022 = vcmp.ne.s32.totalorder %v135, %v155
  %vm3023 = vcmp.gt.f32.partialorder %v3016, %v3006
  %vm3024 = vcmp.gt.f32.partialorder %v3016, %v3011
  %vm3025 = vcmp.eq.f32.partialorder %v3016, %v3006
  %vm3026 = vcmp.eq.f32.partialorder %v3016, %v3011
  %vm3027 = vcmp.lt.s32.totalorder %v155, %v134
  %vm3028 = vcmp.lt.s32.totalorder %v155, %v135
  %vm3029 = vmand %vm3025, %vm3027
  %vm3030 = vmand %vm3026, %vm3028
  %vm3031 = vmor %vm3023, %vm3029
  %vm3032 = vmor %vm3024, %vm3030
  %vm3033 = vmand %vm3021, %vm3031
  %vm3034 = vmand %vm3022, %vm3032
  %v3035 = vsel %vm3033, 1.0, 0.0
  %v3036 = vsel %vm3034, 1.0, 0.0
  %v3037 = vmul.f32 %v3035, %v2995
  %v3038 = vmul.f32 %v3036, %v3000
  %v3039 = vmul.f32 %v3037, %v3020
  %v3040 = vmul.f32 %v3038, %v3020
  %v3041 = vsel %vm236, %v3039, 0.0
  %3042 = vadd.xlane.f32.xlu0 %v3041
  %v3043 = vpop.xlane.xlu0 %3042
  %v3044 = vsel %vm236, %v3040, 0.0
  %3045 = vadd.xlane.f32.xlu0 %v3044
  %v3046 = vpop.xlane.xlu0 %3045
  %vm3047 = vcmp.gt.f32.partialorder 1.0, 0.0
  %vm3048 = vcmp.lt.f32.partialorder %v3043, %v2920
  %vm3049 = vcmp.lt.f32.partialorder %v3046, %v2925
  %vm3050 = vmand %vm3047, %vm3048
  %vm3051 = vmand %vm3047, %vm3049
  %v3052 = vsel %vm3050, 1.0, 0.0
  %v3053 = vsel %vm3051, 1.0, 0.0
  %v3054 = vmul.f32 %v2556, %v3052
  %v3055 = vmul.f32 %v2557, %v3053
  %3057 = vset.pattern.permute.xlu0 0
  %3058 = vperm.xlu0 %3057, %v3054
  %v3059 = vpop.permute.xlu0 %3058
  %3062 = vset.pattern.permute.xlu0 0
  %3063 = vperm.xlu0 %3062, %v3055
  %v3064 = vpop.permute.xlu0 %3063
  %v3066 = vmul.f32 %v2471, %v3059
  %v3067 = vmul.f32 %v2472, %v3064
  %3069 = vset.pattern.permute.xlu0 0
  %3070 = vperm.xlu0 %3069, %v3052
  %v3071 = vpop.permute.xlu0 %3070
  %3074 = vset.pattern.permute.xlu0 0
  %3075 = vperm.xlu0 %3074, %v3053
  %v3076 = vpop.permute.xlu0 %3075
  %v3078 = vmul.f32 %v166, %v3071
  %v3079 = vmul.f32 %v167, %v3076
  %3080 = vmatprep.subr.mxu0 0.0
  %3081 = vmatpush1.msra.mxu0 %v3052
  %3082 = vmatprep.subr.mxu0 0.0
  %3083 = vmatpush1.msra.mxu0 %v3053
  %3084 = vmatprep.subr.mxu0 0.0
  %3085 = vmatpush1.msra.mxu0 0.0
  %3086 = vmatprep.subr.mxu0 0.0
  %3087 = vmatpush1.msra.mxu0 0.0
  %3088 = vmatprep.subr.mxu0 0.0
  %3089 = vmatpush1.msra.mxu0 0.0
  %3090 = vmatprep.subr.mxu0 0.0
  %3091 = vmatpush1.msra.mxu0 0.0
  %3092 = vmatprep.subr.mxu0 0.0
  %3093 = vmatpush1.msra.mxu0 0.0
  %3094 = vmatprep.subr.mxu0 0.0
  %3095 = vmatpush1.msra.mxu0 0.0
  %3096 = vmatprep.subr.mxu0 0.0
  %3097 = vmatpush1.msra.mxu0 0.0
  %3098 = vmatprep.subr.mxu0 0.0
  %3099 = vmatpush1.msra.mxu0 0.0
  %3100 = vmatprep.subr.mxu0 0.0
  %3101 = vmatpush1.msra.mxu0 0.0
  %3102 = vmatprep.subr.mxu0 0.0
  %3103 = vmatpush1.msra.mxu0 0.0
  %3104 = vmatprep.subr.mxu0 0.0
  %3105 = vmatpush1.msra.mxu0 0.0
  %3106 = vmatprep.subr.mxu0 0.0
  %3107 = vmatpush1.msra.mxu0 0.0
  %3108 = vmatprep.subr.mxu0 0.0
  %3109 = vmatpush1.msra.mxu0 0.0
  %3110 = vmatprep.subr.mxu0 0.0
  %3111 = vmatpush1.msra.mxu0 0.0
  %3112 = vmatprep.subr.mxu0 0.0
  %3113 = vmatpush1.msra.mxu0 0.0
  %3114 = vmatprep.subr.mxu0 0.0
  %3115 = vmatpush1.msra.mxu0 0.0
  %3116 = vmatprep.subr.mxu0 0.0
  %3117 = vmatpush1.msra.mxu0 0.0
  %3118 = vmatprep.subr.mxu0 0.0
  %3119 = vmatpush1.msra.mxu0 0.0
  %3120 = vmatprep.subr.mxu0 0.0
  %3121 = vmatpush1.msra.mxu0 0.0
  %3122 = vmatprep.subr.mxu0 0.0
  %3123 = vmatpush1.msra.mxu0 0.0
  %3124 = vmatprep.subr.mxu0 0.0
  %3125 = vmatpush1.msra.mxu0 0.0
  %3126 = vmatprep.subr.mxu0 0.0
  %3127 = vmatpush1.msra.mxu0 0.0
  %3128 = vmatprep.subr.mxu0 0.0
  %3129 = vmatpush1.msra.mxu0 0.0
  %3130 = vmatprep.subr.mxu0 0.0
  %3131 = vmatpush1.msra.mxu0 0.0
  %3132 = vmatprep.subr.mxu0 0.0
  %3133 = vmatpush1.msra.mxu0 0.0
  %3134 = vmatprep.subr.mxu0 0.0
  %3135 = vmatpush1.msra.mxu0 0.0
  %3136 = vmatprep.subr.mxu0 0.0
  %3137 = vmatpush1.msra.mxu0 0.0
  %3138 = vmatprep.subr.mxu0 0.0
  %3139 = vmatpush1.msra.mxu0 0.0
  %3140 = vmatprep.subr.mxu0 0.0
  %3141 = vmatpush1.msra.mxu0 0.0
  %3142 = vmatprep.subr.mxu0 0.0
  %3143 = vmatpush1.msra.mxu0 0.0
  %3144 = vmatprep.mubr.f32.mxu0 0.0
  %3145 = vmatmul.mubr.f32.gmra.mrb[0].mxu0 %v2770
  %v3146 = vpop.f32.mrb[0].mxu0
  %v3147 = vadd.f32 0.0, %v3146
  %v3148 = vpop.f32.mrb[0].mxu0
  %3149 = vdwg.mxu0
  %3150 = vxpose.xlu0.b32.start [1/16] %v3078, 128
  %3151 = vxpose.xlu0.b32.cont [2/16] %v3079, 128
  %3152 = vxpose.xlu0.b32.cont [3/16] 0.0, 128
  %3153 = vxpose.xlu0.b32.cont [4/16] 0.0, 128
  %3154 = vxpose.xlu0.b32.cont [5/16] 0.0, 128
  %3155 = vxpose.xlu0.b32.cont [6/16] 0.0, 128
  %3156 = vxpose.xlu0.b32.cont [7/16] 0.0, 128
  %3157 = vxpose.xlu0.b32.cont [8/16] 0.0, 128
  %3158 = vxpose.xlu0.b32.cont [9/16] 0.0, 128
  %3159 = vxpose.xlu0.b32.cont [10/16] 0.0, 128
  %3160 = vxpose.xlu0.b32.cont [11/16] 0.0, 128
  %3161 = vxpose.xlu0.b32.cont [12/16] 0.0, 128
  %3162 = vxpose.xlu0.b32.cont [13/16] 0.0, 128
  %3163 = vxpose.xlu0.b32.cont [14/16] 0.0, 128
  %3164 = vxpose.xlu0.b32.cont [15/16] 0.0, 128
  %3165 = vxpose.xlu0.b32.end [16/16] 0.0, 128
  %v3166 = vpop.trf.xlu0
  %v3167 = vpop.trf.xlu0
  %v3168 = vpop.trf.xlu0
  %v3169 = vpop.trf.xlu0
  %v3170 = vpop.trf.xlu0
  %v3171 = vpop.trf.xlu0
  %v3172 = vpop.trf.xlu0
  %v3173 = vpop.trf.xlu0
  %v3174 = vpop.trf.xlu0
  %v3175 = vpop.trf.xlu0
  %v3176 = vpop.trf.xlu0
  %v3177 = vpop.trf.xlu0
  %v3178 = vpop.trf.xlu0
  %v3179 = vpop.trf.xlu0
  %v3180 = vpop.trf.xlu0
  %v3181 = vpop.trf.xlu0
  %v3183 = vsel %vm236, %v3166, 0
  %3185 = vmatprep.subr.mxu0 0.0
  %3186 = vmatpush1.msra.mxu0 %v3066
  %3187 = vmatprep.subr.mxu0 0.0
  %3188 = vmatpush1.msra.mxu0 %v3067
  %3189 = vmatprep.subr.mxu0 0.0
  %3190 = vmatpush1.msra.mxu0 0.0
  %3191 = vmatprep.subr.mxu0 0.0
  %3192 = vmatpush1.msra.mxu0 0.0
  %3193 = vmatprep.subr.mxu0 0.0
  %3194 = vmatpush1.msra.mxu0 0.0
  %3195 = vmatprep.subr.mxu0 0.0
  %3196 = vmatpush1.msra.mxu0 0.0
  %3197 = vmatprep.subr.mxu0 0.0
  %3198 = vmatpush1.msra.mxu0 0.0
  %3199 = vmatprep.subr.mxu0 0.0
  %3200 = vmatpush1.msra.mxu0 0.0
  %3201 = vmatprep.subr.mxu0 0.0
  %3202 = vmatpush1.msra.mxu0 0.0
  %3203 = vmatprep.subr.mxu0 0.0
  %3204 = vmatpush1.msra.mxu0 0.0
  %3205 = vmatprep.subr.mxu0 0.0
  %3206 = vmatpush1.msra.mxu0 0.0
  %3207 = vmatprep.subr.mxu0 0.0
  %3208 = vmatpush1.msra.mxu0 0.0
  %3209 = vmatprep.subr.mxu0 0.0
  %3210 = vmatpush1.msra.mxu0 0.0
  %3211 = vmatprep.subr.mxu0 0.0
  %3212 = vmatpush1.msra.mxu0 0.0
  %3213 = vmatprep.subr.mxu0 0.0
  %3214 = vmatpush1.msra.mxu0 0.0
  %3215 = vmatprep.subr.mxu0 0.0
  %3216 = vmatpush1.msra.mxu0 0.0
  %3217 = vmatprep.subr.mxu0 0.0
  %3218 = vmatpush1.msra.mxu0 0.0
  %3219 = vmatprep.subr.mxu0 0.0
  %3220 = vmatpush1.msra.mxu0 0.0
  %3221 = vmatprep.subr.mxu0 0.0
  %3222 = vmatpush1.msra.mxu0 0.0
  %3223 = vmatprep.subr.mxu0 0.0
  %3224 = vmatpush1.msra.mxu0 0.0
  %3225 = vmatprep.subr.mxu0 0.0
  %3226 = vmatpush1.msra.mxu0 0.0
  %3227 = vmatprep.subr.mxu0 0.0
  %3228 = vmatpush1.msra.mxu0 0.0
  %3229 = vmatprep.subr.mxu0 0.0
  %3230 = vmatpush1.msra.mxu0 0.0
  %3231 = vmatprep.subr.mxu0 0.0
  %3232 = vmatpush1.msra.mxu0 0.0
  %3233 = vmatprep.subr.mxu0 0.0
  %3234 = vmatpush1.msra.mxu0 0.0
  %3235 = vmatprep.subr.mxu0 0.0
  %3236 = vmatpush1.msra.mxu0 0.0
  %3237 = vmatprep.subr.mxu0 0.0
  %3238 = vmatpush1.msra.mxu0 0.0
  %3239 = vmatprep.subr.mxu0 0.0
  %3240 = vmatpush1.msra.mxu0 0.0
  %3241 = vmatprep.subr.mxu0 0.0
  %3242 = vmatpush1.msra.mxu0 0.0
  %3243 = vmatprep.subr.mxu0 0.0
  %3244 = vmatpush1.msra.mxu0 0.0
  %3245 = vmatprep.subr.mxu0 0.0
  %3246 = vmatpush1.msra.mxu0 0.0
  %3247 = vmatprep.subr.mxu0 0.0
  %3248 = vmatpush1.msra.mxu0 0.0
  %3249 = vmatprep.mubr.f32.mxu0 0.0
  %3250 = vmatmul.mubr.f32.gmra.mrb[0].mxu0 %v3183
  %v3251 = vpop.f32.mrb[0].mxu0
  %v3252 = vadd.f32 0.0, %v3251
  %v3253 = vpop.f32.mrb[0].mxu0
  %3254 = vdwg.mxu0
  %v3255 = vmax.f32 %v3147, 1.0
  %v3256 = vrcp.pop %v3255
  %v3257 = vmul.f32 1.0, %v3256
  %3259 = vset.pattern.permute.xlu0 0
  %3260 = vperm.xlu0 %3259, %v3257
  %v3261 = vpop.permute.xlu0 %3260
  %v3263 = vmul.f32 %v3252, %v3261
  %vm3264 = vcmp.gt.f32.partialorder %v3078, 0.0
  %vm3265 = vcmp.gt.f32.partialorder %v3079, 0.0
  %v3266 = vsel %vm3264, 1, 0
  %v3267 = vsel %vm3265, 1, 0
  %3268 = vset.pattern.permute.xlu0 0
  %3269 = vperm.xlu0 %3268, %v3266
  %v3270 = vpop.permute.xlu0 %3269
  %3271 = vset.pattern.permute.xlu0 0
  %3272 = vperm.xlu0 %3271, %v3267
  %v3273 = vpop.permute.xlu0 %3272
  %vm3274 = vcmp.eq.s32.totalorder %v3270, 1
  %vm3275 = vcmp.eq.s32.totalorder %v3273, 1
  %v3276 = vsel %vm3274, %v3066, -1e+30
  %v3277 = vsel %vm3275, %v3067, -1e+30
  %v3278 = vsel %vm236, %v3276, -inf
  %v3279 = vsel %vm236, %v3277, -inf
  %v3280 = vmax.f32 %v3278, %v3279
  %v3281 = vrot.slane %v3280, 4
  %v3282 = vmax.f32 %v3280, %v3281
  %v3283 = vrot.slane %v3282, 2
  %v3284 = vmax.f32 %v3282, %v3283
  %v3285 = vrot.slane %v3284, 1
  %v3286 = vmax.f32 %v3284, %v3285
  %vm3287 = vcmp.eq.s32.totalorder %v134, 0
  %v3288 = vsel %vm3287, %v3286, 0.0
  %3289 = vset.pattern.permute.xlu0 1
  %3290 = vperm.xlu0 %3289, %v3266
  %v3291 = vpop.permute.xlu0 %3290
  %3292 = vset.pattern.permute.xlu0 1
  %3293 = vperm.xlu0 %3292, %v3267
  %v3294 = vpop.permute.xlu0 %3293
  %vm3295 = vcmp.eq.s32.totalorder %v3291, 1
  %vm3296 = vcmp.eq.s32.totalorder %v3294, 1
  %v3297 = vsel %vm3295, %v3066, -1e+30
  %v3298 = vsel %vm3296, %v3067, -1e+30
  %v3299 = vsel %vm236, %v3297, -inf
  %v3300 = vsel %vm236, %v3298, -inf
  %v3301 = vmax.f32 %v3299, %v3300
  %v3302 = vrot.slane %v3301, 4
  %v3303 = vmax.f32 %v3301, %v3302
  %v3304 = vrot.slane %v3303, 2
  %v3305 = vmax.f32 %v3303, %v3304
  %v3306 = vrot.slane %v3305, 1
  %v3307 = vmax.f32 %v3305, %v3306
  %vm3308 = vcmp.eq.s32.totalorder %v134, 1
  %v3309 = vsel %vm3308, %v3307, %v3288
  %vm3310 = vcmp.gt.f32.partialorder %v3147, 0.0
  %v3311 = vsel %vm3310, 1, 0
  %3312 = vset.pattern.permute.xlu0 0
  %3313 = vperm.xlu0 %3312, %v3311
  %v3314 = vpop.permute.xlu0 %3313
  %vm3315 = vcmp.eq.s32.totalorder %v3314, 1
  %v3316 = vsel %vm3315, %v3309, 0.0
  %v3317 = vadd.f32 %v3316, 0.0
  %v3318 = vadd.f32 %v3263, 0.0
  %v3319 = vpack.c.bf16 %v3067, %v3066
  %s3320 = scalar_lea.vmem %s29, 8
  %v3321 = vld [vmem:[%s3320] sm:$0xf]
  %v3322 = vld [vmem:[%s3320 + $0x4] sm:$0xf]
  %s3323 = scalar_lea.vmem %s31, 1
  %v3324 = vld [vmem:[%s3323] sm:$0x1]
  %s3325 = scalar_lea.vmem %s33, 2
  %v3326 = vld [vmem:[%s3325] sm:$0x3]
  %s3327 = scalar_lea.vmem %s35, 32
  %v3328 = vld [vmem:[%s3327] sm:$0xff]
  %v3329 = vld [vmem:[%s3327 + $0x8] sm:$0xff]
  %v3330 = vld [vmem:[%s3327 + $0x10] sm:$0xff]
  %v3331 = vld [vmem:[%s3327 + $0x18] sm:$0xff]
  %s3332 = scalar_lea.vmem %s37, 32
  %v3333 = vld [vmem:[%s3332] sm:$0xff]
  %v3334 = vld [vmem:[%s3332 + $0x8] sm:$0xff]
  %v3335 = vld [vmem:[%s3332 + $0x10] sm:$0xff]
  %v3336 = vld [vmem:[%s3332 + $0x18] sm:$0xff]
  %s3337 = scalar_lea.vmem %s39, 16
  %v3338 = vld [vmem:[%s3337] sm:$0xf]
  %v3339 = vld [vmem:[%s3337 + $0x4] sm:$0xf]
  %v3340 = vld [vmem:[%s3337 + $0x8] sm:$0xf]
  %v3341 = vld [vmem:[%s3337 + $0xc] sm:$0xf]
  %s3342 = scalar_lea.vmem %s41, 1
  %v3343 = vld [vmem:[%s3342] sm:$0x1]
  %s3344 = scalar_lea.vmem %s43, 1
  %v3345 = vld [vmem:[%s3344] sm:$0x1]
  %s3346 = scalar_lea.vmem %s45, 1
  %v3347 = vld [vmem:[%s3346] sm:$0x1]
  %3348 = vxpose.xlu0.b32.start [1/16] %v3052, 128
  %3349 = vxpose.xlu0.b32.cont [2/16] %v3053, 128
  %3350 = vxpose.xlu0.b32.cont [3/16] 0.0, 128
  %3351 = vxpose.xlu0.b32.cont [4/16] 0.0, 128
  %3352 = vxpose.xlu0.b32.cont [5/16] 0.0, 128
  %3353 = vxpose.xlu0.b32.cont [6/16] 0.0, 128
  %3354 = vxpose.xlu0.b32.cont [7/16] 0.0, 128
  %3355 = vxpose.xlu0.b32.cont [8/16] 0.0, 128
  %3356 = vxpose.xlu0.b32.cont [9/16] 0.0, 128
  %3357 = vxpose.xlu0.b32.cont [10/16] 0.0, 128
  %3358 = vxpose.xlu0.b32.cont [11/16] 0.0, 128
  %3359 = vxpose.xlu0.b32.cont [12/16] 0.0, 128
  %3360 = vxpose.xlu0.b32.cont [13/16] 0.0, 128
  %3361 = vxpose.xlu0.b32.cont [14/16] 0.0, 128
  %3362 = vxpose.xlu0.b32.cont [15/16] 0.0, 128
  %3363 = vxpose.xlu0.b32.end [16/16] 0.0, 128
  %v3364 = vpop.trf.xlu0
  %v3365 = vpop.trf.xlu0
  %v3366 = vpop.trf.xlu0
  %v3367 = vpop.trf.xlu0
  %v3368 = vpop.trf.xlu0
  %v3369 = vpop.trf.xlu0
  %v3370 = vpop.trf.xlu0
  %v3371 = vpop.trf.xlu0
  %v3372 = vpop.trf.xlu0
  %v3373 = vpop.trf.xlu0
  %v3374 = vpop.trf.xlu0
  %v3375 = vpop.trf.xlu0
  %v3376 = vpop.trf.xlu0
  %v3377 = vpop.trf.xlu0
  %v3378 = vpop.trf.xlu0
  %v3379 = vpop.trf.xlu0
  %v3381 = vsel %vm236, %v3364, 0
  %3383 = vmatprep.subr.mxu0 0.0
  %3384 = vmatpush1.msra.mxu0 %v143
  %3385 = vmatprep.subr.mxu0 0.0
  %3386 = vmatpush1.msra.mxu0 %v144
  %3387 = vmatprep.subr.mxu0 0.0
  %3388 = vmatpush1.msra.mxu0 0.0
  %3389 = vmatprep.subr.mxu0 0.0
  %3390 = vmatpush1.msra.mxu0 0.0
  %3391 = vmatprep.subr.mxu0 0.0
  %3392 = vmatpush1.msra.mxu0 0.0
  %3393 = vmatprep.subr.mxu0 0.0
  %3394 = vmatpush1.msra.mxu0 0.0
  %3395 = vmatprep.subr.mxu0 0.0
  %3396 = vmatpush1.msra.mxu0 0.0
  %3397 = vmatprep.subr.mxu0 0.0
  %3398 = vmatpush1.msra.mxu0 0.0
  %3399 = vmatprep.subr.mxu0 0.0
  %3400 = vmatpush1.msra.mxu0 0.0
  %3401 = vmatprep.subr.mxu0 0.0
  %3402 = vmatpush1.msra.mxu0 0.0
  %3403 = vmatprep.subr.mxu0 0.0
  %3404 = vmatpush1.msra.mxu0 0.0
  %3405 = vmatprep.subr.mxu0 0.0
  %3406 = vmatpush1.msra.mxu0 0.0
  %3407 = vmatprep.subr.mxu0 0.0
  %3408 = vmatpush1.msra.mxu0 0.0
  %3409 = vmatprep.subr.mxu0 0.0
  %3410 = vmatpush1.msra.mxu0 0.0
  %3411 = vmatprep.subr.mxu0 0.0
  %3412 = vmatpush1.msra.mxu0 0.0
  %3413 = vmatprep.subr.mxu0 0.0
  %3414 = vmatpush1.msra.mxu0 0.0
  %3415 = vmatprep.subr.mxu0 0.0
  %3416 = vmatpush1.msra.mxu0 0.0
  %3417 = vmatprep.subr.mxu0 0.0
  %3418 = vmatpush1.msra.mxu0 0.0
  %3419 = vmatprep.subr.mxu0 0.0
  %3420 = vmatpush1.msra.mxu0 0.0
  %3421 = vmatprep.subr.mxu0 0.0
  %3422 = vmatpush1.msra.mxu0 0.0
  %3423 = vmatprep.subr.mxu0 0.0
  %3424 = vmatpush1.msra.mxu0 0.0
  %3425 = vmatprep.subr.mxu0 0.0
  %3426 = vmatpush1.msra.mxu0 0.0
  %3427 = vmatprep.subr.mxu0 0.0
  %3428 = vmatpush1.msra.mxu0 0.0
  %3429 = vmatprep.subr.mxu0 0.0
  %3430 = vmatpush1.msra.mxu0 0.0
  %3431 = vmatprep.subr.mxu0 0.0
  %3432 = vmatpush1.msra.mxu0 0.0
  %3433 = vmatprep.subr.mxu0 0.0
  %3434 = vmatpush1.msra.mxu0 0.0
  %3435 = vmatprep.subr.mxu0 0.0
  %3436 = vmatpush1.msra.mxu0 0.0
  %3437 = vmatprep.subr.mxu0 0.0
  %3438 = vmatpush1.msra.mxu0 0.0
  %3439 = vmatprep.subr.mxu0 0.0
  %3440 = vmatpush1.msra.mxu0 0.0
  %3441 = vmatprep.subr.mxu0 0.0
  %3442 = vmatpush1.msra.mxu0 0.0
  %3443 = vmatprep.subr.mxu0 0.0
  %3444 = vmatpush1.msra.mxu0 0.0
  %3445 = vmatprep.subr.mxu0 0.0
  %3446 = vmatpush1.msra.mxu0 0.0
  %3447 = vmatprep.mubr.f32.mxu0 0.0
  %3448 = vmatmul.mubr.f32.gmra.mrb[0].mxu0 %v3381
  %v3449 = vpop.f32.mrb[0].mxu0
  %v3450 = vadd.f32 0.0, %v3449
  %v3451 = vpop.f32.mrb[0].mxu0
  %3452 = vdwg.mxu0
  %3453 = vmatprep.subr.mxu0 0.0
  %3454 = vmatpush1.msra.mxu0 %v152
  %3455 = vmatprep.subr.mxu0 0.0
  %3456 = vmatpush1.msra.mxu0 %v153
  %3457 = vmatprep.subr.mxu0 0.0
  %3458 = vmatpush1.msra.mxu0 0.0
  %3459 = vmatprep.subr.mxu0 0.0
  %3460 = vmatpush1.msra.mxu0 0.0
  %3461 = vmatprep.subr.mxu0 0.0
  %3462 = vmatpush1.msra.mxu0 0.0
  %3463 = vmatprep.subr.mxu0 0.0
  %3464 = vmatpush1.msra.mxu0 0.0
  %3465 = vmatprep.subr.mxu0 0.0
  %3466 = vmatpush1.msra.mxu0 0.0
  %3467 = vmatprep.subr.mxu0 0.0
  %3468 = vmatpush1.msra.mxu0 0.0
  %3469 = vmatprep.subr.mxu0 0.0
  %3470 = vmatpush1.msra.mxu0 0.0
  %3471 = vmatprep.subr.mxu0 0.0
  %3472 = vmatpush1.msra.mxu0 0.0
  %3473 = vmatprep.subr.mxu0 0.0
  %3474 = vmatpush1.msra.mxu0 0.0
  %3475 = vmatprep.subr.mxu0 0.0
  %3476 = vmatpush1.msra.mxu0 0.0
  %3477 = vmatprep.subr.mxu0 0.0
  %3478 = vmatpush1.msra.mxu0 0.0
  %3479 = vmatprep.subr.mxu0 0.0
  %3480 = vmatpush1.msra.mxu0 0.0
  %3481 = vmatprep.subr.mxu0 0.0
  %3482 = vmatpush1.msra.mxu0 0.0
  %3483 = vmatprep.subr.mxu0 0.0
  %3484 = vmatpush1.msra.mxu0 0.0
  %3485 = vmatprep.subr.mxu0 0.0
  %3486 = vmatpush1.msra.mxu0 0.0
  %3487 = vmatprep.subr.mxu0 0.0
  %3488 = vmatpush1.msra.mxu0 0.0
  %3489 = vmatprep.subr.mxu0 0.0
  %3490 = vmatpush1.msra.mxu0 0.0
  %3491 = vmatprep.subr.mxu0 0.0
  %3492 = vmatpush1.msra.mxu0 0.0
  %3493 = vmatprep.subr.mxu0 0.0
  %3494 = vmatpush1.msra.mxu0 0.0
  %3495 = vmatprep.subr.mxu0 0.0
  %3496 = vmatpush1.msra.mxu0 0.0
  %3497 = vmatprep.subr.mxu0 0.0
  %3498 = vmatpush1.msra.mxu0 0.0
  %3499 = vmatprep.subr.mxu0 0.0
  %3500 = vmatpush1.msra.mxu0 0.0
  %3501 = vmatprep.subr.mxu0 0.0
  %3502 = vmatpush1.msra.mxu0 0.0
  %3503 = vmatprep.subr.mxu0 0.0
  %3504 = vmatpush1.msra.mxu0 0.0
  %3505 = vmatprep.subr.mxu0 0.0
  %3506 = vmatpush1.msra.mxu0 0.0
  %3507 = vmatprep.subr.mxu0 0.0
  %3508 = vmatpush1.msra.mxu0 0.0
  %3509 = vmatprep.subr.mxu0 0.0
  %3510 = vmatpush1.msra.mxu0 0.0
  %3511 = vmatprep.subr.mxu0 0.0
  %3512 = vmatpush1.msra.mxu0 0.0
  %3513 = vmatprep.subr.mxu0 0.0
  %3514 = vmatpush1.msra.mxu0 0.0
  %3515 = vmatprep.subr.mxu0 0.0
  %3516 = vmatpush1.msra.mxu0 0.0
  %3517 = vmatprep.mubr.f32.mxu0 0.0
  %3518 = vmatmul.mubr.f32.gmra.mrb[0].mxu0 %v3381
  %v3519 = vpop.f32.mrb[0].mxu0
  %v3520 = vadd.f32 0.0, %v3519
  %v3521 = vpop.f32.mrb[0].mxu0
  %3522 = vdwg.mxu0
  %v3523 = vmul.f32 %v3450, %v3520
  %v3524 = vlaneseq
  %v3525 = vshrl.u32 %v3524, 7
  %v3526 = vsub.s32 0, %v3525
  %v3527 = vrot.slane %v3523, %v3526
  %v3528 = vmul.f32 %v143, %v3527
  %v3529 = vmul.f32 %v144, %v3527
  %v3530 = vpack.c.bf16 %v3529, %v3528
  %v3531 = vmul.f32 %v152, %v3527
  %v3532 = vmul.f32 %v153, %v3527
  %vm3533 = vcmp.gt.f32.partialorder %v3531, 0.0
  %vm3534 = vcmp.gt.f32.partialorder %v3532, 0.0
  %v3536 = vlaneseq
  %v3537 = vshrl.u32 %v3536, 7
  %v3538 = vsub.s32 0, %v3537
  %v3539 = vrot.slane %v3324, %v3538
  %v3543 = vunpack.c.l.b16 %v3321
  %v3544 = vunpack.c.l.b16 %v3322
  %v3545 = vpack.c.b16 %v3544, %v3543
  %v3548 = vsel %vm236, %v3319, 0
  %3550 = vmatprep.subr.bf16.mxu0 0
  %3551 = vmatpush1.bf16.msra.mxu0 %v3545
  %3552 = vmatprep.subr.bf16.mxu0 0
  %3553 = vmatpush1.bf16.msra.mxu0 0
  %3554 = vmatprep.subr.bf16.mxu0 0
  %3555 = vmatpush1.bf16.msra.mxu0 0
  %3556 = vmatprep.subr.bf16.mxu0 0
  %3557 = vmatpush1.bf16.msra.mxu0 0
  %3558 = vmatprep.subr.bf16.mxu0 0
  %3559 = vmatpush1.bf16.msra.mxu0 0
  %3560 = vmatprep.subr.bf16.mxu0 0
  %3561 = vmatpush1.bf16.msra.mxu0 0
  %3562 = vmatprep.subr.bf16.mxu0 0
  %3563 = vmatpush1.bf16.msra.mxu0 0
  %3564 = vmatprep.subr.bf16.mxu0 0
  %3565 = vmatpush1.bf16.msra.mxu0 0
  %3566 = vmatprep.subr.bf16.mxu0 0
  %3567 = vmatpush1.bf16.msra.mxu0 0
  %3568 = vmatprep.subr.bf16.mxu0 0
  %3569 = vmatpush1.bf16.msra.mxu0 0
  %3570 = vmatprep.subr.bf16.mxu0 0
  %3571 = vmatpush1.bf16.msra.mxu0 0
  %3572 = vmatprep.subr.bf16.mxu0 0
  %3573 = vmatpush1.bf16.msra.mxu0 0
  %3574 = vmatprep.subr.bf16.mxu0 0
  %3575 = vmatpush1.bf16.msra.mxu0 0
  %3576 = vmatprep.subr.bf16.mxu0 0
  %3577 = vmatpush1.bf16.msra.mxu0 0
  %3578 = vmatprep.subr.bf16.mxu0 0
  %3579 = vmatpush1.bf16.msra.mxu0 0
  %3580 = vmatprep.subr.bf16.mxu0 0
  %3581 = vmatpush1.bf16.msra.mxu0 0
  %3582 = vmatprep.mubr.bf16.mxu0 0
  %3583 = vmatmul.mubr.bf16.gmra.mrb[0].mxu0 %v3548
  %v3584 = vpop.f32.mrb[0].mxu0
  %v3585 = vadd.f32 %v3539, %v3584
  %v3586 = vpop.f32.mrb[0].mxu0
  %v3587 = vpop.f32.mrb[0].mxu0
  %v3588 = vadd.f32 %v3539, %v3587
  %v3589 = vpop.f32.mrb[0].mxu0
  %3590 = vdwg.mxu0
  %v3591 = vpack.c.bf16 %v3588, %v3585
  %v3593 = vsel %vm518, %v3326, 0
  %3595 = vmatprep.subr.bf16.mxu0 0
  %3596 = vmatpush1.bf16.msra.mxu0 %v3593
  %3597 = vmatprep.subr.bf16.mxu0 0
  %3598 = vmatpush1.bf16.msra.mxu0 0
  %3599 = vmatprep.subr.bf16.mxu0 0
  %3600 = vmatpush1.bf16.msra.mxu0 0
  %3601 = vmatprep.subr.bf16.mxu0 0
  %3602 = vmatpush1.bf16.msra.mxu0 0
  %3603 = vmatprep.subr.bf16.mxu0 0
  %3604 = vmatpush1.bf16.msra.mxu0 0
  %3605 = vmatprep.subr.bf16.mxu0 0
  %3606 = vmatpush1.bf16.msra.mxu0 0
  %3607 = vmatprep.subr.bf16.mxu0 0
  %3608 = vmatpush1.bf16.msra.mxu0 0
  %3609 = vmatprep.subr.bf16.mxu0 0
  %3610 = vmatpush1.bf16.msra.mxu0 0
  %3611 = vmatprep.subr.bf16.mxu0 0
  %3612 = vmatpush1.bf16.msra.mxu0 0
  %3613 = vmatprep.subr.bf16.mxu0 0
  %3614 = vmatpush1.bf16.msra.mxu0 0
  %3615 = vmatprep.subr.bf16.mxu0 0
  %3616 = vmatpush1.bf16.msra.mxu0 0
  %3617 = vmatprep.subr.bf16.mxu0 0
  %3618 = vmatpush1.bf16.msra.mxu0 0
  %3619 = vmatprep.subr.bf16.mxu0 0
  %3620 = vmatpush1.bf16.msra.mxu0 0
  %3621 = vmatprep.subr.bf16.mxu0 0
  %3622 = vmatpush1.bf16.msra.mxu0 0
  %3623 = vmatprep.subr.bf16.mxu0 0
  %3624 = vmatpush1.bf16.msra.mxu0 0
  %3625 = vmatprep.subr.bf16.mxu0 0
  %3626 = vmatpush1.bf16.msra.mxu0 0
  %3627 = vmatprep.mubr.bf16.mxu0 0
  %3628 = vmatmul.mubr.bf16.gmra.mrb[0].mxu0 %v495
  %v3629 = vpop.f32.mrb[0].mxu0
  %v3630 = vadd.f32 0.0, %v3629
  %v3631 = vpop.f32.mrb[0].mxu0
  %v3632 = vpop.f32.mrb[0].mxu0
  %v3633 = vadd.f32 0.0, %v3632
  %v3634 = vpop.f32.mrb[0].mxu0
  %3635 = vmatprep.mubr.bf16.mxu0 0
  %3636 = vmatmul.mubr.bf16.gmra.mrb[0].mxu0 %v498
  %v3637 = vpop.f32.mrb[0].mxu0
  %v3638 = vadd.f32 0.0, %v3637
  %v3639 = vpop.f32.mrb[0].mxu0
  %v3640 = vpop.f32.mrb[0].mxu0
  %v3641 = vadd.f32 0.0, %v3640
  %v3642 = vpop.f32.mrb[0].mxu0
  %3643 = vmatprep.mubr.bf16.mxu0 0
  %3644 = vmatmul.mubr.bf16.gmra.mrb[0].mxu0 %v501
  %v3645 = vpop.f32.mrb[0].mxu0
  %v3646 = vadd.f32 0.0, %v3645
  %v3647 = vpop.f32.mrb[0].mxu0
  %v3648 = vpop.f32.mrb[0].mxu0
  %v3649 = vadd.f32 0.0, %v3648
  %v3650 = vpop.f32.mrb[0].mxu0
  %3651 = vmatprep.mubr.bf16.mxu0 0
  %3652 = vmatmul.mubr.bf16.gmra.mrb[0].mxu0 %v504
  %v3653 = vpop.f32.mrb[0].mxu0
  %v3654 = vadd.f32 0.0, %v3653
  %v3655 = vpop.f32.mrb[0].mxu0
  %v3656 = vpop.f32.mrb[0].mxu0
  %v3657 = vadd.f32 0.0, %v3656
  %v3658 = vpop.f32.mrb[0].mxu0
  %3659 = vmatprep.mubr.bf16.mxu0 0
  %3660 = vmatmul.mubr.bf16.gmra.mrb[0].mxu0 %v507
  %v3661 = vpop.f32.mrb[0].mxu0
  %v3662 = vadd.f32 0.0, %v3661
  %v3663 = vpop.f32.mrb[0].mxu0
  %v3664 = vpop.f32.mrb[0].mxu0
  %v3665 = vadd.f32 0.0, %v3664
  %v3666 = vpop.f32.mrb[0].mxu0
  %3667 = vmatprep.mubr.bf16.mxu0 0
  %3668 = vmatmul.mubr.bf16.gmra.mrb[0].mxu0 %v510
  %v3669 = vpop.f32.mrb[0].mxu0
  %v3670 = vadd.f32 0.0, %v3669
  %v3671 = vpop.f32.mrb[0].mxu0
  %v3672 = vpop.f32.mrb[0].mxu0
  %v3673 = vadd.f32 0.0, %v3672
  %v3674 = vpop.f32.mrb[0].mxu0
  %3675 = vmatprep.mubr.bf16.mxu0 0
  %3676 = vmatmul.mubr.bf16.gmra.mrb[0].mxu0 %v513
  %v3677 = vpop.f32.mrb[0].mxu0
  %v3678 = vadd.f32 0.0, %v3677
  %v3679 = vpop.f32.mrb[0].mxu0
  %v3680 = vpop.f32.mrb[0].mxu0
  %v3681 = vadd.f32 0.0, %v3680
  %v3682 = vpop.f32.mrb[0].mxu0
  %3683 = vmatprep.mubr.bf16.mxu0 0
  %3684 = vmatmul.mubr.bf16.gmra.mrb[0].mxu0 %v516
  %v3685 = vpop.f32.mrb[0].mxu0
  %v3686 = vadd.f32 0.0, %v3685
  %v3687 = vpop.f32.mrb[0].mxu0
  %v3688 = vpop.f32.mrb[0].mxu0
  %v3689 = vadd.f32 0.0, %v3688
  %v3690 = vpop.f32.mrb[0].mxu0
  %3691 = vdwg.mxu0
  %3692 = vxpose.xlu0.c.b16.start [1/8] %v3530, 128
  %3693 = vxpose.xlu0.c.b16.cont [2/8] 0, 128
  %3694 = vxpose.xlu0.c.b16.cont [3/8] 0, 128
  %3695 = vxpose.xlu0.c.b16.cont [4/8] 0, 128
  %3696 = vxpose.xlu0.c.b16.cont [5/8] 0, 128
  %3697 = vxpose.xlu0.c.b16.cont [6/8] 0, 128
  %3698 = vxpose.xlu0.c.b16.cont [7/8] 0, 128
  %3699 = vxpose.xlu0.c.b16.end [8/8] 0, 128
  %v3700 = vpop.trf.xlu0
  %v3701 = vpop.trf.xlu0
  %v3702 = vpop.trf.xlu0
  %v3703 = vpop.trf.xlu0
  %v3704 = vpop.trf.xlu0
  %v3705 = vpop.trf.xlu0
  %v3706 = vpop.trf.xlu0
  %v3707 = vpop.trf.xlu0
  %3709 = vrot.lane.b32.xlu0 %v3591, 96
  %v3710 = vpop.permute.xlu0 %3709
  %v3713 = vsel %vm236, %v3700, 0
  %v3716 = vsel %vm236, %v3701, 0
  %v3719 = vsel %vm236, %v3702, 0
  %v3722 = vsel %vm236, %v3703, 0
  %v3725 = vsel %vm236, %v3704, 0
  %v3728 = vsel %vm236, %v3705, 0
  %v3731 = vsel %vm236, %v3706, 0
  %v3734 = vsel %vm236, %v3707, 0
  %3736 = vmatprep.subr.bf16.mxu0 0
  %3737 = vmatpush1.bf16.msra.mxu0 %v3710
  %3738 = vmatprep.subr.bf16.mxu0 0
  %3739 = vmatpush1.bf16.msra.mxu0 0
  %3740 = vmatprep.subr.bf16.mxu0 0
  %3741 = vmatpush1.bf16.msra.mxu0 0
  %3742 = vmatprep.subr.bf16.mxu0 0
  %3743 = vmatpush1.bf16.msra.mxu0 0
  %3744 = vmatprep.subr.bf16.mxu0 0
  %3745 = vmatpush1.bf16.msra.mxu0 0
  %3746 = vmatprep.subr.bf16.mxu0 0
  %3747 = vmatpush1.bf16.msra.mxu0 0
  %3748 = vmatprep.subr.bf16.mxu0 0
  %3749 = vmatpush1.bf16.msra.mxu0 0
  %3750 = vmatprep.subr.bf16.mxu0 0
  %3751 = vmatpush1.bf16.msra.mxu0 0
  %3752 = vmatprep.subr.bf16.mxu0 0
  %3753 = vmatpush1.bf16.msra.mxu0 0
  %3754 = vmatprep.subr.bf16.mxu0 0
  %3755 = vmatpush1.bf16.msra.mxu0 0
  %3756 = vmatprep.subr.bf16.mxu0 0
  %3757 = vmatpush1.bf16.msra.mxu0 0
  %3758 = vmatprep.subr.bf16.mxu0 0
  %3759 = vmatpush1.bf16.msra.mxu0 0
  %3760 = vmatprep.subr.bf16.mxu0 0
  %3761 = vmatpush1.bf16.msra.mxu0 0
  %3762 = vmatprep.subr.bf16.mxu0 0
  %3763 = vmatpush1.bf16.msra.mxu0 0
  %3764 = vmatprep.subr.bf16.mxu0 0
  %3765 = vmatpush1.bf16.msra.mxu0 0
  %3766 = vmatprep.subr.bf16.mxu0 0
  %3767 = vmatpush1.bf16.msra.mxu0 0
  %3768 = vmatprep.mubr.bf16.mxu0 0
  %3769 = vmatmul.mubr.bf16.gmra.mrb[0].mxu0 %v3713
  %v3770 = vpop.f32.mrb[0].mxu0
  %v3771 = vadd.f32 %v3630, %v3770
  %v3772 = vpop.f32.mrb[0].mxu0
  %v3773 = vpop.f32.mrb[0].mxu0
  %v3774 = vadd.f32 %v3633, %v3773
  %v3775 = vpop.f32.mrb[0].mxu0
  %3776 = vmatprep.mubr.bf16.mxu0 0
  %3777 = vmatmul.mubr.bf16.gmra.mrb[0].mxu0 %v3716
  %v3778 = vpop.f32.mrb[0].mxu0
  %v3779 = vadd.f32 %v3638, %v3778
  %v3780 = vpop.f32.mrb[0].mxu0
  %v3781 = vpop.f32.mrb[0].mxu0
  %v3782 = vadd.f32 %v3641, %v3781
  %v3783 = vpop.f32.mrb[0].mxu0
  %3784 = vmatprep.mubr.bf16.mxu0 0
  %3785 = vmatmul.mubr.bf16.gmra.mrb[0].mxu0 %v3719
  %v3786 = vpop.f32.mrb[0].mxu0
  %v3787 = vadd.f32 %v3646, %v3786
  %v3788 = vpop.f32.mrb[0].mxu0
  %v3789 = vpop.f32.mrb[0].mxu0
  %v3790 = vadd.f32 %v3649, %v3789
  %v3791 = vpop.f32.mrb[0].mxu0
  %3792 = vmatprep.mubr.bf16.mxu0 0
  %3793 = vmatmul.mubr.bf16.gmra.mrb[0].mxu0 %v3722
  %v3794 = vpop.f32.mrb[0].mxu0
  %v3795 = vadd.f32 %v3654, %v3794
  %v3796 = vpop.f32.mrb[0].mxu0
  %v3797 = vpop.f32.mrb[0].mxu0
  %v3798 = vadd.f32 %v3657, %v3797
  %v3799 = vpop.f32.mrb[0].mxu0
  %3800 = vmatprep.mubr.bf16.mxu0 0
  %3801 = vmatmul.mubr.bf16.gmra.mrb[0].mxu0 %v3725
  %v3802 = vpop.f32.mrb[0].mxu0
  %v3803 = vadd.f32 %v3662, %v3802
  %v3804 = vpop.f32.mrb[0].mxu0
  %v3805 = vpop.f32.mrb[0].mxu0
  %v3806 = vadd.f32 %v3665, %v3805
  %v3807 = vpop.f32.mrb[0].mxu0
  %3808 = vmatprep.mubr.bf16.mxu0 0
  %3809 = vmatmul.mubr.bf16.gmra.mrb[0].mxu0 %v3728
  %v3810 = vpop.f32.mrb[0].mxu0
  %v3811 = vadd.f32 %v3670, %v3810
  %v3812 = vpop.f32.mrb[0].mxu0
  %v3813 = vpop.f32.mrb[0].mxu0
  %v3814 = vadd.f32 %v3673, %v3813
  %v3815 = vpop.f32.mrb[0].mxu0
  %3816 = vmatprep.mubr.bf16.mxu0 0
  %3817 = vmatmul.mubr.bf16.gmra.mrb[0].mxu0 %v3731
  %v3818 = vpop.f32.mrb[0].mxu0
  %v3819 = vadd.f32 %v3678, %v3818
  %v3820 = vpop.f32.mrb[0].mxu0
  %v3821 = vpop.f32.mrb[0].mxu0
  %v3822 = vadd.f32 %v3681, %v3821
  %v3823 = vpop.f32.mrb[0].mxu0
  %3824 = vmatprep.mubr.bf16.mxu0 0
  %3825 = vmatmul.mubr.bf16.gmra.mrb[0].mxu0 %v3734
  %v3826 = vpop.f32.mrb[0].mxu0
  %v3827 = vadd.f32 %v3686, %v3826
  %v3828 = vpop.f32.mrb[0].mxu0
  %v3829 = vpop.f32.mrb[0].mxu0
  %v3830 = vadd.f32 %v3689, %v3829
  %v3831 = vpop.f32.mrb[0].mxu0
  %3832 = vdwg.mxu0
  %3833 = vrot.lane.b32.xlu0 %v3591, 64
  %v3834 = vpop.permute.xlu0 %3833
  %3836 = vmatprep.subr.bf16.mxu0 0
  %3837 = vmatpush1.bf16.msra.mxu0 %v3834
  %3838 = vmatprep.subr.bf16.mxu0 0
  %3839 = vmatpush1.bf16.msra.mxu0 0
  %3840 = vmatprep.subr.bf16.mxu0 0
  %3841 = vmatpush1.bf16.msra.mxu0 0
  %3842 = vmatprep.subr.bf16.mxu0 0
  %3843 = vmatpush1.bf16.msra.mxu0 0
  %3844 = vmatprep.subr.bf16.mxu0 0
  %3845 = vmatpush1.bf16.msra.mxu0 0
  %3846 = vmatprep.subr.bf16.mxu0 0
  %3847 = vmatpush1.bf16.msra.mxu0 0
  %3848 = vmatprep.subr.bf16.mxu0 0
  %3849 = vmatpush1.bf16.msra.mxu0 0
  %3850 = vmatprep.subr.bf16.mxu0 0
  %3851 = vmatpush1.bf16.msra.mxu0 0
  %3852 = vmatprep.subr.bf16.mxu0 0
  %3853 = vmatpush1.bf16.msra.mxu0 0
  %3854 = vmatprep.subr.bf16.mxu0 0
  %3855 = vmatpush1.bf16.msra.mxu0 0
  %3856 = vmatprep.subr.bf16.mxu0 0
  %3857 = vmatpush1.bf16.msra.mxu0 0
  %3858 = vmatprep.subr.bf16.mxu0 0
  %3859 = vmatpush1.bf16.msra.mxu0 0
  %3860 = vmatprep.subr.bf16.mxu0 0
  %3861 = vmatpush1.bf16.msra.mxu0 0
  %3862 = vmatprep.subr.bf16.mxu0 0
  %3863 = vmatpush1.bf16.msra.mxu0 0
  %3864 = vmatprep.subr.bf16.mxu0 0
  %3865 = vmatpush1.bf16.msra.mxu0 0
  %3866 = vmatprep.subr.bf16.mxu0 0
  %3867 = vmatpush1.bf16.msra.mxu0 0
  %3868 = vmatprep.mubr.bf16.mxu0 0
  %3869 = vmatmul.mubr.bf16.gmra.mrb[0].mxu0 %v3713
  %v3870 = vpop.f32.mrb[0].mxu0
  %v3871 = vadd.f32 %v3630, %v3870
  %v3872 = vpop.f32.mrb[0].mxu0
  %v3873 = vpop.f32.mrb[0].mxu0
  %v3874 = vadd.f32 %v3633, %v3873
  %v3875 = vpop.f32.mrb[0].mxu0
  %3876 = vmatprep.mubr.bf16.mxu0 0
  %3877 = vmatmul.mubr.bf16.gmra.mrb[0].mxu0 %v3716
  %v3878 = vpop.f32.mrb[0].mxu0
  %v3879 = vadd.f32 %v3638, %v3878
  %v3880 = vpop.f32.mrb[0].mxu0
  %v3881 = vpop.f32.mrb[0].mxu0
  %v3882 = vadd.f32 %v3641, %v3881
  %v3883 = vpop.f32.mrb[0].mxu0
  %3884 = vmatprep.mubr.bf16.mxu0 0
  %3885 = vmatmul.mubr.bf16.gmra.mrb[0].mxu0 %v3719
  %v3886 = vpop.f32.mrb[0].mxu0
  %v3887 = vadd.f32 %v3646, %v3886
  %v3888 = vpop.f32.mrb[0].mxu0
  %v3889 = vpop.f32.mrb[0].mxu0
  %v3890 = vadd.f32 %v3649, %v3889
  %v3891 = vpop.f32.mrb[0].mxu0
  %3892 = vmatprep.mubr.bf16.mxu0 0
  %3893 = vmatmul.mubr.bf16.gmra.mrb[0].mxu0 %v3722
  %v3894 = vpop.f32.mrb[0].mxu0
  %v3895 = vadd.f32 %v3654, %v3894
  %v3896 = vpop.f32.mrb[0].mxu0
  %v3897 = vpop.f32.mrb[0].mxu0
  %v3898 = vadd.f32 %v3657, %v3897
  %v3899 = vpop.f32.mrb[0].mxu0
  %3900 = vmatprep.mubr.bf16.mxu0 0
  %3901 = vmatmul.mubr.bf16.gmra.mrb[0].mxu0 %v3725
  %v3902 = vpop.f32.mrb[0].mxu0
  %v3903 = vadd.f32 %v3662, %v3902
  %v3904 = vpop.f32.mrb[0].mxu0
  %v3905 = vpop.f32.mrb[0].mxu0
  %v3906 = vadd.f32 %v3665, %v3905
  %v3907 = vpop.f32.mrb[0].mxu0
  %3908 = vmatprep.mubr.bf16.mxu0 0
  %3909 = vmatmul.mubr.bf16.gmra.mrb[0].mxu0 %v3728
  %v3910 = vpop.f32.mrb[0].mxu0
  %v3911 = vadd.f32 %v3670, %v3910
  %v3912 = vpop.f32.mrb[0].mxu0
  %v3913 = vpop.f32.mrb[0].mxu0
  %v3914 = vadd.f32 %v3673, %v3913
  %v3915 = vpop.f32.mrb[0].mxu0
  %3916 = vmatprep.mubr.bf16.mxu0 0
  %3917 = vmatmul.mubr.bf16.gmra.mrb[0].mxu0 %v3731
  %v3918 = vpop.f32.mrb[0].mxu0
  %v3919 = vadd.f32 %v3678, %v3918
  %v3920 = vpop.f32.mrb[0].mxu0
  %v3921 = vpop.f32.mrb[0].mxu0
  %v3922 = vadd.f32 %v3681, %v3921
  %v3923 = vpop.f32.mrb[0].mxu0
  %3924 = vmatprep.mubr.bf16.mxu0 0
  %3925 = vmatmul.mubr.bf16.gmra.mrb[0].mxu0 %v3734
  %v3926 = vpop.f32.mrb[0].mxu0
  %v3927 = vadd.f32 %v3686, %v3926
  %v3928 = vpop.f32.mrb[0].mxu0
  %v3929 = vpop.f32.mrb[0].mxu0
  %v3930 = vadd.f32 %v3689, %v3929
  %v3931 = vpop.f32.mrb[0].mxu0
  %3932 = vdwg.mxu0
  %v3933 = vpack.c.bf16 %v3774, %v3771
  %v3934 = vpack.c.bf16 %v3782, %v3779
  %v3935 = vpack.c.bf16 %v3790, %v3787
  %v3936 = vpack.c.bf16 %v3798, %v3795
  %v3937 = vpack.c.bf16 %v3806, %v3803
  %v3938 = vpack.c.bf16 %v3814, %v3811
  %v3939 = vpack.c.bf16 %v3822, %v3819
  %v3940 = vpack.c.bf16 %v3830, %v3827
  %v3941 = vsel %vm872, %v3585, 0.0
  %v3942 = vsel %vm872, %v3588, 0.0
  %v3943 = vpack.c.bf16 %v3942, %v3941
  %v3944 = vsel %vm872, %v3871, 0.0
  %v3945 = vsel %vm872, %v3874, 0.0
  %v3946 = vsel %vm872, %v3879, 0.0
  %v3947 = vsel %vm872, %v3882, 0.0
  %v3948 = vsel %vm872, %v3887, 0.0
  %v3949 = vsel %vm872, %v3890, 0.0
  %v3950 = vsel %vm872, %v3895, 0.0
  %v3951 = vsel %vm872, %v3898, 0.0
  %v3952 = vsel %vm872, %v3903, 0.0
  %v3953 = vsel %vm872, %v3906, 0.0
  %v3954 = vsel %vm872, %v3911, 0.0
  %v3955 = vsel %vm872, %v3914, 0.0
  %v3956 = vsel %vm872, %v3919, 0.0
  %v3957 = vsel %vm872, %v3922, 0.0
  %v3958 = vsel %vm872, %v3927, 0.0
  %v3959 = vsel %vm872, %v3930, 0.0
  %v3960 = vpack.c.bf16 %v3945, %v3944
  %v3961 = vpack.c.bf16 %v3947, %v3946
  %v3962 = vpack.c.bf16 %v3949, %v3948
  %v3963 = vpack.c.bf16 %v3951, %v3950
  %v3964 = vpack.c.bf16 %v3953, %v3952
  %v3965 = vpack.c.bf16 %v3955, %v3954
  %v3966 = vpack.c.bf16 %v3957, %v3956
  %v3967 = vpack.c.bf16 %v3959, %v3958
  %v3969 = vsel %vm900, %v3943, 0
  %v3972 = vsel %vm900, %v3933, 0
  %v3975 = vsel %vm900, %v3934, 0
  %v3978 = vsel %vm900, %v3935, 0
  %v3981 = vsel %vm900, %v3936, 0
  %v3984 = vsel %vm900, %v3937, 0
  %v3987 = vsel %vm900, %v3938, 0
  %v3990 = vsel %vm900, %v3939, 0
  %v3993 = vsel %vm900, %v3940, 0
  %3995 = vmatprep.subr.bf16.mxu0 0
  %3996 = vmatpush1.bf16.xpose.msra.mxu0 %v3972
  %3997 = vmatprep.subr.bf16.mxu0 0
  %3998 = vmatpush1.bf16.xpose.msra.mxu0 %v3975
  %3999 = vmatprep.subr.bf16.mxu0 0
  %4000 = vmatpush1.bf16.xpose.msra.mxu0 %v3978
  %4001 = vmatprep.subr.bf16.mxu0 0
  %4002 = vmatpush1.bf16.xpose.msra.mxu0 %v3981
  %4003 = vmatprep.subr.bf16.mxu0 0
  %4004 = vmatpush1.bf16.xpose.msra.mxu0 %v3984
  %4005 = vmatprep.subr.bf16.mxu0 0
  %4006 = vmatpush1.bf16.xpose.msra.mxu0 %v3987
  %4007 = vmatprep.subr.bf16.mxu0 0
  %4008 = vmatpush1.bf16.xpose.msra.mxu0 %v3990
  %4009 = vmatprep.subr.bf16.mxu0 0
  %4010 = vmatpush1.bf16.xpose.msra.mxu0 %v3993
  %4011 = vmatprep.subr.bf16.mxu0 0
  %4012 = vmatpush1.bf16.xpose.msra.mxu0 0
  %4013 = vmatprep.subr.bf16.mxu0 0
  %4014 = vmatpush1.bf16.xpose.msra.mxu0 0
  %4015 = vmatprep.subr.bf16.mxu0 0
  %4016 = vmatpush1.bf16.xpose.msra.mxu0 0
  %4017 = vmatprep.subr.bf16.mxu0 0
  %4018 = vmatpush1.bf16.xpose.msra.mxu0 0
  %4019 = vmatprep.subr.bf16.mxu0 0
  %4020 = vmatpush1.bf16.xpose.msra.mxu0 0
  %4021 = vmatprep.subr.bf16.mxu0 0
  %4022 = vmatpush1.bf16.xpose.msra.mxu0 0
  %4023 = vmatprep.subr.bf16.mxu0 0
  %4024 = vmatpush1.bf16.xpose.msra.mxu0 0
  %4025 = vmatprep.subr.bf16.mxu0 0
  %4026 = vmatpush1.bf16.xpose.msra.mxu0 0
  %4027 = vmatprep.mubr.bf16.mxu0 0
  %4028 = vmatmul.mubr.bf16.gmra.mrb[0].mxu0 %v3969
  %v4029 = vpop.f32.mrb[0].mxu0
  %v4030 = vadd.f32 0.0, %v4029
  %v4031 = vpop.f32.mrb[0].mxu0
  %v4032 = vpop.f32.mrb[0].mxu0
  %v4033 = vadd.f32 0.0, %v4032
  %v4034 = vpop.f32.mrb[0].mxu0
  %4035 = vdwg.mxu0
  %v4036 = vmul.f32 %v4030, 0.25
  %v4037 = vmul.f32 %v4033, 0.25
  %v4038 = vsel %vm3533, %v4036, -1e+30
  %v4039 = vsel %vm3534, %v4037, -1e+30
  %4040 = vmax.xlane.f32.xlu0 %v4038
  %v4041 = vpop.xlane.xlu0 %4040
  %4042 = vmax.xlane.f32.xlu0 %v4039
  %v4043 = vpop.xlane.xlu0 %4042
  %v4044 = vsub.f32 %v4038, %v4041
  %v4045 = vsub.f32 %v4039, %v4043
  %v4046 = vmul.f32 %v4044, 1.442695
  %v4047 = vpow.pop %v4046
  %v4048 = vmul.f32 %v4045, 1.442695
  %v4049 = vpow.pop %v4048
  %v4050 = vsel %vm3533, %v4047, 0.0
  %v4051 = vsel %vm3534, %v4049, 0.0
  %4052 = vadd.xlane.f32.xlu0 %v4050
  %v4053 = vpop.xlane.xlu0 %4052
  %4054 = vadd.xlane.f32.xlu0 %v4051
  %v4055 = vpop.xlane.xlu0 %4054
  %vm4056 = vcmp.gt.f32.partialorder %v4053, 0.0
  %vm4057 = vcmp.gt.f32.partialorder %v4055, 0.0
  %v4058 = vsel %vm4056, %v4053, 1.0
  %v4059 = vsel %vm4057, %v4055, 1.0
  %v4060 = vrcp.pop %v4058
  %v4061 = vmul.f32 %v4050, %v4060
  %v4062 = vrcp.pop %v4059
  %v4063 = vmul.f32 %v4051, %v4062
  %v4064 = vpack.c.bf16 %v4063, %v4061
  %v4065 = vsel %vm1002, %v3585, 0.0
  %v4066 = vsel %vm1002, %v3588, 0.0
  %v4067 = vpack.c.bf16 %v4066, %v4065
  %v4068 = vsel %vm1002, %v3871, 0.0
  %v4069 = vsel %vm1002, %v3874, 0.0
  %v4070 = vsel %vm1002, %v3879, 0.0
  %v4071 = vsel %vm1002, %v3882, 0.0
  %v4072 = vsel %vm1002, %v3887, 0.0
  %v4073 = vsel %vm1002, %v3890, 0.0
  %v4074 = vsel %vm1002, %v3895, 0.0
  %v4075 = vsel %vm1002, %v3898, 0.0
  %v4076 = vsel %vm1002, %v3903, 0.0
  %v4077 = vsel %vm1002, %v3906, 0.0
  %v4078 = vsel %vm1002, %v3911, 0.0
  %v4079 = vsel %vm1002, %v3914, 0.0
  %v4080 = vsel %vm1002, %v3919, 0.0
  %v4081 = vsel %vm1002, %v3922, 0.0
  %v4082 = vsel %vm1002, %v3927, 0.0
  %v4083 = vsel %vm1002, %v3930, 0.0
  %v4084 = vpack.c.bf16 %v4069, %v4068
  %v4085 = vpack.c.bf16 %v4071, %v4070
  %v4086 = vpack.c.bf16 %v4073, %v4072
  %v4087 = vpack.c.bf16 %v4075, %v4074
  %v4088 = vpack.c.bf16 %v4077, %v4076
  %v4089 = vpack.c.bf16 %v4079, %v4078
  %v4090 = vpack.c.bf16 %v4081, %v4080
  %v4091 = vpack.c.bf16 %v4083, %v4082
  %v4093 = vsel %vm900, %v4067, 0
  %4095 = vmatprep.subr.bf16.mxu0 0
  %4096 = vmatpush1.bf16.xpose.msra.mxu0 %v3972
  %4097 = vmatprep.subr.bf16.mxu0 0
  %4098 = vmatpush1.bf16.xpose.msra.mxu0 %v3975
  %4099 = vmatprep.subr.bf16.mxu0 0
  %4100 = vmatpush1.bf16.xpose.msra.mxu0 %v3978
  %4101 = vmatprep.subr.bf16.mxu0 0
  %4102 = vmatpush1.bf16.xpose.msra.mxu0 %v3981
  %4103 = vmatprep.subr.bf16.mxu0 0
  %4104 = vmatpush1.bf16.xpose.msra.mxu0 %v3984
  %4105 = vmatprep.subr.bf16.mxu0 0
  %4106 = vmatpush1.bf16.xpose.msra.mxu0 %v3987
  %4107 = vmatprep.subr.bf16.mxu0 0
  %4108 = vmatpush1.bf16.xpose.msra.mxu0 %v3990
  %4109 = vmatprep.subr.bf16.mxu0 0
  %4110 = vmatpush1.bf16.xpose.msra.mxu0 %v3993
  %4111 = vmatprep.subr.bf16.mxu0 0
  %4112 = vmatpush1.bf16.xpose.msra.mxu0 0
  %4113 = vmatprep.subr.bf16.mxu0 0
  %4114 = vmatpush1.bf16.xpose.msra.mxu0 0
  %4115 = vmatprep.subr.bf16.mxu0 0
  %4116 = vmatpush1.bf16.xpose.msra.mxu0 0
  %4117 = vmatprep.subr.bf16.mxu0 0
  %4118 = vmatpush1.bf16.xpose.msra.mxu0 0
  %4119 = vmatprep.subr.bf16.mxu0 0
  %4120 = vmatpush1.bf16.xpose.msra.mxu0 0
  %4121 = vmatprep.subr.bf16.mxu0 0
  %4122 = vmatpush1.bf16.xpose.msra.mxu0 0
  %4123 = vmatprep.subr.bf16.mxu0 0
  %4124 = vmatpush1.bf16.xpose.msra.mxu0 0
  %4125 = vmatprep.subr.bf16.mxu0 0
  %4126 = vmatpush1.bf16.xpose.msra.mxu0 0
  %4127 = vmatprep.mubr.bf16.mxu0 0
  %4128 = vmatmul.mubr.bf16.gmra.mrb[0].mxu0 %v4093
  %v4129 = vpop.f32.mrb[0].mxu0
  %v4130 = vadd.f32 0.0, %v4129
  %v4131 = vpop.f32.mrb[0].mxu0
  %v4132 = vpop.f32.mrb[0].mxu0
  %v4133 = vadd.f32 0.0, %v4132
  %v4134 = vpop.f32.mrb[0].mxu0
  %4135 = vdwg.mxu0
  %v4136 = vmul.f32 %v4130, 0.25
  %v4137 = vmul.f32 %v4133, 0.25
  %v4138 = vsel %vm3533, %v4136, -1e+30
  %v4139 = vsel %vm3534, %v4137, -1e+30
  %4140 = vmax.xlane.f32.xlu0 %v4138
  %v4141 = vpop.xlane.xlu0 %4140
  %4142 = vmax.xlane.f32.xlu0 %v4139
  %v4143 = vpop.xlane.xlu0 %4142
  %v4144 = vsub.f32 %v4138, %v4141
  %v4145 = vsub.f32 %v4139, %v4143
  %v4146 = vmul.f32 %v4144, 1.442695
  %v4147 = vpow.pop %v4146
  %v4148 = vmul.f32 %v4145, 1.442695
  %v4149 = vpow.pop %v4148
  %v4150 = vsel %vm3533, %v4147, 0.0
  %v4151 = vsel %vm3534, %v4149, 0.0
  %4152 = vadd.xlane.f32.xlu0 %v4150
  %v4153 = vpop.xlane.xlu0 %4152
  %4154 = vadd.xlane.f32.xlu0 %v4151
  %v4155 = vpop.xlane.xlu0 %4154
  %vm4156 = vcmp.gt.f32.partialorder %v4153, 0.0
  %vm4157 = vcmp.gt.f32.partialorder %v4155, 0.0
  %v4158 = vsel %vm4156, %v4153, 1.0
  %v4159 = vsel %vm4157, %v4155, 1.0
  %v4160 = vrcp.pop %v4158
  %v4161 = vmul.f32 %v4150, %v4160
  %v4162 = vrcp.pop %v4159
  %v4163 = vmul.f32 %v4151, %v4162
  %v4164 = vpack.c.bf16 %v4163, %v4161
  %4165 = vmatprep.subr.bf16.mxu0 0
  %4166 = vmatpush1.bf16.msra.mxu0 %v4084
  %4167 = vmatprep.subr.bf16.mxu0 0
  %4168 = vmatpush1.bf16.msra.mxu0 %v4085
  %4169 = vmatprep.subr.bf16.mxu0 0
  %4170 = vmatpush1.bf16.msra.mxu0 %v4086
  %4171 = vmatprep.subr.bf16.mxu0 0
  %4172 = vmatpush1.bf16.msra.mxu0 %v4087
  %4173 = vmatprep.subr.bf16.mxu0 0
  %4174 = vmatpush1.bf16.msra.mxu0 %v4088
  %4175 = vmatprep.subr.bf16.mxu0 0
  %4176 = vmatpush1.bf16.msra.mxu0 %v4089
  %4177 = vmatprep.subr.bf16.mxu0 0
  %4178 = vmatpush1.bf16.msra.mxu0 %v4090
  %4179 = vmatprep.subr.bf16.mxu0 0
  %4180 = vmatpush1.bf16.msra.mxu0 %v4091
  %4181 = vmatprep.subr.bf16.mxu0 0
  %4182 = vmatpush1.bf16.msra.mxu0 0
  %4183 = vmatprep.subr.bf16.mxu0 0
  %4184 = vmatpush1.bf16.msra.mxu0 0
  %4185 = vmatprep.subr.bf16.mxu0 0
  %4186 = vmatpush1.bf16.msra.mxu0 0
  %4187 = vmatprep.subr.bf16.mxu0 0
  %4188 = vmatpush1.bf16.msra.mxu0 0
  %4189 = vmatprep.subr.bf16.mxu0 0
  %4190 = vmatpush1.bf16.msra.mxu0 0
  %4191 = vmatprep.subr.bf16.mxu0 0
  %4192 = vmatpush1.bf16.msra.mxu0 0
  %4193 = vmatprep.subr.bf16.mxu0 0
  %4194 = vmatpush1.bf16.msra.mxu0 0
  %4195 = vmatprep.subr.bf16.mxu0 0
  %4196 = vmatpush1.bf16.msra.mxu0 0
  %4197 = vmatprep.mubr.bf16.mxu0 0
  %4198 = vmatmul.mubr.bf16.gmra.mrb[0].mxu0 %v4164
  %v4199 = vpop.f32.mrb[0].mxu0
  %v4200 = vadd.f32 0.0, %v4199
  %v4201 = vpop.f32.mrb[0].mxu0
  %v4202 = vpop.f32.mrb[0].mxu0
  %v4203 = vadd.f32 0.0, %v4202
  %v4204 = vpop.f32.mrb[0].mxu0
  %4205 = vdwg.mxu0
  %4206 = vmatprep.subr.bf16.mxu0 0
  %4207 = vmatpush1.bf16.msra.mxu0 %v3960
  %4208 = vmatprep.subr.bf16.mxu0 0
  %4209 = vmatpush1.bf16.msra.mxu0 %v3961
  %4210 = vmatprep.subr.bf16.mxu0 0
  %4211 = vmatpush1.bf16.msra.mxu0 %v3962
  %4212 = vmatprep.subr.bf16.mxu0 0
  %4213 = vmatpush1.bf16.msra.mxu0 %v3963
  %4214 = vmatprep.subr.bf16.mxu0 0
  %4215 = vmatpush1.bf16.msra.mxu0 %v3964
  %4216 = vmatprep.subr.bf16.mxu0 0
  %4217 = vmatpush1.bf16.msra.mxu0 %v3965
  %4218 = vmatprep.subr.bf16.mxu0 0
  %4219 = vmatpush1.bf16.msra.mxu0 %v3966
  %4220 = vmatprep.subr.bf16.mxu0 0
  %4221 = vmatpush1.bf16.msra.mxu0 %v3967
  %4222 = vmatprep.subr.bf16.mxu0 0
  %4223 = vmatpush1.bf16.msra.mxu0 0
  %4224 = vmatprep.subr.bf16.mxu0 0
  %4225 = vmatpush1.bf16.msra.mxu0 0
  %4226 = vmatprep.subr.bf16.mxu0 0
  %4227 = vmatpush1.bf16.msra.mxu0 0
  %4228 = vmatprep.subr.bf16.mxu0 0
  %4229 = vmatpush1.bf16.msra.mxu0 0
  %4230 = vmatprep.subr.bf16.mxu0 0
  %4231 = vmatpush1.bf16.msra.mxu0 0
  %4232 = vmatprep.subr.bf16.mxu0 0
  %4233 = vmatpush1.bf16.msra.mxu0 0
  %4234 = vmatprep.subr.bf16.mxu0 0
  %4235 = vmatpush1.bf16.msra.mxu0 0
  %4236 = vmatprep.subr.bf16.mxu0 0
  %4237 = vmatpush1.bf16.msra.mxu0 0
  %4238 = vmatprep.mubr.bf16.mxu0 0
  %4239 = vmatmul.mubr.bf16.gmra.mrb[0].mxu0 %v4064
  %v4240 = vpop.f32.mrb[0].mxu0
  %v4241 = vadd.f32 %v4200, %v4240
  %v4242 = vpop.f32.mrb[0].mxu0
  %v4243 = vpop.f32.mrb[0].mxu0
  %v4244 = vadd.f32 %v4203, %v4243
  %v4245 = vpop.f32.mrb[0].mxu0
  %4246 = vdwg.mxu0
  %v4248 = vsel %vm900, %v4241, 0
  %v4251 = vsel %vm900, %v4244, 0
  %4253 = vmatprep.subr.mxu0 0.0
  %4254 = vmatpush1.msra.mxu0 %v3328
  %4255 = vmatprep.subr.mxu0 0.0
  %4256 = vmatpush1.msra.mxu0 %v3329
  %4257 = vmatprep.subr.mxu0 0.0
  %4258 = vmatpush1.msra.mxu0 %v3330
  %4259 = vmatprep.subr.mxu0 0.0
  %4260 = vmatpush1.msra.mxu0 %v3331
  %4261 = vmatprep.subr.mxu0 0.0
  %4262 = vmatpush1.msra.mxu0 0.0
  %4263 = vmatprep.subr.mxu0 0.0
  %4264 = vmatpush1.msra.mxu0 0.0
  %4265 = vmatprep.subr.mxu0 0.0
  %4266 = vmatpush1.msra.mxu0 0.0
  %4267 = vmatprep.subr.mxu0 0.0
  %4268 = vmatpush1.msra.mxu0 0.0
  %4269 = vmatprep.subr.mxu0 0.0
  %4270 = vmatpush1.msra.mxu0 0.0
  %4271 = vmatprep.subr.mxu0 0.0
  %4272 = vmatpush1.msra.mxu0 0.0
  %4273 = vmatprep.subr.mxu0 0.0
  %4274 = vmatpush1.msra.mxu0 0.0
  %4275 = vmatprep.subr.mxu0 0.0
  %4276 = vmatpush1.msra.mxu0 0.0
  %4277 = vmatprep.subr.mxu0 0.0
  %4278 = vmatpush1.msra.mxu0 0.0
  %4279 = vmatprep.subr.mxu0 0.0
  %4280 = vmatpush1.msra.mxu0 0.0
  %4281 = vmatprep.subr.mxu0 0.0
  %4282 = vmatpush1.msra.mxu0 0.0
  %4283 = vmatprep.subr.mxu0 0.0
  %4284 = vmatpush1.msra.mxu0 0.0
  %4285 = vmatprep.subr.mxu0 0.0
  %4286 = vmatpush1.msra.mxu0 0.0
  %4287 = vmatprep.subr.mxu0 0.0
  %4288 = vmatpush1.msra.mxu0 0.0
  %4289 = vmatprep.subr.mxu0 0.0
  %4290 = vmatpush1.msra.mxu0 0.0
  %4291 = vmatprep.subr.mxu0 0.0
  %4292 = vmatpush1.msra.mxu0 0.0
  %4293 = vmatprep.subr.mxu0 0.0
  %4294 = vmatpush1.msra.mxu0 0.0
  %4295 = vmatprep.subr.mxu0 0.0
  %4296 = vmatpush1.msra.mxu0 0.0
  %4297 = vmatprep.subr.mxu0 0.0
  %4298 = vmatpush1.msra.mxu0 0.0
  %4299 = vmatprep.subr.mxu0 0.0
  %4300 = vmatpush1.msra.mxu0 0.0
  %4301 = vmatprep.subr.mxu0 0.0
  %4302 = vmatpush1.msra.mxu0 0.0
  %4303 = vmatprep.subr.mxu0 0.0
  %4304 = vmatpush1.msra.mxu0 0.0
  %4305 = vmatprep.subr.mxu0 0.0
  %4306 = vmatpush1.msra.mxu0 0.0
  %4307 = vmatprep.subr.mxu0 0.0
  %4308 = vmatpush1.msra.mxu0 0.0
  %4309 = vmatprep.subr.mxu0 0.0
  %4310 = vmatpush1.msra.mxu0 0.0
  %4311 = vmatprep.subr.mxu0 0.0
  %4312 = vmatpush1.msra.mxu0 0.0
  %4313 = vmatprep.subr.mxu0 0.0
  %4314 = vmatpush1.msra.mxu0 0.0
  %4315 = vmatprep.subr.mxu0 0.0
  %4316 = vmatpush1.msra.mxu0 0.0
  %4317 = vmatprep.mubr.f32.mxu0 0.0
  %4318 = vmatmul.mubr.f32.gmra.mrb[0].mxu0 %v4248
  %v4319 = vpop.f32.mrb[0].mxu0
  %v4320 = vadd.f32 0.0, %v4319
  %v4321 = vpop.f32.mrb[0].mxu0
  %4322 = vmatprep.mubr.f32.mxu0 0.0
  %4323 = vmatmul.mubr.f32.gmra.mrb[0].mxu0 %v4251
  %v4324 = vpop.f32.mrb[0].mxu0
  %v4325 = vadd.f32 0.0, %v4324
  %v4326 = vpop.f32.mrb[0].mxu0
  %4327 = vdwg.mxu0
  %4330 = vrot.lane.b32.xlu0 %v3585, 32
  %v4331 = vpop.permute.xlu0 %4330
  %4332 = vrot.lane.b32.xlu0 %v3588, 32
  %v4333 = vpop.permute.xlu0 %4332
  %v4334 = vsel %vm900, %v4331, 0
  %v4336 = vsel %vm900, %v4333, 0
  %4338 = vmatprep.subr.mxu0 0.0
  %4339 = vmatpush1.msra.mxu0 %v3333
  %4340 = vmatprep.subr.mxu0 0.0
  %4341 = vmatpush1.msra.mxu0 %v3334
  %4342 = vmatprep.subr.mxu0 0.0
  %4343 = vmatpush1.msra.mxu0 %v3335
  %4344 = vmatprep.subr.mxu0 0.0
  %4345 = vmatpush1.msra.mxu0 %v3336
  %4346 = vmatprep.subr.mxu0 0.0
  %4347 = vmatpush1.msra.mxu0 0.0
  %4348 = vmatprep.subr.mxu0 0.0
  %4349 = vmatpush1.msra.mxu0 0.0
  %4350 = vmatprep.subr.mxu0 0.0
  %4351 = vmatpush1.msra.mxu0 0.0
  %4352 = vmatprep.subr.mxu0 0.0
  %4353 = vmatpush1.msra.mxu0 0.0
  %4354 = vmatprep.subr.mxu0 0.0
  %4355 = vmatpush1.msra.mxu0 0.0
  %4356 = vmatprep.subr.mxu0 0.0
  %4357 = vmatpush1.msra.mxu0 0.0
  %4358 = vmatprep.subr.mxu0 0.0
  %4359 = vmatpush1.msra.mxu0 0.0
  %4360 = vmatprep.subr.mxu0 0.0
  %4361 = vmatpush1.msra.mxu0 0.0
  %4362 = vmatprep.subr.mxu0 0.0
  %4363 = vmatpush1.msra.mxu0 0.0
  %4364 = vmatprep.subr.mxu0 0.0
  %4365 = vmatpush1.msra.mxu0 0.0
  %4366 = vmatprep.subr.mxu0 0.0
  %4367 = vmatpush1.msra.mxu0 0.0
  %4368 = vmatprep.subr.mxu0 0.0
  %4369 = vmatpush1.msra.mxu0 0.0
  %4370 = vmatprep.subr.mxu0 0.0
  %4371 = vmatpush1.msra.mxu0 0.0
  %4372 = vmatprep.subr.mxu0 0.0
  %4373 = vmatpush1.msra.mxu0 0.0
  %4374 = vmatprep.subr.mxu0 0.0
  %4375 = vmatpush1.msra.mxu0 0.0
  %4376 = vmatprep.subr.mxu0 0.0
  %4377 = vmatpush1.msra.mxu0 0.0
  %4378 = vmatprep.subr.mxu0 0.0
  %4379 = vmatpush1.msra.mxu0 0.0
  %4380 = vmatprep.subr.mxu0 0.0
  %4381 = vmatpush1.msra.mxu0 0.0
  %4382 = vmatprep.subr.mxu0 0.0
  %4383 = vmatpush1.msra.mxu0 0.0
  %4384 = vmatprep.subr.mxu0 0.0
  %4385 = vmatpush1.msra.mxu0 0.0
  %4386 = vmatprep.subr.mxu0 0.0
  %4387 = vmatpush1.msra.mxu0 0.0
  %4388 = vmatprep.subr.mxu0 0.0
  %4389 = vmatpush1.msra.mxu0 0.0
  %4390 = vmatprep.subr.mxu0 0.0
  %4391 = vmatpush1.msra.mxu0 0.0
  %4392 = vmatprep.subr.mxu0 0.0
  %4393 = vmatpush1.msra.mxu0 0.0
  %4394 = vmatprep.subr.mxu0 0.0
  %4395 = vmatpush1.msra.mxu0 0.0
  %4396 = vmatprep.subr.mxu0 0.0
  %4397 = vmatpush1.msra.mxu0 0.0
  %4398 = vmatprep.subr.mxu0 0.0
  %4399 = vmatpush1.msra.mxu0 0.0
  %4400 = vmatprep.subr.mxu0 0.0
  %4401 = vmatpush1.msra.mxu0 0.0
  %4402 = vmatprep.mubr.f32.mxu0 0.0
  %4403 = vmatmul.mubr.f32.gmra.mrb[0].mxu0 %v4334
  %v4404 = vpop.f32.mrb[0].mxu0
  %v4405 = vadd.f32 %v4320, %v4404
  %v4406 = vpop.f32.mrb[0].mxu0
  %4407 = vmatprep.mubr.f32.mxu0 0.0
  %4408 = vmatmul.mubr.f32.gmra.mrb[0].mxu0 %v4336
  %v4409 = vpop.f32.mrb[0].mxu0
  %v4410 = vadd.f32 %v4325, %v4409
  %v4411 = vpop.f32.mrb[0].mxu0
  %4412 = vdwg.mxu0
  %v4413 = vsub.f32 0.0, %v4405
  %v4414 = vsub.f32 0.0, %v4410
  %v4415 = vmul.f32 %v4413, 1.442695
  %v4416 = vpow.pop %v4415
  %v4417 = vmul.f32 %v4414, 1.442695
  %v4418 = vpow.pop %v4417
  %v4419 = vadd.f32 %v4416, 1.0
  %v4420 = vadd.f32 %v4418, 1.0
  %v4421 = vrcp.pop %v4419
  %v4422 = vmul.f32 1.0, %v4421
  %v4423 = vrcp.pop %v4420
  %v4424 = vmul.f32 1.0, %v4423
  %4426 = vset.pattern.permute.xlu0 0
  %4427 = vperm.xlu0 %4426, %v4422
  %v4428 = vpop.permute.xlu0 %4427
  %4431 = vset.pattern.permute.xlu0 0
  %4432 = vperm.xlu0 %4431, %v4424
  %v4433 = vpop.permute.xlu0 %4432
  %v4435 = vmul.f32 %v4428, %v3585
  %v4436 = vmul.f32 %v4433, %v3588
  %v4437 = vsub.f32 1.0, %v4422
  %v4438 = vsub.f32 1.0, %v4424
  %4440 = vset.pattern.permute.xlu0 0
  %4441 = vperm.xlu0 %4440, %v4437
  %v4442 = vpop.permute.xlu0 %4441
  %4445 = vset.pattern.permute.xlu0 0
  %4446 = vperm.xlu0 %4445, %v4438
  %v4447 = vpop.permute.xlu0 %4446
  %v4449 = vmul.f32 %v4442, %v4241
  %v4450 = vmul.f32 %v4447, %v4244
  %4453 = vrot.lane.b32.xlu0 %v4449, 96
  %v4454 = vpop.permute.xlu0 %4453
  %4455 = vrot.lane.b32.xlu0 %v4450, 96
  %v4456 = vpop.permute.xlu0 %4455
  %v4459 = vadd.f32 %v4435, %v4454
  %v4460 = vadd.f32 %v4436, %v4456
  %v4461 = vpack.c.bf16 %v4460, %v4459
  %v4463 = vlaneseq
  %v4464 = vshrl.u32 %v4463, 7
  %v4465 = vsub.s32 0, %v4464
  %v4466 = vrot.slane %v3343, %v4465
  %4469 = vrot.lane.b32.xlu0 %v4461, 32
  %v4470 = vpop.permute.xlu0 %4469
  %v4475 = vunpack.c.l.b16 %v3338
  %v4476 = vunpack.c.l.b16 %v3339
  %v4477 = vunpack.c.l.b16 %v3340
  %v4478 = vunpack.c.l.b16 %v3341
  %v4479 = vpack.c.b16 %v4476, %v4475
  %v4480 = vpack.c.b16 %v4478, %v4477
  %v4484 = vsel %vm900, %v4470, 0
  %4486 = vmatprep.subr.bf16.mxu0 0
  %4487 = vmatpush1.bf16.msra.mxu0 %v4479
  %4488 = vmatprep.subr.bf16.mxu0 0
  %4489 = vmatpush1.bf16.msra.mxu0 %v4480
  %4490 = vmatprep.subr.bf16.mxu0 0
  %4491 = vmatpush1.bf16.msra.mxu0 0
  %4492 = vmatprep.subr.bf16.mxu0 0
  %4493 = vmatpush1.bf16.msra.mxu0 0
  %4494 = vmatprep.subr.bf16.mxu0 0
  %4495 = vmatpush1.bf16.msra.mxu0 0
  %4496 = vmatprep.subr.bf16.mxu0 0
  %4497 = vmatpush1.bf16.msra.mxu0 0
  %4498 = vmatprep.subr.bf16.mxu0 0
  %4499 = vmatpush1.bf16.msra.mxu0 0
  %4500 = vmatprep.subr.bf16.mxu0 0
  %4501 = vmatpush1.bf16.msra.mxu0 0
  %4502 = vmatprep.subr.bf16.mxu0 0
  %4503 = vmatpush1.bf16.msra.mxu0 0
  %4504 = vmatprep.subr.bf16.mxu0 0
  %4505 = vmatpush1.bf16.msra.mxu0 0
  %4506 = vmatprep.subr.bf16.mxu0 0
  %4507 = vmatpush1.bf16.msra.mxu0 0
  %4508 = vmatprep.subr.bf16.mxu0 0
  %4509 = vmatpush1.bf16.msra.mxu0 0
  %4510 = vmatprep.subr.bf16.mxu0 0
  %4511 = vmatpush1.bf16.msra.mxu0 0
  %4512 = vmatprep.subr.bf16.mxu0 0
  %4513 = vmatpush1.bf16.msra.mxu0 0
  %4514 = vmatprep.subr.bf16.mxu0 0
  %4515 = vmatpush1.bf16.msra.mxu0 0
  %4516 = vmatprep.subr.bf16.mxu0 0
  %4517 = vmatpush1.bf16.msra.mxu0 0
  %4518 = vmatprep.mubr.bf16.mxu0 0
  %4519 = vmatmul.mubr.bf16.gmra.mrb[0].mxu0 %v4484
  %v4520 = vpop.f32.mrb[0].mxu0
  %v4521 = vadd.f32 %v4466, %v4520
  %v4522 = vpop.f32.mrb[0].mxu0
  %v4523 = vpop.f32.mrb[0].mxu0
  %v4524 = vadd.f32 %v4466, %v4523
  %v4525 = vpop.f32.mrb[0].mxu0
  %4526 = vdwg.mxu0
  %v4527 = vmax.f32 %v4521, 0.0
  %v4528 = vmax.f32 %v4524, 0.0
  %v4530 = vlaneseq
  %v4531 = vshrl.u32 %v4530, 7
  %v4532 = vsub.s32 0, %v4531
  %v4533 = vrot.slane %v3345, %v4532
  %v4535 = vmul.f32 %v4527, %v4533
  %v4536 = vmul.f32 %v4528, %v4533
  %v4538 = vlaneseq
  %v4539 = vshrl.u32 %v4538, 7
  %v4540 = vsub.s32 0, %v4539
  %v4541 = vrot.slane %v3347, %v4540
  %v4543 = vadd.f32 %v4535, %v4541
  %v4544 = vadd.f32 %v4536, %v4541
  %4547 = vrot.lane.b32.xlu0 %v2473, 127
  %v4548 = vpop.permute.xlu0 %4547
  %4549 = vrot.lane.b32.xlu0 %v2474, 127
  %v4550 = vpop.permute.xlu0 %4549
  %v4554 = vsel %vm236, %v4543, 0
  %v4557 = vsel %vm236, %v4544, 0
  %4559 = vmatprep.subr.mxu0 0.0
  %4560 = vmatpush1.msra.mxu0 %v4548
  %4561 = vmatprep.subr.mxu0 0.0
  %4562 = vmatpush1.msra.mxu0 %v4550
  %4563 = vmatprep.subr.mxu0 0.0
  %4564 = vmatpush1.msra.mxu0 0.0
  %4565 = vmatprep.subr.mxu0 0.0
  %4566 = vmatpush1.msra.mxu0 0.0
  %4567 = vmatprep.subr.mxu0 0.0
  %4568 = vmatpush1.msra.mxu0 0.0
  %4569 = vmatprep.subr.mxu0 0.0
  %4570 = vmatpush1.msra.mxu0 0.0
  %4571 = vmatprep.subr.mxu0 0.0
  %4572 = vmatpush1.msra.mxu0 0.0
  %4573 = vmatprep.subr.mxu0 0.0
  %4574 = vmatpush1.msra.mxu0 0.0
  %4575 = vmatprep.subr.mxu0 0.0
  %4576 = vmatpush1.msra.mxu0 0.0
  %4577 = vmatprep.subr.mxu0 0.0
  %4578 = vmatpush1.msra.mxu0 0.0
  %4579 = vmatprep.subr.mxu0 0.0
  %4580 = vmatpush1.msra.mxu0 0.0
  %4581 = vmatprep.subr.mxu0 0.0
  %4582 = vmatpush1.msra.mxu0 0.0
  %4583 = vmatprep.subr.mxu0 0.0
  %4584 = vmatpush1.msra.mxu0 0.0
  %4585 = vmatprep.subr.mxu0 0.0
  %4586 = vmatpush1.msra.mxu0 0.0
  %4587 = vmatprep.subr.mxu0 0.0
  %4588 = vmatpush1.msra.mxu0 0.0
  %4589 = vmatprep.subr.mxu0 0.0
  %4590 = vmatpush1.msra.mxu0 0.0
  %4591 = vmatprep.subr.mxu0 0.0
  %4592 = vmatpush1.msra.mxu0 0.0
  %4593 = vmatprep.subr.mxu0 0.0
  %4594 = vmatpush1.msra.mxu0 0.0
  %4595 = vmatprep.subr.mxu0 0.0
  %4596 = vmatpush1.msra.mxu0 0.0
  %4597 = vmatprep.subr.mxu0 0.0
  %4598 = vmatpush1.msra.mxu0 0.0
  %4599 = vmatprep.subr.mxu0 0.0
  %4600 = vmatpush1.msra.mxu0 0.0
  %4601 = vmatprep.subr.mxu0 0.0
  %4602 = vmatpush1.msra.mxu0 0.0
  %4603 = vmatprep.subr.mxu0 0.0
  %4604 = vmatpush1.msra.mxu0 0.0
  %4605 = vmatprep.subr.mxu0 0.0
  %4606 = vmatpush1.msra.mxu0 0.0
  %4607 = vmatprep.subr.mxu0 0.0
  %4608 = vmatpush1.msra.mxu0 0.0
  %4609 = vmatprep.subr.mxu0 0.0
  %4610 = vmatpush1.msra.mxu0 0.0
  %4611 = vmatprep.subr.mxu0 0.0
  %4612 = vmatpush1.msra.mxu0 0.0
  %4613 = vmatprep.subr.mxu0 0.0
  %4614 = vmatpush1.msra.mxu0 0.0
  %4615 = vmatprep.subr.mxu0 0.0
  %4616 = vmatpush1.msra.mxu0 0.0
  %4617 = vmatprep.subr.mxu0 0.0
  %4618 = vmatpush1.msra.mxu0 0.0
  %4619 = vmatprep.subr.mxu0 0.0
  %4620 = vmatpush1.msra.mxu0 0.0
  %4621 = vmatprep.subr.mxu0 0.0
  %4622 = vmatpush1.msra.mxu0 0.0
  %4623 = vmatprep.mubr.f32.mxu0 0.0
  %4624 = vmatmul.mubr.f32.gmra.mrb[0].mxu0 %v4554
  %v4625 = vpop.f32.mrb[0].mxu0
  %v4626 = vadd.f32 0.0, %v4625
  %v4627 = vpop.f32.mrb[0].mxu0
  %4628 = vmatprep.mubr.f32.mxu0 0.0
  %4629 = vmatmul.mubr.f32.gmra.mrb[0].mxu0 %v4557
  %v4630 = vpop.f32.mrb[0].mxu0
  %v4631 = vadd.f32 0.0, %v4630
  %v4632 = vpop.f32.mrb[0].mxu0
  %4633 = vdwg.mxu0
  %v4634 = vtanh.pop %v4626
  %v4635 = vtanh.pop %v4631
  %4636 = vxpose.xlu0.b32.start [1/16] %v4634, 128
  %4637 = vxpose.xlu0.b32.cont [2/16] %v4635, 128
  %4638 = vxpose.xlu0.b32.cont [3/16] 0.0, 128
  %4639 = vxpose.xlu0.b32.cont [4/16] 0.0, 128
  %4640 = vxpose.xlu0.b32.cont [5/16] 0.0, 128
  %4641 = vxpose.xlu0.b32.cont [6/16] 0.0, 128
  %4642 = vxpose.xlu0.b32.cont [7/16] 0.0, 128
  %4643 = vxpose.xlu0.b32.cont [8/16] 0.0, 128
  %4644 = vxpose.xlu0.b32.cont [9/16] 0.0, 128
  %4645 = vxpose.xlu0.b32.cont [10/16] 0.0, 128
  %4646 = vxpose.xlu0.b32.cont [11/16] 0.0, 128
  %4647 = vxpose.xlu0.b32.cont [12/16] 0.0, 128
  %4648 = vxpose.xlu0.b32.cont [13/16] 0.0, 128
  %4649 = vxpose.xlu0.b32.cont [14/16] 0.0, 128
  %4650 = vxpose.xlu0.b32.cont [15/16] 0.0, 128
  %4651 = vxpose.xlu0.b32.end [16/16] 0.0, 128
  %v4652 = vpop.trf.xlu0
  %v4653 = vpop.trf.xlu0
  %v4654 = vpop.trf.xlu0
  %v4655 = vpop.trf.xlu0
  %v4656 = vpop.trf.xlu0
  %v4657 = vpop.trf.xlu0
  %v4658 = vpop.trf.xlu0
  %v4659 = vpop.trf.xlu0
  %v4660 = vpop.trf.xlu0
  %v4661 = vpop.trf.xlu0
  %v4662 = vpop.trf.xlu0
  %v4663 = vpop.trf.xlu0
  %v4664 = vpop.trf.xlu0
  %v4665 = vpop.trf.xlu0
  %v4666 = vpop.trf.xlu0
  %v4667 = vpop.trf.xlu0
  %v4669 = vsel %vm236, %v4652, 0
  %4671 = vmatprep.subr.mxu0 0.0
  %4672 = vmatpush1.msra.mxu0 %v2560
  %4673 = vmatprep.subr.mxu0 0.0
  %4674 = vmatpush1.msra.mxu0 %v2561
  %4675 = vmatprep.subr.mxu0 0.0
  %4676 = vmatpush1.msra.mxu0 0.0
  %4677 = vmatprep.subr.mxu0 0.0
  %4678 = vmatpush1.msra.mxu0 0.0
  %4679 = vmatprep.subr.mxu0 0.0
  %4680 = vmatpush1.msra.mxu0 0.0
  %4681 = vmatprep.subr.mxu0 0.0
  %4682 = vmatpush1.msra.mxu0 0.0
  %4683 = vmatprep.subr.mxu0 0.0
  %4684 = vmatpush1.msra.mxu0 0.0
  %4685 = vmatprep.subr.mxu0 0.0
  %4686 = vmatpush1.msra.mxu0 0.0
  %4687 = vmatprep.subr.mxu0 0.0
  %4688 = vmatpush1.msra.mxu0 0.0
  %4689 = vmatprep.subr.mxu0 0.0
  %4690 = vmatpush1.msra.mxu0 0.0
  %4691 = vmatprep.subr.mxu0 0.0
  %4692 = vmatpush1.msra.mxu0 0.0
  %4693 = vmatprep.subr.mxu0 0.0
  %4694 = vmatpush1.msra.mxu0 0.0
  %4695 = vmatprep.subr.mxu0 0.0
  %4696 = vmatpush1.msra.mxu0 0.0
  %4697 = vmatprep.subr.mxu0 0.0
  %4698 = vmatpush1.msra.mxu0 0.0
  %4699 = vmatprep.subr.mxu0 0.0
  %4700 = vmatpush1.msra.mxu0 0.0
  %4701 = vmatprep.subr.mxu0 0.0
  %4702 = vmatpush1.msra.mxu0 0.0
  %4703 = vmatprep.subr.mxu0 0.0
  %4704 = vmatpush1.msra.mxu0 0.0
  %4705 = vmatprep.subr.mxu0 0.0
  %4706 = vmatpush1.msra.mxu0 0.0
  %4707 = vmatprep.subr.mxu0 0.0
  %4708 = vmatpush1.msra.mxu0 0.0
  %4709 = vmatprep.subr.mxu0 0.0
  %4710 = vmatpush1.msra.mxu0 0.0
  %4711 = vmatprep.subr.mxu0 0.0
  %4712 = vmatpush1.msra.mxu0 0.0
  %4713 = vmatprep.subr.mxu0 0.0
  %4714 = vmatpush1.msra.mxu0 0.0
  %4715 = vmatprep.subr.mxu0 0.0
  %4716 = vmatpush1.msra.mxu0 0.0
  %4717 = vmatprep.subr.mxu0 0.0
  %4718 = vmatpush1.msra.mxu0 0.0
  %4719 = vmatprep.subr.mxu0 0.0
  %4720 = vmatpush1.msra.mxu0 0.0
  %4721 = vmatprep.subr.mxu0 0.0
  %4722 = vmatpush1.msra.mxu0 0.0
  %4723 = vmatprep.subr.mxu0 0.0
  %4724 = vmatpush1.msra.mxu0 0.0
  %4725 = vmatprep.subr.mxu0 0.0
  %4726 = vmatpush1.msra.mxu0 0.0
  %4727 = vmatprep.subr.mxu0 0.0
  %4728 = vmatpush1.msra.mxu0 0.0
  %4729 = vmatprep.subr.mxu0 0.0
  %4730 = vmatpush1.msra.mxu0 0.0
  %4731 = vmatprep.subr.mxu0 0.0
  %4732 = vmatpush1.msra.mxu0 0.0
  %4733 = vmatprep.subr.mxu0 0.0
  %4734 = vmatpush1.msra.mxu0 0.0
  %4735 = vmatprep.mubr.f32.mxu0 0.0
  %4736 = vmatmul.mubr.f32.gmra.mrb[0].mxu0 %v4669
  %v4737 = vpop.f32.mrb[0].mxu0
  %v4738 = vadd.f32 0.0, %v4737
  %v4739 = vpop.f32.mrb[0].mxu0
  %4740 = vdwg.mxu0
  %4741 = vmatprep.subr.mxu0 0.0
  %4742 = vmatpush1.msra.mxu0 %v2560
  %4743 = vmatprep.subr.mxu0 0.0
  %4744 = vmatpush1.msra.mxu0 %v2561
  %4745 = vmatprep.subr.mxu0 0.0
  %4746 = vmatpush1.msra.mxu0 0.0
  %4747 = vmatprep.subr.mxu0 0.0
  %4748 = vmatpush1.msra.mxu0 0.0
  %4749 = vmatprep.subr.mxu0 0.0
  %4750 = vmatpush1.msra.mxu0 0.0
  %4751 = vmatprep.subr.mxu0 0.0
  %4752 = vmatpush1.msra.mxu0 0.0
  %4753 = vmatprep.subr.mxu0 0.0
  %4754 = vmatpush1.msra.mxu0 0.0
  %4755 = vmatprep.subr.mxu0 0.0
  %4756 = vmatpush1.msra.mxu0 0.0
  %4757 = vmatprep.subr.mxu0 0.0
  %4758 = vmatpush1.msra.mxu0 0.0
  %4759 = vmatprep.subr.mxu0 0.0
  %4760 = vmatpush1.msra.mxu0 0.0
  %4761 = vmatprep.subr.mxu0 0.0
  %4762 = vmatpush1.msra.mxu0 0.0
  %4763 = vmatprep.subr.mxu0 0.0
  %4764 = vmatpush1.msra.mxu0 0.0
  %4765 = vmatprep.subr.mxu0 0.0
  %4766 = vmatpush1.msra.mxu0 0.0
  %4767 = vmatprep.subr.mxu0 0.0
  %4768 = vmatpush1.msra.mxu0 0.0
  %4769 = vmatprep.subr.mxu0 0.0
  %4770 = vmatpush1.msra.mxu0 0.0
  %4771 = vmatprep.subr.mxu0 0.0
  %4772 = vmatpush1.msra.mxu0 0.0
  %4773 = vmatprep.subr.mxu0 0.0
  %4774 = vmatpush1.msra.mxu0 0.0
  %4775 = vmatprep.subr.mxu0 0.0
  %4776 = vmatpush1.msra.mxu0 0.0
  %4777 = vmatprep.subr.mxu0 0.0
  %4778 = vmatpush1.msra.mxu0 0.0
  %4779 = vmatprep.subr.mxu0 0.0
  %4780 = vmatpush1.msra.mxu0 0.0
  %4781 = vmatprep.subr.mxu0 0.0
  %4782 = vmatpush1.msra.mxu0 0.0
  %4783 = vmatprep.subr.mxu0 0.0
  %4784 = vmatpush1.msra.mxu0 0.0
  %4785 = vmatprep.subr.mxu0 0.0
  %4786 = vmatpush1.msra.mxu0 0.0
  %4787 = vmatprep.subr.mxu0 0.0
  %4788 = vmatpush1.msra.mxu0 0.0
  %4789 = vmatprep.subr.mxu0 0.0
  %4790 = vmatpush1.msra.mxu0 0.0
  %4791 = vmatprep.subr.mxu0 0.0
  %4792 = vmatpush1.msra.mxu0 0.0
  %4793 = vmatprep.subr.mxu0 0.0
  %4794 = vmatpush1.msra.mxu0 0.0
  %4795 = vmatprep.subr.mxu0 0.0
  %4796 = vmatpush1.msra.mxu0 0.0
  %4797 = vmatprep.subr.mxu0 0.0
  %4798 = vmatpush1.msra.mxu0 0.0
  %4799 = vmatprep.subr.mxu0 0.0
  %4800 = vmatpush1.msra.mxu0 0.0
  %4801 = vmatprep.subr.mxu0 0.0
  %4802 = vmatpush1.msra.mxu0 0.0
  %4803 = vmatprep.subr.mxu0 0.0
  %4804 = vmatpush1.msra.mxu0 0.0
  %4805 = vmatprep.mubr.f32.mxu0 0.0
  %4806 = vmatmul.mubr.f32.gmra.mrb[0].mxu0 %v3381
  %v4807 = vpop.f32.mrb[0].mxu0
  %v4808 = vadd.f32 0.0, %v4807
  %v4809 = vpop.f32.mrb[0].mxu0
  %4810 = vdwg.mxu0
  %v4811 = vmul.f32 %v3147, 0.5
  %v4813 = vsel %vm518, %v4811, 0
  %4815 = vmatprep.subr.mxu0 0.0
  %4816 = vmatpush1.msra.mxu0 %v4813
  %4817 = vmatprep.subr.mxu0 0.0
  %4818 = vmatpush1.msra.mxu0 0.0
  %4819 = vmatprep.subr.mxu0 0.0
  %4820 = vmatpush1.msra.mxu0 0.0
  %4821 = vmatprep.subr.mxu0 0.0
  %4822 = vmatpush1.msra.mxu0 0.0
  %4823 = vmatprep.subr.mxu0 0.0
  %4824 = vmatpush1.msra.mxu0 0.0
  %4825 = vmatprep.subr.mxu0 0.0
  %4826 = vmatpush1.msra.mxu0 0.0
  %4827 = vmatprep.subr.mxu0 0.0
  %4828 = vmatpush1.msra.mxu0 0.0
  %4829 = vmatprep.subr.mxu0 0.0
  %4830 = vmatpush1.msra.mxu0 0.0
  %4831 = vmatprep.subr.mxu0 0.0
  %4832 = vmatpush1.msra.mxu0 0.0
  %4833 = vmatprep.subr.mxu0 0.0
  %4834 = vmatpush1.msra.mxu0 0.0
  %4835 = vmatprep.subr.mxu0 0.0
  %4836 = vmatpush1.msra.mxu0 0.0
  %4837 = vmatprep.subr.mxu0 0.0
  %4838 = vmatpush1.msra.mxu0 0.0
  %4839 = vmatprep.subr.mxu0 0.0
  %4840 = vmatpush1.msra.mxu0 0.0
  %4841 = vmatprep.subr.mxu0 0.0
  %4842 = vmatpush1.msra.mxu0 0.0
  %4843 = vmatprep.subr.mxu0 0.0
  %4844 = vmatpush1.msra.mxu0 0.0
  %4845 = vmatprep.subr.mxu0 0.0
  %4846 = vmatpush1.msra.mxu0 0.0
  %4847 = vmatprep.subr.mxu0 0.0
  %4848 = vmatpush1.msra.mxu0 0.0
  %4849 = vmatprep.subr.mxu0 0.0
  %4850 = vmatpush1.msra.mxu0 0.0
  %4851 = vmatprep.subr.mxu0 0.0
  %4852 = vmatpush1.msra.mxu0 0.0
  %4853 = vmatprep.subr.mxu0 0.0
  %4854 = vmatpush1.msra.mxu0 0.0
  %4855 = vmatprep.subr.mxu0 0.0
  %4856 = vmatpush1.msra.mxu0 0.0
  %4857 = vmatprep.subr.mxu0 0.0
  %4858 = vmatpush1.msra.mxu0 0.0
  %4859 = vmatprep.subr.mxu0 0.0
  %4860 = vmatpush1.msra.mxu0 0.0
  %4861 = vmatprep.subr.mxu0 0.0
  %4862 = vmatpush1.msra.mxu0 0.0
  %4863 = vmatprep.subr.mxu0 0.0
  %4864 = vmatpush1.msra.mxu0 0.0
  %4865 = vmatprep.subr.mxu0 0.0
  %4866 = vmatpush1.msra.mxu0 0.0
  %4867 = vmatprep.subr.mxu0 0.0
  %4868 = vmatpush1.msra.mxu0 0.0
  %4869 = vmatprep.subr.mxu0 0.0
  %4870 = vmatpush1.msra.mxu0 0.0
  %4871 = vmatprep.subr.mxu0 0.0
  %4872 = vmatpush1.msra.mxu0 0.0
  %4873 = vmatprep.subr.mxu0 0.0
  %4874 = vmatpush1.msra.mxu0 0.0
  %4875 = vmatprep.subr.mxu0 0.0
  %4876 = vmatpush1.msra.mxu0 0.0
  %4877 = vmatprep.subr.mxu0 0.0
  %4878 = vmatpush1.msra.mxu0 0.0
  %4879 = vmatprep.mubr.f32.mxu0 0.0
  %4880 = vmatmul.mubr.f32.gmra.mrb[0].mxu0 %v2845
  %v4881 = vpop.f32.mrb[0].mxu0
  %v4882 = vadd.f32 0.0, %v4881
  %v4883 = vpop.f32.mrb[0].mxu0
  %4884 = vmatprep.mubr.f32.mxu0 0.0
  %4885 = vmatmul.mubr.f32.gmra.mrb[0].mxu0 %v2848
  %v4886 = vpop.f32.mrb[0].mxu0
  %v4887 = vadd.f32 0.0, %v4886
  %v4888 = vpop.f32.mrb[0].mxu0
  %4889 = vdwg.mxu0
  %4891 = vset.pattern.permute.xlu0 0
  %4892 = vperm.xlu0 %4891, %v4634
  %v4893 = vpop.permute.xlu0 %4892
  %4896 = vset.pattern.permute.xlu0 0
  %4897 = vperm.xlu0 %4896, %v4635
  %v4898 = vpop.permute.xlu0 %4897
  %v4900 = vlaneseq
  %v4901 = vshrl.u32 %v4900, 7
  %v4902 = vsub.s32 0, %v4901
  %v4903 = vrot.slane %v4738, %v4902
  %v4904 = vlaneseq
  %v4905 = vshrl.u32 %v4904, 7
  %v4906 = vsub.s32 0, %v4905
  %v4907 = vrot.slane %v4808, %v4906
  %vm4908 = vcmp.gt.f32.partialorder %v4903, %v4893
  %vm4909 = vcmp.gt.f32.partialorder %v4903, %v4898
  %vm4910 = vcmp.eq.f32.partialorder %v4903, %v4893
  %vm4911 = vcmp.eq.f32.partialorder %v4903, %v4898
  %vm4912 = vmand %vm4910, %vm3027
  %vm4913 = vmand %vm4911, %vm3028
  %vm4914 = vmor %vm4908, %vm4912
  %vm4915 = vmor %vm4909, %vm4913
  %vm4916 = vmand %vm3021, %vm4914
  %vm4917 = vmand %vm3022, %vm4915
  %v4918 = vsel %vm4916, 1.0, 0.0
  %v4919 = vsel %vm4917, 1.0, 0.0
  %v4920 = vmul.f32 %v4918, %v2995
  %v4921 = vmul.f32 %v4919, %v3000
  %v4922 = vmul.f32 %v4920, %v4907
  %v4923 = vmul.f32 %v4921, %v4907
  %v4924 = vsel %vm236, %v4922, 0.0
  %4925 = vadd.xlane.f32.xlu0 %v4924
  %v4926 = vpop.xlane.xlu0 %4925
  %v4927 = vsel %vm236, %v4923, 0.0
  %4928 = vadd.xlane.f32.xlu0 %v4927
  %v4929 = vpop.xlane.xlu0 %4928
  %vm4930 = vcmp.gt.f32.partialorder %v3052, 0.0
  %vm4931 = vcmp.gt.f32.partialorder %v3053, 0.0
  %vm4932 = vcmp.lt.f32.partialorder %v4926, %v4882
  %vm4933 = vcmp.lt.f32.partialorder %v4929, %v4887
  %vm4934 = vmand %vm4930, %vm4932
  %vm4935 = vmand %vm4931, %vm4933
  %v4936 = vsel %vm4934, 1.0, 0.0
  %v4937 = vsel %vm4935, 1.0, 0.0
  %v4938 = vmul.f32 %v4634, %v4936
  %v4939 = vmul.f32 %v4635, %v4937
  %4941 = vset.pattern.permute.xlu0 0
  %4942 = vperm.xlu0 %4941, %v4938
  %v4943 = vpop.permute.xlu0 %4942
  %4946 = vset.pattern.permute.xlu0 0
  %4947 = vperm.xlu0 %4946, %v4939
  %v4948 = vpop.permute.xlu0 %4947
  %v4950 = vmul.f32 %v4543, %v4943
  %v4951 = vmul.f32 %v4544, %v4948
  %4953 = vset.pattern.permute.xlu0 0
  %4954 = vperm.xlu0 %4953, %v4936
  %v4955 = vpop.permute.xlu0 %4954
  %4958 = vset.pattern.permute.xlu0 0
  %4959 = vperm.xlu0 %4958, %v4937
  %v4960 = vpop.permute.xlu0 %4959
  %v4962 = vmul.f32 %v166, %v4955
  %v4963 = vmul.f32 %v167, %v4960
  %4964 = vmatprep.subr.mxu0 0.0
  %4965 = vmatpush1.msra.mxu0 %v4936
  %4966 = vmatprep.subr.mxu0 0.0
  %4967 = vmatpush1.msra.mxu0 %v4937
  %4968 = vmatprep.subr.mxu0 0.0
  %4969 = vmatpush1.msra.mxu0 0.0
  %4970 = vmatprep.subr.mxu0 0.0
  %4971 = vmatpush1.msra.mxu0 0.0
  %4972 = vmatprep.subr.mxu0 0.0
  %4973 = vmatpush1.msra.mxu0 0.0
  %4974 = vmatprep.subr.mxu0 0.0
  %4975 = vmatpush1.msra.mxu0 0.0
  %4976 = vmatprep.subr.mxu0 0.0
  %4977 = vmatpush1.msra.mxu0 0.0
  %4978 = vmatprep.subr.mxu0 0.0
  %4979 = vmatpush1.msra.mxu0 0.0
  %4980 = vmatprep.subr.mxu0 0.0
  %4981 = vmatpush1.msra.mxu0 0.0
  %4982 = vmatprep.subr.mxu0 0.0
  %4983 = vmatpush1.msra.mxu0 0.0
  %4984 = vmatprep.subr.mxu0 0.0
  %4985 = vmatpush1.msra.mxu0 0.0
  %4986 = vmatprep.subr.mxu0 0.0
  %4987 = vmatpush1.msra.mxu0 0.0
  %4988 = vmatprep.subr.mxu0 0.0
  %4989 = vmatpush1.msra.mxu0 0.0
  %4990 = vmatprep.subr.mxu0 0.0
  %4991 = vmatpush1.msra.mxu0 0.0
  %4992 = vmatprep.subr.mxu0 0.0
  %4993 = vmatpush1.msra.mxu0 0.0
  %4994 = vmatprep.subr.mxu0 0.0
  %4995 = vmatpush1.msra.mxu0 0.0
  %4996 = vmatprep.subr.mxu0 0.0
  %4997 = vmatpush1.msra.mxu0 0.0
  %4998 = vmatprep.subr.mxu0 0.0
  %4999 = vmatpush1.msra.mxu0 0.0
  %5000 = vmatprep.subr.mxu0 0.0
  %5001 = vmatpush1.msra.mxu0 0.0
  %5002 = vmatprep.subr.mxu0 0.0
  %5003 = vmatpush1.msra.mxu0 0.0
  %5004 = vmatprep.subr.mxu0 0.0
  %5005 = vmatpush1.msra.mxu0 0.0
  %5006 = vmatprep.subr.mxu0 0.0
  %5007 = vmatpush1.msra.mxu0 0.0
  %5008 = vmatprep.subr.mxu0 0.0
  %5009 = vmatpush1.msra.mxu0 0.0
  %5010 = vmatprep.subr.mxu0 0.0
  %5011 = vmatpush1.msra.mxu0 0.0
  %5012 = vmatprep.subr.mxu0 0.0
  %5013 = vmatpush1.msra.mxu0 0.0
  %5014 = vmatprep.subr.mxu0 0.0
  %5015 = vmatpush1.msra.mxu0 0.0
  %5016 = vmatprep.subr.mxu0 0.0
  %5017 = vmatpush1.msra.mxu0 0.0
  %5018 = vmatprep.subr.mxu0 0.0
  %5019 = vmatpush1.msra.mxu0 0.0
  %5020 = vmatprep.subr.mxu0 0.0
  %5021 = vmatpush1.msra.mxu0 0.0
  %5022 = vmatprep.subr.mxu0 0.0
  %5023 = vmatpush1.msra.mxu0 0.0
  %5024 = vmatprep.subr.mxu0 0.0
  %5025 = vmatpush1.msra.mxu0 0.0
  %5026 = vmatprep.subr.mxu0 0.0
  %5027 = vmatpush1.msra.mxu0 0.0
  %5028 = vmatprep.mubr.f32.mxu0 0.0
  %5029 = vmatmul.mubr.f32.gmra.mrb[0].mxu0 %v2770
  %v5030 = vpop.f32.mrb[0].mxu0
  %v5031 = vadd.f32 0.0, %v5030
  %v5032 = vpop.f32.mrb[0].mxu0
  %5033 = vdwg.mxu0
  %5034 = vxpose.xlu0.b32.start [1/16] %v4962, 128
  %5035 = vxpose.xlu0.b32.cont [2/16] %v4963, 128
  %5036 = vxpose.xlu0.b32.cont [3/16] 0.0, 128
  %5037 = vxpose.xlu0.b32.cont [4/16] 0.0, 128
  %5038 = vxpose.xlu0.b32.cont [5/16] 0.0, 128
  %5039 = vxpose.xlu0.b32.cont [6/16] 0.0, 128
  %5040 = vxpose.xlu0.b32.cont [7/16] 0.0, 128
  %5041 = vxpose.xlu0.b32.cont [8/16] 0.0, 128
  %5042 = vxpose.xlu0.b32.cont [9/16] 0.0, 128
  %5043 = vxpose.xlu0.b32.cont [10/16] 0.0, 128
  %5044 = vxpose.xlu0.b32.cont [11/16] 0.0, 128
  %5045 = vxpose.xlu0.b32.cont [12/16] 0.0, 128
  %5046 = vxpose.xlu0.b32.cont [13/16] 0.0, 128
  %5047 = vxpose.xlu0.b32.cont [14/16] 0.0, 128
  %5048 = vxpose.xlu0.b32.cont [15/16] 0.0, 128
  %5049 = vxpose.xlu0.b32.end [16/16] 0.0, 128
  %v5050 = vpop.trf.xlu0
  %v5051 = vpop.trf.xlu0
  %v5052 = vpop.trf.xlu0
  %v5053 = vpop.trf.xlu0
  %v5054 = vpop.trf.xlu0
  %v5055 = vpop.trf.xlu0
  %v5056 = vpop.trf.xlu0
  %v5057 = vpop.trf.xlu0
  %v5058 = vpop.trf.xlu0
  %v5059 = vpop.trf.xlu0
  %v5060 = vpop.trf.xlu0
  %v5061 = vpop.trf.xlu0
  %v5062 = vpop.trf.xlu0
  %v5063 = vpop.trf.xlu0
  %v5064 = vpop.trf.xlu0
  %v5065 = vpop.trf.xlu0
  %v5067 = vsel %vm236, %v5050, 0
  %5069 = vmatprep.subr.mxu0 0.0
  %5070 = vmatpush1.msra.mxu0 %v4950
  %5071 = vmatprep.subr.mxu0 0.0
  %5072 = vmatpush1.msra.mxu0 %v4951
  %5073 = vmatprep.subr.mxu0 0.0
  %5074 = vmatpush1.msra.mxu0 0.0
  %5075 = vmatprep.subr.mxu0 0.0
  %5076 = vmatpush1.msra.mxu0 0.0
  %5077 = vmatprep.subr.mxu0 0.0
  %5078 = vmatpush1.msra.mxu0 0.0
  %5079 = vmatprep.subr.mxu0 0.0
  %5080 = vmatpush1.msra.mxu0 0.0
  %5081 = vmatprep.subr.mxu0 0.0
  %5082 = vmatpush1.msra.mxu0 0.0
  %5083 = vmatprep.subr.mxu0 0.0
  %5084 = vmatpush1.msra.mxu0 0.0
  %5085 = vmatprep.subr.mxu0 0.0
  %5086 = vmatpush1.msra.mxu0 0.0
  %5087 = vmatprep.subr.mxu0 0.0
  %5088 = vmatpush1.msra.mxu0 0.0
  %5089 = vmatprep.subr.mxu0 0.0
  %5090 = vmatpush1.msra.mxu0 0.0
  %5091 = vmatprep.subr.mxu0 0.0
  %5092 = vmatpush1.msra.mxu0 0.0
  %5093 = vmatprep.subr.mxu0 0.0
  %5094 = vmatpush1.msra.mxu0 0.0
  %5095 = vmatprep.subr.mxu0 0.0
  %5096 = vmatpush1.msra.mxu0 0.0
  %5097 = vmatprep.subr.mxu0 0.0
  %5098 = vmatpush1.msra.mxu0 0.0
  %5099 = vmatprep.subr.mxu0 0.0
  %5100 = vmatpush1.msra.mxu0 0.0
  %5101 = vmatprep.subr.mxu0 0.0
  %5102 = vmatpush1.msra.mxu0 0.0
  %5103 = vmatprep.subr.mxu0 0.0
  %5104 = vmatpush1.msra.mxu0 0.0
  %5105 = vmatprep.subr.mxu0 0.0
  %5106 = vmatpush1.msra.mxu0 0.0
  %5107 = vmatprep.subr.mxu0 0.0
  %5108 = vmatpush1.msra.mxu0 0.0
  %5109 = vmatprep.subr.mxu0 0.0
  %5110 = vmatpush1.msra.mxu0 0.0
  %5111 = vmatprep.subr.mxu0 0.0
  %5112 = vmatpush1.msra.mxu0 0.0
  %5113 = vmatprep.subr.mxu0 0.0
  %5114 = vmatpush1.msra.mxu0 0.0
  %5115 = vmatprep.subr.mxu0 0.0
  %5116 = vmatpush1.msra.mxu0 0.0
  %5117 = vmatprep.subr.mxu0 0.0
  %5118 = vmatpush1.msra.mxu0 0.0
  %5119 = vmatprep.subr.mxu0 0.0
  %5120 = vmatpush1.msra.mxu0 0.0
  %5121 = vmatprep.subr.mxu0 0.0
  %5122 = vmatpush1.msra.mxu0 0.0
  %5123 = vmatprep.subr.mxu0 0.0
  %5124 = vmatpush1.msra.mxu0 0.0
  %5125 = vmatprep.subr.mxu0 0.0
  %5126 = vmatpush1.msra.mxu0 0.0
  %5127 = vmatprep.subr.mxu0 0.0
  %5128 = vmatpush1.msra.mxu0 0.0
  %5129 = vmatprep.subr.mxu0 0.0
  %5130 = vmatpush1.msra.mxu0 0.0
  %5131 = vmatprep.subr.mxu0 0.0
  %5132 = vmatpush1.msra.mxu0 0.0
  %5133 = vmatprep.mubr.f32.mxu0 0.0
  %5134 = vmatmul.mubr.f32.gmra.mrb[0].mxu0 %v5067
  %v5135 = vpop.f32.mrb[0].mxu0
  %v5136 = vadd.f32 0.0, %v5135
  %v5137 = vpop.f32.mrb[0].mxu0
  %5138 = vdwg.mxu0
  %v5139 = vmax.f32 %v5031, 1.0
  %v5140 = vrcp.pop %v5139
  %v5141 = vmul.f32 1.0, %v5140
  %5143 = vset.pattern.permute.xlu0 0
  %5144 = vperm.xlu0 %5143, %v5141
  %v5145 = vpop.permute.xlu0 %5144
  %v5147 = vmul.f32 %v5136, %v5145
  %vm5148 = vcmp.gt.f32.partialorder %v4962, 0.0
  %vm5149 = vcmp.gt.f32.partialorder %v4963, 0.0
  %v5150 = vsel %vm5148, 1, 0
  %v5151 = vsel %vm5149, 1, 0
  %5152 = vset.pattern.permute.xlu0 0
  %5153 = vperm.xlu0 %5152, %v5150
  %v5154 = vpop.permute.xlu0 %5153
  %5155 = vset.pattern.permute.xlu0 0
  %5156 = vperm.xlu0 %5155, %v5151
  %v5157 = vpop.permute.xlu0 %5156
  %vm5158 = vcmp.eq.s32.totalorder %v5154, 1
  %vm5159 = vcmp.eq.s32.totalorder %v5157, 1
  %v5160 = vsel %vm5158, %v4950, -1e+30
  %v5161 = vsel %vm5159, %v4951, -1e+30
  %v5162 = vsel %vm236, %v5160, -inf
  %v5163 = vsel %vm236, %v5161, -inf
  %v5164 = vmax.f32 %v5162, %v5163
  %v5165 = vrot.slane %v5164, 4
  %v5166 = vmax.f32 %v5164, %v5165
  %v5167 = vrot.slane %v5166, 2
  %v5168 = vmax.f32 %v5166, %v5167
  %v5169 = vrot.slane %v5168, 1
  %v5170 = vmax.f32 %v5168, %v5169
  %v5171 = vsel %vm3287, %v5170, 0.0
  %5172 = vset.pattern.permute.xlu0 1
  %5173 = vperm.xlu0 %5172, %v5150
  %v5174 = vpop.permute.xlu0 %5173
  %5175 = vset.pattern.permute.xlu0 1
  %5176 = vperm.xlu0 %5175, %v5151
  %v5177 = vpop.permute.xlu0 %5176
  %vm5178 = vcmp.eq.s32.totalorder %v5174, 1
  %vm5179 = vcmp.eq.s32.totalorder %v5177, 1
  %v5180 = vsel %vm5178, %v4950, -1e+30
  %v5181 = vsel %vm5179, %v4951, -1e+30
  %v5182 = vsel %vm236, %v5180, -inf
  %v5183 = vsel %vm236, %v5181, -inf
  %v5184 = vmax.f32 %v5182, %v5183
  %v5185 = vrot.slane %v5184, 4
  %v5186 = vmax.f32 %v5184, %v5185
  %v5187 = vrot.slane %v5186, 2
  %v5188 = vmax.f32 %v5186, %v5187
  %v5189 = vrot.slane %v5188, 1
  %v5190 = vmax.f32 %v5188, %v5189
  %v5191 = vsel %vm3308, %v5190, %v5171
  %vm5192 = vcmp.gt.f32.partialorder %v5031, 0.0
  %v5193 = vsel %vm5192, 1, 0
  %5194 = vset.pattern.permute.xlu0 0
  %5195 = vperm.xlu0 %5194, %v5193
  %v5196 = vpop.permute.xlu0 %5195
  %vm5197 = vcmp.eq.s32.totalorder %v5196, 1
  %v5198 = vsel %vm5197, %v5191, 0.0
  %v5199 = vadd.f32 %v3317, %v5198
  %v5200 = vadd.f32 %v3318, %v5147
  %v5201 = vpack.c.bf16 %v5199, %v5199
  %v5202 = vld [vmem:[%s49] sm:$0xf]
  %v5203 = vld [vmem:[%s49 + $0x4] sm:$0xf]
  %v5204 = vpack.c.bf16 %v5200, %v5200
  %v5205 = vld [vmem:[%s51] sm:$0xf]
  %v5206 = vld [vmem:[%s51 + $0x4] sm:$0xf]
  %v5209 = vunpack.c.l.b16 %v5205
  %v5210 = vunpack.c.l.b16 %v5206
  %v5211 = vpack.c.b16 %v5210, %v5209
  %v5214 = vsel %vm236, %v5204, 0
  %5216 = vmatprep.subr.bf16.mxu0 0
  %5217 = vmatpush1.bf16.msra.mxu0 %v5211
  %5218 = vmatprep.subr.bf16.mxu0 0
  %5219 = vmatpush1.bf16.msra.mxu0 0
  %5220 = vmatprep.subr.bf16.mxu0 0
  %5221 = vmatpush1.bf16.msra.mxu0 0
  %5222 = vmatprep.subr.bf16.mxu0 0
  %5223 = vmatpush1.bf16.msra.mxu0 0
  %5224 = vmatprep.subr.bf16.mxu0 0
  %5225 = vmatpush1.bf16.msra.mxu0 0
  %5226 = vmatprep.subr.bf16.mxu0 0
  %5227 = vmatpush1.bf16.msra.mxu0 0
  %5228 = vmatprep.subr.bf16.mxu0 0
  %5229 = vmatpush1.bf16.msra.mxu0 0
  %5230 = vmatprep.subr.bf16.mxu0 0
  %5231 = vmatpush1.bf16.msra.mxu0 0
  %5232 = vmatprep.subr.bf16.mxu0 0
  %5233 = vmatpush1.bf16.msra.mxu0 0
  %5234 = vmatprep.subr.bf16.mxu0 0
  %5235 = vmatpush1.bf16.msra.mxu0 0
  %5236 = vmatprep.subr.bf16.mxu0 0
  %5237 = vmatpush1.bf16.msra.mxu0 0
  %5238 = vmatprep.subr.bf16.mxu0 0
  %5239 = vmatpush1.bf16.msra.mxu0 0
  %5240 = vmatprep.subr.bf16.mxu0 0
  %5241 = vmatpush1.bf16.msra.mxu0 0
  %5242 = vmatprep.subr.bf16.mxu0 0
  %5243 = vmatpush1.bf16.msra.mxu0 0
  %5244 = vmatprep.subr.bf16.mxu0 0
  %5245 = vmatpush1.bf16.msra.mxu0 0
  %5246 = vmatprep.subr.bf16.mxu0 0
  %5247 = vmatpush1.bf16.msra.mxu0 0
  %5248 = vmatprep.mubr.bf16.mxu0 0
  %5249 = vmatmul.mubr.bf16.gmra.mrb[0].mxu0 %v5214
  %v5250 = vpop.f32.mrb[0].mxu0
  %v5251 = vadd.f32 0.0, %v5250
  %v5252 = vpop.f32.mrb[0].mxu0
  %v5253 = vpop.f32.mrb[0].mxu0
  %v5254 = vpop.f32.mrb[0].mxu0
  %5255 = vdwg.mxu0
  %v5258 = vunpack.c.l.b16 %v5202
  %v5259 = vunpack.c.l.b16 %v5203
  %v5260 = vpack.c.b16 %v5259, %v5258
  %v5263 = vsel %vm236, %v5201, 0
  %5265 = vmatprep.subr.bf16.mxu0 0
  %5266 = vmatpush1.bf16.msra.mxu0 %v5260
  %5267 = vmatprep.subr.bf16.mxu0 0
  %5268 = vmatpush1.bf16.msra.mxu0 0
  %5269 = vmatprep.subr.bf16.mxu0 0
  %5270 = vmatpush1.bf16.msra.mxu0 0
  %5271 = vmatprep.subr.bf16.mxu0 0
  %5272 = vmatpush1.bf16.msra.mxu0 0
  %5273 = vmatprep.subr.bf16.mxu0 0
  %5274 = vmatpush1.bf16.msra.mxu0 0
  %5275 = vmatprep.subr.bf16.mxu0 0
  %5276 = vmatpush1.bf16.msra.mxu0 0
  %5277 = vmatprep.subr.bf16.mxu0 0
  %5278 = vmatpush1.bf16.msra.mxu0 0
  %5279 = vmatprep.subr.bf16.mxu0 0
  %5280 = vmatpush1.bf16.msra.mxu0 0
  %5281 = vmatprep.subr.bf16.mxu0 0
  %5282 = vmatpush1.bf16.msra.mxu0 0
  %5283 = vmatprep.subr.bf16.mxu0 0
  %5284 = vmatpush1.bf16.msra.mxu0 0
  %5285 = vmatprep.subr.bf16.mxu0 0
  %5286 = vmatpush1.bf16.msra.mxu0 0
  %5287 = vmatprep.subr.bf16.mxu0 0
  %5288 = vmatpush1.bf16.msra.mxu0 0
  %5289 = vmatprep.subr.bf16.mxu0 0
  %5290 = vmatpush1.bf16.msra.mxu0 0
  %5291 = vmatprep.subr.bf16.mxu0 0
  %5292 = vmatpush1.bf16.msra.mxu0 0
  %5293 = vmatprep.subr.bf16.mxu0 0
  %5294 = vmatpush1.bf16.msra.mxu0 0
  %5295 = vmatprep.subr.bf16.mxu0 0
  %5296 = vmatpush1.bf16.msra.mxu0 0
  %5297 = vmatprep.mubr.bf16.mxu0 0
  %5298 = vmatmul.mubr.bf16.gmra.mrb[0].mxu0 %v5263
  %v5299 = vpop.f32.mrb[0].mxu0
  %v5300 = vadd.f32 %v5251, %v5299
  %v5301 = vpop.f32.mrb[0].mxu0
  %v5302 = vpop.f32.mrb[0].mxu0
  %v5303 = vpop.f32.mrb[0].mxu0
  %5304 = vdwg.mxu0
  %v5305 = vld [vmem:[%s53] sm:$0x1]
  %v5307 = vlaneseq
  %v5308 = vshrl.u32 %v5307, 7
  %v5309 = vsub.s32 0, %v5308
  %v5310 = vrot.slane %v5305, %v5309
  %v5312 = vadd.f32 %v5300, %v5310
  %v5313 = vmax.f32 %v5312, 0.0
  %v5314 = vpack.c.bf16 %v5313, %v5313
  %v5315 = vld [vmem:[%s55] sm:$0xf]
  %v5316 = vld [vmem:[%s55 + $0x4] sm:$0xf]
  %v5317 = vld [vmem:[%s55 + $0x8] sm:$0xf]
  %v5318 = vld [vmem:[%s55 + $0xc] sm:$0xf]
  %v5319 = vld [vmem:[%s57] sm:$0x1]
  %v5321 = vlaneseq
  %v5322 = vshrl.u32 %v5321, 7
  %v5323 = vsub.s32 0, %v5322
  %v5324 = vrot.slane %v5319, %v5323
  %v5330 = vunpack.c.l.b16 %v5315
  %v5331 = vunpack.c.l.b16 %v5316
  %v5332 = vunpack.c.l.b16 %v5317
  %v5333 = vunpack.c.l.b16 %v5318
  %v5334 = vpack.c.b16 %v5331, %v5330
  %v5335 = vpack.c.b16 %v5333, %v5332
  %v5339 = vsel %vm900, %v5314, 0
  %5341 = vmatprep.subr.bf16.mxu0 0
  %5342 = vmatpush1.bf16.msra.mxu0 %v5334
  %5343 = vmatprep.subr.bf16.mxu0 0
  %5344 = vmatpush1.bf16.msra.mxu0 %v5335
  %5345 = vmatprep.subr.bf16.mxu0 0
  %5346 = vmatpush1.bf16.msra.mxu0 0
  %5347 = vmatprep.subr.bf16.mxu0 0
  %5348 = vmatpush1.bf16.msra.mxu0 0
  %5349 = vmatprep.subr.bf16.mxu0 0
  %5350 = vmatpush1.bf16.msra.mxu0 0
  %5351 = vmatprep.subr.bf16.mxu0 0
  %5352 = vmatpush1.bf16.msra.mxu0 0
  %5353 = vmatprep.subr.bf16.mxu0 0
  %5354 = vmatpush1.bf16.msra.mxu0 0
  %5355 = vmatprep.subr.bf16.mxu0 0
  %5356 = vmatpush1.bf16.msra.mxu0 0
  %5357 = vmatprep.subr.bf16.mxu0 0
  %5358 = vmatpush1.bf16.msra.mxu0 0
  %5359 = vmatprep.subr.bf16.mxu0 0
  %5360 = vmatpush1.bf16.msra.mxu0 0
  %5361 = vmatprep.subr.bf16.mxu0 0
  %5362 = vmatpush1.bf16.msra.mxu0 0
  %5363 = vmatprep.subr.bf16.mxu0 0
  %5364 = vmatpush1.bf16.msra.mxu0 0
  %5365 = vmatprep.subr.bf16.mxu0 0
  %5366 = vmatpush1.bf16.msra.mxu0 0
  %5367 = vmatprep.subr.bf16.mxu0 0
  %5368 = vmatpush1.bf16.msra.mxu0 0
  %5369 = vmatprep.subr.bf16.mxu0 0
  %5370 = vmatpush1.bf16.msra.mxu0 0
  %5371 = vmatprep.subr.bf16.mxu0 0
  %5372 = vmatpush1.bf16.msra.mxu0 0
  %5373 = vmatprep.mubr.bf16.mxu0 0
  %5374 = vmatmul.mubr.bf16.gmra.mrb[0].mxu0 %v5339
  %v5375 = vpop.f32.mrb[0].mxu0
  %v5376 = vadd.f32 %v5324, %v5375
  %v5377 = vpop.f32.mrb[0].mxu0
  %v5378 = vpop.f32.mrb[0].mxu0
  %v5379 = vpop.f32.mrb[0].mxu0
  %5380 = vdwg.mxu0
  %v5381 = vmax.f32 %v5376, 0.0
  %v5382 = vpack.c.bf16 %v5381, %v5381
  %v5383 = vld [vmem:[%s59] sm:$0xf]
  %v5384 = vld [vmem:[%s59 + $0x4] sm:$0xf]
  %v5385 = vld [vmem:[#allocation2] sm:$0x1]
  %v5387 = vlaneseq
  %v5388 = vshrl.u32 %v5387, 7
  %v5389 = vsub.s32 0, %v5388
  %v5390 = vrot.slane %v5385, %v5389
  %v5394 = vunpack.c.l.b16 %v5383
  %v5395 = vunpack.c.l.b16 %v5384
  %v5396 = vpack.c.b16 %v5395, %v5394
  %v5399 = vsel %vm236, %v5382, 0
  %5401 = vmatprep.subr.bf16.mxu0 0
  %5402 = vmatpush1.bf16.msra.mxu0 %v5396
  %5403 = vmatprep.subr.bf16.mxu0 0
  %5404 = vmatpush1.bf16.msra.mxu0 0
  %5405 = vmatprep.subr.bf16.mxu0 0
  %5406 = vmatpush1.bf16.msra.mxu0 0
  %5407 = vmatprep.subr.bf16.mxu0 0
  %5408 = vmatpush1.bf16.msra.mxu0 0
  %5409 = vmatprep.subr.bf16.mxu0 0
  %5410 = vmatpush1.bf16.msra.mxu0 0
  %5411 = vmatprep.subr.bf16.mxu0 0
  %5412 = vmatpush1.bf16.msra.mxu0 0
  %5413 = vmatprep.subr.bf16.mxu0 0
  %5414 = vmatpush1.bf16.msra.mxu0 0
  %5415 = vmatprep.subr.bf16.mxu0 0
  %5416 = vmatpush1.bf16.msra.mxu0 0
  %5417 = vmatprep.subr.bf16.mxu0 0
  %5418 = vmatpush1.bf16.msra.mxu0 0
  %5419 = vmatprep.subr.bf16.mxu0 0
  %5420 = vmatpush1.bf16.msra.mxu0 0
  %5421 = vmatprep.subr.bf16.mxu0 0
  %5422 = vmatpush1.bf16.msra.mxu0 0
  %5423 = vmatprep.subr.bf16.mxu0 0
  %5424 = vmatpush1.bf16.msra.mxu0 0
  %5425 = vmatprep.subr.bf16.mxu0 0
  %5426 = vmatpush1.bf16.msra.mxu0 0
  %5427 = vmatprep.subr.bf16.mxu0 0
  %5428 = vmatpush1.bf16.msra.mxu0 0
  %5429 = vmatprep.subr.bf16.mxu0 0
  %5430 = vmatpush1.bf16.msra.mxu0 0
  %5431 = vmatprep.subr.bf16.mxu0 0
  %5432 = vmatpush1.bf16.msra.mxu0 0
  %5433 = vmatprep.mubr.bf16.mxu0 0
  %5434 = vmatmul.mubr.bf16.gmra.mrb[0].mxu0 %v5399
  %v5435 = vpop.f32.mrb[0].mxu0
  %v5436 = vadd.f32 %v5390, %v5435
  %v5437 = vpop.f32.mrb[0].mxu0
  %v5438 = vpop.f32.mrb[0].mxu0
  %v5439 = vpop.f32.mrb[0].mxu0
  %5440 = vdwg.mxu0
  %vm5441 = vcmask 1024
  %5442 = vst.msk [vmem:[%s63] sm:$0x3] %vm5441, %v5436
  // Predicated region
  $region126: #{gnn_trans_forward.1} parent=0 // pred_check
    _
  $region127: #{gnn_trans_forward.1} parent=0 // pred_check_branch
    %5444 = sbr.rel (0) target = $region129
  $region128: #{gnn_trans_forward.1} parent=0 // pred_region
    _
  $region129: #{gnn_trans_forward.1} parent=0 // pred_fallthru
    _
  // Predicated region
  $region130: #{gnn_trans_forward.1} parent=0 // pred_check
    _
  $region131: #{gnn_trans_forward.1} parent=0 // pred_check_branch
    %5446 = sbr.rel (0) target = $region133
  $region132: #{gnn_trans_forward.1} parent=0 // pred_region
    _
  $region133: #{gnn_trans_forward.1} parent=0 // pred_fallthru
    _

</llo_original>
